<compile_context>
chip_gen: v7x
topology: tpu7x:2x2x1
jax: 0.10.0
libtpu: 0.0.40
codegen_flags: <defaults>
</compile_context>

<pallas_src>
import numpy as np
import jax
import jax.numpy as jnp
from jax.experimental import pallas as pl
from jax.experimental.pallas import tpu as pltpu

# ----------------------------- configuration --------------------------------
HIDDEN_RADIX = 23
RADIX_SCALE = float(2 ** HIDDEN_RADIX)
INV_RADIX = 1.0 / RADIX_SCALE
MAX_FORGET = 0.875

H_SIZE = 32          # h_size
HALF = H_SIZE // 2
N_LAYERS = 2         # nlayers
EMB_DIM = H_SIZE     # RevGRU(h_size, h_size) => embedding_dim == h_size
VOCAB = 50           # embedding.num_embeddings
SEQ_LEN = 8
BATCH = 8


# ------------------------------- kernel -------------------------------------
def _revgru_stack_kernel(emb_ref, h0_ref,
                         wzr1_ref, bzr1_ref, wg1_ref, bg1_ref,
                         wzr2_ref, bzr2_ref, wg2_ref, bg2_ref,
                         out_ref):
    """Single invocation: full (time x layer) recurrence, everything in VMEM."""
    # Hoisted per-layer bias loads (reused across all unrolled timesteps).
    bz1 = [bzr1_ref[l:l + 1, :] for l in range(N_LAYERS)]   # (1, H)
    bg1 = [bg1_ref[l:l + 1, :] for l in range(N_LAYERS)]    # (1, HALF)
    bz2 = [bzr2_ref[l:l + 1, :] for l in range(N_LAYERS)]   # (1, H)
    bg2 = [bg2_ref[l:l + 1, :] for l in range(N_LAYERS)]    # (1, HALF)

    # Recurrent state carried as values through the statically unrolled loops;
    # kept as separate halves (the two-half RevGRU update needs them anyway).
    h1s = [h0_ref[l, :, :HALF] for l in range(N_LAYERS)]    # int32 (B, HALF)
    h2s = [h0_ref[l, :, HALF:] for l in range(N_LAYERS)]    # int32 (B, HALF)

    for t in range(SEQ_LEN):
        x = emb_ref[t]  # (B, E) float32 (lockdropi with p=0 is identity)

        for l in range(N_LAYERS):
            h1, h2 = h1s[l], h2s[l]
            h2f = h2.astype(jnp.float32) * INV_RADIX

            # ---- update first half h1 from (x, h2): one fused dot per gate ----
            xh2 = jnp.concatenate([x, h2f], axis=-1)                      # (B, E+HALF)
            zr1 = jnp.dot(xh2, wzr1_ref[l],
                          preferred_element_type=jnp.float32) + bz1[l]
            s1 = jax.nn.sigmoid(zr1)                                      # one EUP pass
            z1 = MAX_FORGET * s1[:, :HALF] + (1.0 - MAX_FORGET)
            r1 = s1[:, HALF:]
            xrh2 = jnp.concatenate([x, r1 * h2f], axis=-1)
            g1 = jnp.tanh(jnp.dot(xrh2, wg1_ref[l],
                                  preferred_element_type=jnp.float32) + bg1[l])
            h1_new = (jnp.floor(z1 * h1.astype(jnp.float32)).astype(jnp.int32)
                      + jnp.floor((1.0 - z1) * g1 * RADIX_SCALE).astype(jnp.int32))
            h1f_new = h1_new.astype(jnp.float32) * INV_RADIX

            # ---- update second half h2 from (x, new h1) ----
            xh1 = jnp.concatenate([x, h1f_new], axis=-1)
            zr2 = jnp.dot(xh1, wzr2_ref[l],
                          preferred_element_type=jnp.float32) + bz2[l]
            s2 = jax.nn.sigmoid(zr2)
            z2 = MAX_FORGET * s2[:, :HALF] + (1.0 - MAX_FORGET)
            r2 = s2[:, HALF:]
            xrh1 = jnp.concatenate([x, r2 * h1f_new], axis=-1)
            g2 = jnp.tanh(jnp.dot(xrh1, wg2_ref[l],
                                  preferred_element_type=jnp.float32) + bg2[l])
            h2_new = (jnp.floor(z2 * h2.astype(jnp.float32)).astype(jnp.int32)
                      + jnp.floor((1.0 - z2) * g2 * RADIX_SCALE).astype(jnp.int32))

            # Single int32 concat feeds both the output slab (one full-width
            # store) and the next layer's float input (one cast).
            h1s[l], h2s[l] = h1_new, h2_new
            h_new = jnp.concatenate([h1_new, h2_new], axis=-1)            # (B, H) int32
            out_ref[t, l] = h_new                                         # recurrent_hidden

            # output_hidden -> input to next layer (lockdroph p=0 is identity)
            x = h_new.astype(jnp.float32) * INV_RADIX


# ------------------------------- wrapper -------------------------------------
def rev_decoder_forward(input_seq, hiddens, params, dec_lengths=None):
    """Mirrors RevDecoder.forward(input_seq, hiddens, main_buf, dec_lengths=None)."""
    # TODO(synk): dec_lengths masking of frozen positions not implemented (None path only).
    S, B = input_seq.shape
    emb = jnp.take(params["embedding"], input_seq, axis=0)        # (S, B, E) f32
    h0 = jnp.stack(hiddens, axis=0).astype(jnp.int32)             # (NL, B, H) int32

    vmem = pl.BlockSpec(memory_space=pltpu.MemorySpace.VMEM)
    hid_seq = pl.pallas_call(
        _revgru_stack_kernel,
        out_shape=jax.ShapeDtypeStruct((S, N_LAYERS, B, H_SIZE), jnp.int32),
        in_specs=[vmem] * 10,
        out_specs=vmem,
    )(emb, h0,
      params["w_zr1"], params["b_zr1"], params["w_g1"], params["b_g1"],
      params["w_zr2"], params["b_zr2"], params["w_g2"], params["b_g2"])

    final_hiddens = [hid_seq[-1, l] for l in range(N_LAYERS)]
    buffers = [(None, None) for _ in range(N_LAYERS)]  # TODO(synk): InformationBuffer
    output_dict = {
        "optimal_bits": 0,  # TODO(synk): requires buffer bit accounting
        "normal_bits": sum(32 * S * B * H_SIZE for _ in range(N_LAYERS)),
        "hid_seq": jnp.concatenate([h0[None], hid_seq], axis=0),  # (S+1, NL, B, H)
        "last_h": final_hiddens,
        "used_bits": float("inf"),
    }
    return final_hiddens, buffers, output_dict


# ------------------------- pure-JAX reference --------------------------------
def _revgru_cell_ref(x, h, wzr1, bzr1, wg1, bg1, wzr2, bzr2, wg2, bg2):
    h1, h2 = h[:, :HALF], h[:, HALF:]
    h2f = h2.astype(jnp.float32) * INV_RADIX
    zr1 = x @ wzr1[:EMB_DIM] + h2f @ wzr1[EMB_DIM:] + bzr1
    z1 = MAX_FORGET * jax.nn.sigmoid(zr1[:, :HALF]) + (1.0 - MAX_FORGET)
    r1 = jax.nn.sigmoid(zr1[:, HALF:])
    g1 = jnp.tanh(x @ wg1[:EMB_DIM] + (r1 * h2f) @ wg1[EMB_DIM:] + bg1)
    h1n = (jnp.floor(z1 * h1.astype(jnp.float32)).astype(jnp.int32)
           + jnp.floor((1.0 - z1) * g1 * RADIX_SCALE).astype(jnp.int32))
    h1fn = h1n.astype(jnp.float32) * INV_RADIX
    zr2 = x @ wzr2[:EMB_DIM] + h1fn @ wzr2[EMB_DIM:] + bzr2
    z2 = MAX_FORGET * jax.nn.sigmoid(zr2[:, :HALF]) + (1.0 - MAX_FORGET)
    r2 = jax.nn.sigmoid(zr2[:, HALF:])
    g2 = jnp.tanh(x @ wg2[:EMB_DIM] + (r2 * h1fn) @ wg2[EMB_DIM:] + bg2)
    h2n = (jnp.floor(z2 * h2.astype(jnp.float32)).astype(jnp.int32)
           + jnp.floor((1.0 - z2) * g2 * RADIX_SCALE).astype(jnp.int32))
    return jnp.concatenate([h1n, h2n], axis=1)


def rev_decoder_forward_ref(input_seq, hiddens, params):
    emb = jnp.take(params["embedding"], input_seq, axis=0)
    hs = list(hiddens)
    steps = []
    for t in range(input_seq.shape[0]):
        x = emb[t]
        layer_hs = []
        for l in range(N_LAYERS):
            h_new = _revgru_cell_ref(
                x, hs[l],
                params["w_zr1"][l], params["b_zr1"][l],
                params["w_g1"][l], params["b_g1"][l],
                params["w_zr2"][l], params["b_zr2"][l],
                params["w_g2"][l], params["b_g2"][l])
            hs[l] = h_new
            layer_hs.append(h_new)
            x = h_new.astype(jnp.float32) * INV_RADIX
        steps.append(jnp.stack(layer_hs, axis=0))
    return jnp.stack(steps, axis=0), hs


# --------------------------- parameter init ----------------------------------
def init_params(key):
    def linear(k, fan_in, fan_out):
        kw, kb = jax.random.split(k)
        bound = 1.0 / np.sqrt(fan_in)
        # stored transposed vs. torch (in, out) so the kernel computes x @ W
        w = jax.random.uniform(kw, (fan_in, fan_out), jnp.float32, -bound, bound)
        b = jax.random.uniform(kb, (fan_out,), jnp.float32, -bound, bound)
        return w, b

    keys = jax.random.split(key, 1 + 4 * N_LAYERS)
    emb = jax.random.normal(keys[0], (VOCAB, EMB_DIM), jnp.float32)  # nn.Embedding default N(0,1)

    w_zr1, b_zr1, w_g1, b_g1, w_zr2, b_zr2, w_g2, b_g2 = ([] for _ in range(8))
    for l in range(N_LAYERS):
        k0, k1, k2, k3 = jax.random.split(keys[1 + l], 4)
        w, b = linear(k0, EMB_DIM + HALF, H_SIZE); w_zr1.append(w); b_zr1.append(b)
        w, b = linear(k1, EMB_DIM + HALF, HALF);   w_g1.append(w);  b_g1.append(b)
        w, b = linear(k2, EMB_DIM + HALF, H_SIZE); w_zr2.append(w); b_zr2.append(b)
        w, b = linear(k3, EMB_DIM + HALF, HALF);   w_g2.append(w);  b_g2.append(b)

    return {
        "embedding": emb,
        "w_zr1": jnp.stack(w_zr1), "b_zr1": jnp.stack(b_zr1),
        "w_g1": jnp.stack(w_g1),   "b_g1": jnp.stack(b_g1),
        "w_zr2": jnp.stack(w_zr2), "b_zr2": jnp.stack(b_zr2),
        "w_g2": jnp.stack(w_g2),   "b_g2": jnp.stack(b_g2),
    }
    # NOTE: generator (Linear h->vocab) and MultiSizeAttention belong to
    # reverse()/loss computation, not forward(); not needed here.


# --------------------------------- main ---------------------------------------
if __name__ == "__main__":
    key = jax.random.PRNGKey(0)
    k_param, k_seq = jax.random.split(key)
    params = init_params(k_param)

    input_seq = jax.random.randint(k_seq, (SEQ_LEN, BATCH), 0, VOCAB, dtype=jnp.int32)
    # RevDecoder.init_hiddens: zero int hidden states
    hiddens0 = [jnp.zeros((BATCH, H_SIZE), jnp.int32) for _ in range(N_LAYERS)]

    final_hiddens, buffers, out_dict = rev_decoder_forward(input_seq, hiddens0, params)
    jax.block_until_ready(final_hiddens)

    # sanity check against a pure-JAX reference (compare in float domain)
    ref_seq, _ = rev_decoder_forward_ref(input_seq, hiddens0, params)
    got = np.asarray(out_dict["hid_seq"][1:], dtype=np.float64) / RADIX_SCALE
    want = np.asarray(ref_seq, dtype=np.float64) / RADIX_SCALE
    assert got.shape == want.shape == (SEQ_LEN, N_LAYERS, BATCH, H_SIZE)
    assert np.allclose(got, want, atol=5e-2), float(np.max(np.abs(got - want)))
    assert final_hiddens[0].dtype == jnp.int32

    print("KERNEL_OK")
</pallas_src>

<mosaic_0001>
module attributes {stable_mosaic.version = 11 : i64} {
  func.func @_revgru_stack_kernel(%arg0: memref<8x8x32xf32, #tpu.memory_space<vmem>>, %arg1: memref<2x8x32xi32, #tpu.memory_space<vmem>>, %arg2: memref<2x48x32xf32, #tpu.memory_space<vmem>>, %arg3: memref<2x32xf32, #tpu.memory_space<vmem>>, %arg4: memref<2x48x16xf32, #tpu.memory_space<vmem>>, %arg5: memref<2x16xf32, #tpu.memory_space<vmem>>, %arg6: memref<2x48x32xf32, #tpu.memory_space<vmem>>, %arg7: memref<2x32xf32, #tpu.memory_space<vmem>>, %arg8: memref<2x48x16xf32, #tpu.memory_space<vmem>>, %arg9: memref<2x16xf32, #tpu.memory_space<vmem>>, %arg10: memref<8x2x8x32xi32, #tpu.memory_space<vmem>>) attributes {dimension_semantics = [], scalar_prefetch = 0 : i64, scratch_operands = 0 : i64, tpu.core_type = #tpu.core_type<tc>} {
    %c0 = arith.constant 0 : index
    %c0_0 = arith.constant 0 : index
    %0 = vector.load %arg3[%c0, %c0_0] : memref<2x32xf32, #tpu.memory_space<vmem>>, vector<1x32xf32>
    %c1 = arith.constant 1 : index
    %c0_1 = arith.constant 0 : index
    %1 = vector.load %arg3[%c1, %c0_1] : memref<2x32xf32, #tpu.memory_space<vmem>>, vector<1x32xf32>
    %c0_2 = arith.constant 0 : index
    %c0_3 = arith.constant 0 : index
    %2 = vector.load %arg5[%c0_2, %c0_3] : memref<2x16xf32, #tpu.memory_space<vmem>>, vector<1x16xf32>
    %c1_4 = arith.constant 1 : index
    %c0_5 = arith.constant 0 : index
    %3 = vector.load %arg5[%c1_4, %c0_5] : memref<2x16xf32, #tpu.memory_space<vmem>>, vector<1x16xf32>
    %c0_6 = arith.constant 0 : index
    %c0_7 = arith.constant 0 : index
    %4 = vector.load %arg7[%c0_6, %c0_7] : memref<2x32xf32, #tpu.memory_space<vmem>>, vector<1x32xf32>
    %c1_8 = arith.constant 1 : index
    %c0_9 = arith.constant 0 : index
    %5 = vector.load %arg7[%c1_8, %c0_9] : memref<2x32xf32, #tpu.memory_space<vmem>>, vector<1x32xf32>
    %c0_10 = arith.constant 0 : index
    %c0_11 = arith.constant 0 : index
    %6 = vector.load %arg9[%c0_10, %c0_11] : memref<2x16xf32, #tpu.memory_space<vmem>>, vector<1x16xf32>
    %c1_12 = arith.constant 1 : index
    %c0_13 = arith.constant 0 : index
    %7 = vector.load %arg9[%c1_12, %c0_13] : memref<2x16xf32, #tpu.memory_space<vmem>>, vector<1x16xf32>
    %c0_14 = arith.constant 0 : index
    %c0_15 = arith.constant 0 : index
    %c0_16 = arith.constant 0 : index
    %8 = vector.load %arg1[%c0_14, %c0_15, %c0_16] : memref<2x8x32xi32, #tpu.memory_space<vmem>>, vector<1x8x16xi32>
    %9 = vector.shape_cast %8 : vector<1x8x16xi32> to vector<8x16xi32>
    %c1_17 = arith.constant 1 : index
    %c0_18 = arith.constant 0 : index
    %c0_19 = arith.constant 0 : index
    %10 = vector.load %arg1[%c1_17, %c0_18, %c0_19] : memref<2x8x32xi32, #tpu.memory_space<vmem>>, vector<1x8x16xi32>
    %11 = vector.shape_cast %10 : vector<1x8x16xi32> to vector<8x16xi32>
    %c0_20 = arith.constant 0 : index
    %c0_21 = arith.constant 0 : index
    %c16 = arith.constant 16 : index
    %12 = vector.load %arg1[%c0_20, %c0_21, %c16] : memref<2x8x32xi32, #tpu.memory_space<vmem>>, vector<1x8x16xi32>
    %13 = vector.shape_cast %12 : vector<1x8x16xi32> to vector<8x16xi32>
    %c1_22 = arith.constant 1 : index
    %c0_23 = arith.constant 0 : index
    %c16_24 = arith.constant 16 : index
    %14 = vector.load %arg1[%c1_22, %c0_23, %c16_24] : memref<2x8x32xi32, #tpu.memory_space<vmem>>, vector<1x8x16xi32>
    %15 = vector.shape_cast %14 : vector<1x8x16xi32> to vector<8x16xi32>
    %c0_25 = arith.constant 0 : index
    %c0_26 = arith.constant 0 : index
    %c0_27 = arith.constant 0 : index
    %16 = vector.load %arg0[%c0_25, %c0_26, %c0_27] : memref<8x8x32xf32, #tpu.memory_space<vmem>>, vector<1x8x32xf32>
    %17 = vector.shape_cast %16 : vector<1x8x32xf32> to vector<8x32xf32>
    %18 = arith.sitofp %13 : vector<8x16xi32> to vector<8x16xf32>
    %cst = arith.constant 1.1920929E-7 : f32
    %19 = vector.broadcast %cst : f32 to vector<8x16xf32>
    %20 = arith.mulf %18, %19 : vector<8x16xf32>
    %21 = tpu.concatenate %17, %20 in 1 : vector<8x32xf32>, vector<8x16xf32> -> vector<8x48xf32>
    %c0_28 = arith.constant 0 : index
    %c0_29 = arith.constant 0 : index
    %c0_30 = arith.constant 0 : index
    %22 = vector.load %arg2[%c0_28, %c0_29, %c0_30] : memref<2x48x32xf32, #tpu.memory_space<vmem>>, vector<1x48x32xf32>
    %23 = vector.shape_cast %22 : vector<1x48x32xf32> to vector<48x32xf32>
    %cst_31 = arith.constant dense<0.000000e+00> : vector<8x32xf32>
    %24 = tpu.matmul %21, %23, %cst_31 {dimension_numbers = #tpu.dot_dimension_numbers<[1], [0], [0], [1], [0, 0, 1, 1], [], []>} : vector<8x48xf32>, vector<48x32xf32>, vector<8x32xf32> -> vector<8x32xf32>
    %25 = vector.broadcast %0 : vector<1x32xf32> to vector<8x32xf32>
    %26 = arith.addf %24, %25 : vector<8x32xf32>
    %27 = arith.negf %26 : vector<8x32xf32>
    %28 = math.exp %27 : vector<8x32xf32>
    %cst_32 = arith.constant 1.000000e+00 : f32
    %29 = vector.broadcast %cst_32 : f32 to vector<8x32xf32>
    %30 = arith.addf %29, %28 : vector<8x32xf32>
    %31 = arith.divf %29, %30 : vector<8x32xf32>
    %32 = vector.extract_strided_slice %31 {offsets = [0, 0], sizes = [8, 16], strides = [1, 1]} : vector<8x32xf32> to vector<8x16xf32>
    %cst_33 = arith.constant 8.750000e-01 : f32
    %33 = vector.broadcast %cst_33 : f32 to vector<8x16xf32>
    %34 = arith.mulf %33, %32 : vector<8x16xf32>
    %cst_34 = arith.constant 1.250000e-01 : f32
    %35 = vector.broadcast %cst_34 : f32 to vector<8x16xf32>
    %36 = arith.addf %34, %35 : vector<8x16xf32>
    %37 = vector.extract_strided_slice %31 {offsets = [0, 16], sizes = [8, 16], strides = [1, 1]} : vector<8x32xf32> to vector<8x16xf32>
    %38 = arith.mulf %37, %20 : vector<8x16xf32>
    %39 = tpu.concatenate %17, %38 in 1 : vector<8x32xf32>, vector<8x16xf32> -> vector<8x48xf32>
    %c0_35 = arith.constant 0 : index
    %c0_36 = arith.constant 0 : index
    %c0_37 = arith.constant 0 : index
    %40 = vector.load %arg4[%c0_35, %c0_36, %c0_37] : memref<2x48x16xf32, #tpu.memory_space<vmem>>, vector<1x48x16xf32>
    %41 = vector.shape_cast %40 : vector<1x48x16xf32> to vector<48x16xf32>
    %cst_38 = arith.constant dense<0.000000e+00> : vector<8x16xf32>
    %42 = tpu.matmul %39, %41, %cst_38 {dimension_numbers = #tpu.dot_dimension_numbers<[1], [0], [0], [1], [0, 0, 1, 1], [], []>} : vector<8x48xf32>, vector<48x16xf32>, vector<8x16xf32> -> vector<8x16xf32>
    %43 = vector.broadcast %2 : vector<1x16xf32> to vector<8x16xf32>
    %44 = arith.addf %42, %43 : vector<8x16xf32>
    %45 = math.tanh %44 : vector<8x16xf32>
    %46 = arith.sitofp %9 : vector<8x16xi32> to vector<8x16xf32>
    %47 = arith.mulf %36, %46 : vector<8x16xf32>
    %48 = math.floor %47 : vector<8x16xf32>
    %49 = arith.fptosi %48 : vector<8x16xf32> to vector<8x16xi32>
    %cst_39 = arith.constant 1.000000e+00 : f32
    %50 = vector.broadcast %cst_39 : f32 to vector<8x16xf32>
    %51 = arith.subf %50, %36 : vector<8x16xf32>
    %52 = arith.mulf %51, %45 : vector<8x16xf32>
    %cst_40 = arith.constant 0x4B000000 : f32
    %53 = vector.broadcast %cst_40 : f32 to vector<8x16xf32>
    %54 = arith.mulf %52, %53 : vector<8x16xf32>
    %55 = math.floor %54 : vector<8x16xf32>
    %56 = arith.fptosi %55 : vector<8x16xf32> to vector<8x16xi32>
    %57 = arith.addi %49, %56 : vector<8x16xi32>
    %58 = arith.sitofp %57 : vector<8x16xi32> to vector<8x16xf32>
    %cst_41 = arith.constant 1.1920929E-7 : f32
    %59 = vector.broadcast %cst_41 : f32 to vector<8x16xf32>
    %60 = arith.mulf %58, %59 : vector<8x16xf32>
    %61 = tpu.concatenate %17, %60 in 1 : vector<8x32xf32>, vector<8x16xf32> -> vector<8x48xf32>
    %c0_42 = arith.constant 0 : index
    %c0_43 = arith.constant 0 : index
    %c0_44 = arith.constant 0 : index
    %62 = vector.load %arg6[%c0_42, %c0_43, %c0_44] : memref<2x48x32xf32, #tpu.memory_space<vmem>>, vector<1x48x32xf32>
    %63 = vector.shape_cast %62 : vector<1x48x32xf32> to vector<48x32xf32>
    %cst_45 = arith.constant dense<0.000000e+00> : vector<8x32xf32>
    %64 = tpu.matmul %61, %63, %cst_45 {dimension_numbers = #tpu.dot_dimension_numbers<[1], [0], [0], [1], [0, 0, 1, 1], [], []>} : vector<8x48xf32>, vector<48x32xf32>, vector<8x32xf32> -> vector<8x32xf32>
    %65 = vector.broadcast %4 : vector<1x32xf32> to vector<8x32xf32>
    %66 = arith.addf %64, %65 : vector<8x32xf32>
    %67 = arith.negf %66 : vector<8x32xf32>
    %68 = math.exp %67 : vector<8x32xf32>
    %cst_46 = arith.constant 1.000000e+00 : f32
    %69 = vector.broadcast %cst_46 : f32 to vector<8x32xf32>
    %70 = arith.addf %69, %68 : vector<8x32xf32>
    %71 = arith.divf %69, %70 : vector<8x32xf32>
    %72 = vector.extract_strided_slice %71 {offsets = [0, 0], sizes = [8, 16], strides = [1, 1]} : vector<8x32xf32> to vector<8x16xf32>
    %cst_47 = arith.constant 8.750000e-01 : f32
    %73 = vector.broadcast %cst_47 : f32 to vector<8x16xf32>
    %74 = arith.mulf %73, %72 : vector<8x16xf32>
    %cst_48 = arith.constant 1.250000e-01 : f32
    %75 = vector.broadcast %cst_48 : f32 to vector<8x16xf32>
    %76 = arith.addf %74, %75 : vector<8x16xf32>
    %77 = vector.extract_strided_slice %71 {offsets = [0, 16], sizes = [8, 16], strides = [1, 1]} : vector<8x32xf32> to vector<8x16xf32>
    %78 = arith.mulf %77, %60 : vector<8x16xf32>
    %79 = tpu.concatenate %17, %78 in 1 : vector<8x32xf32>, vector<8x16xf32> -> vector<8x48xf32>
    %c0_49 = arith.constant 0 : index
    %c0_50 = arith.constant 0 : index
    %c0_51 = arith.constant 0 : index
    %80 = vector.load %arg8[%c0_49, %c0_50, %c0_51] : memref<2x48x16xf32, #tpu.memory_space<vmem>>, vector<1x48x16xf32>
    %81 = vector.shape_cast %80 : vector<1x48x16xf32> to vector<48x16xf32>
    %cst_52 = arith.constant dense<0.000000e+00> : vector<8x16xf32>
    %82 = tpu.matmul %79, %81, %cst_52 {dimension_numbers = #tpu.dot_dimension_numbers<[1], [0], [0], [1], [0, 0, 1, 1], [], []>} : vector<8x48xf32>, vector<48x16xf32>, vector<8x16xf32> -> vector<8x16xf32>
    %83 = vector.broadcast %6 : vector<1x16xf32> to vector<8x16xf32>
    %84 = arith.addf %82, %83 : vector<8x16xf32>
    %85 = math.tanh %84 : vector<8x16xf32>
    %86 = arith.sitofp %13 : vector<8x16xi32> to vector<8x16xf32>
    %87 = arith.mulf %76, %86 : vector<8x16xf32>
    %88 = math.floor %87 : vector<8x16xf32>
    %89 = arith.fptosi %88 : vector<8x16xf32> to vector<8x16xi32>
    %cst_53 = arith.constant 1.000000e+00 : f32
    %90 = vector.broadcast %cst_53 : f32 to vector<8x16xf32>
    %91 = arith.subf %90, %76 : vector<8x16xf32>
    %92 = arith.mulf %91, %85 : vector<8x16xf32>
    %cst_54 = arith.constant 0x4B000000 : f32
    %93 = vector.broadcast %cst_54 : f32 to vector<8x16xf32>
    %94 = arith.mulf %92, %93 : vector<8x16xf32>
    %95 = math.floor %94 : vector<8x16xf32>
    %96 = arith.fptosi %95 : vector<8x16xf32> to vector<8x16xi32>
    %97 = arith.addi %89, %96 : vector<8x16xi32>
    %98 = tpu.concatenate %57, %97 in 1 : vector<8x16xi32>, vector<8x16xi32> -> vector<8x32xi32>
    %c0_55 = arith.constant 0 : index
    %c0_56 = arith.constant 0 : index
    %c0_57 = arith.constant 0 : index
    %c0_58 = arith.constant 0 : index
    %99 = vector.load %arg10[%c0_55, %c0_56, %c0_57, %c0_58] : memref<8x2x8x32xi32, #tpu.memory_space<vmem>>, vector<1x1x8x32xi32>
    %100 = vector.shape_cast %99 : vector<1x1x8x32xi32> to vector<8x32xi32>
    %101 = vector.shape_cast %98 : vector<8x32xi32> to vector<1x1x8x32xi32>
    tpu.vector_store %arg10[%c0_55, %c0_56, %c0_57, %c0_58], %101 {strides = array<i32>} : memref<8x2x8x32xi32, #tpu.memory_space<vmem>>, vector<1x1x8x32xi32>,
    %102 = arith.sitofp %98 : vector<8x32xi32> to vector<8x32xf32>
    %cst_59 = arith.constant 1.1920929E-7 : f32
    %103 = vector.broadcast %cst_59 : f32 to vector<8x32xf32>
    %104 = arith.mulf %102, %103 : vector<8x32xf32>
    %105 = arith.sitofp %15 : vector<8x16xi32> to vector<8x16xf32>
    %cst_60 = arith.constant 1.1920929E-7 : f32
    %106 = vector.broadcast %cst_60 : f32 to vector<8x16xf32>
    %107 = arith.mulf %105, %106 : vector<8x16xf32>
    %108 = tpu.concatenate %104, %107 in 1 : vector<8x32xf32>, vector<8x16xf32> -> vector<8x48xf32>
    %c1_61 = arith.constant 1 : index
    %c0_62 = arith.constant 0 : index
    %c0_63 = arith.constant 0 : index
    %109 = vector.load %arg2[%c1_61, %c0_62, %c0_63] : memref<2x48x32xf32, #tpu.memory_space<vmem>>, vector<1x48x32xf32>
    %110 = vector.shape_cast %109 : vector<1x48x32xf32> to vector<48x32xf32>
    %cst_64 = arith.constant dense<0.000000e+00> : vector<8x32xf32>
    %111 = tpu.matmul %108, %110, %cst_64 {dimension_numbers = #tpu.dot_dimension_numbers<[1], [0], [0], [1], [0, 0, 1, 1], [], []>} : vector<8x48xf32>, vector<48x32xf32>, vector<8x32xf32> -> vector<8x32xf32>
    %112 = vector.broadcast %1 : vector<1x32xf32> to vector<8x32xf32>
    %113 = arith.addf %111, %112 : vector<8x32xf32>
    %114 = arith.negf %113 : vector<8x32xf32>
    %115 = math.exp %114 : vector<8x32xf32>
    %cst_65 = arith.constant 1.000000e+00 : f32
    %116 = vector.broadcast %cst_65 : f32 to vector<8x32xf32>
    %117 = arith.addf %116, %115 : vector<8x32xf32>
    %118 = arith.divf %116, %117 : vector<8x32xf32>
    %119 = vector.extract_strided_slice %118 {offsets = [0, 0], sizes = [8, 16], strides = [1, 1]} : vector<8x32xf32> to vector<8x16xf32>
    %cst_66 = arith.constant 8.750000e-01 : f32
    %120 = vector.broadcast %cst_66 : f32 to vector<8x16xf32>
    %121 = arith.mulf %120, %119 : vector<8x16xf32>
    %cst_67 = arith.constant 1.250000e-01 : f32
    %122 = vector.broadcast %cst_67 : f32 to vector<8x16xf32>
    %123 = arith.addf %121, %122 : vector<8x16xf32>
    %124 = vector.extract_strided_slice %118 {offsets = [0, 16], sizes = [8, 16], strides = [1, 1]} : vector<8x32xf32> to vector<8x16xf32>
    %125 = arith.mulf %124, %107 : vector<8x16xf32>
    %126 = tpu.concatenate %104, %125 in 1 : vector<8x32xf32>, vector<8x16xf32> -> vector<8x48xf32>
    %c1_68 = arith.constant 1 : index
    %c0_69 = arith.constant 0 : index
    %c0_70 = arith.constant 0 : index
    %127 = vector.load %arg4[%c1_68, %c0_69, %c0_70] : memref<2x48x16xf32, #tpu.memory_space<vmem>>, vector<1x48x16xf32>
    %128 = vector.shape_cast %127 : vector<1x48x16xf32> to vector<48x16xf32>
    %cst_71 = arith.constant dense<0.000000e+00> : vector<8x16xf32>
    %129 = tpu.matmul %126, %128, %cst_71 {dimension_numbers = #tpu.dot_dimension_numbers<[1], [0], [0], [1], [0, 0, 1, 1], [], []>} : vector<8x48xf32>, vector<48x16xf32>, vector<8x16xf32> -> vector<8x16xf32>
    %130 = vector.broadcast %3 : vector<1x16xf32> to vector<8x16xf32>
    %131 = arith.addf %129, %130 : vector<8x16xf32>
    %132 = math.tanh %131 : vector<8x16xf32>
    %133 = arith.sitofp %11 : vector<8x16xi32> to vector<8x16xf32>
    %134 = arith.mulf %123, %133 : vector<8x16xf32>
    %135 = math.floor %134 : vector<8x16xf32>
    %136 = arith.fptosi %135 : vector<8x16xf32> to vector<8x16xi32>
    %cst_72 = arith.constant 1.000000e+00 : f32
    %137 = vector.broadcast %cst_72 : f32 to vector<8x16xf32>
    %138 = arith.subf %137, %123 : vector<8x16xf32>
    %139 = arith.mulf %138, %132 : vector<8x16xf32>
    %cst_73 = arith.constant 0x4B000000 : f32
    %140 = vector.broadcast %cst_73 : f32 to vector<8x16xf32>
    %141 = arith.mulf %139, %140 : vector<8x16xf32>
    %142 = math.floor %141 : vector<8x16xf32>
    %143 = arith.fptosi %142 : vector<8x16xf32> to vector<8x16xi32>
    %144 = arith.addi %136, %143 : vector<8x16xi32>
    %145 = arith.sitofp %144 : vector<8x16xi32> to vector<8x16xf32>
    %cst_74 = arith.constant 1.1920929E-7 : f32
    %146 = vector.broadcast %cst_74 : f32 to vector<8x16xf32>
    %147 = arith.mulf %145, %146 : vector<8x16xf32>
    %148 = tpu.concatenate %104, %147 in 1 : vector<8x32xf32>, vector<8x16xf32> -> vector<8x48xf32>
    %c1_75 = arith.constant 1 : index
    %c0_76 = arith.constant 0 : index
    %c0_77 = arith.constant 0 : index
    %149 = vector.load %arg6[%c1_75, %c0_76, %c0_77] : memref<2x48x32xf32, #tpu.memory_space<vmem>>, vector<1x48x32xf32>
    %150 = vector.shape_cast %149 : vector<1x48x32xf32> to vector<48x32xf32>
    %cst_78 = arith.constant dense<0.000000e+00> : vector<8x32xf32>
    %151 = tpu.matmul %148, %150, %cst_78 {dimension_numbers = #tpu.dot_dimension_numbers<[1], [0], [0], [1], [0, 0, 1, 1], [], []>} : vector<8x48xf32>, vector<48x32xf32>, vector<8x32xf32> -> vector<8x32xf32>
    %152 = vector.broadcast %5 : vector<1x32xf32> to vector<8x32xf32>
    %153 = arith.addf %151, %152 : vector<8x32xf32>
    %154 = arith.negf %153 : vector<8x32xf32>
    %155 = math.exp %154 : vector<8x32xf32>
    %cst_79 = arith.constant 1.000000e+00 : f32
    %156 = vector.broadcast %cst_79 : f32 to vector<8x32xf32>
    %157 = arith.addf %156, %155 : vector<8x32xf32>
    %158 = arith.divf %156, %157 : vector<8x32xf32>
    %159 = vector.extract_strided_slice %158 {offsets = [0, 0], sizes = [8, 16], strides = [1, 1]} : vector<8x32xf32> to vector<8x16xf32>
    %cst_80 = arith.constant 8.750000e-01 : f32
    %160 = vector.broadcast %cst_80 : f32 to vector<8x16xf32>
    %161 = arith.mulf %160, %159 : vector<8x16xf32>
    %cst_81 = arith.constant 1.250000e-01 : f32
    %162 = vector.broadcast %cst_81 : f32 to vector<8x16xf32>
    %163 = arith.addf %161, %162 : vector<8x16xf32>
    %164 = vector.extract_strided_slice %158 {offsets = [0, 16], sizes = [8, 16], strides = [1, 1]} : vector<8x32xf32> to vector<8x16xf32>
    %165 = arith.mulf %164, %147 : vector<8x16xf32>
    %166 = tpu.concatenate %104, %165 in 1 : vector<8x32xf32>, vector<8x16xf32> -> vector<8x48xf32>
    %c1_82 = arith.constant 1 : index
    %c0_83 = arith.constant 0 : index
    %c0_84 = arith.constant 0 : index
    %167 = vector.load %arg8[%c1_82, %c0_83, %c0_84] : memref<2x48x16xf32, #tpu.memory_space<vmem>>, vector<1x48x16xf32>
    %168 = vector.shape_cast %167 : vector<1x48x16xf32> to vector<48x16xf32>
    %cst_85 = arith.constant dense<0.000000e+00> : vector<8x16xf32>
    %169 = tpu.matmul %166, %168, %cst_85 {dimension_numbers = #tpu.dot_dimension_numbers<[1], [0], [0], [1], [0, 0, 1, 1], [], []>} : vector<8x48xf32>, vector<48x16xf32>, vector<8x16xf32> -> vector<8x16xf32>
    %170 = vector.broadcast %7 : vector<1x16xf32> to vector<8x16xf32>
    %171 = arith.addf %169, %170 : vector<8x16xf32>
    %172 = math.tanh %171 : vector<8x16xf32>
    %173 = arith.sitofp %15 : vector<8x16xi32> to vector<8x16xf32>
    %174 = arith.mulf %163, %173 : vector<8x16xf32>
    %175 = math.floor %174 : vector<8x16xf32>
    %176 = arith.fptosi %175 : vector<8x16xf32> to vector<8x16xi32>
    %cst_86 = arith.constant 1.000000e+00 : f32
    %177 = vector.broadcast %cst_86 : f32 to vector<8x16xf32>
    %178 = arith.subf %177, %163 : vector<8x16xf32>
    %179 = arith.mulf %178, %172 : vector<8x16xf32>
    %cst_87 = arith.constant 0x4B000000 : f32
    %180 = vector.broadcast %cst_87 : f32 to vector<8x16xf32>
    %181 = arith.mulf %179, %180 : vector<8x16xf32>
    %182 = math.floor %181 : vector<8x16xf32>
    %183 = arith.fptosi %182 : vector<8x16xf32> to vector<8x16xi32>
    %184 = arith.addi %176, %183 : vector<8x16xi32>
    %185 = tpu.concatenate %144, %184 in 1 : vector<8x16xi32>, vector<8x16xi32> -> vector<8x32xi32>
    %c0_88 = arith.constant 0 : index
    %c1_89 = arith.constant 1 : index
    %c0_90 = arith.constant 0 : index
    %c0_91 = arith.constant 0 : index
    %186 = vector.load %arg10[%c0_88, %c1_89, %c0_90, %c0_91] : memref<8x2x8x32xi32, #tpu.memory_space<vmem>>, vector<1x1x8x32xi32>
    %187 = vector.shape_cast %186 : vector<1x1x8x32xi32> to vector<8x32xi32>
    %188 = vector.shape_cast %185 : vector<8x32xi32> to vector<1x1x8x32xi32>
    tpu.vector_store %arg10[%c0_88, %c1_89, %c0_90, %c0_91], %188 {strides = array<i32>} : memref<8x2x8x32xi32, #tpu.memory_space<vmem>>, vector<1x1x8x32xi32>,
    %c1_92 = arith.constant 1 : index
    %c0_93 = arith.constant 0 : index
    %c0_94 = arith.constant 0 : index
    %189 = vector.load %arg0[%c1_92, %c0_93, %c0_94] : memref<8x8x32xf32, #tpu.memory_space<vmem>>, vector<1x8x32xf32>
    %190 = vector.shape_cast %189 : vector<1x8x32xf32> to vector<8x32xf32>
    %191 = arith.sitofp %97 : vector<8x16xi32> to vector<8x16xf32>
    %cst_95 = arith.constant 1.1920929E-7 : f32
    %192 = vector.broadcast %cst_95 : f32 to vector<8x16xf32>
    %193 = arith.mulf %191, %192 : vector<8x16xf32>
    %194 = tpu.concatenate %190, %193 in 1 : vector<8x32xf32>, vector<8x16xf32> -> vector<8x48xf32>
    %c0_96 = arith.constant 0 : index
    %c0_97 = arith.constant 0 : index
    %c0_98 = arith.constant 0 : index
    %195 = vector.load %arg2[%c0_96, %c0_97, %c0_98] : memref<2x48x32xf32, #tpu.memory_space<vmem>>, vector<1x48x32xf32>
    %196 = vector.shape_cast %195 : vector<1x48x32xf32> to vector<48x32xf32>
    %cst_99 = arith.constant dense<0.000000e+00> : vector<8x32xf32>
    %197 = tpu.matmul %194, %196, %cst_99 {dimension_numbers = #tpu.dot_dimension_numbers<[1], [0], [0], [1], [0, 0, 1, 1], [], []>} : vector<8x48xf32>, vector<48x32xf32>, vector<8x32xf32> -> vector<8x32xf32>
    %198 = vector.broadcast %0 : vector<1x32xf32> to vector<8x32xf32>
    %199 = arith.addf %197, %198 : vector<8x32xf32>
    %200 = arith.negf %199 : vector<8x32xf32>
    %201 = math.exp %200 : vector<8x32xf32>
    %cst_100 = arith.constant 1.000000e+00 : f32
    %202 = vector.broadcast %cst_100 : f32 to vector<8x32xf32>
    %203 = arith.addf %202, %201 : vector<8x32xf32>
    %204 = arith.divf %202, %203 : vector<8x32xf32>
    %205 = vector.extract_strided_slice %204 {offsets = [0, 0], sizes = [8, 16], strides = [1, 1]} : vector<8x32xf32> to vector<8x16xf32>
    %cst_101 = arith.constant 8.750000e-01 : f32
    %206 = vector.broadcast %cst_101 : f32 to vector<8x16xf32>
    %207 = arith.mulf %206, %205 : vector<8x16xf32>
    %cst_102 = arith.constant 1.250000e-01 : f32
    %208 = vector.broadcast %cst_102 : f32 to vector<8x16xf32>
    %209 = arith.addf %207, %208 : vector<8x16xf32>
    %210 = vector.extract_strided_slice %204 {offsets = [0, 16], sizes = [8, 16], strides = [1, 1]} : vector<8x32xf32> to vector<8x16xf32>
    %211 = arith.mulf %210, %193 : vector<8x16xf32>
    %212 = tpu.concatenate %190, %211 in 1 : vector<8x32xf32>, vector<8x16xf32> -> vector<8x48xf32>
    %c0_103 = arith.constant 0 : index
    %c0_104 = arith.constant 0 : index
    %c0_105 = arith.constant 0 : index
    %213 = vector.load %arg4[%c0_103, %c0_104, %c0_105] : memref<2x48x16xf32, #tpu.memory_space<vmem>>, vector<1x48x16xf32>
    %214 = vector.shape_cast %213 : vector<1x48x16xf32> to vector<48x16xf32>
    %cst_106 = arith.constant dense<0.000000e+00> : vector<8x16xf32>
    %215 = tpu.matmul %212, %214, %cst_106 {dimension_numbers = #tpu.dot_dimension_numbers<[1], [0], [0], [1], [0, 0, 1, 1], [], []>} : vector<8x48xf32>, vector<48x16xf32>, vector<8x16xf32> -> vector<8x16xf32>
    %216 = vector.broadcast %2 : vector<1x16xf32> to vector<8x16xf32>
    %217 = arith.addf %215, %216 : vector<8x16xf32>
    %218 = math.tanh %217 : vector<8x16xf32>
    %219 = arith.sitofp %57 : vector<8x16xi32> to vector<8x16xf32>
    %220 = arith.mulf %209, %219 : vector<8x16xf32>
    %221 = math.floor %220 : vector<8x16xf32>
    %222 = arith.fptosi %221 : vector<8x16xf32> to vector<8x16xi32>
    %cst_107 = arith.constant 1.000000e+00 : f32
    %223 = vector.broadcast %cst_107 : f32 to vector<8x16xf32>
    %224 = arith.subf %223, %209 : vector<8x16xf32>
    %225 = arith.mulf %224, %218 : vector<8x16xf32>
    %cst_108 = arith.constant 0x4B000000 : f32
    %226 = vector.broadcast %cst_108 : f32 to vector<8x16xf32>
    %227 = arith.mulf %225, %226 : vector<8x16xf32>
    %228 = math.floor %227 : vector<8x16xf32>
    %229 = arith.fptosi %228 : vector<8x16xf32> to vector<8x16xi32>
    %230 = arith.addi %222, %229 : vector<8x16xi32>
    %231 = arith.sitofp %230 : vector<8x16xi32> to vector<8x16xf32>
    %cst_109 = arith.constant 1.1920929E-7 : f32
    %232 = vector.broadcast %cst_109 : f32 to vector<8x16xf32>
    %233 = arith.mulf %231, %232 : vector<8x16xf32>
    %234 = tpu.concatenate %190, %233 in 1 : vector<8x32xf32>, vector<8x16xf32> -> vector<8x48xf32>
    %c0_110 = arith.constant 0 : index
    %c0_111 = arith.constant 0 : index
    %c0_112 = arith.constant 0 : index
    %235 = vector.load %arg6[%c0_110, %c0_111, %c0_112] : memref<2x48x32xf32, #tpu.memory_space<vmem>>, vector<1x48x32xf32>
    %236 = vector.shape_cast %235 : vector<1x48x32xf32> to vector<48x32xf32>
    %cst_113 = arith.constant dense<0.000000e+00> : vector<8x32xf32>
    %237 = tpu.matmul %234, %236, %cst_113 {dimension_numbers = #tpu.dot_dimension_numbers<[1], [0], [0], [1], [0, 0, 1, 1], [], []>} : vector<8x48xf32>, vector<48x32xf32>, vector<8x32xf32> -> vector<8x32xf32>
    %238 = vector.broadcast %4 : vector<1x32xf32> to vector<8x32xf32>
    %239 = arith.addf %237, %238 : vector<8x32xf32>
    %240 = arith.negf %239 : vector<8x32xf32>
    %241 = math.exp %240 : vector<8x32xf32>
    %cst_114 = arith.constant 1.000000e+00 : f32
    %242 = vector.broadcast %cst_114 : f32 to vector<8x32xf32>
    %243 = arith.addf %242, %241 : vector<8x32xf32>
    %244 = arith.divf %242, %243 : vector<8x32xf32>
    %245 = vector.extract_strided_slice %244 {offsets = [0, 0], sizes = [8, 16], strides = [1, 1]} : vector<8x32xf32> to vector<8x16xf32>
    %cst_115 = arith.constant 8.750000e-01 : f32
    %246 = vector.broadcast %cst_115 : f32 to vector<8x16xf32>
    %247 = arith.mulf %246, %245 : vector<8x16xf32>
    %cst_116 = arith.constant 1.250000e-01 : f32
    %248 = vector.broadcast %cst_116 : f32 to vector<8x16xf32>
    %249 = arith.addf %247, %248 : vector<8x16xf32>
    %250 = vector.extract_strided_slice %244 {offsets = [0, 16], sizes = [8, 16], strides = [1, 1]} : vector<8x32xf32> to vector<8x16xf32>
    %251 = arith.mulf %250, %233 : vector<8x16xf32>
    %252 = tpu.concatenate %190, %251 in 1 : vector<8x32xf32>, vector<8x16xf32> -> vector<8x48xf32>
    %c0_117 = arith.constant 0 : index
    %c0_118 = arith.constant 0 : index
    %c0_119 = arith.constant 0 : index
    %253 = vector.load %arg8[%c0_117, %c0_118, %c0_119] : memref<2x48x16xf32, #tpu.memory_space<vmem>>, vector<1x48x16xf32>
    %254 = vector.shape_cast %253 : vector<1x48x16xf32> to vector<48x16xf32>
    %cst_120 = arith.constant dense<0.000000e+00> : vector<8x16xf32>
    %255 = tpu.matmul %252, %254, %cst_120 {dimension_numbers = #tpu.dot_dimension_numbers<[1], [0], [0], [1], [0, 0, 1, 1], [], []>} : vector<8x48xf32>, vector<48x16xf32>, vector<8x16xf32> -> vector<8x16xf32>
    %256 = vector.broadcast %6 : vector<1x16xf32> to vector<8x16xf32>
    %257 = arith.addf %255, %256 : vector<8x16xf32>
    %258 = math.tanh %257 : vector<8x16xf32>
    %259 = arith.sitofp %97 : vector<8x16xi32> to vector<8x16xf32>
    %260 = arith.mulf %249, %259 : vector<8x16xf32>
    %261 = math.floor %260 : vector<8x16xf32>
    %262 = arith.fptosi %261 : vector<8x16xf32> to vector<8x16xi32>
    %cst_121 = arith.constant 1.000000e+00 : f32
    %263 = vector.broadcast %cst_121 : f32 to vector<8x16xf32>
    %264 = arith.subf %263, %249 : vector<8x16xf32>
    %265 = arith.mulf %264, %258 : vector<8x16xf32>
    %cst_122 = arith.constant 0x4B000000 : f32
    %266 = vector.broadcast %cst_122 : f32 to vector<8x16xf32>
    %267 = arith.mulf %265, %266 : vector<8x16xf32>
    %268 = math.floor %267 : vector<8x16xf32>
    %269 = arith.fptosi %268 : vector<8x16xf32> to vector<8x16xi32>
    %270 = arith.addi %262, %269 : vector<8x16xi32>
    %271 = tpu.concatenate %230, %270 in 1 : vector<8x16xi32>, vector<8x16xi32> -> vector<8x32xi32>
    %c1_123 = arith.constant 1 : index
    %c0_124 = arith.constant 0 : index
    %c0_125 = arith.constant 0 : index
    %c0_126 = arith.constant 0 : index
    %272 = vector.load %arg10[%c1_123, %c0_124, %c0_125, %c0_126] : memref<8x2x8x32xi32, #tpu.memory_space<vmem>>, vector<1x1x8x32xi32>
    %273 = vector.shape_cast %272 : vector<1x1x8x32xi32> to vector<8x32xi32>
    %274 = vector.shape_cast %271 : vector<8x32xi32> to vector<1x1x8x32xi32>
    tpu.vector_store %arg10[%c1_123, %c0_124, %c0_125, %c0_126], %274 {strides = array<i32>} : memref<8x2x8x32xi32, #tpu.memory_space<vmem>>, vector<1x1x8x32xi32>,
    %275 = arith.sitofp %271 : vector<8x32xi32> to vector<8x32xf32>
    %cst_127 = arith.constant 1.1920929E-7 : f32
    %276 = vector.broadcast %cst_127 : f32 to vector<8x32xf32>
    %277 = arith.mulf %275, %276 : vector<8x32xf32>
    %278 = arith.sitofp %184 : vector<8x16xi32> to vector<8x16xf32>
    %cst_128 = arith.constant 1.1920929E-7 : f32
    %279 = vector.broadcast %cst_128 : f32 to vector<8x16xf32>
    %280 = arith.mulf %278, %279 : vector<8x16xf32>
    %281 = tpu.concatenate %277, %280 in 1 : vector<8x32xf32>, vector<8x16xf32> -> vector<8x48xf32>
    %c1_129 = arith.constant 1 : index
    %c0_130 = arith.constant 0 : index
    %c0_131 = arith.constant 0 : index
    %282 = vector.load %arg2[%c1_129, %c0_130, %c0_131] : memref<2x48x32xf32, #tpu.memory_space<vmem>>, vector<1x48x32xf32>
    %283 = vector.shape_cast %282 : vector<1x48x32xf32> to vector<48x32xf32>
    %cst_132 = arith.constant dense<0.000000e+00> : vector<8x32xf32>
    %284 = tpu.matmul %281, %283, %cst_132 {dimension_numbers = #tpu.dot_dimension_numbers<[1], [0], [0], [1], [0, 0, 1, 1], [], []>} : vector<8x48xf32>, vector<48x32xf32>, vector<8x32xf32> -> vector<8x32xf32>
    %285 = vector.broadcast %1 : vector<1x32xf32> to vector<8x32xf32>
    %286 = arith.addf %284, %285 : vector<8x32xf32>
    %287 = arith.negf %286 : vector<8x32xf32>
    %288 = math.exp %287 : vector<8x32xf32>
    %cst_133 = arith.constant 1.000000e+00 : f32
    %289 = vector.broadcast %cst_133 : f32 to vector<8x32xf32>
    %290 = arith.addf %289, %288 : vector<8x32xf32>
    %291 = arith.divf %289, %290 : vector<8x32xf32>
    %292 = vector.extract_strided_slice %291 {offsets = [0, 0], sizes = [8, 16], strides = [1, 1]} : vector<8x32xf32> to vector<8x16xf32>
    %cst_134 = arith.constant 8.750000e-01 : f32
    %293 = vector.broadcast %cst_134 : f32 to vector<8x16xf32>
    %294 = arith.mulf %293, %292 : vector<8x16xf32>
    %cst_135 = arith.constant 1.250000e-01 : f32
    %295 = vector.broadcast %cst_135 : f32 to vector<8x16xf32>
    %296 = arith.addf %294, %295 : vector<8x16xf32>
    %297 = vector.extract_strided_slice %291 {offsets = [0, 16], sizes = [8, 16], strides = [1, 1]} : vector<8x32xf32> to vector<8x16xf32>
    %298 = arith.mulf %297, %280 : vector<8x16xf32>
    %299 = tpu.concatenate %277, %298 in 1 : vector<8x32xf32>, vector<8x16xf32> -> vector<8x48xf32>
    %c1_136 = arith.constant 1 : index
    %c0_137 = arith.constant 0 : index
    %c0_138 = arith.constant 0 : index
    %300 = vector.load %arg4[%c1_136, %c0_137, %c0_138] : memref<2x48x16xf32, #tpu.memory_space<vmem>>, vector<1x48x16xf32>
    %301 = vector.shape_cast %300 : vector<1x48x16xf32> to vector<48x16xf32>
    %cst_139 = arith.constant dense<0.000000e+00> : vector<8x16xf32>
    %302 = tpu.matmul %299, %301, %cst_139 {dimension_numbers = #tpu.dot_dimension_numbers<[1], [0], [0], [1], [0, 0, 1, 1], [], []>} : vector<8x48xf32>, vector<48x16xf32>, vector<8x16xf32> -> vector<8x16xf32>
    %303 = vector.broadcast %3 : vector<1x16xf32> to vector<8x16xf32>
    %304 = arith.addf %302, %303 : vector<8x16xf32>
    %305 = math.tanh %304 : vector<8x16xf32>
    %306 = arith.sitofp %144 : vector<8x16xi32> to vector<8x16xf32>
    %307 = arith.mulf %296, %306 : vector<8x16xf32>
    %308 = math.floor %307 : vector<8x16xf32>
    %309 = arith.fptosi %308 : vector<8x16xf32> to vector<8x16xi32>
    %cst_140 = arith.constant 1.000000e+00 : f32
    %310 = vector.broadcast %cst_140 : f32 to vector<8x16xf32>
    %311 = arith.subf %310, %296 : vector<8x16xf32>
    %312 = arith.mulf %311, %305 : vector<8x16xf32>
    %cst_141 = arith.constant 0x4B000000 : f32
    %313 = vector.broadcast %cst_141 : f32 to vector<8x16xf32>
    %314 = arith.mulf %312, %313 : vector<8x16xf32>
    %315 = math.floor %314 : vector<8x16xf32>
    %316 = arith.fptosi %315 : vector<8x16xf32> to vector<8x16xi32>
    %317 = arith.addi %309, %316 : vector<8x16xi32>
    %318 = arith.sitofp %317 : vector<8x16xi32> to vector<8x16xf32>
    %cst_142 = arith.constant 1.1920929E-7 : f32
    %319 = vector.broadcast %cst_142 : f32 to vector<8x16xf32>
    %320 = arith.mulf %318, %319 : vector<8x16xf32>
    %321 = tpu.concatenate %277, %320 in 1 : vector<8x32xf32>, vector<8x16xf32> -> vector<8x48xf32>
    %c1_143 = arith.constant 1 : index
    %c0_144 = arith.constant 0 : index
    %c0_145 = arith.constant 0 : index
    %322 = vector.load %arg6[%c1_143, %c0_144, %c0_145] : memref<2x48x32xf32, #tpu.memory_space<vmem>>, vector<1x48x32xf32>
    %323 = vector.shape_cast %322 : vector<1x48x32xf32> to vector<48x32xf32>
    %cst_146 = arith.constant dense<0.000000e+00> : vector<8x32xf32>
    %324 = tpu.matmul %321, %323, %cst_146 {dimension_numbers = #tpu.dot_dimension_numbers<[1], [0], [0], [1], [0, 0, 1, 1], [], []>} : vector<8x48xf32>, vector<48x32xf32>, vector<8x32xf32> -> vector<8x32xf32>
    %325 = vector.broadcast %5 : vector<1x32xf32> to vector<8x32xf32>
    %326 = arith.addf %324, %325 : vector<8x32xf32>
    %327 = arith.negf %326 : vector<8x32xf32>
    %328 = math.exp %327 : vector<8x32xf32>
    %cst_147 = arith.constant 1.000000e+00 : f32
    %329 = vector.broadcast %cst_147 : f32 to vector<8x32xf32>
    %330 = arith.addf %329, %328 : vector<8x32xf32>
    %331 = arith.divf %329, %330 : vector<8x32xf32>
    %332 = vector.extract_strided_slice %331 {offsets = [0, 0], sizes = [8, 16], strides = [1, 1]} : vector<8x32xf32> to vector<8x16xf32>
    %cst_148 = arith.constant 8.750000e-01 : f32
    %333 = vector.broadcast %cst_148 : f32 to vector<8x16xf32>
    %334 = arith.mulf %333, %332 : vector<8x16xf32>
    %cst_149 = arith.constant 1.250000e-01 : f32
    %335 = vector.broadcast %cst_149 : f32 to vector<8x16xf32>
    %336 = arith.addf %334, %335 : vector<8x16xf32>
    %337 = vector.extract_strided_slice %331 {offsets = [0, 16], sizes = [8, 16], strides = [1, 1]} : vector<8x32xf32> to vector<8x16xf32>
    %338 = arith.mulf %337, %320 : vector<8x16xf32>
    %339 = tpu.concatenate %277, %338 in 1 : vector<8x32xf32>, vector<8x16xf32> -> vector<8x48xf32>
    %c1_150 = arith.constant 1 : index
    %c0_151 = arith.constant 0 : index
    %c0_152 = arith.constant 0 : index
    %340 = vector.load %arg8[%c1_150, %c0_151, %c0_152] : memref<2x48x16xf32, #tpu.memory_space<vmem>>, vector<1x48x16xf32>
    %341 = vector.shape_cast %340 : vector<1x48x16xf32> to vector<48x16xf32>
    %cst_153 = arith.constant dense<0.000000e+00> : vector<8x16xf32>
    %342 = tpu.matmul %339, %341, %cst_153 {dimension_numbers = #tpu.dot_dimension_numbers<[1], [0], [0], [1], [0, 0, 1, 1], [], []>} : vector<8x48xf32>, vector<48x16xf32>, vector<8x16xf32> -> vector<8x16xf32>
    %343 = vector.broadcast %7 : vector<1x16xf32> to vector<8x16xf32>
    %344 = arith.addf %342, %343 : vector<8x16xf32>
    %345 = math.tanh %344 : vector<8x16xf32>
    %346 = arith.sitofp %184 : vector<8x16xi32> to vector<8x16xf32>
    %347 = arith.mulf %336, %346 : vector<8x16xf32>
    %348 = math.floor %347 : vector<8x16xf32>
    %349 = arith.fptosi %348 : vector<8x16xf32> to vector<8x16xi32>
    %cst_154 = arith.constant 1.000000e+00 : f32
    %350 = vector.broadcast %cst_154 : f32 to vector<8x16xf32>
    %351 = arith.subf %350, %336 : vector<8x16xf32>
    %352 = arith.mulf %351, %345 : vector<8x16xf32>
    %cst_155 = arith.constant 0x4B000000 : f32
    %353 = vector.broadcast %cst_155 : f32 to vector<8x16xf32>
    %354 = arith.mulf %352, %353 : vector<8x16xf32>
    %355 = math.floor %354 : vector<8x16xf32>
    %356 = arith.fptosi %355 : vector<8x16xf32> to vector<8x16xi32>
    %357 = arith.addi %349, %356 : vector<8x16xi32>
    %358 = tpu.concatenate %317, %357 in 1 : vector<8x16xi32>, vector<8x16xi32> -> vector<8x32xi32>
    %c1_156 = arith.constant 1 : index
    %c1_157 = arith.constant 1 : index
    %c0_158 = arith.constant 0 : index
    %c0_159 = arith.constant 0 : index
    %359 = vector.load %arg10[%c1_156, %c1_157, %c0_158, %c0_159] : memref<8x2x8x32xi32, #tpu.memory_space<vmem>>, vector<1x1x8x32xi32>
    %360 = vector.shape_cast %359 : vector<1x1x8x32xi32> to vector<8x32xi32>
    %361 = vector.shape_cast %358 : vector<8x32xi32> to vector<1x1x8x32xi32>
    tpu.vector_store %arg10[%c1_156, %c1_157, %c0_158, %c0_159], %361 {strides = array<i32>} : memref<8x2x8x32xi32, #tpu.memory_space<vmem>>, vector<1x1x8x32xi32>,
    %c2 = arith.constant 2 : index
    %c0_160 = arith.constant 0 : index
    %c0_161 = arith.constant 0 : index
    %362 = vector.load %arg0[%c2, %c0_160, %c0_161] : memref<8x8x32xf32, #tpu.memory_space<vmem>>, vector<1x8x32xf32>
    %363 = vector.shape_cast %362 : vector<1x8x32xf32> to vector<8x32xf32>
    %364 = arith.sitofp %270 : vector<8x16xi32> to vector<8x16xf32>
    %cst_162 = arith.constant 1.1920929E-7 : f32
    %365 = vector.broadcast %cst_162 : f32 to vector<8x16xf32>
    %366 = arith.mulf %364, %365 : vector<8x16xf32>
    %367 = tpu.concatenate %363, %366 in 1 : vector<8x32xf32>, vector<8x16xf32> -> vector<8x48xf32>
    %c0_163 = arith.constant 0 : index
    %c0_164 = arith.constant 0 : index
    %c0_165 = arith.constant 0 : index
    %368 = vector.load %arg2[%c0_163, %c0_164, %c0_165] : memref<2x48x32xf32, #tpu.memory_space<vmem>>, vector<1x48x32xf32>
    %369 = vector.shape_cast %368 : vector<1x48x32xf32> to vector<48x32xf32>
    %cst_166 = arith.constant dense<0.000000e+00> : vector<8x32xf32>
    %370 = tpu.matmul %367, %369, %cst_166 {dimension_numbers = #tpu.dot_dimension_numbers<[1], [0], [0], [1], [0, 0, 1, 1], [], []>} : vector<8x48xf32>, vector<48x32xf32>, vector<8x32xf32> -> vector<8x32xf32>
    %371 = vector.broadcast %0 : vector<1x32xf32> to vector<8x32xf32>
    %372 = arith.addf %370, %371 : vector<8x32xf32>
    %373 = arith.negf %372 : vector<8x32xf32>
    %374 = math.exp %373 : vector<8x32xf32>
    %cst_167 = arith.constant 1.000000e+00 : f32
    %375 = vector.broadcast %cst_167 : f32 to vector<8x32xf32>
    %376 = arith.addf %375, %374 : vector<8x32xf32>
    %377 = arith.divf %375, %376 : vector<8x32xf32>
    %378 = vector.extract_strided_slice %377 {offsets = [0, 0], sizes = [8, 16], strides = [1, 1]} : vector<8x32xf32> to vector<8x16xf32>
    %cst_168 = arith.constant 8.750000e-01 : f32
    %379 = vector.broadcast %cst_168 : f32 to vector<8x16xf32>
    %380 = arith.mulf %379, %378 : vector<8x16xf32>
    %cst_169 = arith.constant 1.250000e-01 : f32
    %381 = vector.broadcast %cst_169 : f32 to vector<8x16xf32>
    %382 = arith.addf %380, %381 : vector<8x16xf32>
    %383 = vector.extract_strided_slice %377 {offsets = [0, 16], sizes = [8, 16], strides = [1, 1]} : vector<8x32xf32> to vector<8x16xf32>
    %384 = arith.mulf %383, %366 : vector<8x16xf32>
    %385 = tpu.concatenate %363, %384 in 1 : vector<8x32xf32>, vector<8x16xf32> -> vector<8x48xf32>
    %c0_170 = arith.constant 0 : index
    %c0_171 = arith.constant 0 : index
    %c0_172 = arith.constant 0 : index
    %386 = vector.load %arg4[%c0_170, %c0_171, %c0_172] : memref<2x48x16xf32, #tpu.memory_space<vmem>>, vector<1x48x16xf32>
    %387 = vector.shape_cast %386 : vector<1x48x16xf32> to vector<48x16xf32>
    %cst_173 = arith.constant dense<0.000000e+00> : vector<8x16xf32>
    %388 = tpu.matmul %385, %387, %cst_173 {dimension_numbers = #tpu.dot_dimension_numbers<[1], [0], [0], [1], [0, 0, 1, 1], [], []>} : vector<8x48xf32>, vector<48x16xf32>, vector<8x16xf32> -> vector<8x16xf32>
    %389 = vector.broadcast %2 : vector<1x16xf32> to vector<8x16xf32>
    %390 = arith.addf %388, %389 : vector<8x16xf32>
    %391 = math.tanh %390 : vector<8x16xf32>
    %392 = arith.sitofp %230 : vector<8x16xi32> to vector<8x16xf32>
    %393 = arith.mulf %382, %392 : vector<8x16xf32>
    %394 = math.floor %393 : vector<8x16xf32>
    %395 = arith.fptosi %394 : vector<8x16xf32> to vector<8x16xi32>
    %cst_174 = arith.constant 1.000000e+00 : f32
    %396 = vector.broadcast %cst_174 : f32 to vector<8x16xf32>
    %397 = arith.subf %396, %382 : vector<8x16xf32>
    %398 = arith.mulf %397, %391 : vector<8x16xf32>
    %cst_175 = arith.constant 0x4B000000 : f32
    %399 = vector.broadcast %cst_175 : f32 to vector<8x16xf32>
    %400 = arith.mulf %398, %399 : vector<8x16xf32>
    %401 = math.floor %400 : vector<8x16xf32>
    %402 = arith.fptosi %401 : vector<8x16xf32> to vector<8x16xi32>
    %403 = arith.addi %395, %402 : vector<8x16xi32>
    %404 = arith.sitofp %403 : vector<8x16xi32> to vector<8x16xf32>
    %cst_176 = arith.constant 1.1920929E-7 : f32
    %405 = vector.broadcast %cst_176 : f32 to vector<8x16xf32>
    %406 = arith.mulf %404, %405 : vector<8x16xf32>
    %407 = tpu.concatenate %363, %406 in 1 : vector<8x32xf32>, vector<8x16xf32> -> vector<8x48xf32>
    %c0_177 = arith.constant 0 : index
    %c0_178 = arith.constant 0 : index
    %c0_179 = arith.constant 0 : index
    %408 = vector.load %arg6[%c0_177, %c0_178, %c0_179] : memref<2x48x32xf32, #tpu.memory_space<vmem>>, vector<1x48x32xf32>
    %409 = vector.shape_cast %408 : vector<1x48x32xf32> to vector<48x32xf32>
    %cst_180 = arith.constant dense<0.000000e+00> : vector<8x32xf32>
    %410 = tpu.matmul %407, %409, %cst_180 {dimension_numbers = #tpu.dot_dimension_numbers<[1], [0], [0], [1], [0, 0, 1, 1], [], []>} : vector<8x48xf32>, vector<48x32xf32>, vector<8x32xf32> -> vector<8x32xf32>
    %411 = vector.broadcast %4 : vector<1x32xf32> to vector<8x32xf32>
    %412 = arith.addf %410, %411 : vector<8x32xf32>
    %413 = arith.negf %412 : vector<8x32xf32>
    %414 = math.exp %413 : vector<8x32xf32>
    %cst_181 = arith.constant 1.000000e+00 : f32
    %415 = vector.broadcast %cst_181 : f32 to vector<8x32xf32>
    %416 = arith.addf %415, %414 : vector<8x32xf32>
    %417 = arith.divf %415, %416 : vector<8x32xf32>
    %418 = vector.extract_strided_slice %417 {offsets = [0, 0], sizes = [8, 16], strides = [1, 1]} : vector<8x32xf32> to vector<8x16xf32>
    %cst_182 = arith.constant 8.750000e-01 : f32
    %419 = vector.broadcast %cst_182 : f32 to vector<8x16xf32>
    %420 = arith.mulf %419, %418 : vector<8x16xf32>
    %cst_183 = arith.constant 1.250000e-01 : f32
    %421 = vector.broadcast %cst_183 : f32 to vector<8x16xf32>
    %422 = arith.addf %420, %421 : vector<8x16xf32>
    %423 = vector.extract_strided_slice %417 {offsets = [0, 16], sizes = [8, 16], strides = [1, 1]} : vector<8x32xf32> to vector<8x16xf32>
    %424 = arith.mulf %423, %406 : vector<8x16xf32>
    %425 = tpu.concatenate %363, %424 in 1 : vector<8x32xf32>, vector<8x16xf32> -> vector<8x48xf32>
    %c0_184 = arith.constant 0 : index
    %c0_185 = arith.constant 0 : index
    %c0_186 = arith.constant 0 : index
    %426 = vector.load %arg8[%c0_184, %c0_185, %c0_186] : memref<2x48x16xf32, #tpu.memory_space<vmem>>, vector<1x48x16xf32>
    %427 = vector.shape_cast %426 : vector<1x48x16xf32> to vector<48x16xf32>
    %cst_187 = arith.constant dense<0.000000e+00> : vector<8x16xf32>
    %428 = tpu.matmul %425, %427, %cst_187 {dimension_numbers = #tpu.dot_dimension_numbers<[1], [0], [0], [1], [0, 0, 1, 1], [], []>} : vector<8x48xf32>, vector<48x16xf32>, vector<8x16xf32> -> vector<8x16xf32>
    %429 = vector.broadcast %6 : vector<1x16xf32> to vector<8x16xf32>
    %430 = arith.addf %428, %429 : vector<8x16xf32>
    %431 = math.tanh %430 : vector<8x16xf32>
    %432 = arith.sitofp %270 : vector<8x16xi32> to vector<8x16xf32>
    %433 = arith.mulf %422, %432 : vector<8x16xf32>
    %434 = math.floor %433 : vector<8x16xf32>
    %435 = arith.fptosi %434 : vector<8x16xf32> to vector<8x16xi32>
    %cst_188 = arith.constant 1.000000e+00 : f32
    %436 = vector.broadcast %cst_188 : f32 to vector<8x16xf32>
    %437 = arith.subf %436, %422 : vector<8x16xf32>
    %438 = arith.mulf %437, %431 : vector<8x16xf32>
    %cst_189 = arith.constant 0x4B000000 : f32
    %439 = vector.broadcast %cst_189 : f32 to vector<8x16xf32>
    %440 = arith.mulf %438, %439 : vector<8x16xf32>
    %441 = math.floor %440 : vector<8x16xf32>
    %442 = arith.fptosi %441 : vector<8x16xf32> to vector<8x16xi32>
    %443 = arith.addi %435, %442 : vector<8x16xi32>
    %444 = tpu.concatenate %403, %443 in 1 : vector<8x16xi32>, vector<8x16xi32> -> vector<8x32xi32>
    %c2_190 = arith.constant 2 : index
    %c0_191 = arith.constant 0 : index
    %c0_192 = arith.constant 0 : index
    %c0_193 = arith.constant 0 : index
    %445 = vector.load %arg10[%c2_190, %c0_191, %c0_192, %c0_193] : memref<8x2x8x32xi32, #tpu.memory_space<vmem>>, vector<1x1x8x32xi32>
    %446 = vector.shape_cast %445 : vector<1x1x8x32xi32> to vector<8x32xi32>
    %447 = vector.shape_cast %444 : vector<8x32xi32> to vector<1x1x8x32xi32>
    tpu.vector_store %arg10[%c2_190, %c0_191, %c0_192, %c0_193], %447 {strides = array<i32>} : memref<8x2x8x32xi32, #tpu.memory_space<vmem>>, vector<1x1x8x32xi32>,
    %448 = arith.sitofp %444 : vector<8x32xi32> to vector<8x32xf32>
    %cst_194 = arith.constant 1.1920929E-7 : f32
    %449 = vector.broadcast %cst_194 : f32 to vector<8x32xf32>
    %450 = arith.mulf %448, %449 : vector<8x32xf32>
    %451 = arith.sitofp %357 : vector<8x16xi32> to vector<8x16xf32>
    %cst_195 = arith.constant 1.1920929E-7 : f32
    %452 = vector.broadcast %cst_195 : f32 to vector<8x16xf32>
    %453 = arith.mulf %451, %452 : vector<8x16xf32>
    %454 = tpu.concatenate %450, %453 in 1 : vector<8x32xf32>, vector<8x16xf32> -> vector<8x48xf32>
    %c1_196 = arith.constant 1 : index
    %c0_197 = arith.constant 0 : index
    %c0_198 = arith.constant 0 : index
    %455 = vector.load %arg2[%c1_196, %c0_197, %c0_198] : memref<2x48x32xf32, #tpu.memory_space<vmem>>, vector<1x48x32xf32>
    %456 = vector.shape_cast %455 : vector<1x48x32xf32> to vector<48x32xf32>
    %cst_199 = arith.constant dense<0.000000e+00> : vector<8x32xf32>
    %457 = tpu.matmul %454, %456, %cst_199 {dimension_numbers = #tpu.dot_dimension_numbers<[1], [0], [0], [1], [0, 0, 1, 1], [], []>} : vector<8x48xf32>, vector<48x32xf32>, vector<8x32xf32> -> vector<8x32xf32>
    %458 = vector.broadcast %1 : vector<1x32xf32> to vector<8x32xf32>
    %459 = arith.addf %457, %458 : vector<8x32xf32>
    %460 = arith.negf %459 : vector<8x32xf32>
    %461 = math.exp %460 : vector<8x32xf32>
    %cst_200 = arith.constant 1.000000e+00 : f32
    %462 = vector.broadcast %cst_200 : f32 to vector<8x32xf32>
    %463 = arith.addf %462, %461 : vector<8x32xf32>
    %464 = arith.divf %462, %463 : vector<8x32xf32>
    %465 = vector.extract_strided_slice %464 {offsets = [0, 0], sizes = [8, 16], strides = [1, 1]} : vector<8x32xf32> to vector<8x16xf32>
    %cst_201 = arith.constant 8.750000e-01 : f32
    %466 = vector.broadcast %cst_201 : f32 to vector<8x16xf32>
    %467 = arith.mulf %466, %465 : vector<8x16xf32>
    %cst_202 = arith.constant 1.250000e-01 : f32
    %468 = vector.broadcast %cst_202 : f32 to vector<8x16xf32>
    %469 = arith.addf %467, %468 : vector<8x16xf32>
    %470 = vector.extract_strided_slice %464 {offsets = [0, 16], sizes = [8, 16], strides = [1, 1]} : vector<8x32xf32> to vector<8x16xf32>
    %471 = arith.mulf %470, %453 : vector<8x16xf32>
    %472 = tpu.concatenate %450, %471 in 1 : vector<8x32xf32>, vector<8x16xf32> -> vector<8x48xf32>
    %c1_203 = arith.constant 1 : index
    %c0_204 = arith.constant 0 : index
    %c0_205 = arith.constant 0 : index
    %473 = vector.load %arg4[%c1_203, %c0_204, %c0_205] : memref<2x48x16xf32, #tpu.memory_space<vmem>>, vector<1x48x16xf32>
    %474 = vector.shape_cast %473 : vector<1x48x16xf32> to vector<48x16xf32>
    %cst_206 = arith.constant dense<0.000000e+00> : vector<8x16xf32>
    %475 = tpu.matmul %472, %474, %cst_206 {dimension_numbers = #tpu.dot_dimension_numbers<[1], [0], [0], [1], [0, 0, 1, 1], [], []>} : vector<8x48xf32>, vector<48x16xf32>, vector<8x16xf32> -> vector<8x16xf32>
    %476 = vector.broadcast %3 : vector<1x16xf32> to vector<8x16xf32>
    %477 = arith.addf %475, %476 : vector<8x16xf32>
    %478 = math.tanh %477 : vector<8x16xf32>
    %479 = arith.sitofp %317 : vector<8x16xi32> to vector<8x16xf32>
    %480 = arith.mulf %469, %479 : vector<8x16xf32>
    %481 = math.floor %480 : vector<8x16xf32>
    %482 = arith.fptosi %481 : vector<8x16xf32> to vector<8x16xi32>
    %cst_207 = arith.constant 1.000000e+00 : f32
    %483 = vector.broadcast %cst_207 : f32 to vector<8x16xf32>
    %484 = arith.subf %483, %469 : vector<8x16xf32>
    %485 = arith.mulf %484, %478 : vector<8x16xf32>
    %cst_208 = arith.constant 0x4B000000 : f32
    %486 = vector.broadcast %cst_208 : f32 to vector<8x16xf32>
    %487 = arith.mulf %485, %486 : vector<8x16xf32>
    %488 = math.floor %487 : vector<8x16xf32>
    %489 = arith.fptosi %488 : vector<8x16xf32> to vector<8x16xi32>
    %490 = arith.addi %482, %489 : vector<8x16xi32>
    %491 = arith.sitofp %490 : vector<8x16xi32> to vector<8x16xf32>
    %cst_209 = arith.constant 1.1920929E-7 : f32
    %492 = vector.broadcast %cst_209 : f32 to vector<8x16xf32>
    %493 = arith.mulf %491, %492 : vector<8x16xf32>
    %494 = tpu.concatenate %450, %493 in 1 : vector<8x32xf32>, vector<8x16xf32> -> vector<8x48xf32>
    %c1_210 = arith.constant 1 : index
    %c0_211 = arith.constant 0 : index
    %c0_212 = arith.constant 0 : index
    %495 = vector.load %arg6[%c1_210, %c0_211, %c0_212] : memref<2x48x32xf32, #tpu.memory_space<vmem>>, vector<1x48x32xf32>
    %496 = vector.shape_cast %495 : vector<1x48x32xf32> to vector<48x32xf32>
    %cst_213 = arith.constant dense<0.000000e+00> : vector<8x32xf32>
    %497 = tpu.matmul %494, %496, %cst_213 {dimension_numbers = #tpu.dot_dimension_numbers<[1], [0], [0], [1], [0, 0, 1, 1], [], []>} : vector<8x48xf32>, vector<48x32xf32>, vector<8x32xf32> -> vector<8x32xf32>
    %498 = vector.broadcast %5 : vector<1x32xf32> to vector<8x32xf32>
    %499 = arith.addf %497, %498 : vector<8x32xf32>
    %500 = arith.negf %499 : vector<8x32xf32>
    %501 = math.exp %500 : vector<8x32xf32>
    %cst_214 = arith.constant 1.000000e+00 : f32
    %502 = vector.broadcast %cst_214 : f32 to vector<8x32xf32>
    %503 = arith.addf %502, %501 : vector<8x32xf32>
    %504 = arith.divf %502, %503 : vector<8x32xf32>
    %505 = vector.extract_strided_slice %504 {offsets = [0, 0], sizes = [8, 16], strides = [1, 1]} : vector<8x32xf32> to vector<8x16xf32>
    %cst_215 = arith.constant 8.750000e-01 : f32
    %506 = vector.broadcast %cst_215 : f32 to vector<8x16xf32>
    %507 = arith.mulf %506, %505 : vector<8x16xf32>
    %cst_216 = arith.constant 1.250000e-01 : f32
    %508 = vector.broadcast %cst_216 : f32 to vector<8x16xf32>
    %509 = arith.addf %507, %508 : vector<8x16xf32>
    %510 = vector.extract_strided_slice %504 {offsets = [0, 16], sizes = [8, 16], strides = [1, 1]} : vector<8x32xf32> to vector<8x16xf32>
    %511 = arith.mulf %510, %493 : vector<8x16xf32>
    %512 = tpu.concatenate %450, %511 in 1 : vector<8x32xf32>, vector<8x16xf32> -> vector<8x48xf32>
    %c1_217 = arith.constant 1 : index
    %c0_218 = arith.constant 0 : index
    %c0_219 = arith.constant 0 : index
    %513 = vector.load %arg8[%c1_217, %c0_218, %c0_219] : memref<2x48x16xf32, #tpu.memory_space<vmem>>, vector<1x48x16xf32>
    %514 = vector.shape_cast %513 : vector<1x48x16xf32> to vector<48x16xf32>
    %cst_220 = arith.constant dense<0.000000e+00> : vector<8x16xf32>
    %515 = tpu.matmul %512, %514, %cst_220 {dimension_numbers = #tpu.dot_dimension_numbers<[1], [0], [0], [1], [0, 0, 1, 1], [], []>} : vector<8x48xf32>, vector<48x16xf32>, vector<8x16xf32> -> vector<8x16xf32>
    %516 = vector.broadcast %7 : vector<1x16xf32> to vector<8x16xf32>
    %517 = arith.addf %515, %516 : vector<8x16xf32>
    %518 = math.tanh %517 : vector<8x16xf32>
    %519 = arith.sitofp %357 : vector<8x16xi32> to vector<8x16xf32>
    %520 = arith.mulf %509, %519 : vector<8x16xf32>
    %521 = math.floor %520 : vector<8x16xf32>
    %522 = arith.fptosi %521 : vector<8x16xf32> to vector<8x16xi32>
    %cst_221 = arith.constant 1.000000e+00 : f32
    %523 = vector.broadcast %cst_221 : f32 to vector<8x16xf32>
    %524 = arith.subf %523, %509 : vector<8x16xf32>
    %525 = arith.mulf %524, %518 : vector<8x16xf32>
    %cst_222 = arith.constant 0x4B000000 : f32
    %526 = vector.broadcast %cst_222 : f32 to vector<8x16xf32>
    %527 = arith.mulf %525, %526 : vector<8x16xf32>
    %528 = math.floor %527 : vector<8x16xf32>
    %529 = arith.fptosi %528 : vector<8x16xf32> to vector<8x16xi32>
    %530 = arith.addi %522, %529 : vector<8x16xi32>
    %531 = tpu.concatenate %490, %530 in 1 : vector<8x16xi32>, vector<8x16xi32> -> vector<8x32xi32>
    %c2_223 = arith.constant 2 : index
    %c1_224 = arith.constant 1 : index
    %c0_225 = arith.constant 0 : index
    %c0_226 = arith.constant 0 : index
    %532 = vector.load %arg10[%c2_223, %c1_224, %c0_225, %c0_226] : memref<8x2x8x32xi32, #tpu.memory_space<vmem>>, vector<1x1x8x32xi32>
    %533 = vector.shape_cast %532 : vector<1x1x8x32xi32> to vector<8x32xi32>
    %534 = vector.shape_cast %531 : vector<8x32xi32> to vector<1x1x8x32xi32>
    tpu.vector_store %arg10[%c2_223, %c1_224, %c0_225, %c0_226], %534 {strides = array<i32>} : memref<8x2x8x32xi32, #tpu.memory_space<vmem>>, vector<1x1x8x32xi32>,
    %c3 = arith.constant 3 : index
    %c0_227 = arith.constant 0 : index
    %c0_228 = arith.constant 0 : index
    %535 = vector.load %arg0[%c3, %c0_227, %c0_228] : memref<8x8x32xf32, #tpu.memory_space<vmem>>, vector<1x8x32xf32>
    %536 = vector.shape_cast %535 : vector<1x8x32xf32> to vector<8x32xf32>
    %537 = arith.sitofp %443 : vector<8x16xi32> to vector<8x16xf32>
    %cst_229 = arith.constant 1.1920929E-7 : f32
    %538 = vector.broadcast %cst_229 : f32 to vector<8x16xf32>
    %539 = arith.mulf %537, %538 : vector<8x16xf32>
    %540 = tpu.concatenate %536, %539 in 1 : vector<8x32xf32>, vector<8x16xf32> -> vector<8x48xf32>
    %c0_230 = arith.constant 0 : index
    %c0_231 = arith.constant 0 : index
    %c0_232 = arith.constant 0 : index
    %541 = vector.load %arg2[%c0_230, %c0_231, %c0_232] : memref<2x48x32xf32, #tpu.memory_space<vmem>>, vector<1x48x32xf32>
    %542 = vector.shape_cast %541 : vector<1x48x32xf32> to vector<48x32xf32>
    %cst_233 = arith.constant dense<0.000000e+00> : vector<8x32xf32>
    %543 = tpu.matmul %540, %542, %cst_233 {dimension_numbers = #tpu.dot_dimension_numbers<[1], [0], [0], [1], [0, 0, 1, 1], [], []>} : vector<8x48xf32>, vector<48x32xf32>, vector<8x32xf32> -> vector<8x32xf32>
    %544 = vector.broadcast %0 : vector<1x32xf32> to vector<8x32xf32>
    %545 = arith.addf %543, %544 : vector<8x32xf32>
    %546 = arith.negf %545 : vector<8x32xf32>
    %547 = math.exp %546 : vector<8x32xf32>
    %cst_234 = arith.constant 1.000000e+00 : f32
    %548 = vector.broadcast %cst_234 : f32 to vector<8x32xf32>
    %549 = arith.addf %548, %547 : vector<8x32xf32>
    %550 = arith.divf %548, %549 : vector<8x32xf32>
    %551 = vector.extract_strided_slice %550 {offsets = [0, 0], sizes = [8, 16], strides = [1, 1]} : vector<8x32xf32> to vector<8x16xf32>
    %cst_235 = arith.constant 8.750000e-01 : f32
    %552 = vector.broadcast %cst_235 : f32 to vector<8x16xf32>
    %553 = arith.mulf %552, %551 : vector<8x16xf32>
    %cst_236 = arith.constant 1.250000e-01 : f32
    %554 = vector.broadcast %cst_236 : f32 to vector<8x16xf32>
    %555 = arith.addf %553, %554 : vector<8x16xf32>
    %556 = vector.extract_strided_slice %550 {offsets = [0, 16], sizes = [8, 16], strides = [1, 1]} : vector<8x32xf32> to vector<8x16xf32>
    %557 = arith.mulf %556, %539 : vector<8x16xf32>
    %558 = tpu.concatenate %536, %557 in 1 : vector<8x32xf32>, vector<8x16xf32> -> vector<8x48xf32>
    %c0_237 = arith.constant 0 : index
    %c0_238 = arith.constant 0 : index
    %c0_239 = arith.constant 0 : index
    %559 = vector.load %arg4[%c0_237, %c0_238, %c0_239] : memref<2x48x16xf32, #tpu.memory_space<vmem>>, vector<1x48x16xf32>
    %560 = vector.shape_cast %559 : vector<1x48x16xf32> to vector<48x16xf32>
    %cst_240 = arith.constant dense<0.000000e+00> : vector<8x16xf32>
    %561 = tpu.matmul %558, %560, %cst_240 {dimension_numbers = #tpu.dot_dimension_numbers<[1], [0], [0], [1], [0, 0, 1, 1], [], []>} : vector<8x48xf32>, vector<48x16xf32>, vector<8x16xf32> -> vector<8x16xf32>
    %562 = vector.broadcast %2 : vector<1x16xf32> to vector<8x16xf32>
    %563 = arith.addf %561, %562 : vector<8x16xf32>
    %564 = math.tanh %563 : vector<8x16xf32>
    %565 = arith.sitofp %403 : vector<8x16xi32> to vector<8x16xf32>
    %566 = arith.mulf %555, %565 : vector<8x16xf32>
    %567 = math.floor %566 : vector<8x16xf32>
    %568 = arith.fptosi %567 : vector<8x16xf32> to vector<8x16xi32>
    %cst_241 = arith.constant 1.000000e+00 : f32
    %569 = vector.broadcast %cst_241 : f32 to vector<8x16xf32>
    %570 = arith.subf %569, %555 : vector<8x16xf32>
    %571 = arith.mulf %570, %564 : vector<8x16xf32>
    %cst_242 = arith.constant 0x4B000000 : f32
    %572 = vector.broadcast %cst_242 : f32 to vector<8x16xf32>
    %573 = arith.mulf %571, %572 : vector<8x16xf32>
    %574 = math.floor %573 : vector<8x16xf32>
    %575 = arith.fptosi %574 : vector<8x16xf32> to vector<8x16xi32>
    %576 = arith.addi %568, %575 : vector<8x16xi32>
    %577 = arith.sitofp %576 : vector<8x16xi32> to vector<8x16xf32>
    %cst_243 = arith.constant 1.1920929E-7 : f32
    %578 = vector.broadcast %cst_243 : f32 to vector<8x16xf32>
    %579 = arith.mulf %577, %578 : vector<8x16xf32>
    %580 = tpu.concatenate %536, %579 in 1 : vector<8x32xf32>, vector<8x16xf32> -> vector<8x48xf32>
    %c0_244 = arith.constant 0 : index
    %c0_245 = arith.constant 0 : index
    %c0_246 = arith.constant 0 : index
    %581 = vector.load %arg6[%c0_244, %c0_245, %c0_246] : memref<2x48x32xf32, #tpu.memory_space<vmem>>, vector<1x48x32xf32>
    %582 = vector.shape_cast %581 : vector<1x48x32xf32> to vector<48x32xf32>
    %cst_247 = arith.constant dense<0.000000e+00> : vector<8x32xf32>
    %583 = tpu.matmul %580, %582, %cst_247 {dimension_numbers = #tpu.dot_dimension_numbers<[1], [0], [0], [1], [0, 0, 1, 1], [], []>} : vector<8x48xf32>, vector<48x32xf32>, vector<8x32xf32> -> vector<8x32xf32>
    %584 = vector.broadcast %4 : vector<1x32xf32> to vector<8x32xf32>
    %585 = arith.addf %583, %584 : vector<8x32xf32>
    %586 = arith.negf %585 : vector<8x32xf32>
    %587 = math.exp %586 : vector<8x32xf32>
    %cst_248 = arith.constant 1.000000e+00 : f32
    %588 = vector.broadcast %cst_248 : f32 to vector<8x32xf32>
    %589 = arith.addf %588, %587 : vector<8x32xf32>
    %590 = arith.divf %588, %589 : vector<8x32xf32>
    %591 = vector.extract_strided_slice %590 {offsets = [0, 0], sizes = [8, 16], strides = [1, 1]} : vector<8x32xf32> to vector<8x16xf32>
    %cst_249 = arith.constant 8.750000e-01 : f32
    %592 = vector.broadcast %cst_249 : f32 to vector<8x16xf32>
    %593 = arith.mulf %592, %591 : vector<8x16xf32>
    %cst_250 = arith.constant 1.250000e-01 : f32
    %594 = vector.broadcast %cst_250 : f32 to vector<8x16xf32>
    %595 = arith.addf %593, %594 : vector<8x16xf32>
    %596 = vector.extract_strided_slice %590 {offsets = [0, 16], sizes = [8, 16], strides = [1, 1]} : vector<8x32xf32> to vector<8x16xf32>
    %597 = arith.mulf %596, %579 : vector<8x16xf32>
    %598 = tpu.concatenate %536, %597 in 1 : vector<8x32xf32>, vector<8x16xf32> -> vector<8x48xf32>
    %c0_251 = arith.constant 0 : index
    %c0_252 = arith.constant 0 : index
    %c0_253 = arith.constant 0 : index
    %599 = vector.load %arg8[%c0_251, %c0_252, %c0_253] : memref<2x48x16xf32, #tpu.memory_space<vmem>>, vector<1x48x16xf32>
    %600 = vector.shape_cast %599 : vector<1x48x16xf32> to vector<48x16xf32>
    %cst_254 = arith.constant dense<0.000000e+00> : vector<8x16xf32>
    %601 = tpu.matmul %598, %600, %cst_254 {dimension_numbers = #tpu.dot_dimension_numbers<[1], [0], [0], [1], [0, 0, 1, 1], [], []>} : vector<8x48xf32>, vector<48x16xf32>, vector<8x16xf32> -> vector<8x16xf32>
    %602 = vector.broadcast %6 : vector<1x16xf32> to vector<8x16xf32>
    %603 = arith.addf %601, %602 : vector<8x16xf32>
    %604 = math.tanh %603 : vector<8x16xf32>
    %605 = arith.sitofp %443 : vector<8x16xi32> to vector<8x16xf32>
    %606 = arith.mulf %595, %605 : vector<8x16xf32>
    %607 = math.floor %606 : vector<8x16xf32>
    %608 = arith.fptosi %607 : vector<8x16xf32> to vector<8x16xi32>
    %cst_255 = arith.constant 1.000000e+00 : f32
    %609 = vector.broadcast %cst_255 : f32 to vector<8x16xf32>
    %610 = arith.subf %609, %595 : vector<8x16xf32>
    %611 = arith.mulf %610, %604 : vector<8x16xf32>
    %cst_256 = arith.constant 0x4B000000 : f32
    %612 = vector.broadcast %cst_256 : f32 to vector<8x16xf32>
    %613 = arith.mulf %611, %612 : vector<8x16xf32>
    %614 = math.floor %613 : vector<8x16xf32>
    %615 = arith.fptosi %614 : vector<8x16xf32> to vector<8x16xi32>
    %616 = arith.addi %608, %615 : vector<8x16xi32>
    %617 = tpu.concatenate %576, %616 in 1 : vector<8x16xi32>, vector<8x16xi32> -> vector<8x32xi32>
    %c3_257 = arith.constant 3 : index
    %c0_258 = arith.constant 0 : index
    %c0_259 = arith.constant 0 : index
    %c0_260 = arith.constant 0 : index
    %618 = vector.load %arg10[%c3_257, %c0_258, %c0_259, %c0_260] : memref<8x2x8x32xi32, #tpu.memory_space<vmem>>, vector<1x1x8x32xi32>
    %619 = vector.shape_cast %618 : vector<1x1x8x32xi32> to vector<8x32xi32>
    %620 = vector.shape_cast %617 : vector<8x32xi32> to vector<1x1x8x32xi32>
    tpu.vector_store %arg10[%c3_257, %c0_258, %c0_259, %c0_260], %620 {strides = array<i32>} : memref<8x2x8x32xi32, #tpu.memory_space<vmem>>, vector<1x1x8x32xi32>,
    %621 = arith.sitofp %617 : vector<8x32xi32> to vector<8x32xf32>
    %cst_261 = arith.constant 1.1920929E-7 : f32
    %622 = vector.broadcast %cst_261 : f32 to vector<8x32xf32>
    %623 = arith.mulf %621, %622 : vector<8x32xf32>
    %624 = arith.sitofp %530 : vector<8x16xi32> to vector<8x16xf32>
    %cst_262 = arith.constant 1.1920929E-7 : f32
    %625 = vector.broadcast %cst_262 : f32 to vector<8x16xf32>
    %626 = arith.mulf %624, %625 : vector<8x16xf32>
    %627 = tpu.concatenate %623, %626 in 1 : vector<8x32xf32>, vector<8x16xf32> -> vector<8x48xf32>
    %c1_263 = arith.constant 1 : index
    %c0_264 = arith.constant 0 : index
    %c0_265 = arith.constant 0 : index
    %628 = vector.load %arg2[%c1_263, %c0_264, %c0_265] : memref<2x48x32xf32, #tpu.memory_space<vmem>>, vector<1x48x32xf32>
    %629 = vector.shape_cast %628 : vector<1x48x32xf32> to vector<48x32xf32>
    %cst_266 = arith.constant dense<0.000000e+00> : vector<8x32xf32>
    %630 = tpu.matmul %627, %629, %cst_266 {dimension_numbers = #tpu.dot_dimension_numbers<[1], [0], [0], [1], [0, 0, 1, 1], [], []>} : vector<8x48xf32>, vector<48x32xf32>, vector<8x32xf32> -> vector<8x32xf32>
    %631 = vector.broadcast %1 : vector<1x32xf32> to vector<8x32xf32>
    %632 = arith.addf %630, %631 : vector<8x32xf32>
    %633 = arith.negf %632 : vector<8x32xf32>
    %634 = math.exp %633 : vector<8x32xf32>
    %cst_267 = arith.constant 1.000000e+00 : f32
    %635 = vector.broadcast %cst_267 : f32 to vector<8x32xf32>
    %636 = arith.addf %635, %634 : vector<8x32xf32>
    %637 = arith.divf %635, %636 : vector<8x32xf32>
    %638 = vector.extract_strided_slice %637 {offsets = [0, 0], sizes = [8, 16], strides = [1, 1]} : vector<8x32xf32> to vector<8x16xf32>
    %cst_268 = arith.constant 8.750000e-01 : f32
    %639 = vector.broadcast %cst_268 : f32 to vector<8x16xf32>
    %640 = arith.mulf %639, %638 : vector<8x16xf32>
    %cst_269 = arith.constant 1.250000e-01 : f32
    %641 = vector.broadcast %cst_269 : f32 to vector<8x16xf32>
    %642 = arith.addf %640, %641 : vector<8x16xf32>
    %643 = vector.extract_strided_slice %637 {offsets = [0, 16], sizes = [8, 16], strides = [1, 1]} : vector<8x32xf32> to vector<8x16xf32>
    %644 = arith.mulf %643, %626 : vector<8x16xf32>
    %645 = tpu.concatenate %623, %644 in 1 : vector<8x32xf32>, vector<8x16xf32> -> vector<8x48xf32>
    %c1_270 = arith.constant 1 : index
    %c0_271 = arith.constant 0 : index
    %c0_272 = arith.constant 0 : index
    %646 = vector.load %arg4[%c1_270, %c0_271, %c0_272] : memref<2x48x16xf32, #tpu.memory_space<vmem>>, vector<1x48x16xf32>
    %647 = vector.shape_cast %646 : vector<1x48x16xf32> to vector<48x16xf32>
    %cst_273 = arith.constant dense<0.000000e+00> : vector<8x16xf32>
    %648 = tpu.matmul %645, %647, %cst_273 {dimension_numbers = #tpu.dot_dimension_numbers<[1], [0], [0], [1], [0, 0, 1, 1], [], []>} : vector<8x48xf32>, vector<48x16xf32>, vector<8x16xf32> -> vector<8x16xf32>
    %649 = vector.broadcast %3 : vector<1x16xf32> to vector<8x16xf32>
    %650 = arith.addf %648, %649 : vector<8x16xf32>
    %651 = math.tanh %650 : vector<8x16xf32>
    %652 = arith.sitofp %490 : vector<8x16xi32> to vector<8x16xf32>
    %653 = arith.mulf %642, %652 : vector<8x16xf32>
    %654 = math.floor %653 : vector<8x16xf32>
    %655 = arith.fptosi %654 : vector<8x16xf32> to vector<8x16xi32>
    %cst_274 = arith.constant 1.000000e+00 : f32
    %656 = vector.broadcast %cst_274 : f32 to vector<8x16xf32>
    %657 = arith.subf %656, %642 : vector<8x16xf32>
    %658 = arith.mulf %657, %651 : vector<8x16xf32>
    %cst_275 = arith.constant 0x4B000000 : f32
    %659 = vector.broadcast %cst_275 : f32 to vector<8x16xf32>
    %660 = arith.mulf %658, %659 : vector<8x16xf32>
    %661 = math.floor %660 : vector<8x16xf32>
    %662 = arith.fptosi %661 : vector<8x16xf32> to vector<8x16xi32>
    %663 = arith.addi %655, %662 : vector<8x16xi32>
    %664 = arith.sitofp %663 : vector<8x16xi32> to vector<8x16xf32>
    %cst_276 = arith.constant 1.1920929E-7 : f32
    %665 = vector.broadcast %cst_276 : f32 to vector<8x16xf32>
    %666 = arith.mulf %664, %665 : vector<8x16xf32>
    %667 = tpu.concatenate %623, %666 in 1 : vector<8x32xf32>, vector<8x16xf32> -> vector<8x48xf32>
    %c1_277 = arith.constant 1 : index
    %c0_278 = arith.constant 0 : index
    %c0_279 = arith.constant 0 : index
    %668 = vector.load %arg6[%c1_277, %c0_278, %c0_279] : memref<2x48x32xf32, #tpu.memory_space<vmem>>, vector<1x48x32xf32>
    %669 = vector.shape_cast %668 : vector<1x48x32xf32> to vector<48x32xf32>
    %cst_280 = arith.constant dense<0.000000e+00> : vector<8x32xf32>
    %670 = tpu.matmul %667, %669, %cst_280 {dimension_numbers = #tpu.dot_dimension_numbers<[1], [0], [0], [1], [0, 0, 1, 1], [], []>} : vector<8x48xf32>, vector<48x32xf32>, vector<8x32xf32> -> vector<8x32xf32>
    %671 = vector.broadcast %5 : vector<1x32xf32> to vector<8x32xf32>
    %672 = arith.addf %670, %671 : vector<8x32xf32>
    %673 = arith.negf %672 : vector<8x32xf32>
    %674 = math.exp %673 : vector<8x32xf32>
    %cst_281 = arith.constant 1.000000e+00 : f32
    %675 = vector.broadcast %cst_281 : f32 to vector<8x32xf32>
    %676 = arith.addf %675, %674 : vector<8x32xf32>
    %677 = arith.divf %675, %676 : vector<8x32xf32>
    %678 = vector.extract_strided_slice %677 {offsets = [0, 0], sizes = [8, 16], strides = [1, 1]} : vector<8x32xf32> to vector<8x16xf32>
    %cst_282 = arith.constant 8.750000e-01 : f32
    %679 = vector.broadcast %cst_282 : f32 to vector<8x16xf32>
    %680 = arith.mulf %679, %678 : vector<8x16xf32>
    %cst_283 = arith.constant 1.250000e-01 : f32
    %681 = vector.broadcast %cst_283 : f32 to vector<8x16xf32>
    %682 = arith.addf %680, %681 : vector<8x16xf32>
    %683 = vector.extract_strided_slice %677 {offsets = [0, 16], sizes = [8, 16], strides = [1, 1]} : vector<8x32xf32> to vector<8x16xf32>
    %684 = arith.mulf %683, %666 : vector<8x16xf32>
    %685 = tpu.concatenate %623, %684 in 1 : vector<8x32xf32>, vector<8x16xf32> -> vector<8x48xf32>
    %c1_284 = arith.constant 1 : index
    %c0_285 = arith.constant 0 : index
    %c0_286 = arith.constant 0 : index
    %686 = vector.load %arg8[%c1_284, %c0_285, %c0_286] : memref<2x48x16xf32, #tpu.memory_space<vmem>>, vector<1x48x16xf32>
    %687 = vector.shape_cast %686 : vector<1x48x16xf32> to vector<48x16xf32>
    %cst_287 = arith.constant dense<0.000000e+00> : vector<8x16xf32>
    %688 = tpu.matmul %685, %687, %cst_287 {dimension_numbers = #tpu.dot_dimension_numbers<[1], [0], [0], [1], [0, 0, 1, 1], [], []>} : vector<8x48xf32>, vector<48x16xf32>, vector<8x16xf32> -> vector<8x16xf32>
    %689 = vector.broadcast %7 : vector<1x16xf32> to vector<8x16xf32>
    %690 = arith.addf %688, %689 : vector<8x16xf32>
    %691 = math.tanh %690 : vector<8x16xf32>
    %692 = arith.sitofp %530 : vector<8x16xi32> to vector<8x16xf32>
    %693 = arith.mulf %682, %692 : vector<8x16xf32>
    %694 = math.floor %693 : vector<8x16xf32>
    %695 = arith.fptosi %694 : vector<8x16xf32> to vector<8x16xi32>
    %cst_288 = arith.constant 1.000000e+00 : f32
    %696 = vector.broadcast %cst_288 : f32 to vector<8x16xf32>
    %697 = arith.subf %696, %682 : vector<8x16xf32>
    %698 = arith.mulf %697, %691 : vector<8x16xf32>
    %cst_289 = arith.constant 0x4B000000 : f32
    %699 = vector.broadcast %cst_289 : f32 to vector<8x16xf32>
    %700 = arith.mulf %698, %699 : vector<8x16xf32>
    %701 = math.floor %700 : vector<8x16xf32>
    %702 = arith.fptosi %701 : vector<8x16xf32> to vector<8x16xi32>
    %703 = arith.addi %695, %702 : vector<8x16xi32>
    %704 = tpu.concatenate %663, %703 in 1 : vector<8x16xi32>, vector<8x16xi32> -> vector<8x32xi32>
    %c3_290 = arith.constant 3 : index
    %c1_291 = arith.constant 1 : index
    %c0_292 = arith.constant 0 : index
    %c0_293 = arith.constant 0 : index
    %705 = vector.load %arg10[%c3_290, %c1_291, %c0_292, %c0_293] : memref<8x2x8x32xi32, #tpu.memory_space<vmem>>, vector<1x1x8x32xi32>
    %706 = vector.shape_cast %705 : vector<1x1x8x32xi32> to vector<8x32xi32>
    %707 = vector.shape_cast %704 : vector<8x32xi32> to vector<1x1x8x32xi32>
    tpu.vector_store %arg10[%c3_290, %c1_291, %c0_292, %c0_293], %707 {strides = array<i32>} : memref<8x2x8x32xi32, #tpu.memory_space<vmem>>, vector<1x1x8x32xi32>,
    %c4 = arith.constant 4 : index
    %c0_294 = arith.constant 0 : index
    %c0_295 = arith.constant 0 : index
    %708 = vector.load %arg0[%c4, %c0_294, %c0_295] : memref<8x8x32xf32, #tpu.memory_space<vmem>>, vector<1x8x32xf32>
    %709 = vector.shape_cast %708 : vector<1x8x32xf32> to vector<8x32xf32>
    %710 = arith.sitofp %616 : vector<8x16xi32> to vector<8x16xf32>
    %cst_296 = arith.constant 1.1920929E-7 : f32
    %711 = vector.broadcast %cst_296 : f32 to vector<8x16xf32>
    %712 = arith.mulf %710, %711 : vector<8x16xf32>
    %713 = tpu.concatenate %709, %712 in 1 : vector<8x32xf32>, vector<8x16xf32> -> vector<8x48xf32>
    %c0_297 = arith.constant 0 : index
    %c0_298 = arith.constant 0 : index
    %c0_299 = arith.constant 0 : index
    %714 = vector.load %arg2[%c0_297, %c0_298, %c0_299] : memref<2x48x32xf32, #tpu.memory_space<vmem>>, vector<1x48x32xf32>
    %715 = vector.shape_cast %714 : vector<1x48x32xf32> to vector<48x32xf32>
    %cst_300 = arith.constant dense<0.000000e+00> : vector<8x32xf32>
    %716 = tpu.matmul %713, %715, %cst_300 {dimension_numbers = #tpu.dot_dimension_numbers<[1], [0], [0], [1], [0, 0, 1, 1], [], []>} : vector<8x48xf32>, vector<48x32xf32>, vector<8x32xf32> -> vector<8x32xf32>
    %717 = vector.broadcast %0 : vector<1x32xf32> to vector<8x32xf32>
    %718 = arith.addf %716, %717 : vector<8x32xf32>
    %719 = arith.negf %718 : vector<8x32xf32>
    %720 = math.exp %719 : vector<8x32xf32>
    %cst_301 = arith.constant 1.000000e+00 : f32
    %721 = vector.broadcast %cst_301 : f32 to vector<8x32xf32>
    %722 = arith.addf %721, %720 : vector<8x32xf32>
    %723 = arith.divf %721, %722 : vector<8x32xf32>
    %724 = vector.extract_strided_slice %723 {offsets = [0, 0], sizes = [8, 16], strides = [1, 1]} : vector<8x32xf32> to vector<8x16xf32>
    %cst_302 = arith.constant 8.750000e-01 : f32
    %725 = vector.broadcast %cst_302 : f32 to vector<8x16xf32>
    %726 = arith.mulf %725, %724 : vector<8x16xf32>
    %cst_303 = arith.constant 1.250000e-01 : f32
    %727 = vector.broadcast %cst_303 : f32 to vector<8x16xf32>
    %728 = arith.addf %726, %727 : vector<8x16xf32>
    %729 = vector.extract_strided_slice %723 {offsets = [0, 16], sizes = [8, 16], strides = [1, 1]} : vector<8x32xf32> to vector<8x16xf32>
    %730 = arith.mulf %729, %712 : vector<8x16xf32>
    %731 = tpu.concatenate %709, %730 in 1 : vector<8x32xf32>, vector<8x16xf32> -> vector<8x48xf32>
    %c0_304 = arith.constant 0 : index
    %c0_305 = arith.constant 0 : index
    %c0_306 = arith.constant 0 : index
    %732 = vector.load %arg4[%c0_304, %c0_305, %c0_306] : memref<2x48x16xf32, #tpu.memory_space<vmem>>, vector<1x48x16xf32>
    %733 = vector.shape_cast %732 : vector<1x48x16xf32> to vector<48x16xf32>
    %cst_307 = arith.constant dense<0.000000e+00> : vector<8x16xf32>
    %734 = tpu.matmul %731, %733, %cst_307 {dimension_numbers = #tpu.dot_dimension_numbers<[1], [0], [0], [1], [0, 0, 1, 1], [], []>} : vector<8x48xf32>, vector<48x16xf32>, vector<8x16xf32> -> vector<8x16xf32>
    %735 = vector.broadcast %2 : vector<1x16xf32> to vector<8x16xf32>
    %736 = arith.addf %734, %735 : vector<8x16xf32>
    %737 = math.tanh %736 : vector<8x16xf32>
    %738 = arith.sitofp %576 : vector<8x16xi32> to vector<8x16xf32>
    %739 = arith.mulf %728, %738 : vector<8x16xf32>
    %740 = math.floor %739 : vector<8x16xf32>
    %741 = arith.fptosi %740 : vector<8x16xf32> to vector<8x16xi32>
    %cst_308 = arith.constant 1.000000e+00 : f32
    %742 = vector.broadcast %cst_308 : f32 to vector<8x16xf32>
    %743 = arith.subf %742, %728 : vector<8x16xf32>
    %744 = arith.mulf %743, %737 : vector<8x16xf32>
    %cst_309 = arith.constant 0x4B000000 : f32
    %745 = vector.broadcast %cst_309 : f32 to vector<8x16xf32>
    %746 = arith.mulf %744, %745 : vector<8x16xf32>
    %747 = math.floor %746 : vector<8x16xf32>
    %748 = arith.fptosi %747 : vector<8x16xf32> to vector<8x16xi32>
    %749 = arith.addi %741, %748 : vector<8x16xi32>
    %750 = arith.sitofp %749 : vector<8x16xi32> to vector<8x16xf32>
    %cst_310 = arith.constant 1.1920929E-7 : f32
    %751 = vector.broadcast %cst_310 : f32 to vector<8x16xf32>
    %752 = arith.mulf %750, %751 : vector<8x16xf32>
    %753 = tpu.concatenate %709, %752 in 1 : vector<8x32xf32>, vector<8x16xf32> -> vector<8x48xf32>
    %c0_311 = arith.constant 0 : index
    %c0_312 = arith.constant 0 : index
    %c0_313 = arith.constant 0 : index
    %754 = vector.load %arg6[%c0_311, %c0_312, %c0_313] : memref<2x48x32xf32, #tpu.memory_space<vmem>>, vector<1x48x32xf32>
    %755 = vector.shape_cast %754 : vector<1x48x32xf32> to vector<48x32xf32>
    %cst_314 = arith.constant dense<0.000000e+00> : vector<8x32xf32>
    %756 = tpu.matmul %753, %755, %cst_314 {dimension_numbers = #tpu.dot_dimension_numbers<[1], [0], [0], [1], [0, 0, 1, 1], [], []>} : vector<8x48xf32>, vector<48x32xf32>, vector<8x32xf32> -> vector<8x32xf32>
    %757 = vector.broadcast %4 : vector<1x32xf32> to vector<8x32xf32>
    %758 = arith.addf %756, %757 : vector<8x32xf32>
    %759 = arith.negf %758 : vector<8x32xf32>
    %760 = math.exp %759 : vector<8x32xf32>
    %cst_315 = arith.constant 1.000000e+00 : f32
    %761 = vector.broadcast %cst_315 : f32 to vector<8x32xf32>
    %762 = arith.addf %761, %760 : vector<8x32xf32>
    %763 = arith.divf %761, %762 : vector<8x32xf32>
    %764 = vector.extract_strided_slice %763 {offsets = [0, 0], sizes = [8, 16], strides = [1, 1]} : vector<8x32xf32> to vector<8x16xf32>
    %cst_316 = arith.constant 8.750000e-01 : f32
    %765 = vector.broadcast %cst_316 : f32 to vector<8x16xf32>
    %766 = arith.mulf %765, %764 : vector<8x16xf32>
    %cst_317 = arith.constant 1.250000e-01 : f32
    %767 = vector.broadcast %cst_317 : f32 to vector<8x16xf32>
    %768 = arith.addf %766, %767 : vector<8x16xf32>
    %769 = vector.extract_strided_slice %763 {offsets = [0, 16], sizes = [8, 16], strides = [1, 1]} : vector<8x32xf32> to vector<8x16xf32>
    %770 = arith.mulf %769, %752 : vector<8x16xf32>
    %771 = tpu.concatenate %709, %770 in 1 : vector<8x32xf32>, vector<8x16xf32> -> vector<8x48xf32>
    %c0_318 = arith.constant 0 : index
    %c0_319 = arith.constant 0 : index
    %c0_320 = arith.constant 0 : index
    %772 = vector.load %arg8[%c0_318, %c0_319, %c0_320] : memref<2x48x16xf32, #tpu.memory_space<vmem>>, vector<1x48x16xf32>
    %773 = vector.shape_cast %772 : vector<1x48x16xf32> to vector<48x16xf32>
    %cst_321 = arith.constant dense<0.000000e+00> : vector<8x16xf32>
    %774 = tpu.matmul %771, %773, %cst_321 {dimension_numbers = #tpu.dot_dimension_numbers<[1], [0], [0], [1], [0, 0, 1, 1], [], []>} : vector<8x48xf32>, vector<48x16xf32>, vector<8x16xf32> -> vector<8x16xf32>
    %775 = vector.broadcast %6 : vector<1x16xf32> to vector<8x16xf32>
    %776 = arith.addf %774, %775 : vector<8x16xf32>
    %777 = math.tanh %776 : vector<8x16xf32>
    %778 = arith.sitofp %616 : vector<8x16xi32> to vector<8x16xf32>
    %779 = arith.mulf %768, %778 : vector<8x16xf32>
    %780 = math.floor %779 : vector<8x16xf32>
    %781 = arith.fptosi %780 : vector<8x16xf32> to vector<8x16xi32>
    %cst_322 = arith.constant 1.000000e+00 : f32
    %782 = vector.broadcast %cst_322 : f32 to vector<8x16xf32>
    %783 = arith.subf %782, %768 : vector<8x16xf32>
    %784 = arith.mulf %783, %777 : vector<8x16xf32>
    %cst_323 = arith.constant 0x4B000000 : f32
    %785 = vector.broadcast %cst_323 : f32 to vector<8x16xf32>
    %786 = arith.mulf %784, %785 : vector<8x16xf32>
    %787 = math.floor %786 : vector<8x16xf32>
    %788 = arith.fptosi %787 : vector<8x16xf32> to vector<8x16xi32>
    %789 = arith.addi %781, %788 : vector<8x16xi32>
    %790 = tpu.concatenate %749, %789 in 1 : vector<8x16xi32>, vector<8x16xi32> -> vector<8x32xi32>
    %c4_324 = arith.constant 4 : index
    %c0_325 = arith.constant 0 : index
    %c0_326 = arith.constant 0 : index
    %c0_327 = arith.constant 0 : index
    %791 = vector.load %arg10[%c4_324, %c0_325, %c0_326, %c0_327] : memref<8x2x8x32xi32, #tpu.memory_space<vmem>>, vector<1x1x8x32xi32>
    %792 = vector.shape_cast %791 : vector<1x1x8x32xi32> to vector<8x32xi32>
    %793 = vector.shape_cast %790 : vector<8x32xi32> to vector<1x1x8x32xi32>
    tpu.vector_store %arg10[%c4_324, %c0_325, %c0_326, %c0_327], %793 {strides = array<i32>} : memref<8x2x8x32xi32, #tpu.memory_space<vmem>>, vector<1x1x8x32xi32>,
    %794 = arith.sitofp %790 : vector<8x32xi32> to vector<8x32xf32>
    %cst_328 = arith.constant 1.1920929E-7 : f32
    %795 = vector.broadcast %cst_328 : f32 to vector<8x32xf32>
    %796 = arith.mulf %794, %795 : vector<8x32xf32>
    %797 = arith.sitofp %703 : vector<8x16xi32> to vector<8x16xf32>
    %cst_329 = arith.constant 1.1920929E-7 : f32
    %798 = vector.broadcast %cst_329 : f32 to vector<8x16xf32>
    %799 = arith.mulf %797, %798 : vector<8x16xf32>
    %800 = tpu.concatenate %796, %799 in 1 : vector<8x32xf32>, vector<8x16xf32> -> vector<8x48xf32>
    %c1_330 = arith.constant 1 : index
    %c0_331 = arith.constant 0 : index
    %c0_332 = arith.constant 0 : index
    %801 = vector.load %arg2[%c1_330, %c0_331, %c0_332] : memref<2x48x32xf32, #tpu.memory_space<vmem>>, vector<1x48x32xf32>
    %802 = vector.shape_cast %801 : vector<1x48x32xf32> to vector<48x32xf32>
    %cst_333 = arith.constant dense<0.000000e+00> : vector<8x32xf32>
    %803 = tpu.matmul %800, %802, %cst_333 {dimension_numbers = #tpu.dot_dimension_numbers<[1], [0], [0], [1], [0, 0, 1, 1], [], []>} : vector<8x48xf32>, vector<48x32xf32>, vector<8x32xf32> -> vector<8x32xf32>
    %804 = vector.broadcast %1 : vector<1x32xf32> to vector<8x32xf32>
    %805 = arith.addf %803, %804 : vector<8x32xf32>
    %806 = arith.negf %805 : vector<8x32xf32>
    %807 = math.exp %806 : vector<8x32xf32>
    %cst_334 = arith.constant 1.000000e+00 : f32
    %808 = vector.broadcast %cst_334 : f32 to vector<8x32xf32>
    %809 = arith.addf %808, %807 : vector<8x32xf32>
    %810 = arith.divf %808, %809 : vector<8x32xf32>
    %811 = vector.extract_strided_slice %810 {offsets = [0, 0], sizes = [8, 16], strides = [1, 1]} : vector<8x32xf32> to vector<8x16xf32>
    %cst_335 = arith.constant 8.750000e-01 : f32
    %812 = vector.broadcast %cst_335 : f32 to vector<8x16xf32>
    %813 = arith.mulf %812, %811 : vector<8x16xf32>
    %cst_336 = arith.constant 1.250000e-01 : f32
    %814 = vector.broadcast %cst_336 : f32 to vector<8x16xf32>
    %815 = arith.addf %813, %814 : vector<8x16xf32>
    %816 = vector.extract_strided_slice %810 {offsets = [0, 16], sizes = [8, 16], strides = [1, 1]} : vector<8x32xf32> to vector<8x16xf32>
    %817 = arith.mulf %816, %799 : vector<8x16xf32>
    %818 = tpu.concatenate %796, %817 in 1 : vector<8x32xf32>, vector<8x16xf32> -> vector<8x48xf32>
    %c1_337 = arith.constant 1 : index
    %c0_338 = arith.constant 0 : index
    %c0_339 = arith.constant 0 : index
    %819 = vector.load %arg4[%c1_337, %c0_338, %c0_339] : memref<2x48x16xf32, #tpu.memory_space<vmem>>, vector<1x48x16xf32>
    %820 = vector.shape_cast %819 : vector<1x48x16xf32> to vector<48x16xf32>
    %cst_340 = arith.constant dense<0.000000e+00> : vector<8x16xf32>
    %821 = tpu.matmul %818, %820, %cst_340 {dimension_numbers = #tpu.dot_dimension_numbers<[1], [0], [0], [1], [0, 0, 1, 1], [], []>} : vector<8x48xf32>, vector<48x16xf32>, vector<8x16xf32> -> vector<8x16xf32>
    %822 = vector.broadcast %3 : vector<1x16xf32> to vector<8x16xf32>
    %823 = arith.addf %821, %822 : vector<8x16xf32>
    %824 = math.tanh %823 : vector<8x16xf32>
    %825 = arith.sitofp %663 : vector<8x16xi32> to vector<8x16xf32>
    %826 = arith.mulf %815, %825 : vector<8x16xf32>
    %827 = math.floor %826 : vector<8x16xf32>
    %828 = arith.fptosi %827 : vector<8x16xf32> to vector<8x16xi32>
    %cst_341 = arith.constant 1.000000e+00 : f32
    %829 = vector.broadcast %cst_341 : f32 to vector<8x16xf32>
    %830 = arith.subf %829, %815 : vector<8x16xf32>
    %831 = arith.mulf %830, %824 : vector<8x16xf32>
    %cst_342 = arith.constant 0x4B000000 : f32
    %832 = vector.broadcast %cst_342 : f32 to vector<8x16xf32>
    %833 = arith.mulf %831, %832 : vector<8x16xf32>
    %834 = math.floor %833 : vector<8x16xf32>
    %835 = arith.fptosi %834 : vector<8x16xf32> to vector<8x16xi32>
    %836 = arith.addi %828, %835 : vector<8x16xi32>
    %837 = arith.sitofp %836 : vector<8x16xi32> to vector<8x16xf32>
    %cst_343 = arith.constant 1.1920929E-7 : f32
    %838 = vector.broadcast %cst_343 : f32 to vector<8x16xf32>
    %839 = arith.mulf %837, %838 : vector<8x16xf32>
    %840 = tpu.concatenate %796, %839 in 1 : vector<8x32xf32>, vector<8x16xf32> -> vector<8x48xf32>
    %c1_344 = arith.constant 1 : index
    %c0_345 = arith.constant 0 : index
    %c0_346 = arith.constant 0 : index
    %841 = vector.load %arg6[%c1_344, %c0_345, %c0_346] : memref<2x48x32xf32, #tpu.memory_space<vmem>>, vector<1x48x32xf32>
    %842 = vector.shape_cast %841 : vector<1x48x32xf32> to vector<48x32xf32>
    %cst_347 = arith.constant dense<0.000000e+00> : vector<8x32xf32>
    %843 = tpu.matmul %840, %842, %cst_347 {dimension_numbers = #tpu.dot_dimension_numbers<[1], [0], [0], [1], [0, 0, 1, 1], [], []>} : vector<8x48xf32>, vector<48x32xf32>, vector<8x32xf32> -> vector<8x32xf32>
    %844 = vector.broadcast %5 : vector<1x32xf32> to vector<8x32xf32>
    %845 = arith.addf %843, %844 : vector<8x32xf32>
    %846 = arith.negf %845 : vector<8x32xf32>
    %847 = math.exp %846 : vector<8x32xf32>
    %cst_348 = arith.constant 1.000000e+00 : f32
    %848 = vector.broadcast %cst_348 : f32 to vector<8x32xf32>
    %849 = arith.addf %848, %847 : vector<8x32xf32>
    %850 = arith.divf %848, %849 : vector<8x32xf32>
    %851 = vector.extract_strided_slice %850 {offsets = [0, 0], sizes = [8, 16], strides = [1, 1]} : vector<8x32xf32> to vector<8x16xf32>
    %cst_349 = arith.constant 8.750000e-01 : f32
    %852 = vector.broadcast %cst_349 : f32 to vector<8x16xf32>
    %853 = arith.mulf %852, %851 : vector<8x16xf32>
    %cst_350 = arith.constant 1.250000e-01 : f32
    %854 = vector.broadcast %cst_350 : f32 to vector<8x16xf32>
    %855 = arith.addf %853, %854 : vector<8x16xf32>
    %856 = vector.extract_strided_slice %850 {offsets = [0, 16], sizes = [8, 16], strides = [1, 1]} : vector<8x32xf32> to vector<8x16xf32>
    %857 = arith.mulf %856, %839 : vector<8x16xf32>
    %858 = tpu.concatenate %796, %857 in 1 : vector<8x32xf32>, vector<8x16xf32> -> vector<8x48xf32>
    %c1_351 = arith.constant 1 : index
    %c0_352 = arith.constant 0 : index
    %c0_353 = arith.constant 0 : index
    %859 = vector.load %arg8[%c1_351, %c0_352, %c0_353] : memref<2x48x16xf32, #tpu.memory_space<vmem>>, vector<1x48x16xf32>
    %860 = vector.shape_cast %859 : vector<1x48x16xf32> to vector<48x16xf32>
    %cst_354 = arith.constant dense<0.000000e+00> : vector<8x16xf32>
    %861 = tpu.matmul %858, %860, %cst_354 {dimension_numbers = #tpu.dot_dimension_numbers<[1], [0], [0], [1], [0, 0, 1, 1], [], []>} : vector<8x48xf32>, vector<48x16xf32>, vector<8x16xf32> -> vector<8x16xf32>
    %862 = vector.broadcast %7 : vector<1x16xf32> to vector<8x16xf32>
    %863 = arith.addf %861, %862 : vector<8x16xf32>
    %864 = math.tanh %863 : vector<8x16xf32>
    %865 = arith.sitofp %703 : vector<8x16xi32> to vector<8x16xf32>
    %866 = arith.mulf %855, %865 : vector<8x16xf32>
    %867 = math.floor %866 : vector<8x16xf32>
    %868 = arith.fptosi %867 : vector<8x16xf32> to vector<8x16xi32>
    %cst_355 = arith.constant 1.000000e+00 : f32
    %869 = vector.broadcast %cst_355 : f32 to vector<8x16xf32>
    %870 = arith.subf %869, %855 : vector<8x16xf32>
    %871 = arith.mulf %870, %864 : vector<8x16xf32>
    %cst_356 = arith.constant 0x4B000000 : f32
    %872 = vector.broadcast %cst_356 : f32 to vector<8x16xf32>
    %873 = arith.mulf %871, %872 : vector<8x16xf32>
    %874 = math.floor %873 : vector<8x16xf32>
    %875 = arith.fptosi %874 : vector<8x16xf32> to vector<8x16xi32>
    %876 = arith.addi %868, %875 : vector<8x16xi32>
    %877 = tpu.concatenate %836, %876 in 1 : vector<8x16xi32>, vector<8x16xi32> -> vector<8x32xi32>
    %c4_357 = arith.constant 4 : index
    %c1_358 = arith.constant 1 : index
    %c0_359 = arith.constant 0 : index
    %c0_360 = arith.constant 0 : index
    %878 = vector.load %arg10[%c4_357, %c1_358, %c0_359, %c0_360] : memref<8x2x8x32xi32, #tpu.memory_space<vmem>>, vector<1x1x8x32xi32>
    %879 = vector.shape_cast %878 : vector<1x1x8x32xi32> to vector<8x32xi32>
    %880 = vector.shape_cast %877 : vector<8x32xi32> to vector<1x1x8x32xi32>
    tpu.vector_store %arg10[%c4_357, %c1_358, %c0_359, %c0_360], %880 {strides = array<i32>} : memref<8x2x8x32xi32, #tpu.memory_space<vmem>>, vector<1x1x8x32xi32>,
    %c5 = arith.constant 5 : index
    %c0_361 = arith.constant 0 : index
    %c0_362 = arith.constant 0 : index
    %881 = vector.load %arg0[%c5, %c0_361, %c0_362] : memref<8x8x32xf32, #tpu.memory_space<vmem>>, vector<1x8x32xf32>
    %882 = vector.shape_cast %881 : vector<1x8x32xf32> to vector<8x32xf32>
    %883 = arith.sitofp %789 : vector<8x16xi32> to vector<8x16xf32>
    %cst_363 = arith.constant 1.1920929E-7 : f32
    %884 = vector.broadcast %cst_363 : f32 to vector<8x16xf32>
    %885 = arith.mulf %883, %884 : vector<8x16xf32>
    %886 = tpu.concatenate %882, %885 in 1 : vector<8x32xf32>, vector<8x16xf32> -> vector<8x48xf32>
    %c0_364 = arith.constant 0 : index
    %c0_365 = arith.constant 0 : index
    %c0_366 = arith.constant 0 : index
    %887 = vector.load %arg2[%c0_364, %c0_365, %c0_366] : memref<2x48x32xf32, #tpu.memory_space<vmem>>, vector<1x48x32xf32>
    %888 = vector.shape_cast %887 : vector<1x48x32xf32> to vector<48x32xf32>
    %cst_367 = arith.constant dense<0.000000e+00> : vector<8x32xf32>
    %889 = tpu.matmul %886, %888, %cst_367 {dimension_numbers = #tpu.dot_dimension_numbers<[1], [0], [0], [1], [0, 0, 1, 1], [], []>} : vector<8x48xf32>, vector<48x32xf32>, vector<8x32xf32> -> vector<8x32xf32>
    %890 = vector.broadcast %0 : vector<1x32xf32> to vector<8x32xf32>
    %891 = arith.addf %889, %890 : vector<8x32xf32>
    %892 = arith.negf %891 : vector<8x32xf32>
    %893 = math.exp %892 : vector<8x32xf32>
    %cst_368 = arith.constant 1.000000e+00 : f32
    %894 = vector.broadcast %cst_368 : f32 to vector<8x32xf32>
    %895 = arith.addf %894, %893 : vector<8x32xf32>
    %896 = arith.divf %894, %895 : vector<8x32xf32>
    %897 = vector.extract_strided_slice %896 {offsets = [0, 0], sizes = [8, 16], strides = [1, 1]} : vector<8x32xf32> to vector<8x16xf32>
    %cst_369 = arith.constant 8.750000e-01 : f32
    %898 = vector.broadcast %cst_369 : f32 to vector<8x16xf32>
    %899 = arith.mulf %898, %897 : vector<8x16xf32>
    %cst_370 = arith.constant 1.250000e-01 : f32
    %900 = vector.broadcast %cst_370 : f32 to vector<8x16xf32>
    %901 = arith.addf %899, %900 : vector<8x16xf32>
    %902 = vector.extract_strided_slice %896 {offsets = [0, 16], sizes = [8, 16], strides = [1, 1]} : vector<8x32xf32> to vector<8x16xf32>
    %903 = arith.mulf %902, %885 : vector<8x16xf32>
    %904 = tpu.concatenate %882, %903 in 1 : vector<8x32xf32>, vector<8x16xf32> -> vector<8x48xf32>
    %c0_371 = arith.constant 0 : index
    %c0_372 = arith.constant 0 : index
    %c0_373 = arith.constant 0 : index
    %905 = vector.load %arg4[%c0_371, %c0_372, %c0_373] : memref<2x48x16xf32, #tpu.memory_space<vmem>>, vector<1x48x16xf32>
    %906 = vector.shape_cast %905 : vector<1x48x16xf32> to vector<48x16xf32>
    %cst_374 = arith.constant dense<0.000000e+00> : vector<8x16xf32>
    %907 = tpu.matmul %904, %906, %cst_374 {dimension_numbers = #tpu.dot_dimension_numbers<[1], [0], [0], [1], [0, 0, 1, 1], [], []>} : vector<8x48xf32>, vector<48x16xf32>, vector<8x16xf32> -> vector<8x16xf32>
    %908 = vector.broadcast %2 : vector<1x16xf32> to vector<8x16xf32>
    %909 = arith.addf %907, %908 : vector<8x16xf32>
    %910 = math.tanh %909 : vector<8x16xf32>
    %911 = arith.sitofp %749 : vector<8x16xi32> to vector<8x16xf32>
    %912 = arith.mulf %901, %911 : vector<8x16xf32>
    %913 = math.floor %912 : vector<8x16xf32>
    %914 = arith.fptosi %913 : vector<8x16xf32> to vector<8x16xi32>
    %cst_375 = arith.constant 1.000000e+00 : f32
    %915 = vector.broadcast %cst_375 : f32 to vector<8x16xf32>
    %916 = arith.subf %915, %901 : vector<8x16xf32>
    %917 = arith.mulf %916, %910 : vector<8x16xf32>
    %cst_376 = arith.constant 0x4B000000 : f32
    %918 = vector.broadcast %cst_376 : f32 to vector<8x16xf32>
    %919 = arith.mulf %917, %918 : vector<8x16xf32>
    %920 = math.floor %919 : vector<8x16xf32>
    %921 = arith.fptosi %920 : vector<8x16xf32> to vector<8x16xi32>
    %922 = arith.addi %914, %921 : vector<8x16xi32>
    %923 = arith.sitofp %922 : vector<8x16xi32> to vector<8x16xf32>
    %cst_377 = arith.constant 1.1920929E-7 : f32
    %924 = vector.broadcast %cst_377 : f32 to vector<8x16xf32>
    %925 = arith.mulf %923, %924 : vector<8x16xf32>
    %926 = tpu.concatenate %882, %925 in 1 : vector<8x32xf32>, vector<8x16xf32> -> vector<8x48xf32>
    %c0_378 = arith.constant 0 : index
    %c0_379 = arith.constant 0 : index
    %c0_380 = arith.constant 0 : index
    %927 = vector.load %arg6[%c0_378, %c0_379, %c0_380] : memref<2x48x32xf32, #tpu.memory_space<vmem>>, vector<1x48x32xf32>
    %928 = vector.shape_cast %927 : vector<1x48x32xf32> to vector<48x32xf32>
    %cst_381 = arith.constant dense<0.000000e+00> : vector<8x32xf32>
    %929 = tpu.matmul %926, %928, %cst_381 {dimension_numbers = #tpu.dot_dimension_numbers<[1], [0], [0], [1], [0, 0, 1, 1], [], []>} : vector<8x48xf32>, vector<48x32xf32>, vector<8x32xf32> -> vector<8x32xf32>
    %930 = vector.broadcast %4 : vector<1x32xf32> to vector<8x32xf32>
    %931 = arith.addf %929, %930 : vector<8x32xf32>
    %932 = arith.negf %931 : vector<8x32xf32>
    %933 = math.exp %932 : vector<8x32xf32>
    %cst_382 = arith.constant 1.000000e+00 : f32
    %934 = vector.broadcast %cst_382 : f32 to vector<8x32xf32>
    %935 = arith.addf %934, %933 : vector<8x32xf32>
    %936 = arith.divf %934, %935 : vector<8x32xf32>
    %937 = vector.extract_strided_slice %936 {offsets = [0, 0], sizes = [8, 16], strides = [1, 1]} : vector<8x32xf32> to vector<8x16xf32>
    %cst_383 = arith.constant 8.750000e-01 : f32
    %938 = vector.broadcast %cst_383 : f32 to vector<8x16xf32>
    %939 = arith.mulf %938, %937 : vector<8x16xf32>
    %cst_384 = arith.constant 1.250000e-01 : f32
    %940 = vector.broadcast %cst_384 : f32 to vector<8x16xf32>
    %941 = arith.addf %939, %940 : vector<8x16xf32>
    %942 = vector.extract_strided_slice %936 {offsets = [0, 16], sizes = [8, 16], strides = [1, 1]} : vector<8x32xf32> to vector<8x16xf32>
    %943 = arith.mulf %942, %925 : vector<8x16xf32>
    %944 = tpu.concatenate %882, %943 in 1 : vector<8x32xf32>, vector<8x16xf32> -> vector<8x48xf32>
    %c0_385 = arith.constant 0 : index
    %c0_386 = arith.constant 0 : index
    %c0_387 = arith.constant 0 : index
    %945 = vector.load %arg8[%c0_385, %c0_386, %c0_387] : memref<2x48x16xf32, #tpu.memory_space<vmem>>, vector<1x48x16xf32>
    %946 = vector.shape_cast %945 : vector<1x48x16xf32> to vector<48x16xf32>
    %cst_388 = arith.constant dense<0.000000e+00> : vector<8x16xf32>
    %947 = tpu.matmul %944, %946, %cst_388 {dimension_numbers = #tpu.dot_dimension_numbers<[1], [0], [0], [1], [0, 0, 1, 1], [], []>} : vector<8x48xf32>, vector<48x16xf32>, vector<8x16xf32> -> vector<8x16xf32>
    %948 = vector.broadcast %6 : vector<1x16xf32> to vector<8x16xf32>
    %949 = arith.addf %947, %948 : vector<8x16xf32>
    %950 = math.tanh %949 : vector<8x16xf32>
    %951 = arith.sitofp %789 : vector<8x16xi32> to vector<8x16xf32>
    %952 = arith.mulf %941, %951 : vector<8x16xf32>
    %953 = math.floor %952 : vector<8x16xf32>
    %954 = arith.fptosi %953 : vector<8x16xf32> to vector<8x16xi32>
    %cst_389 = arith.constant 1.000000e+00 : f32
    %955 = vector.broadcast %cst_389 : f32 to vector<8x16xf32>
    %956 = arith.subf %955, %941 : vector<8x16xf32>
    %957 = arith.mulf %956, %950 : vector<8x16xf32>
    %cst_390 = arith.constant 0x4B000000 : f32
    %958 = vector.broadcast %cst_390 : f32 to vector<8x16xf32>
    %959 = arith.mulf %957, %958 : vector<8x16xf32>
    %960 = math.floor %959 : vector<8x16xf32>
    %961 = arith.fptosi %960 : vector<8x16xf32> to vector<8x16xi32>
    %962 = arith.addi %954, %961 : vector<8x16xi32>
    %963 = tpu.concatenate %922, %962 in 1 : vector<8x16xi32>, vector<8x16xi32> -> vector<8x32xi32>
    %c5_391 = arith.constant 5 : index
    %c0_392 = arith.constant 0 : index
    %c0_393 = arith.constant 0 : index
    %c0_394 = arith.constant 0 : index
    %964 = vector.load %arg10[%c5_391, %c0_392, %c0_393, %c0_394] : memref<8x2x8x32xi32, #tpu.memory_space<vmem>>, vector<1x1x8x32xi32>
    %965 = vector.shape_cast %964 : vector<1x1x8x32xi32> to vector<8x32xi32>
    %966 = vector.shape_cast %963 : vector<8x32xi32> to vector<1x1x8x32xi32>
    tpu.vector_store %arg10[%c5_391, %c0_392, %c0_393, %c0_394], %966 {strides = array<i32>} : memref<8x2x8x32xi32, #tpu.memory_space<vmem>>, vector<1x1x8x32xi32>,
    %967 = arith.sitofp %963 : vector<8x32xi32> to vector<8x32xf32>
    %cst_395 = arith.constant 1.1920929E-7 : f32
    %968 = vector.broadcast %cst_395 : f32 to vector<8x32xf32>
    %969 = arith.mulf %967, %968 : vector<8x32xf32>
    %970 = arith.sitofp %876 : vector<8x16xi32> to vector<8x16xf32>
    %cst_396 = arith.constant 1.1920929E-7 : f32
    %971 = vector.broadcast %cst_396 : f32 to vector<8x16xf32>
    %972 = arith.mulf %970, %971 : vector<8x16xf32>
    %973 = tpu.concatenate %969, %972 in 1 : vector<8x32xf32>, vector<8x16xf32> -> vector<8x48xf32>
    %c1_397 = arith.constant 1 : index
    %c0_398 = arith.constant 0 : index
    %c0_399 = arith.constant 0 : index
    %974 = vector.load %arg2[%c1_397, %c0_398, %c0_399] : memref<2x48x32xf32, #tpu.memory_space<vmem>>, vector<1x48x32xf32>
    %975 = vector.shape_cast %974 : vector<1x48x32xf32> to vector<48x32xf32>
    %cst_400 = arith.constant dense<0.000000e+00> : vector<8x32xf32>
    %976 = tpu.matmul %973, %975, %cst_400 {dimension_numbers = #tpu.dot_dimension_numbers<[1], [0], [0], [1], [0, 0, 1, 1], [], []>} : vector<8x48xf32>, vector<48x32xf32>, vector<8x32xf32> -> vector<8x32xf32>
    %977 = vector.broadcast %1 : vector<1x32xf32> to vector<8x32xf32>
    %978 = arith.addf %976, %977 : vector<8x32xf32>
    %979 = arith.negf %978 : vector<8x32xf32>
    %980 = math.exp %979 : vector<8x32xf32>
    %cst_401 = arith.constant 1.000000e+00 : f32
    %981 = vector.broadcast %cst_401 : f32 to vector<8x32xf32>
    %982 = arith.addf %981, %980 : vector<8x32xf32>
    %983 = arith.divf %981, %982 : vector<8x32xf32>
    %984 = vector.extract_strided_slice %983 {offsets = [0, 0], sizes = [8, 16], strides = [1, 1]} : vector<8x32xf32> to vector<8x16xf32>
    %cst_402 = arith.constant 8.750000e-01 : f32
    %985 = vector.broadcast %cst_402 : f32 to vector<8x16xf32>
    %986 = arith.mulf %985, %984 : vector<8x16xf32>
    %cst_403 = arith.constant 1.250000e-01 : f32
    %987 = vector.broadcast %cst_403 : f32 to vector<8x16xf32>
    %988 = arith.addf %986, %987 : vector<8x16xf32>
    %989 = vector.extract_strided_slice %983 {offsets = [0, 16], sizes = [8, 16], strides = [1, 1]} : vector<8x32xf32> to vector<8x16xf32>
    %990 = arith.mulf %989, %972 : vector<8x16xf32>
    %991 = tpu.concatenate %969, %990 in 1 : vector<8x32xf32>, vector<8x16xf32> -> vector<8x48xf32>
    %c1_404 = arith.constant 1 : index
    %c0_405 = arith.constant 0 : index
    %c0_406 = arith.constant 0 : index
    %992 = vector.load %arg4[%c1_404, %c0_405, %c0_406] : memref<2x48x16xf32, #tpu.memory_space<vmem>>, vector<1x48x16xf32>
    %993 = vector.shape_cast %992 : vector<1x48x16xf32> to vector<48x16xf32>
    %cst_407 = arith.constant dense<0.000000e+00> : vector<8x16xf32>
    %994 = tpu.matmul %991, %993, %cst_407 {dimension_numbers = #tpu.dot_dimension_numbers<[1], [0], [0], [1], [0, 0, 1, 1], [], []>} : vector<8x48xf32>, vector<48x16xf32>, vector<8x16xf32> -> vector<8x16xf32>
    %995 = vector.broadcast %3 : vector<1x16xf32> to vector<8x16xf32>
    %996 = arith.addf %994, %995 : vector<8x16xf32>
    %997 = math.tanh %996 : vector<8x16xf32>
    %998 = arith.sitofp %836 : vector<8x16xi32> to vector<8x16xf32>
    %999 = arith.mulf %988, %998 : vector<8x16xf32>
    %1000 = math.floor %999 : vector<8x16xf32>
    %1001 = arith.fptosi %1000 : vector<8x16xf32> to vector<8x16xi32>
    %cst_408 = arith.constant 1.000000e+00 : f32
    %1002 = vector.broadcast %cst_408 : f32 to vector<8x16xf32>
    %1003 = arith.subf %1002, %988 : vector<8x16xf32>
    %1004 = arith.mulf %1003, %997 : vector<8x16xf32>
    %cst_409 = arith.constant 0x4B000000 : f32
    %1005 = vector.broadcast %cst_409 : f32 to vector<8x16xf32>
    %1006 = arith.mulf %1004, %1005 : vector<8x16xf32>
    %1007 = math.floor %1006 : vector<8x16xf32>
    %1008 = arith.fptosi %1007 : vector<8x16xf32> to vector<8x16xi32>
    %1009 = arith.addi %1001, %1008 : vector<8x16xi32>
    %1010 = arith.sitofp %1009 : vector<8x16xi32> to vector<8x16xf32>
    %cst_410 = arith.constant 1.1920929E-7 : f32
    %1011 = vector.broadcast %cst_410 : f32 to vector<8x16xf32>
    %1012 = arith.mulf %1010, %1011 : vector<8x16xf32>
    %1013 = tpu.concatenate %969, %1012 in 1 : vector<8x32xf32>, vector<8x16xf32> -> vector<8x48xf32>
    %c1_411 = arith.constant 1 : index
    %c0_412 = arith.constant 0 : index
    %c0_413 = arith.constant 0 : index
    %1014 = vector.load %arg6[%c1_411, %c0_412, %c0_413] : memref<2x48x32xf32, #tpu.memory_space<vmem>>, vector<1x48x32xf32>
    %1015 = vector.shape_cast %1014 : vector<1x48x32xf32> to vector<48x32xf32>
    %cst_414 = arith.constant dense<0.000000e+00> : vector<8x32xf32>
    %1016 = tpu.matmul %1013, %1015, %cst_414 {dimension_numbers = #tpu.dot_dimension_numbers<[1], [0], [0], [1], [0, 0, 1, 1], [], []>} : vector<8x48xf32>, vector<48x32xf32>, vector<8x32xf32> -> vector<8x32xf32>
    %1017 = vector.broadcast %5 : vector<1x32xf32> to vector<8x32xf32>
    %1018 = arith.addf %1016, %1017 : vector<8x32xf32>
    %1019 = arith.negf %1018 : vector<8x32xf32>
    %1020 = math.exp %1019 : vector<8x32xf32>
    %cst_415 = arith.constant 1.000000e+00 : f32
    %1021 = vector.broadcast %cst_415 : f32 to vector<8x32xf32>
    %1022 = arith.addf %1021, %1020 : vector<8x32xf32>
    %1023 = arith.divf %1021, %1022 : vector<8x32xf32>
    %1024 = vector.extract_strided_slice %1023 {offsets = [0, 0], sizes = [8, 16], strides = [1, 1]} : vector<8x32xf32> to vector<8x16xf32>
    %cst_416 = arith.constant 8.750000e-01 : f32
    %1025 = vector.broadcast %cst_416 : f32 to vector<8x16xf32>
    %1026 = arith.mulf %1025, %1024 : vector<8x16xf32>
    %cst_417 = arith.constant 1.250000e-01 : f32
    %1027 = vector.broadcast %cst_417 : f32 to vector<8x16xf32>
    %1028 = arith.addf %1026, %1027 : vector<8x16xf32>
    %1029 = vector.extract_strided_slice %1023 {offsets = [0, 16], sizes = [8, 16], strides = [1, 1]} : vector<8x32xf32> to vector<8x16xf32>
    %1030 = arith.mulf %1029, %1012 : vector<8x16xf32>
    %1031 = tpu.concatenate %969, %1030 in 1 : vector<8x32xf32>, vector<8x16xf32> -> vector<8x48xf32>
    %c1_418 = arith.constant 1 : index
    %c0_419 = arith.constant 0 : index
    %c0_420 = arith.constant 0 : index
    %1032 = vector.load %arg8[%c1_418, %c0_419, %c0_420] : memref<2x48x16xf32, #tpu.memory_space<vmem>>, vector<1x48x16xf32>
    %1033 = vector.shape_cast %1032 : vector<1x48x16xf32> to vector<48x16xf32>
    %cst_421 = arith.constant dense<0.000000e+00> : vector<8x16xf32>
    %1034 = tpu.matmul %1031, %1033, %cst_421 {dimension_numbers = #tpu.dot_dimension_numbers<[1], [0], [0], [1], [0, 0, 1, 1], [], []>} : vector<8x48xf32>, vector<48x16xf32>, vector<8x16xf32> -> vector<8x16xf32>
    %1035 = vector.broadcast %7 : vector<1x16xf32> to vector<8x16xf32>
    %1036 = arith.addf %1034, %1035 : vector<8x16xf32>
    %1037 = math.tanh %1036 : vector<8x16xf32>
    %1038 = arith.sitofp %876 : vector<8x16xi32> to vector<8x16xf32>
    %1039 = arith.mulf %1028, %1038 : vector<8x16xf32>
    %1040 = math.floor %1039 : vector<8x16xf32>
    %1041 = arith.fptosi %1040 : vector<8x16xf32> to vector<8x16xi32>
    %cst_422 = arith.constant 1.000000e+00 : f32
    %1042 = vector.broadcast %cst_422 : f32 to vector<8x16xf32>
    %1043 = arith.subf %1042, %1028 : vector<8x16xf32>
    %1044 = arith.mulf %1043, %1037 : vector<8x16xf32>
    %cst_423 = arith.constant 0x4B000000 : f32
    %1045 = vector.broadcast %cst_423 : f32 to vector<8x16xf32>
    %1046 = arith.mulf %1044, %1045 : vector<8x16xf32>
    %1047 = math.floor %1046 : vector<8x16xf32>
    %1048 = arith.fptosi %1047 : vector<8x16xf32> to vector<8x16xi32>
    %1049 = arith.addi %1041, %1048 : vector<8x16xi32>
    %1050 = tpu.concatenate %1009, %1049 in 1 : vector<8x16xi32>, vector<8x16xi32> -> vector<8x32xi32>
    %c5_424 = arith.constant 5 : index
    %c1_425 = arith.constant 1 : index
    %c0_426 = arith.constant 0 : index
    %c0_427 = arith.constant 0 : index
    %1051 = vector.load %arg10[%c5_424, %c1_425, %c0_426, %c0_427] : memref<8x2x8x32xi32, #tpu.memory_space<vmem>>, vector<1x1x8x32xi32>
    %1052 = vector.shape_cast %1051 : vector<1x1x8x32xi32> to vector<8x32xi32>
    %1053 = vector.shape_cast %1050 : vector<8x32xi32> to vector<1x1x8x32xi32>
    tpu.vector_store %arg10[%c5_424, %c1_425, %c0_426, %c0_427], %1053 {strides = array<i32>} : memref<8x2x8x32xi32, #tpu.memory_space<vmem>>, vector<1x1x8x32xi32>,
    %c6 = arith.constant 6 : index
    %c0_428 = arith.constant 0 : index
    %c0_429 = arith.constant 0 : index
    %1054 = vector.load %arg0[%c6, %c0_428, %c0_429] : memref<8x8x32xf32, #tpu.memory_space<vmem>>, vector<1x8x32xf32>
    %1055 = vector.shape_cast %1054 : vector<1x8x32xf32> to vector<8x32xf32>
    %1056 = arith.sitofp %962 : vector<8x16xi32> to vector<8x16xf32>
    %cst_430 = arith.constant 1.1920929E-7 : f32
    %1057 = vector.broadcast %cst_430 : f32 to vector<8x16xf32>
    %1058 = arith.mulf %1056, %1057 : vector<8x16xf32>
    %1059 = tpu.concatenate %1055, %1058 in 1 : vector<8x32xf32>, vector<8x16xf32> -> vector<8x48xf32>
    %c0_431 = arith.constant 0 : index
    %c0_432 = arith.constant 0 : index
    %c0_433 = arith.constant 0 : index
    %1060 = vector.load %arg2[%c0_431, %c0_432, %c0_433] : memref<2x48x32xf32, #tpu.memory_space<vmem>>, vector<1x48x32xf32>
    %1061 = vector.shape_cast %1060 : vector<1x48x32xf32> to vector<48x32xf32>
    %cst_434 = arith.constant dense<0.000000e+00> : vector<8x32xf32>
    %1062 = tpu.matmul %1059, %1061, %cst_434 {dimension_numbers = #tpu.dot_dimension_numbers<[1], [0], [0], [1], [0, 0, 1, 1], [], []>} : vector<8x48xf32>, vector<48x32xf32>, vector<8x32xf32> -> vector<8x32xf32>
    %1063 = vector.broadcast %0 : vector<1x32xf32> to vector<8x32xf32>
    %1064 = arith.addf %1062, %1063 : vector<8x32xf32>
    %1065 = arith.negf %1064 : vector<8x32xf32>
    %1066 = math.exp %1065 : vector<8x32xf32>
    %cst_435 = arith.constant 1.000000e+00 : f32
    %1067 = vector.broadcast %cst_435 : f32 to vector<8x32xf32>
    %1068 = arith.addf %1067, %1066 : vector<8x32xf32>
    %1069 = arith.divf %1067, %1068 : vector<8x32xf32>
    %1070 = vector.extract_strided_slice %1069 {offsets = [0, 0], sizes = [8, 16], strides = [1, 1]} : vector<8x32xf32> to vector<8x16xf32>
    %cst_436 = arith.constant 8.750000e-01 : f32
    %1071 = vector.broadcast %cst_436 : f32 to vector<8x16xf32>
    %1072 = arith.mulf %1071, %1070 : vector<8x16xf32>
    %cst_437 = arith.constant 1.250000e-01 : f32
    %1073 = vector.broadcast %cst_437 : f32 to vector<8x16xf32>
    %1074 = arith.addf %1072, %1073 : vector<8x16xf32>
    %1075 = vector.extract_strided_slice %1069 {offsets = [0, 16], sizes = [8, 16], strides = [1, 1]} : vector<8x32xf32> to vector<8x16xf32>
    %1076 = arith.mulf %1075, %1058 : vector<8x16xf32>
    %1077 = tpu.concatenate %1055, %1076 in 1 : vector<8x32xf32>, vector<8x16xf32> -> vector<8x48xf32>
    %c0_438 = arith.constant 0 : index
    %c0_439 = arith.constant 0 : index
    %c0_440 = arith.constant 0 : index
    %1078 = vector.load %arg4[%c0_438, %c0_439, %c0_440] : memref<2x48x16xf32, #tpu.memory_space<vmem>>, vector<1x48x16xf32>
    %1079 = vector.shape_cast %1078 : vector<1x48x16xf32> to vector<48x16xf32>
    %cst_441 = arith.constant dense<0.000000e+00> : vector<8x16xf32>
    %1080 = tpu.matmul %1077, %1079, %cst_441 {dimension_numbers = #tpu.dot_dimension_numbers<[1], [0], [0], [1], [0, 0, 1, 1], [], []>} : vector<8x48xf32>, vector<48x16xf32>, vector<8x16xf32> -> vector<8x16xf32>
    %1081 = vector.broadcast %2 : vector<1x16xf32> to vector<8x16xf32>
    %1082 = arith.addf %1080, %1081 : vector<8x16xf32>
    %1083 = math.tanh %1082 : vector<8x16xf32>
    %1084 = arith.sitofp %922 : vector<8x16xi32> to vector<8x16xf32>
    %1085 = arith.mulf %1074, %1084 : vector<8x16xf32>
    %1086 = math.floor %1085 : vector<8x16xf32>
    %1087 = arith.fptosi %1086 : vector<8x16xf32> to vector<8x16xi32>
    %cst_442 = arith.constant 1.000000e+00 : f32
    %1088 = vector.broadcast %cst_442 : f32 to vector<8x16xf32>
    %1089 = arith.subf %1088, %1074 : vector<8x16xf32>
    %1090 = arith.mulf %1089, %1083 : vector<8x16xf32>
    %cst_443 = arith.constant 0x4B000000 : f32
    %1091 = vector.broadcast %cst_443 : f32 to vector<8x16xf32>
    %1092 = arith.mulf %1090, %1091 : vector<8x16xf32>
    %1093 = math.floor %1092 : vector<8x16xf32>
    %1094 = arith.fptosi %1093 : vector<8x16xf32> to vector<8x16xi32>
    %1095 = arith.addi %1087, %1094 : vector<8x16xi32>
    %1096 = arith.sitofp %1095 : vector<8x16xi32> to vector<8x16xf32>
    %cst_444 = arith.constant 1.1920929E-7 : f32
    %1097 = vector.broadcast %cst_444 : f32 to vector<8x16xf32>
    %1098 = arith.mulf %1096, %1097 : vector<8x16xf32>
    %1099 = tpu.concatenate %1055, %1098 in 1 : vector<8x32xf32>, vector<8x16xf32> -> vector<8x48xf32>
    %c0_445 = arith.constant 0 : index
    %c0_446 = arith.constant 0 : index
    %c0_447 = arith.constant 0 : index
    %1100 = vector.load %arg6[%c0_445, %c0_446, %c0_447] : memref<2x48x32xf32, #tpu.memory_space<vmem>>, vector<1x48x32xf32>
    %1101 = vector.shape_cast %1100 : vector<1x48x32xf32> to vector<48x32xf32>
    %cst_448 = arith.constant dense<0.000000e+00> : vector<8x32xf32>
    %1102 = tpu.matmul %1099, %1101, %cst_448 {dimension_numbers = #tpu.dot_dimension_numbers<[1], [0], [0], [1], [0, 0, 1, 1], [], []>} : vector<8x48xf32>, vector<48x32xf32>, vector<8x32xf32> -> vector<8x32xf32>
    %1103 = vector.broadcast %4 : vector<1x32xf32> to vector<8x32xf32>
    %1104 = arith.addf %1102, %1103 : vector<8x32xf32>
    %1105 = arith.negf %1104 : vector<8x32xf32>
    %1106 = math.exp %1105 : vector<8x32xf32>
    %cst_449 = arith.constant 1.000000e+00 : f32
    %1107 = vector.broadcast %cst_449 : f32 to vector<8x32xf32>
    %1108 = arith.addf %1107, %1106 : vector<8x32xf32>
    %1109 = arith.divf %1107, %1108 : vector<8x32xf32>
    %1110 = vector.extract_strided_slice %1109 {offsets = [0, 0], sizes = [8, 16], strides = [1, 1]} : vector<8x32xf32> to vector<8x16xf32>
    %cst_450 = arith.constant 8.750000e-01 : f32
    %1111 = vector.broadcast %cst_450 : f32 to vector<8x16xf32>
    %1112 = arith.mulf %1111, %1110 : vector<8x16xf32>
    %cst_451 = arith.constant 1.250000e-01 : f32
    %1113 = vector.broadcast %cst_451 : f32 to vector<8x16xf32>
    %1114 = arith.addf %1112, %1113 : vector<8x16xf32>
    %1115 = vector.extract_strided_slice %1109 {offsets = [0, 16], sizes = [8, 16], strides = [1, 1]} : vector<8x32xf32> to vector<8x16xf32>
    %1116 = arith.mulf %1115, %1098 : vector<8x16xf32>
    %1117 = tpu.concatenate %1055, %1116 in 1 : vector<8x32xf32>, vector<8x16xf32> -> vector<8x48xf32>
    %c0_452 = arith.constant 0 : index
    %c0_453 = arith.constant 0 : index
    %c0_454 = arith.constant 0 : index
    %1118 = vector.load %arg8[%c0_452, %c0_453, %c0_454] : memref<2x48x16xf32, #tpu.memory_space<vmem>>, vector<1x48x16xf32>
    %1119 = vector.shape_cast %1118 : vector<1x48x16xf32> to vector<48x16xf32>
    %cst_455 = arith.constant dense<0.000000e+00> : vector<8x16xf32>
    %1120 = tpu.matmul %1117, %1119, %cst_455 {dimension_numbers = #tpu.dot_dimension_numbers<[1], [0], [0], [1], [0, 0, 1, 1], [], []>} : vector<8x48xf32>, vector<48x16xf32>, vector<8x16xf32> -> vector<8x16xf32>
    %1121 = vector.broadcast %6 : vector<1x16xf32> to vector<8x16xf32>
    %1122 = arith.addf %1120, %1121 : vector<8x16xf32>
    %1123 = math.tanh %1122 : vector<8x16xf32>
    %1124 = arith.sitofp %962 : vector<8x16xi32> to vector<8x16xf32>
    %1125 = arith.mulf %1114, %1124 : vector<8x16xf32>
    %1126 = math.floor %1125 : vector<8x16xf32>
    %1127 = arith.fptosi %1126 : vector<8x16xf32> to vector<8x16xi32>
    %cst_456 = arith.constant 1.000000e+00 : f32
    %1128 = vector.broadcast %cst_456 : f32 to vector<8x16xf32>
    %1129 = arith.subf %1128, %1114 : vector<8x16xf32>
    %1130 = arith.mulf %1129, %1123 : vector<8x16xf32>
    %cst_457 = arith.constant 0x4B000000 : f32
    %1131 = vector.broadcast %cst_457 : f32 to vector<8x16xf32>
    %1132 = arith.mulf %1130, %1131 : vector<8x16xf32>
    %1133 = math.floor %1132 : vector<8x16xf32>
    %1134 = arith.fptosi %1133 : vector<8x16xf32> to vector<8x16xi32>
    %1135 = arith.addi %1127, %1134 : vector<8x16xi32>
    %1136 = tpu.concatenate %1095, %1135 in 1 : vector<8x16xi32>, vector<8x16xi32> -> vector<8x32xi32>
    %c6_458 = arith.constant 6 : index
    %c0_459 = arith.constant 0 : index
    %c0_460 = arith.constant 0 : index
    %c0_461 = arith.constant 0 : index
    %1137 = vector.load %arg10[%c6_458, %c0_459, %c0_460, %c0_461] : memref<8x2x8x32xi32, #tpu.memory_space<vmem>>, vector<1x1x8x32xi32>
    %1138 = vector.shape_cast %1137 : vector<1x1x8x32xi32> to vector<8x32xi32>
    %1139 = vector.shape_cast %1136 : vector<8x32xi32> to vector<1x1x8x32xi32>
    tpu.vector_store %arg10[%c6_458, %c0_459, %c0_460, %c0_461], %1139 {strides = array<i32>} : memref<8x2x8x32xi32, #tpu.memory_space<vmem>>, vector<1x1x8x32xi32>,
    %1140 = arith.sitofp %1136 : vector<8x32xi32> to vector<8x32xf32>
    %cst_462 = arith.constant 1.1920929E-7 : f32
    %1141 = vector.broadcast %cst_462 : f32 to vector<8x32xf32>
    %1142 = arith.mulf %1140, %1141 : vector<8x32xf32>
    %1143 = arith.sitofp %1049 : vector<8x16xi32> to vector<8x16xf32>
    %cst_463 = arith.constant 1.1920929E-7 : f32
    %1144 = vector.broadcast %cst_463 : f32 to vector<8x16xf32>
    %1145 = arith.mulf %1143, %1144 : vector<8x16xf32>
    %1146 = tpu.concatenate %1142, %1145 in 1 : vector<8x32xf32>, vector<8x16xf32> -> vector<8x48xf32>
    %c1_464 = arith.constant 1 : index
    %c0_465 = arith.constant 0 : index
    %c0_466 = arith.constant 0 : index
    %1147 = vector.load %arg2[%c1_464, %c0_465, %c0_466] : memref<2x48x32xf32, #tpu.memory_space<vmem>>, vector<1x48x32xf32>
    %1148 = vector.shape_cast %1147 : vector<1x48x32xf32> to vector<48x32xf32>
    %cst_467 = arith.constant dense<0.000000e+00> : vector<8x32xf32>
    %1149 = tpu.matmul %1146, %1148, %cst_467 {dimension_numbers = #tpu.dot_dimension_numbers<[1], [0], [0], [1], [0, 0, 1, 1], [], []>} : vector<8x48xf32>, vector<48x32xf32>, vector<8x32xf32> -> vector<8x32xf32>
    %1150 = vector.broadcast %1 : vector<1x32xf32> to vector<8x32xf32>
    %1151 = arith.addf %1149, %1150 : vector<8x32xf32>
    %1152 = arith.negf %1151 : vector<8x32xf32>
    %1153 = math.exp %1152 : vector<8x32xf32>
    %cst_468 = arith.constant 1.000000e+00 : f32
    %1154 = vector.broadcast %cst_468 : f32 to vector<8x32xf32>
    %1155 = arith.addf %1154, %1153 : vector<8x32xf32>
    %1156 = arith.divf %1154, %1155 : vector<8x32xf32>
    %1157 = vector.extract_strided_slice %1156 {offsets = [0, 0], sizes = [8, 16], strides = [1, 1]} : vector<8x32xf32> to vector<8x16xf32>
    %cst_469 = arith.constant 8.750000e-01 : f32
    %1158 = vector.broadcast %cst_469 : f32 to vector<8x16xf32>
    %1159 = arith.mulf %1158, %1157 : vector<8x16xf32>
    %cst_470 = arith.constant 1.250000e-01 : f32
    %1160 = vector.broadcast %cst_470 : f32 to vector<8x16xf32>
    %1161 = arith.addf %1159, %1160 : vector<8x16xf32>
    %1162 = vector.extract_strided_slice %1156 {offsets = [0, 16], sizes = [8, 16], strides = [1, 1]} : vector<8x32xf32> to vector<8x16xf32>
    %1163 = arith.mulf %1162, %1145 : vector<8x16xf32>
    %1164 = tpu.concatenate %1142, %1163 in 1 : vector<8x32xf32>, vector<8x16xf32> -> vector<8x48xf32>
    %c1_471 = arith.constant 1 : index
    %c0_472 = arith.constant 0 : index
    %c0_473 = arith.constant 0 : index
    %1165 = vector.load %arg4[%c1_471, %c0_472, %c0_473] : memref<2x48x16xf32, #tpu.memory_space<vmem>>, vector<1x48x16xf32>
    %1166 = vector.shape_cast %1165 : vector<1x48x16xf32> to vector<48x16xf32>
    %cst_474 = arith.constant dense<0.000000e+00> : vector<8x16xf32>
    %1167 = tpu.matmul %1164, %1166, %cst_474 {dimension_numbers = #tpu.dot_dimension_numbers<[1], [0], [0], [1], [0, 0, 1, 1], [], []>} : vector<8x48xf32>, vector<48x16xf32>, vector<8x16xf32> -> vector<8x16xf32>
    %1168 = vector.broadcast %3 : vector<1x16xf32> to vector<8x16xf32>
    %1169 = arith.addf %1167, %1168 : vector<8x16xf32>
    %1170 = math.tanh %1169 : vector<8x16xf32>
    %1171 = arith.sitofp %1009 : vector<8x16xi32> to vector<8x16xf32>
    %1172 = arith.mulf %1161, %1171 : vector<8x16xf32>
    %1173 = math.floor %1172 : vector<8x16xf32>
    %1174 = arith.fptosi %1173 : vector<8x16xf32> to vector<8x16xi32>
    %cst_475 = arith.constant 1.000000e+00 : f32
    %1175 = vector.broadcast %cst_475 : f32 to vector<8x16xf32>
    %1176 = arith.subf %1175, %1161 : vector<8x16xf32>
    %1177 = arith.mulf %1176, %1170 : vector<8x16xf32>
    %cst_476 = arith.constant 0x4B000000 : f32
    %1178 = vector.broadcast %cst_476 : f32 to vector<8x16xf32>
    %1179 = arith.mulf %1177, %1178 : vector<8x16xf32>
    %1180 = math.floor %1179 : vector<8x16xf32>
    %1181 = arith.fptosi %1180 : vector<8x16xf32> to vector<8x16xi32>
    %1182 = arith.addi %1174, %1181 : vector<8x16xi32>
    %1183 = arith.sitofp %1182 : vector<8x16xi32> to vector<8x16xf32>
    %cst_477 = arith.constant 1.1920929E-7 : f32
    %1184 = vector.broadcast %cst_477 : f32 to vector<8x16xf32>
    %1185 = arith.mulf %1183, %1184 : vector<8x16xf32>
    %1186 = tpu.concatenate %1142, %1185 in 1 : vector<8x32xf32>, vector<8x16xf32> -> vector<8x48xf32>
    %c1_478 = arith.constant 1 : index
    %c0_479 = arith.constant 0 : index
    %c0_480 = arith.constant 0 : index
    %1187 = vector.load %arg6[%c1_478, %c0_479, %c0_480] : memref<2x48x32xf32, #tpu.memory_space<vmem>>, vector<1x48x32xf32>
    %1188 = vector.shape_cast %1187 : vector<1x48x32xf32> to vector<48x32xf32>
    %cst_481 = arith.constant dense<0.000000e+00> : vector<8x32xf32>
    %1189 = tpu.matmul %1186, %1188, %cst_481 {dimension_numbers = #tpu.dot_dimension_numbers<[1], [0], [0], [1], [0, 0, 1, 1], [], []>} : vector<8x48xf32>, vector<48x32xf32>, vector<8x32xf32> -> vector<8x32xf32>
    %1190 = vector.broadcast %5 : vector<1x32xf32> to vector<8x32xf32>
    %1191 = arith.addf %1189, %1190 : vector<8x32xf32>
    %1192 = arith.negf %1191 : vector<8x32xf32>
    %1193 = math.exp %1192 : vector<8x32xf32>
    %cst_482 = arith.constant 1.000000e+00 : f32
    %1194 = vector.broadcast %cst_482 : f32 to vector<8x32xf32>
    %1195 = arith.addf %1194, %1193 : vector<8x32xf32>
    %1196 = arith.divf %1194, %1195 : vector<8x32xf32>
    %1197 = vector.extract_strided_slice %1196 {offsets = [0, 0], sizes = [8, 16], strides = [1, 1]} : vector<8x32xf32> to vector<8x16xf32>
    %cst_483 = arith.constant 8.750000e-01 : f32
    %1198 = vector.broadcast %cst_483 : f32 to vector<8x16xf32>
    %1199 = arith.mulf %1198, %1197 : vector<8x16xf32>
    %cst_484 = arith.constant 1.250000e-01 : f32
    %1200 = vector.broadcast %cst_484 : f32 to vector<8x16xf32>
    %1201 = arith.addf %1199, %1200 : vector<8x16xf32>
    %1202 = vector.extract_strided_slice %1196 {offsets = [0, 16], sizes = [8, 16], strides = [1, 1]} : vector<8x32xf32> to vector<8x16xf32>
    %1203 = arith.mulf %1202, %1185 : vector<8x16xf32>
    %1204 = tpu.concatenate %1142, %1203 in 1 : vector<8x32xf32>, vector<8x16xf32> -> vector<8x48xf32>
    %c1_485 = arith.constant 1 : index
    %c0_486 = arith.constant 0 : index
    %c0_487 = arith.constant 0 : index
    %1205 = vector.load %arg8[%c1_485, %c0_486, %c0_487] : memref<2x48x16xf32, #tpu.memory_space<vmem>>, vector<1x48x16xf32>
    %1206 = vector.shape_cast %1205 : vector<1x48x16xf32> to vector<48x16xf32>
    %cst_488 = arith.constant dense<0.000000e+00> : vector<8x16xf32>
    %1207 = tpu.matmul %1204, %1206, %cst_488 {dimension_numbers = #tpu.dot_dimension_numbers<[1], [0], [0], [1], [0, 0, 1, 1], [], []>} : vector<8x48xf32>, vector<48x16xf32>, vector<8x16xf32> -> vector<8x16xf32>
    %1208 = vector.broadcast %7 : vector<1x16xf32> to vector<8x16xf32>
    %1209 = arith.addf %1207, %1208 : vector<8x16xf32>
    %1210 = math.tanh %1209 : vector<8x16xf32>
    %1211 = arith.sitofp %1049 : vector<8x16xi32> to vector<8x16xf32>
    %1212 = arith.mulf %1201, %1211 : vector<8x16xf32>
    %1213 = math.floor %1212 : vector<8x16xf32>
    %1214 = arith.fptosi %1213 : vector<8x16xf32> to vector<8x16xi32>
    %cst_489 = arith.constant 1.000000e+00 : f32
    %1215 = vector.broadcast %cst_489 : f32 to vector<8x16xf32>
    %1216 = arith.subf %1215, %1201 : vector<8x16xf32>
    %1217 = arith.mulf %1216, %1210 : vector<8x16xf32>
    %cst_490 = arith.constant 0x4B000000 : f32
    %1218 = vector.broadcast %cst_490 : f32 to vector<8x16xf32>
    %1219 = arith.mulf %1217, %1218 : vector<8x16xf32>
    %1220 = math.floor %1219 : vector<8x16xf32>
    %1221 = arith.fptosi %1220 : vector<8x16xf32> to vector<8x16xi32>
    %1222 = arith.addi %1214, %1221 : vector<8x16xi32>
    %1223 = tpu.concatenate %1182, %1222 in 1 : vector<8x16xi32>, vector<8x16xi32> -> vector<8x32xi32>
    %c6_491 = arith.constant 6 : index
    %c1_492 = arith.constant 1 : index
    %c0_493 = arith.constant 0 : index
    %c0_494 = arith.constant 0 : index
    %1224 = vector.load %arg10[%c6_491, %c1_492, %c0_493, %c0_494] : memref<8x2x8x32xi32, #tpu.memory_space<vmem>>, vector<1x1x8x32xi32>
    %1225 = vector.shape_cast %1224 : vector<1x1x8x32xi32> to vector<8x32xi32>
    %1226 = vector.shape_cast %1223 : vector<8x32xi32> to vector<1x1x8x32xi32>
    tpu.vector_store %arg10[%c6_491, %c1_492, %c0_493, %c0_494], %1226 {strides = array<i32>} : memref<8x2x8x32xi32, #tpu.memory_space<vmem>>, vector<1x1x8x32xi32>,
    %c7 = arith.constant 7 : index
    %c0_495 = arith.constant 0 : index
    %c0_496 = arith.constant 0 : index
    %1227 = vector.load %arg0[%c7, %c0_495, %c0_496] : memref<8x8x32xf32, #tpu.memory_space<vmem>>, vector<1x8x32xf32>
    %1228 = vector.shape_cast %1227 : vector<1x8x32xf32> to vector<8x32xf32>
    %1229 = arith.sitofp %1135 : vector<8x16xi32> to vector<8x16xf32>
    %cst_497 = arith.constant 1.1920929E-7 : f32
    %1230 = vector.broadcast %cst_497 : f32 to vector<8x16xf32>
    %1231 = arith.mulf %1229, %1230 : vector<8x16xf32>
    %1232 = tpu.concatenate %1228, %1231 in 1 : vector<8x32xf32>, vector<8x16xf32> -> vector<8x48xf32>
    %c0_498 = arith.constant 0 : index
    %c0_499 = arith.constant 0 : index
    %c0_500 = arith.constant 0 : index
    %1233 = vector.load %arg2[%c0_498, %c0_499, %c0_500] : memref<2x48x32xf32, #tpu.memory_space<vmem>>, vector<1x48x32xf32>
    %1234 = vector.shape_cast %1233 : vector<1x48x32xf32> to vector<48x32xf32>
    %cst_501 = arith.constant dense<0.000000e+00> : vector<8x32xf32>
    %1235 = tpu.matmul %1232, %1234, %cst_501 {dimension_numbers = #tpu.dot_dimension_numbers<[1], [0], [0], [1], [0, 0, 1, 1], [], []>} : vector<8x48xf32>, vector<48x32xf32>, vector<8x32xf32> -> vector<8x32xf32>
    %1236 = vector.broadcast %0 : vector<1x32xf32> to vector<8x32xf32>
    %1237 = arith.addf %1235, %1236 : vector<8x32xf32>
    %1238 = arith.negf %1237 : vector<8x32xf32>
    %1239 = math.exp %1238 : vector<8x32xf32>
    %cst_502 = arith.constant 1.000000e+00 : f32
    %1240 = vector.broadcast %cst_502 : f32 to vector<8x32xf32>
    %1241 = arith.addf %1240, %1239 : vector<8x32xf32>
    %1242 = arith.divf %1240, %1241 : vector<8x32xf32>
    %1243 = vector.extract_strided_slice %1242 {offsets = [0, 0], sizes = [8, 16], strides = [1, 1]} : vector<8x32xf32> to vector<8x16xf32>
    %cst_503 = arith.constant 8.750000e-01 : f32
    %1244 = vector.broadcast %cst_503 : f32 to vector<8x16xf32>
    %1245 = arith.mulf %1244, %1243 : vector<8x16xf32>
    %cst_504 = arith.constant 1.250000e-01 : f32
    %1246 = vector.broadcast %cst_504 : f32 to vector<8x16xf32>
    %1247 = arith.addf %1245, %1246 : vector<8x16xf32>
    %1248 = vector.extract_strided_slice %1242 {offsets = [0, 16], sizes = [8, 16], strides = [1, 1]} : vector<8x32xf32> to vector<8x16xf32>
    %1249 = arith.mulf %1248, %1231 : vector<8x16xf32>
    %1250 = tpu.concatenate %1228, %1249 in 1 : vector<8x32xf32>, vector<8x16xf32> -> vector<8x48xf32>
    %c0_505 = arith.constant 0 : index
    %c0_506 = arith.constant 0 : index
    %c0_507 = arith.constant 0 : index
    %1251 = vector.load %arg4[%c0_505, %c0_506, %c0_507] : memref<2x48x16xf32, #tpu.memory_space<vmem>>, vector<1x48x16xf32>
    %1252 = vector.shape_cast %1251 : vector<1x48x16xf32> to vector<48x16xf32>
    %cst_508 = arith.constant dense<0.000000e+00> : vector<8x16xf32>
    %1253 = tpu.matmul %1250, %1252, %cst_508 {dimension_numbers = #tpu.dot_dimension_numbers<[1], [0], [0], [1], [0, 0, 1, 1], [], []>} : vector<8x48xf32>, vector<48x16xf32>, vector<8x16xf32> -> vector<8x16xf32>
    %1254 = vector.broadcast %2 : vector<1x16xf32> to vector<8x16xf32>
    %1255 = arith.addf %1253, %1254 : vector<8x16xf32>
    %1256 = math.tanh %1255 : vector<8x16xf32>
    %1257 = arith.sitofp %1095 : vector<8x16xi32> to vector<8x16xf32>
    %1258 = arith.mulf %1247, %1257 : vector<8x16xf32>
    %1259 = math.floor %1258 : vector<8x16xf32>
    %1260 = arith.fptosi %1259 : vector<8x16xf32> to vector<8x16xi32>
    %cst_509 = arith.constant 1.000000e+00 : f32
    %1261 = vector.broadcast %cst_509 : f32 to vector<8x16xf32>
    %1262 = arith.subf %1261, %1247 : vector<8x16xf32>
    %1263 = arith.mulf %1262, %1256 : vector<8x16xf32>
    %cst_510 = arith.constant 0x4B000000 : f32
    %1264 = vector.broadcast %cst_510 : f32 to vector<8x16xf32>
    %1265 = arith.mulf %1263, %1264 : vector<8x16xf32>
    %1266 = math.floor %1265 : vector<8x16xf32>
    %1267 = arith.fptosi %1266 : vector<8x16xf32> to vector<8x16xi32>
    %1268 = arith.addi %1260, %1267 : vector<8x16xi32>
    %1269 = arith.sitofp %1268 : vector<8x16xi32> to vector<8x16xf32>
    %cst_511 = arith.constant 1.1920929E-7 : f32
    %1270 = vector.broadcast %cst_511 : f32 to vector<8x16xf32>
    %1271 = arith.mulf %1269, %1270 : vector<8x16xf32>
    %1272 = tpu.concatenate %1228, %1271 in 1 : vector<8x32xf32>, vector<8x16xf32> -> vector<8x48xf32>
    %c0_512 = arith.constant 0 : index
    %c0_513 = arith.constant 0 : index
    %c0_514 = arith.constant 0 : index
    %1273 = vector.load %arg6[%c0_512, %c0_513, %c0_514] : memref<2x48x32xf32, #tpu.memory_space<vmem>>, vector<1x48x32xf32>
    %1274 = vector.shape_cast %1273 : vector<1x48x32xf32> to vector<48x32xf32>
    %cst_515 = arith.constant dense<0.000000e+00> : vector<8x32xf32>
    %1275 = tpu.matmul %1272, %1274, %cst_515 {dimension_numbers = #tpu.dot_dimension_numbers<[1], [0], [0], [1], [0, 0, 1, 1], [], []>} : vector<8x48xf32>, vector<48x32xf32>, vector<8x32xf32> -> vector<8x32xf32>
    %1276 = vector.broadcast %4 : vector<1x32xf32> to vector<8x32xf32>
    %1277 = arith.addf %1275, %1276 : vector<8x32xf32>
    %1278 = arith.negf %1277 : vector<8x32xf32>
    %1279 = math.exp %1278 : vector<8x32xf32>
    %cst_516 = arith.constant 1.000000e+00 : f32
    %1280 = vector.broadcast %cst_516 : f32 to vector<8x32xf32>
    %1281 = arith.addf %1280, %1279 : vector<8x32xf32>
    %1282 = arith.divf %1280, %1281 : vector<8x32xf32>
    %1283 = vector.extract_strided_slice %1282 {offsets = [0, 0], sizes = [8, 16], strides = [1, 1]} : vector<8x32xf32> to vector<8x16xf32>
    %cst_517 = arith.constant 8.750000e-01 : f32
    %1284 = vector.broadcast %cst_517 : f32 to vector<8x16xf32>
    %1285 = arith.mulf %1284, %1283 : vector<8x16xf32>
    %cst_518 = arith.constant 1.250000e-01 : f32
    %1286 = vector.broadcast %cst_518 : f32 to vector<8x16xf32>
    %1287 = arith.addf %1285, %1286 : vector<8x16xf32>
    %1288 = vector.extract_strided_slice %1282 {offsets = [0, 16], sizes = [8, 16], strides = [1, 1]} : vector<8x32xf32> to vector<8x16xf32>
    %1289 = arith.mulf %1288, %1271 : vector<8x16xf32>
    %1290 = tpu.concatenate %1228, %1289 in 1 : vector<8x32xf32>, vector<8x16xf32> -> vector<8x48xf32>
    %c0_519 = arith.constant 0 : index
    %c0_520 = arith.constant 0 : index
    %c0_521 = arith.constant 0 : index
    %1291 = vector.load %arg8[%c0_519, %c0_520, %c0_521] : memref<2x48x16xf32, #tpu.memory_space<vmem>>, vector<1x48x16xf32>
    %1292 = vector.shape_cast %1291 : vector<1x48x16xf32> to vector<48x16xf32>
    %cst_522 = arith.constant dense<0.000000e+00> : vector<8x16xf32>
    %1293 = tpu.matmul %1290, %1292, %cst_522 {dimension_numbers = #tpu.dot_dimension_numbers<[1], [0], [0], [1], [0, 0, 1, 1], [], []>} : vector<8x48xf32>, vector<48x16xf32>, vector<8x16xf32> -> vector<8x16xf32>
    %1294 = vector.broadcast %6 : vector<1x16xf32> to vector<8x16xf32>
    %1295 = arith.addf %1293, %1294 : vector<8x16xf32>
    %1296 = math.tanh %1295 : vector<8x16xf32>
    %1297 = arith.sitofp %1135 : vector<8x16xi32> to vector<8x16xf32>
    %1298 = arith.mulf %1287, %1297 : vector<8x16xf32>
    %1299 = math.floor %1298 : vector<8x16xf32>
    %1300 = arith.fptosi %1299 : vector<8x16xf32> to vector<8x16xi32>
    %cst_523 = arith.constant 1.000000e+00 : f32
    %1301 = vector.broadcast %cst_523 : f32 to vector<8x16xf32>
    %1302 = arith.subf %1301, %1287 : vector<8x16xf32>
    %1303 = arith.mulf %1302, %1296 : vector<8x16xf32>
    %cst_524 = arith.constant 0x4B000000 : f32
    %1304 = vector.broadcast %cst_524 : f32 to vector<8x16xf32>
    %1305 = arith.mulf %1303, %1304 : vector<8x16xf32>
    %1306 = math.floor %1305 : vector<8x16xf32>
    %1307 = arith.fptosi %1306 : vector<8x16xf32> to vector<8x16xi32>
    %1308 = arith.addi %1300, %1307 : vector<8x16xi32>
    %1309 = tpu.concatenate %1268, %1308 in 1 : vector<8x16xi32>, vector<8x16xi32> -> vector<8x32xi32>
    %c7_525 = arith.constant 7 : index
    %c0_526 = arith.constant 0 : index
    %c0_527 = arith.constant 0 : index
    %c0_528 = arith.constant 0 : index
    %1310 = vector.load %arg10[%c7_525, %c0_526, %c0_527, %c0_528] : memref<8x2x8x32xi32, #tpu.memory_space<vmem>>, vector<1x1x8x32xi32>
    %1311 = vector.shape_cast %1310 : vector<1x1x8x32xi32> to vector<8x32xi32>
    %1312 = vector.shape_cast %1309 : vector<8x32xi32> to vector<1x1x8x32xi32>
    tpu.vector_store %arg10[%c7_525, %c0_526, %c0_527, %c0_528], %1312 {strides = array<i32>} : memref<8x2x8x32xi32, #tpu.memory_space<vmem>>, vector<1x1x8x32xi32>,
    %1313 = arith.sitofp %1309 : vector<8x32xi32> to vector<8x32xf32>
    %cst_529 = arith.constant 1.1920929E-7 : f32
    %1314 = vector.broadcast %cst_529 : f32 to vector<8x32xf32>
    %1315 = arith.mulf %1313, %1314 : vector<8x32xf32>
    %1316 = arith.sitofp %1222 : vector<8x16xi32> to vector<8x16xf32>
    %cst_530 = arith.constant 1.1920929E-7 : f32
    %1317 = vector.broadcast %cst_530 : f32 to vector<8x16xf32>
    %1318 = arith.mulf %1316, %1317 : vector<8x16xf32>
    %1319 = tpu.concatenate %1315, %1318 in 1 : vector<8x32xf32>, vector<8x16xf32> -> vector<8x48xf32>
    %c1_531 = arith.constant 1 : index
    %c0_532 = arith.constant 0 : index
    %c0_533 = arith.constant 0 : index
    %1320 = vector.load %arg2[%c1_531, %c0_532, %c0_533] : memref<2x48x32xf32, #tpu.memory_space<vmem>>, vector<1x48x32xf32>
    %1321 = vector.shape_cast %1320 : vector<1x48x32xf32> to vector<48x32xf32>
    %cst_534 = arith.constant dense<0.000000e+00> : vector<8x32xf32>
    %1322 = tpu.matmul %1319, %1321, %cst_534 {dimension_numbers = #tpu.dot_dimension_numbers<[1], [0], [0], [1], [0, 0, 1, 1], [], []>} : vector<8x48xf32>, vector<48x32xf32>, vector<8x32xf32> -> vector<8x32xf32>
    %1323 = vector.broadcast %1 : vector<1x32xf32> to vector<8x32xf32>
    %1324 = arith.addf %1322, %1323 : vector<8x32xf32>
    %1325 = arith.negf %1324 : vector<8x32xf32>
    %1326 = math.exp %1325 : vector<8x32xf32>
    %cst_535 = arith.constant 1.000000e+00 : f32
    %1327 = vector.broadcast %cst_535 : f32 to vector<8x32xf32>
    %1328 = arith.addf %1327, %1326 : vector<8x32xf32>
    %1329 = arith.divf %1327, %1328 : vector<8x32xf32>
    %1330 = vector.extract_strided_slice %1329 {offsets = [0, 0], sizes = [8, 16], strides = [1, 1]} : vector<8x32xf32> to vector<8x16xf32>
    %cst_536 = arith.constant 8.750000e-01 : f32
    %1331 = vector.broadcast %cst_536 : f32 to vector<8x16xf32>
    %1332 = arith.mulf %1331, %1330 : vector<8x16xf32>
    %cst_537 = arith.constant 1.250000e-01 : f32
    %1333 = vector.broadcast %cst_537 : f32 to vector<8x16xf32>
    %1334 = arith.addf %1332, %1333 : vector<8x16xf32>
    %1335 = vector.extract_strided_slice %1329 {offsets = [0, 16], sizes = [8, 16], strides = [1, 1]} : vector<8x32xf32> to vector<8x16xf32>
    %1336 = arith.mulf %1335, %1318 : vector<8x16xf32>
    %1337 = tpu.concatenate %1315, %1336 in 1 : vector<8x32xf32>, vector<8x16xf32> -> vector<8x48xf32>
    %c1_538 = arith.constant 1 : index
    %c0_539 = arith.constant 0 : index
    %c0_540 = arith.constant 0 : index
    %1338 = vector.load %arg4[%c1_538, %c0_539, %c0_540] : memref<2x48x16xf32, #tpu.memory_space<vmem>>, vector<1x48x16xf32>
    %1339 = vector.shape_cast %1338 : vector<1x48x16xf32> to vector<48x16xf32>
    %cst_541 = arith.constant dense<0.000000e+00> : vector<8x16xf32>
    %1340 = tpu.matmul %1337, %1339, %cst_541 {dimension_numbers = #tpu.dot_dimension_numbers<[1], [0], [0], [1], [0, 0, 1, 1], [], []>} : vector<8x48xf32>, vector<48x16xf32>, vector<8x16xf32> -> vector<8x16xf32>
    %1341 = vector.broadcast %3 : vector<1x16xf32> to vector<8x16xf32>
    %1342 = arith.addf %1340, %1341 : vector<8x16xf32>
    %1343 = math.tanh %1342 : vector<8x16xf32>
    %1344 = arith.sitofp %1182 : vector<8x16xi32> to vector<8x16xf32>
    %1345 = arith.mulf %1334, %1344 : vector<8x16xf32>
    %1346 = math.floor %1345 : vector<8x16xf32>
    %1347 = arith.fptosi %1346 : vector<8x16xf32> to vector<8x16xi32>
    %cst_542 = arith.constant 1.000000e+00 : f32
    %1348 = vector.broadcast %cst_542 : f32 to vector<8x16xf32>
    %1349 = arith.subf %1348, %1334 : vector<8x16xf32>
    %1350 = arith.mulf %1349, %1343 : vector<8x16xf32>
    %cst_543 = arith.constant 0x4B000000 : f32
    %1351 = vector.broadcast %cst_543 : f32 to vector<8x16xf32>
    %1352 = arith.mulf %1350, %1351 : vector<8x16xf32>
    %1353 = math.floor %1352 : vector<8x16xf32>
    %1354 = arith.fptosi %1353 : vector<8x16xf32> to vector<8x16xi32>
    %1355 = arith.addi %1347, %1354 : vector<8x16xi32>
    %1356 = arith.sitofp %1355 : vector<8x16xi32> to vector<8x16xf32>
    %cst_544 = arith.constant 1.1920929E-7 : f32
    %1357 = vector.broadcast %cst_544 : f32 to vector<8x16xf32>
    %1358 = arith.mulf %1356, %1357 : vector<8x16xf32>
    %1359 = tpu.concatenate %1315, %1358 in 1 : vector<8x32xf32>, vector<8x16xf32> -> vector<8x48xf32>
    %c1_545 = arith.constant 1 : index
    %c0_546 = arith.constant 0 : index
    %c0_547 = arith.constant 0 : index
    %1360 = vector.load %arg6[%c1_545, %c0_546, %c0_547] : memref<2x48x32xf32, #tpu.memory_space<vmem>>, vector<1x48x32xf32>
    %1361 = vector.shape_cast %1360 : vector<1x48x32xf32> to vector<48x32xf32>
    %cst_548 = arith.constant dense<0.000000e+00> : vector<8x32xf32>
    %1362 = tpu.matmul %1359, %1361, %cst_548 {dimension_numbers = #tpu.dot_dimension_numbers<[1], [0], [0], [1], [0, 0, 1, 1], [], []>} : vector<8x48xf32>, vector<48x32xf32>, vector<8x32xf32> -> vector<8x32xf32>
    %1363 = vector.broadcast %5 : vector<1x32xf32> to vector<8x32xf32>
    %1364 = arith.addf %1362, %1363 : vector<8x32xf32>
    %1365 = arith.negf %1364 : vector<8x32xf32>
    %1366 = math.exp %1365 : vector<8x32xf32>
    %cst_549 = arith.constant 1.000000e+00 : f32
    %1367 = vector.broadcast %cst_549 : f32 to vector<8x32xf32>
    %1368 = arith.addf %1367, %1366 : vector<8x32xf32>
    %1369 = arith.divf %1367, %1368 : vector<8x32xf32>
    %1370 = vector.extract_strided_slice %1369 {offsets = [0, 0], sizes = [8, 16], strides = [1, 1]} : vector<8x32xf32> to vector<8x16xf32>
    %cst_550 = arith.constant 8.750000e-01 : f32
    %1371 = vector.broadcast %cst_550 : f32 to vector<8x16xf32>
    %1372 = arith.mulf %1371, %1370 : vector<8x16xf32>
    %cst_551 = arith.constant 1.250000e-01 : f32
    %1373 = vector.broadcast %cst_551 : f32 to vector<8x16xf32>
    %1374 = arith.addf %1372, %1373 : vector<8x16xf32>
    %1375 = vector.extract_strided_slice %1369 {offsets = [0, 16], sizes = [8, 16], strides = [1, 1]} : vector<8x32xf32> to vector<8x16xf32>
    %1376 = arith.mulf %1375, %1358 : vector<8x16xf32>
    %1377 = tpu.concatenate %1315, %1376 in 1 : vector<8x32xf32>, vector<8x16xf32> -> vector<8x48xf32>
    %c1_552 = arith.constant 1 : index
    %c0_553 = arith.constant 0 : index
    %c0_554 = arith.constant 0 : index
    %1378 = vector.load %arg8[%c1_552, %c0_553, %c0_554] : memref<2x48x16xf32, #tpu.memory_space<vmem>>, vector<1x48x16xf32>
    %1379 = vector.shape_cast %1378 : vector<1x48x16xf32> to vector<48x16xf32>
    %cst_555 = arith.constant dense<0.000000e+00> : vector<8x16xf32>
    %1380 = tpu.matmul %1377, %1379, %cst_555 {dimension_numbers = #tpu.dot_dimension_numbers<[1], [0], [0], [1], [0, 0, 1, 1], [], []>} : vector<8x48xf32>, vector<48x16xf32>, vector<8x16xf32> -> vector<8x16xf32>
    %1381 = vector.broadcast %7 : vector<1x16xf32> to vector<8x16xf32>
    %1382 = arith.addf %1380, %1381 : vector<8x16xf32>
    %1383 = math.tanh %1382 : vector<8x16xf32>
    %1384 = arith.sitofp %1222 : vector<8x16xi32> to vector<8x16xf32>
    %1385 = arith.mulf %1374, %1384 : vector<8x16xf32>
    %1386 = math.floor %1385 : vector<8x16xf32>
    %1387 = arith.fptosi %1386 : vector<8x16xf32> to vector<8x16xi32>
    %cst_556 = arith.constant 1.000000e+00 : f32
    %1388 = vector.broadcast %cst_556 : f32 to vector<8x16xf32>
    %1389 = arith.subf %1388, %1374 : vector<8x16xf32>
    %1390 = arith.mulf %1389, %1383 : vector<8x16xf32>
    %cst_557 = arith.constant 0x4B000000 : f32
    %1391 = vector.broadcast %cst_557 : f32 to vector<8x16xf32>
    %1392 = arith.mulf %1390, %1391 : vector<8x16xf32>
    %1393 = math.floor %1392 : vector<8x16xf32>
    %1394 = arith.fptosi %1393 : vector<8x16xf32> to vector<8x16xi32>
    %1395 = arith.addi %1387, %1394 : vector<8x16xi32>
    %1396 = tpu.concatenate %1355, %1395 in 1 : vector<8x16xi32>, vector<8x16xi32> -> vector<8x32xi32>
    %c7_558 = arith.constant 7 : index
    %c1_559 = arith.constant 1 : index
    %c0_560 = arith.constant 0 : index
    %c0_561 = arith.constant 0 : index
    %1397 = vector.load %arg10[%c7_558, %c1_559, %c0_560, %c0_561] : memref<8x2x8x32xi32, #tpu.memory_space<vmem>>, vector<1x1x8x32xi32>
    %1398 = vector.shape_cast %1397 : vector<1x1x8x32xi32> to vector<8x32xi32>
    %1399 = vector.shape_cast %1396 : vector<8x32xi32> to vector<1x1x8x32xi32>
    tpu.vector_store %arg10[%c7_558, %c1_559, %c0_560, %c0_561], %1399 {strides = array<i32>} : memref<8x2x8x32xi32, #tpu.memory_space<vmem>>, vector<1x1x8x32xi32>,
    return
  }
}

</mosaic_0001>

<llo_original>
// kernel: tpu_custom_call.1
$region0: #{tpu_custom_call.1}
  #allocation0 [shape = 'u32[]', space=smem, size = 0x4, offset = 0x4, fixed_abs, tag = 'smem constant byte address 0x4 - core index']
  #allocation1 [shape = 'u32[144,128]{1,0:T(1,128)}', space=vmem, size = 0x12000, scoped, tag = 'internal scratch']
  %s0 = inlined_call_operand.vmem [shape: f32[8,8,32], index: 0, kind: input, shape index: {}]
  %s1 = inlined_call_operand.vmem [shape: s32[2,8,32], index: 1, kind: input, shape index: {}]
  %s2 = inlined_call_operand.vmem [shape: f32[2,48,32], index: 2, kind: input, shape index: {}]
  %s3 = inlined_call_operand.vmem [shape: f32[2,32], index: 3, kind: input, shape index: {}]
  %s4 = inlined_call_operand.vmem [shape: f32[2,48,16], index: 4, kind: input, shape index: {}]
  %s5 = inlined_call_operand.vmem [shape: f32[2,16], index: 5, kind: input, shape index: {}]
  %s6 = inlined_call_operand.vmem [shape: f32[2,48,32], index: 6, kind: input, shape index: {}]
  %s7 = inlined_call_operand.vmem [shape: f32[2,32], index: 7, kind: input, shape index: {}]
  %s8 = inlined_call_operand.vmem [shape: f32[2,48,16], index: 8, kind: input, shape index: {}]
  %s9 = inlined_call_operand.vmem [shape: f32[2,16], index: 9, kind: input, shape index: {}]
  %s10 = inlined_call_operand.hbm [shape: s32[8,2,8,32], index: 10, kind: output, shape index: {}]
  %s11 = sld [smem:[#allocation0]]
  $region50: #{tpu_custom_call.1} parent=0
    _
  %s13 = ssub.s32 1, %s11
  %s14 = scalar_select 0, %s13, %s11
  $region1: #{tpu_custom_call.1} parent=0
    #allocation2 [shape = 'u8[65536]{0}', space=vmem, size = 0x10000, scoped, tag = 'output window, operand 0, single buffered']
    #allocation3 [shape = 's32[1]{0}', space=sflag, size = 0x4, scoped, tag = 'scoped memory for tpu_custom_call.1']
    %15 = vsyncpa [#allocation3], 0
    // Predicated region
    $region2: #{tpu_custom_call.1} parent=1 // pred_check
      _
    $region3: #{tpu_custom_call.1} parent=1 // pred_check_branch
      %17 = sbr.rel (0) target = $region5
    $region4: #{tpu_custom_call.1} parent=1 // pred_region
      _
    $region5: #{tpu_custom_call.1} parent=1 // pred_fallthru
      _
    // Predicated region
    $region6: #{tpu_custom_call.1} parent=1 // pred_check
      _
    $region7: #{tpu_custom_call.1} parent=1 // pred_check_branch
      %19 = sbr.rel (0) target = $region9
    $region8: #{tpu_custom_call.1} parent=1 // pred_region
      _
    $region9: #{tpu_custom_call.1} parent=1 // pred_fallthru
      _
    // Predicated region
    $region10: #{tpu_custom_call.1} parent=1 // pred_check
      _
    $region11: #{tpu_custom_call.1} parent=1 // pred_check_branch
      %21 = sbr.rel (0) target = $region13
    $region12: #{tpu_custom_call.1} parent=1 // pred_region
      _
    $region13: #{tpu_custom_call.1} parent=1 // pred_fallthru
      _
    // Predicated region
    $region14: #{tpu_custom_call.1} parent=1 // pred_check
      _
    $region15: #{tpu_custom_call.1} parent=1 // pred_check_branch
      %23 = sbr.rel (0) target = $region17
    $region16: #{tpu_custom_call.1} parent=1 // pred_region
      _
    $region17: #{tpu_custom_call.1} parent=1 // pred_fallthru
      _
    // Predicated region
    $region18: #{tpu_custom_call.1} parent=1 // pred_check
      _
    $region19: #{tpu_custom_call.1} parent=1 // pred_check_branch
      %25 = sbr.rel (0) target = $region21
    $region20: #{tpu_custom_call.1} parent=1 // pred_region
      _
    $region21: #{tpu_custom_call.1} parent=1 // pred_fallthru
      _
    // Predicated region
    $region22: #{tpu_custom_call.1} parent=1 // pred_check
      _
    $region23: #{tpu_custom_call.1} parent=1 // pred_check_branch
      %27 = sbr.rel (0) target = $region25
    $region24: #{tpu_custom_call.1} parent=1 // pred_region
      _
    $region25: #{tpu_custom_call.1} parent=1 // pred_fallthru
      _
    // Predicated region
    $region26: #{tpu_custom_call.1} parent=1 // pred_check
      _
    $region27: #{tpu_custom_call.1} parent=1 // pred_check_branch
      %29 = sbr.rel (0) target = $region29
    $region28: #{tpu_custom_call.1} parent=1 // pred_region
      _
    $region29: #{tpu_custom_call.1} parent=1 // pred_fallthru
      _
    // Predicated region
    $region30: #{tpu_custom_call.1} parent=1 // pred_check
      _
    $region31: #{tpu_custom_call.1} parent=1 // pred_check_branch
      %31 = sbr.rel (0) target = $region33
    $region32: #{tpu_custom_call.1} parent=1 // pred_region
      _
    $region33: #{tpu_custom_call.1} parent=1 // pred_fallthru
      _
    // Predicated region
    $region34: #{tpu_custom_call.1} parent=1 // pred_check
      _
    $region35: #{tpu_custom_call.1} parent=1 // pred_check_branch
      %33 = sbr.rel (0) target = $region37
    $region36: #{tpu_custom_call.1} parent=1 // pred_region
      _
    $region37: #{tpu_custom_call.1} parent=1 // pred_fallthru
      _
    // Predicated region
    $region38: #{tpu_custom_call.1} parent=1 // pred_check
      _
    $region39: #{tpu_custom_call.1} parent=1 // pred_check_branch
      %35 = sbr.rel (0) target = $region41
    $region40: #{tpu_custom_call.1} parent=1 // pred_region
      _
    $region41: #{tpu_custom_call.1} parent=1 // pred_fallthru
      _
    %v36 = vld [vmem:[%s3] sm:$0x1]
    %v37 = vld [vmem:[%s3 + $0x1] sm:$0x1]
    %v38 = vld [vmem:[%s5] sm:$0x1]
    %v39 = vld [vmem:[%s5 + $0x1] sm:$0x1]
    %v40 = vld [vmem:[%s7] sm:$0x1]
    %v41 = vld [vmem:[%s7 + $0x1] sm:$0x1]
    %v42 = vld [vmem:[%s9] sm:$0x1]
    %v43 = vld [vmem:[%s9 + $0x1] sm:$0x1]
    %v44 = vld [vmem:[%s1] sm:$0xff]
    %s45 = scalar_lea.vmem %s1, 8
    %v46 = vld [vmem:[%s45] sm:$0xff]
    %v47 = vld [vmem:[%s0] sm:$0xff]
    %v48 = vcvt.s32.f32 %v44
    %v49 = vmul.f32 %v48, 1.1920929e-07
    %51 = vrot.lane.b32.xlu0 %v49, 16
    %v52 = vpop.permute.xlu0 %51
    %vm54 = vcmask 261120
    %v55 = vsel %vm54, %v47, %v52
    %v56 = vld [vmem:[%s2] sm:$0xff]
    %v57 = vld [vmem:[%s2 + $0x8] sm:$0xff]
    %v58 = vld [vmem:[%s2 + $0x10] sm:$0xff]
    %v59 = vld [vmem:[%s2 + $0x18] sm:$0xff]
    %v60 = vld [vmem:[%s2 + $0x20] sm:$0xff]
    %v61 = vld [vmem:[%s2 + $0x28] sm:$0xff]
    %v62 = vlaneseq
    %v63 = vshrl.u32 %v62, 7
    %v64 = vsub.s32 0, %v63
    %v65 = vrot.slane %v36, %v64
    %vm66 = vcmask 392192
    %v68 = vsel %vm66, %v55, 0
    %70 = vmatprep.subr.mxu0 0.0
    %71 = vmatpush1.msra.mxu0 %v56
    %72 = vmatprep.subr.mxu0 0.0
    %73 = vmatpush1.msra.mxu0 %v57
    %74 = vmatprep.subr.mxu0 0.0
    %75 = vmatpush1.msra.mxu0 %v58
    %76 = vmatprep.subr.mxu0 0.0
    %77 = vmatpush1.msra.mxu0 %v59
    %78 = vmatprep.subr.mxu0 0.0
    %79 = vmatpush1.msra.mxu0 %v60
    %80 = vmatprep.subr.mxu0 0.0
    %81 = vmatpush1.msra.mxu0 %v61
    %82 = vmatprep.subr.mxu0 0.0
    %83 = vmatpush1.msra.mxu0 0.0
    %84 = vmatprep.subr.mxu0 0.0
    %85 = vmatpush1.msra.mxu0 0.0
    %86 = vmatprep.subr.mxu0 0.0
    %87 = vmatpush1.msra.mxu0 0.0
    %88 = vmatprep.subr.mxu0 0.0
    %89 = vmatpush1.msra.mxu0 0.0
    %90 = vmatprep.subr.mxu0 0.0
    %91 = vmatpush1.msra.mxu0 0.0
    %92 = vmatprep.subr.mxu0 0.0
    %93 = vmatpush1.msra.mxu0 0.0
    %94 = vmatprep.subr.mxu0 0.0
    %95 = vmatpush1.msra.mxu0 0.0
    %96 = vmatprep.subr.mxu0 0.0
    %97 = vmatpush1.msra.mxu0 0.0
    %98 = vmatprep.subr.mxu0 0.0
    %99 = vmatpush1.msra.mxu0 0.0
    %100 = vmatprep.subr.mxu0 0.0
    %101 = vmatpush1.msra.mxu0 0.0
    %102 = vmatprep.subr.mxu0 0.0
    %103 = vmatpush1.msra.mxu0 0.0
    %104 = vmatprep.subr.mxu0 0.0
    %105 = vmatpush1.msra.mxu0 0.0
    %106 = vmatprep.subr.mxu0 0.0
    %107 = vmatpush1.msra.mxu0 0.0
    %108 = vmatprep.subr.mxu0 0.0
    %109 = vmatpush1.msra.mxu0 0.0
    %110 = vmatprep.subr.mxu0 0.0
    %111 = vmatpush1.msra.mxu0 0.0
    %112 = vmatprep.subr.mxu0 0.0
    %113 = vmatpush1.msra.mxu0 0.0
    %114 = vmatprep.subr.mxu0 0.0
    %115 = vmatpush1.msra.mxu0 0.0
    %116 = vmatprep.subr.mxu0 0.0
    %117 = vmatpush1.msra.mxu0 0.0
    %118 = vmatprep.subr.mxu0 0.0
    %119 = vmatpush1.msra.mxu0 0.0
    %120 = vmatprep.subr.mxu0 0.0
    %121 = vmatpush1.msra.mxu0 0.0
    %122 = vmatprep.subr.mxu0 0.0
    %123 = vmatpush1.msra.mxu0 0.0
    %124 = vmatprep.subr.mxu0 0.0
    %125 = vmatpush1.msra.mxu0 0.0
    %126 = vmatprep.subr.mxu0 0.0
    %127 = vmatpush1.msra.mxu0 0.0
    %128 = vmatprep.subr.mxu0 0.0
    %129 = vmatpush1.msra.mxu0 0.0
    %130 = vmatprep.subr.mxu0 0.0
    %131 = vmatpush1.msra.mxu0 0.0
    %132 = vmatprep.subr.mxu0 0.0
    %133 = vmatpush1.msra.mxu0 0.0
    %134 = vmatprep.mubr.f32.mxu0 0.0
    %135 = vmatmul.mubr.f32.gmra.mrb[0].mxu0 %v68
    %v136 = vpop.f32.mrb[0].mxu0
    %v137 = vadd.f32 %v65, %v136
    %v138 = vpop.f32.mrb[0].mxu0
    %139 = vdwg.mxu0
    %v140 = vxor.u32 %v137, 2147483648
    %v141 = vmul.f32 %v140, 1.442695
    %v142 = vpow.pop %v141
    %v143 = vadd.f32 %v142, 1.0
    %v144 = vrcp.pop %v143
    %v145 = vmul.f32 1.0, %v144
    %v146 = vmul.f32 %v145, 0.875
    %v147 = vadd.f32 %v146, 0.125
    %v148 = vmul.f32 %v145, %v49
    %150 = vrot.lane.b32.xlu0 %v148, 16
    %v151 = vpop.permute.xlu0 %150
    %v153 = vsel %vm54, %v47, %v151
    %v154 = vld [vmem:[%s4] sm:$0xff]
    %v155 = vld [vmem:[%s4 + $0x8] sm:$0xff]
    %v156 = vld [vmem:[%s4 + $0x10] sm:$0xff]
    %v157 = vld [vmem:[%s4 + $0x18] sm:$0xff]
    %v158 = vld [vmem:[%s4 + $0x20] sm:$0xff]
    %v159 = vld [vmem:[%s4 + $0x28] sm:$0xff]
    %v160 = vlaneseq
    %v161 = vshrl.u32 %v160, 7
    %v162 = vsub.s32 0, %v161
    %v163 = vrot.slane %v38, %v162
    %v165 = vsel %vm66, %v153, 0
    %167 = vmatprep.subr.mxu0 0.0
    %168 = vmatpush1.msra.mxu0 %v154
    %169 = vmatprep.subr.mxu0 0.0
    %170 = vmatpush1.msra.mxu0 %v155
    %171 = vmatprep.subr.mxu0 0.0
    %172 = vmatpush1.msra.mxu0 %v156
    %173 = vmatprep.subr.mxu0 0.0
    %174 = vmatpush1.msra.mxu0 %v157
    %175 = vmatprep.subr.mxu0 0.0
    %176 = vmatpush1.msra.mxu0 %v158
    %177 = vmatprep.subr.mxu0 0.0
    %178 = vmatpush1.msra.mxu0 %v159
    %179 = vmatprep.subr.mxu0 0.0
    %180 = vmatpush1.msra.mxu0 0.0
    %181 = vmatprep.subr.mxu0 0.0
    %182 = vmatpush1.msra.mxu0 0.0
    %183 = vmatprep.subr.mxu0 0.0
    %184 = vmatpush1.msra.mxu0 0.0
    %185 = vmatprep.subr.mxu0 0.0
    %186 = vmatpush1.msra.mxu0 0.0
    %187 = vmatprep.subr.mxu0 0.0
    %188 = vmatpush1.msra.mxu0 0.0
    %189 = vmatprep.subr.mxu0 0.0
    %190 = vmatpush1.msra.mxu0 0.0
    %191 = vmatprep.subr.mxu0 0.0
    %192 = vmatpush1.msra.mxu0 0.0
    %193 = vmatprep.subr.mxu0 0.0
    %194 = vmatpush1.msra.mxu0 0.0
    %195 = vmatprep.subr.mxu0 0.0
    %196 = vmatpush1.msra.mxu0 0.0
    %197 = vmatprep.subr.mxu0 0.0
    %198 = vmatpush1.msra.mxu0 0.0
    %199 = vmatprep.subr.mxu0 0.0
    %200 = vmatpush1.msra.mxu0 0.0
    %201 = vmatprep.subr.mxu0 0.0
    %202 = vmatpush1.msra.mxu0 0.0
    %203 = vmatprep.subr.mxu0 0.0
    %204 = vmatpush1.msra.mxu0 0.0
    %205 = vmatprep.subr.mxu0 0.0
    %206 = vmatpush1.msra.mxu0 0.0
    %207 = vmatprep.subr.mxu0 0.0
    %208 = vmatpush1.msra.mxu0 0.0
    %209 = vmatprep.subr.mxu0 0.0
    %210 = vmatpush1.msra.mxu0 0.0
    %211 = vmatprep.subr.mxu0 0.0
    %212 = vmatpush1.msra.mxu0 0.0
    %213 = vmatprep.subr.mxu0 0.0
    %214 = vmatpush1.msra.mxu0 0.0
    %215 = vmatprep.subr.mxu0 0.0
    %216 = vmatpush1.msra.mxu0 0.0
    %217 = vmatprep.subr.mxu0 0.0
    %218 = vmatpush1.msra.mxu0 0.0
    %219 = vmatprep.subr.mxu0 0.0
    %220 = vmatpush1.msra.mxu0 0.0
    %221 = vmatprep.subr.mxu0 0.0
    %222 = vmatpush1.msra.mxu0 0.0
    %223 = vmatprep.subr.mxu0 0.0
    %224 = vmatpush1.msra.mxu0 0.0
    %225 = vmatprep.subr.mxu0 0.0
    %226 = vmatpush1.msra.mxu0 0.0
    %227 = vmatprep.subr.mxu0 0.0
    %228 = vmatpush1.msra.mxu0 0.0
    %229 = vmatprep.subr.mxu0 0.0
    %230 = vmatpush1.msra.mxu0 0.0
    %231 = vmatprep.mubr.f32.mxu0 0.0
    %232 = vmatmul.mubr.f32.gmra.mrb[0].mxu0 %v165
    %v233 = vpop.f32.mrb[0].mxu0
    %v234 = vadd.f32 %v163, %v233
    %v235 = vpop.f32.mrb[0].mxu0
    %236 = vdwg.mxu0
    %v237 = vtanh.pop %v234
    %v238 = vmul.f32 %v147, %v48
    %v239 = vfloor.f32 %v238
    %v240 = vcvt.f32.s32.to.zero.pseudo %v239
    %v241 = vsub.f32 1.0, %v147
    %v242 = vmul.f32 %v241, %v237
    %v243 = vmul.f32 %v242, 8388608.0
    %v244 = vfloor.f32 %v243
    %v245 = vcvt.f32.s32.to.zero.pseudo %v244
    %v246 = vadd.s32 %v240, %v245
    %v247 = vcvt.s32.f32 %v246
    %v248 = vmul.f32 %v247, 1.1920929e-07
    %250 = vrot.lane.b32.xlu0 %v248, 32
    %v251 = vpop.permute.xlu0 %250
    %v253 = vsel %vm54, %v47, %v251
    %v254 = vld [vmem:[%s6] sm:$0xff]
    %v255 = vld [vmem:[%s6 + $0x8] sm:$0xff]
    %v256 = vld [vmem:[%s6 + $0x10] sm:$0xff]
    %v257 = vld [vmem:[%s6 + $0x18] sm:$0xff]
    %v258 = vld [vmem:[%s6 + $0x20] sm:$0xff]
    %v259 = vld [vmem:[%s6 + $0x28] sm:$0xff]
    %v260 = vlaneseq
    %v261 = vshrl.u32 %v260, 7
    %v262 = vsub.s32 0, %v261
    %v263 = vrot.slane %v40, %v262
    %v265 = vsel %vm66, %v253, 0
    %267 = vmatprep.subr.mxu0 0.0
    %268 = vmatpush1.msra.mxu0 %v254
    %269 = vmatprep.subr.mxu0 0.0
    %270 = vmatpush1.msra.mxu0 %v255
    %271 = vmatprep.subr.mxu0 0.0
    %272 = vmatpush1.msra.mxu0 %v256
    %273 = vmatprep.subr.mxu0 0.0
    %274 = vmatpush1.msra.mxu0 %v257
    %275 = vmatprep.subr.mxu0 0.0
    %276 = vmatpush1.msra.mxu0 %v258
    %277 = vmatprep.subr.mxu0 0.0
    %278 = vmatpush1.msra.mxu0 %v259
    %279 = vmatprep.subr.mxu0 0.0
    %280 = vmatpush1.msra.mxu0 0.0
    %281 = vmatprep.subr.mxu0 0.0
    %282 = vmatpush1.msra.mxu0 0.0
    %283 = vmatprep.subr.mxu0 0.0
    %284 = vmatpush1.msra.mxu0 0.0
    %285 = vmatprep.subr.mxu0 0.0
    %286 = vmatpush1.msra.mxu0 0.0
    %287 = vmatprep.subr.mxu0 0.0
    %288 = vmatpush1.msra.mxu0 0.0
    %289 = vmatprep.subr.mxu0 0.0
    %290 = vmatpush1.msra.mxu0 0.0
    %291 = vmatprep.subr.mxu0 0.0
    %292 = vmatpush1.msra.mxu0 0.0
    %293 = vmatprep.subr.mxu0 0.0
    %294 = vmatpush1.msra.mxu0 0.0
    %295 = vmatprep.subr.mxu0 0.0
    %296 = vmatpush1.msra.mxu0 0.0
    %297 = vmatprep.subr.mxu0 0.0
    %298 = vmatpush1.msra.mxu0 0.0
    %299 = vmatprep.subr.mxu0 0.0
    %300 = vmatpush1.msra.mxu0 0.0
    %301 = vmatprep.subr.mxu0 0.0
    %302 = vmatpush1.msra.mxu0 0.0
    %303 = vmatprep.subr.mxu0 0.0
    %304 = vmatpush1.msra.mxu0 0.0
    %305 = vmatprep.subr.mxu0 0.0
    %306 = vmatpush1.msra.mxu0 0.0
    %307 = vmatprep.subr.mxu0 0.0
    %308 = vmatpush1.msra.mxu0 0.0
    %309 = vmatprep.subr.mxu0 0.0
    %310 = vmatpush1.msra.mxu0 0.0
    %311 = vmatprep.subr.mxu0 0.0
    %312 = vmatpush1.msra.mxu0 0.0
    %313 = vmatprep.subr.mxu0 0.0
    %314 = vmatpush1.msra.mxu0 0.0
    %315 = vmatprep.subr.mxu0 0.0
    %316 = vmatpush1.msra.mxu0 0.0
    %317 = vmatprep.subr.mxu0 0.0
    %318 = vmatpush1.msra.mxu0 0.0
    %319 = vmatprep.subr.mxu0 0.0
    %320 = vmatpush1.msra.mxu0 0.0
    %321 = vmatprep.subr.mxu0 0.0
    %322 = vmatpush1.msra.mxu0 0.0
    %323 = vmatprep.subr.mxu0 0.0
    %324 = vmatpush1.msra.mxu0 0.0
    %325 = vmatprep.subr.mxu0 0.0
    %326 = vmatpush1.msra.mxu0 0.0
    %327 = vmatprep.subr.mxu0 0.0
    %328 = vmatpush1.msra.mxu0 0.0
    %329 = vmatprep.subr.mxu0 0.0
    %330 = vmatpush1.msra.mxu0 0.0
    %331 = vmatprep.mubr.f32.mxu0 0.0
    %332 = vmatmul.mubr.f32.gmra.mrb[0].mxu0 %v265
    %v333 = vpop.f32.mrb[0].mxu0
    %v334 = vadd.f32 %v263, %v333
    %v335 = vpop.f32.mrb[0].mxu0
    %336 = vdwg.mxu0
    %v337 = vxor.u32 %v334, 2147483648
    %v338 = vmul.f32 %v337, 1.442695
    %v339 = vpow.pop %v338
    %v340 = vadd.f32 %v339, 1.0
    %v341 = vrcp.pop %v340
    %v342 = vmul.f32 1.0, %v341
    %v343 = vmul.f32 %v342, 0.875
    %v344 = vadd.f32 %v343, 0.125
    %345 = vrot.lane.b32.xlu0 %v248, 16
    %v346 = vpop.permute.xlu0 %345
    %v348 = vmul.f32 %v342, %v346
    %350 = vrot.lane.b32.xlu0 %v348, 16
    %v351 = vpop.permute.xlu0 %350
    %v353 = vsel %vm54, %v47, %v351
    %v354 = vld [vmem:[%s8] sm:$0xff]
    %v355 = vld [vmem:[%s8 + $0x8] sm:$0xff]
    %v356 = vld [vmem:[%s8 + $0x10] sm:$0xff]
    %v357 = vld [vmem:[%s8 + $0x18] sm:$0xff]
    %v358 = vld [vmem:[%s8 + $0x20] sm:$0xff]
    %v359 = vld [vmem:[%s8 + $0x28] sm:$0xff]
    %v360 = vlaneseq
    %v361 = vshrl.u32 %v360, 7
    %v362 = vsub.s32 0, %v361
    %v363 = vrot.slane %v42, %v362
    %v365 = vsel %vm66, %v353, 0
    %367 = vmatprep.subr.mxu0 0.0
    %368 = vmatpush1.msra.mxu0 %v354
    %369 = vmatprep.subr.mxu0 0.0
    %370 = vmatpush1.msra.mxu0 %v355
    %371 = vmatprep.subr.mxu0 0.0
    %372 = vmatpush1.msra.mxu0 %v356
    %373 = vmatprep.subr.mxu0 0.0
    %374 = vmatpush1.msra.mxu0 %v357
    %375 = vmatprep.subr.mxu0 0.0
    %376 = vmatpush1.msra.mxu0 %v358
    %377 = vmatprep.subr.mxu0 0.0
    %378 = vmatpush1.msra.mxu0 %v359
    %379 = vmatprep.subr.mxu0 0.0
    %380 = vmatpush1.msra.mxu0 0.0
    %381 = vmatprep.subr.mxu0 0.0
    %382 = vmatpush1.msra.mxu0 0.0
    %383 = vmatprep.subr.mxu0 0.0
    %384 = vmatpush1.msra.mxu0 0.0
    %385 = vmatprep.subr.mxu0 0.0
    %386 = vmatpush1.msra.mxu0 0.0
    %387 = vmatprep.subr.mxu0 0.0
    %388 = vmatpush1.msra.mxu0 0.0
    %389 = vmatprep.subr.mxu0 0.0
    %390 = vmatpush1.msra.mxu0 0.0
    %391 = vmatprep.subr.mxu0 0.0
    %392 = vmatpush1.msra.mxu0 0.0
    %393 = vmatprep.subr.mxu0 0.0
    %394 = vmatpush1.msra.mxu0 0.0
    %395 = vmatprep.subr.mxu0 0.0
    %396 = vmatpush1.msra.mxu0 0.0
    %397 = vmatprep.subr.mxu0 0.0
    %398 = vmatpush1.msra.mxu0 0.0
    %399 = vmatprep.subr.mxu0 0.0
    %400 = vmatpush1.msra.mxu0 0.0
    %401 = vmatprep.subr.mxu0 0.0
    %402 = vmatpush1.msra.mxu0 0.0
    %403 = vmatprep.subr.mxu0 0.0
    %404 = vmatpush1.msra.mxu0 0.0
    %405 = vmatprep.subr.mxu0 0.0
    %406 = vmatpush1.msra.mxu0 0.0
    %407 = vmatprep.subr.mxu0 0.0
    %408 = vmatpush1.msra.mxu0 0.0
    %409 = vmatprep.subr.mxu0 0.0
    %410 = vmatpush1.msra.mxu0 0.0
    %411 = vmatprep.subr.mxu0 0.0
    %412 = vmatpush1.msra.mxu0 0.0
    %413 = vmatprep.subr.mxu0 0.0
    %414 = vmatpush1.msra.mxu0 0.0
    %415 = vmatprep.subr.mxu0 0.0
    %416 = vmatpush1.msra.mxu0 0.0
    %417 = vmatprep.subr.mxu0 0.0
    %418 = vmatpush1.msra.mxu0 0.0
    %419 = vmatprep.subr.mxu0 0.0
    %420 = vmatpush1.msra.mxu0 0.0
    %421 = vmatprep.subr.mxu0 0.0
    %422 = vmatpush1.msra.mxu0 0.0
    %423 = vmatprep.subr.mxu0 0.0
    %424 = vmatpush1.msra.mxu0 0.0
    %425 = vmatprep.subr.mxu0 0.0
    %426 = vmatpush1.msra.mxu0 0.0
    %427 = vmatprep.subr.mxu0 0.0
    %428 = vmatpush1.msra.mxu0 0.0
    %429 = vmatprep.subr.mxu0 0.0
    %430 = vmatpush1.msra.mxu0 0.0
    %431 = vmatprep.mubr.f32.mxu0 0.0
    %432 = vmatmul.mubr.f32.gmra.mrb[0].mxu0 %v365
    %v433 = vpop.f32.mrb[0].mxu0
    %v434 = vadd.f32 %v363, %v433
    %v435 = vpop.f32.mrb[0].mxu0
    %436 = vdwg.mxu0
    %v437 = vtanh.pop %v434
    %439 = vrot.lane.b32.xlu0 %v48, 112
    %v440 = vpop.permute.xlu0 %439
    %v442 = vmul.f32 %v344, %v440
    %v443 = vfloor.f32 %v442
    %v444 = vcvt.f32.s32.to.zero.pseudo %v443
    %v445 = vsub.f32 1.0, %v344
    %v446 = vmul.f32 %v445, %v437
    %v447 = vmul.f32 %v446, 8388608.0
    %v448 = vfloor.f32 %v447
    %v449 = vcvt.f32.s32.to.zero.pseudo %v448
    %v450 = vadd.s32 %v444, %v449
    %451 = vrot.lane.b32.xlu0 %v450, 16
    %v452 = vpop.permute.xlu0 %451
    %vm453 = vcmask 130048
    %v454 = vsel %vm453, %v246, %v452
    %455 = vst.msk [vmem:[#allocation2] sm:$0xff] %vm54, %v454
    %v456 = vcvt.s32.f32 %v454
    %v457 = vmul.f32 %v456, 1.1920929e-07
    %v458 = vcvt.s32.f32 %v46
    %v459 = vmul.f32 %v458, 1.1920929e-07
    %461 = vrot.lane.b32.xlu0 %v459, 16
    %v462 = vpop.permute.xlu0 %461
    %v464 = vsel %vm54, %v457, %v462
    %s465 = scalar_lea.vmem %s2, 48
    %v466 = vld [vmem:[%s465] sm:$0xff]
    %v467 = vld [vmem:[%s465 + $0x8] sm:$0xff]
    %v468 = vld [vmem:[%s465 + $0x10] sm:$0xff]
    %v469 = vld [vmem:[%s465 + $0x18] sm:$0xff]
    %v470 = vld [vmem:[%s465 + $0x20] sm:$0xff]
    %v471 = vld [vmem:[%s465 + $0x28] sm:$0xff]
    %v472 = vlaneseq
    %v473 = vshrl.u32 %v472, 7
    %v474 = vsub.s32 0, %v473
    %v475 = vrot.slane %v37, %v474
    %v477 = vsel %vm66, %v464, 0
    %479 = vmatprep.subr.mxu0 0.0
    %480 = vmatpush1.msra.mxu0 %v466
    %481 = vmatprep.subr.mxu0 0.0
    %482 = vmatpush1.msra.mxu0 %v467
    %483 = vmatprep.subr.mxu0 0.0
    %484 = vmatpush1.msra.mxu0 %v468
    %485 = vmatprep.subr.mxu0 0.0
    %486 = vmatpush1.msra.mxu0 %v469
    %487 = vmatprep.subr.mxu0 0.0
    %488 = vmatpush1.msra.mxu0 %v470
    %489 = vmatprep.subr.mxu0 0.0
    %490 = vmatpush1.msra.mxu0 %v471
    %491 = vmatprep.subr.mxu0 0.0
    %492 = vmatpush1.msra.mxu0 0.0
    %493 = vmatprep.subr.mxu0 0.0
    %494 = vmatpush1.msra.mxu0 0.0
    %495 = vmatprep.subr.mxu0 0.0
    %496 = vmatpush1.msra.mxu0 0.0
    %497 = vmatprep.subr.mxu0 0.0
    %498 = vmatpush1.msra.mxu0 0.0
    %499 = vmatprep.subr.mxu0 0.0
    %500 = vmatpush1.msra.mxu0 0.0
    %501 = vmatprep.subr.mxu0 0.0
    %502 = vmatpush1.msra.mxu0 0.0
    %503 = vmatprep.subr.mxu0 0.0
    %504 = vmatpush1.msra.mxu0 0.0
    %505 = vmatprep.subr.mxu0 0.0
    %506 = vmatpush1.msra.mxu0 0.0
    %507 = vmatprep.subr.mxu0 0.0
    %508 = vmatpush1.msra.mxu0 0.0
    %509 = vmatprep.subr.mxu0 0.0
    %510 = vmatpush1.msra.mxu0 0.0
    %511 = vmatprep.subr.mxu0 0.0
    %512 = vmatpush1.msra.mxu0 0.0
    %513 = vmatprep.subr.mxu0 0.0
    %514 = vmatpush1.msra.mxu0 0.0
    %515 = vmatprep.subr.mxu0 0.0
    %516 = vmatpush1.msra.mxu0 0.0
    %517 = vmatprep.subr.mxu0 0.0
    %518 = vmatpush1.msra.mxu0 0.0
    %519 = vmatprep.subr.mxu0 0.0
    %520 = vmatpush1.msra.mxu0 0.0
    %521 = vmatprep.subr.mxu0 0.0
    %522 = vmatpush1.msra.mxu0 0.0
    %523 = vmatprep.subr.mxu0 0.0
    %524 = vmatpush1.msra.mxu0 0.0
    %525 = vmatprep.subr.mxu0 0.0
    %526 = vmatpush1.msra.mxu0 0.0
    %527 = vmatprep.subr.mxu0 0.0
    %528 = vmatpush1.msra.mxu0 0.0
    %529 = vmatprep.subr.mxu0 0.0
    %530 = vmatpush1.msra.mxu0 0.0
    %531 = vmatprep.subr.mxu0 0.0
    %532 = vmatpush1.msra.mxu0 0.0
    %533 = vmatprep.subr.mxu0 0.0
    %534 = vmatpush1.msra.mxu0 0.0
    %535 = vmatprep.subr.mxu0 0.0
    %536 = vmatpush1.msra.mxu0 0.0
    %537 = vmatprep.subr.mxu0 0.0
    %538 = vmatpush1.msra.mxu0 0.0
    %539 = vmatprep.subr.mxu0 0.0
    %540 = vmatpush1.msra.mxu0 0.0
    %541 = vmatprep.subr.mxu0 0.0
    %542 = vmatpush1.msra.mxu0 0.0
    %543 = vmatprep.mubr.f32.mxu0 0.0
    %544 = vmatmul.mubr.f32.gmra.mrb[0].mxu0 %v477
    %v545 = vpop.f32.mrb[0].mxu0
    %v546 = vadd.f32 %v475, %v545
    %v547 = vpop.f32.mrb[0].mxu0
    %548 = vdwg.mxu0
    %v549 = vxor.u32 %v546, 2147483648
    %v550 = vmul.f32 %v549, 1.442695
    %v551 = vpow.pop %v550
    %v552 = vadd.f32 %v551, 1.0
    %v553 = vrcp.pop %v552
    %v554 = vmul.f32 1.0, %v553
    %v555 = vmul.f32 %v554, 0.875
    %v556 = vadd.f32 %v555, 0.125
    %v557 = vmul.f32 %v554, %v459
    %559 = vrot.lane.b32.xlu0 %v557, 16
    %v560 = vpop.permute.xlu0 %559
    %v562 = vsel %vm54, %v457, %v560
    %s563 = scalar_lea.vmem %s4, 48
    %v564 = vld [vmem:[%s563] sm:$0xff]
    %v565 = vld [vmem:[%s563 + $0x8] sm:$0xff]
    %v566 = vld [vmem:[%s563 + $0x10] sm:$0xff]
    %v567 = vld [vmem:[%s563 + $0x18] sm:$0xff]
    %v568 = vld [vmem:[%s563 + $0x20] sm:$0xff]
    %v569 = vld [vmem:[%s563 + $0x28] sm:$0xff]
    %v570 = vlaneseq
    %v571 = vshrl.u32 %v570, 7
    %v572 = vsub.s32 0, %v571
    %v573 = vrot.slane %v39, %v572
    %v575 = vsel %vm66, %v562, 0
    %577 = vmatprep.subr.mxu0 0.0
    %578 = vmatpush1.msra.mxu0 %v564
    %579 = vmatprep.subr.mxu0 0.0
    %580 = vmatpush1.msra.mxu0 %v565
    %581 = vmatprep.subr.mxu0 0.0
    %582 = vmatpush1.msra.mxu0 %v566
    %583 = vmatprep.subr.mxu0 0.0
    %584 = vmatpush1.msra.mxu0 %v567
    %585 = vmatprep.subr.mxu0 0.0
    %586 = vmatpush1.msra.mxu0 %v568
    %587 = vmatprep.subr.mxu0 0.0
    %588 = vmatpush1.msra.mxu0 %v569
    %589 = vmatprep.subr.mxu0 0.0
    %590 = vmatpush1.msra.mxu0 0.0
    %591 = vmatprep.subr.mxu0 0.0
    %592 = vmatpush1.msra.mxu0 0.0
    %593 = vmatprep.subr.mxu0 0.0
    %594 = vmatpush1.msra.mxu0 0.0
    %595 = vmatprep.subr.mxu0 0.0
    %596 = vmatpush1.msra.mxu0 0.0
    %597 = vmatprep.subr.mxu0 0.0
    %598 = vmatpush1.msra.mxu0 0.0
    %599 = vmatprep.subr.mxu0 0.0
    %600 = vmatpush1.msra.mxu0 0.0
    %601 = vmatprep.subr.mxu0 0.0
    %602 = vmatpush1.msra.mxu0 0.0
    %603 = vmatprep.subr.mxu0 0.0
    %604 = vmatpush1.msra.mxu0 0.0
    %605 = vmatprep.subr.mxu0 0.0
    %606 = vmatpush1.msra.mxu0 0.0
    %607 = vmatprep.subr.mxu0 0.0
    %608 = vmatpush1.msra.mxu0 0.0
    %609 = vmatprep.subr.mxu0 0.0
    %610 = vmatpush1.msra.mxu0 0.0
    %611 = vmatprep.subr.mxu0 0.0
    %612 = vmatpush1.msra.mxu0 0.0
    %613 = vmatprep.subr.mxu0 0.0
    %614 = vmatpush1.msra.mxu0 0.0
    %615 = vmatprep.subr.mxu0 0.0
    %616 = vmatpush1.msra.mxu0 0.0
    %617 = vmatprep.subr.mxu0 0.0
    %618 = vmatpush1.msra.mxu0 0.0
    %619 = vmatprep.subr.mxu0 0.0
    %620 = vmatpush1.msra.mxu0 0.0
    %621 = vmatprep.subr.mxu0 0.0
    %622 = vmatpush1.msra.mxu0 0.0
    %623 = vmatprep.subr.mxu0 0.0
    %624 = vmatpush1.msra.mxu0 0.0
    %625 = vmatprep.subr.mxu0 0.0
    %626 = vmatpush1.msra.mxu0 0.0
    %627 = vmatprep.subr.mxu0 0.0
    %628 = vmatpush1.msra.mxu0 0.0
    %629 = vmatprep.subr.mxu0 0.0
    %630 = vmatpush1.msra.mxu0 0.0
    %631 = vmatprep.subr.mxu0 0.0
    %632 = vmatpush1.msra.mxu0 0.0
    %633 = vmatprep.subr.mxu0 0.0
    %634 = vmatpush1.msra.mxu0 0.0
    %635 = vmatprep.subr.mxu0 0.0
    %636 = vmatpush1.msra.mxu0 0.0
    %637 = vmatprep.subr.mxu0 0.0
    %638 = vmatpush1.msra.mxu0 0.0
    %639 = vmatprep.subr.mxu0 0.0
    %640 = vmatpush1.msra.mxu0 0.0
    %641 = vmatprep.mubr.f32.mxu0 0.0
    %642 = vmatmul.mubr.f32.gmra.mrb[0].mxu0 %v575
    %v643 = vpop.f32.mrb[0].mxu0
    %v644 = vadd.f32 %v573, %v643
    %v645 = vpop.f32.mrb[0].mxu0
    %646 = vdwg.mxu0
    %v647 = vtanh.pop %v644
    %v648 = vmul.f32 %v556, %v458
    %v649 = vfloor.f32 %v648
    %v650 = vcvt.f32.s32.to.zero.pseudo %v649
    %v651 = vsub.f32 1.0, %v556
    %v652 = vmul.f32 %v651, %v647
    %v653 = vmul.f32 %v652, 8388608.0
    %v654 = vfloor.f32 %v653
    %v655 = vcvt.f32.s32.to.zero.pseudo %v654
    %v656 = vadd.s32 %v650, %v655
    %v657 = vcvt.s32.f32 %v656
    %v658 = vmul.f32 %v657, 1.1920929e-07
    %660 = vrot.lane.b32.xlu0 %v658, 32
    %v661 = vpop.permute.xlu0 %660
    %v663 = vsel %vm54, %v457, %v661
    %s664 = scalar_lea.vmem %s6, 48
    %v665 = vld [vmem:[%s664] sm:$0xff]
    %v666 = vld [vmem:[%s664 + $0x8] sm:$0xff]
    %v667 = vld [vmem:[%s664 + $0x10] sm:$0xff]
    %v668 = vld [vmem:[%s664 + $0x18] sm:$0xff]
    %v669 = vld [vmem:[%s664 + $0x20] sm:$0xff]
    %v670 = vld [vmem:[%s664 + $0x28] sm:$0xff]
    %v671 = vlaneseq
    %v672 = vshrl.u32 %v671, 7
    %v673 = vsub.s32 0, %v672
    %v674 = vrot.slane %v41, %v673
    %v676 = vsel %vm66, %v663, 0
    %678 = vmatprep.subr.mxu0 0.0
    %679 = vmatpush1.msra.mxu0 %v665
    %680 = vmatprep.subr.mxu0 0.0
    %681 = vmatpush1.msra.mxu0 %v666
    %682 = vmatprep.subr.mxu0 0.0
    %683 = vmatpush1.msra.mxu0 %v667
    %684 = vmatprep.subr.mxu0 0.0
    %685 = vmatpush1.msra.mxu0 %v668
    %686 = vmatprep.subr.mxu0 0.0
    %687 = vmatpush1.msra.mxu0 %v669
    %688 = vmatprep.subr.mxu0 0.0
    %689 = vmatpush1.msra.mxu0 %v670
    %690 = vmatprep.subr.mxu0 0.0
    %691 = vmatpush1.msra.mxu0 0.0
    %692 = vmatprep.subr.mxu0 0.0
    %693 = vmatpush1.msra.mxu0 0.0
    %694 = vmatprep.subr.mxu0 0.0
    %695 = vmatpush1.msra.mxu0 0.0
    %696 = vmatprep.subr.mxu0 0.0
    %697 = vmatpush1.msra.mxu0 0.0
    %698 = vmatprep.subr.mxu0 0.0
    %699 = vmatpush1.msra.mxu0 0.0
    %700 = vmatprep.subr.mxu0 0.0
    %701 = vmatpush1.msra.mxu0 0.0
    %702 = vmatprep.subr.mxu0 0.0
    %703 = vmatpush1.msra.mxu0 0.0
    %704 = vmatprep.subr.mxu0 0.0
    %705 = vmatpush1.msra.mxu0 0.0
    %706 = vmatprep.subr.mxu0 0.0
    %707 = vmatpush1.msra.mxu0 0.0
    %708 = vmatprep.subr.mxu0 0.0
    %709 = vmatpush1.msra.mxu0 0.0
    %710 = vmatprep.subr.mxu0 0.0
    %711 = vmatpush1.msra.mxu0 0.0
    %712 = vmatprep.subr.mxu0 0.0
    %713 = vmatpush1.msra.mxu0 0.0
    %714 = vmatprep.subr.mxu0 0.0
    %715 = vmatpush1.msra.mxu0 0.0
    %716 = vmatprep.subr.mxu0 0.0
    %717 = vmatpush1.msra.mxu0 0.0
    %718 = vmatprep.subr.mxu0 0.0
    %719 = vmatpush1.msra.mxu0 0.0
    %720 = vmatprep.subr.mxu0 0.0
    %721 = vmatpush1.msra.mxu0 0.0
    %722 = vmatprep.subr.mxu0 0.0
    %723 = vmatpush1.msra.mxu0 0.0
    %724 = vmatprep.subr.mxu0 0.0
    %725 = vmatpush1.msra.mxu0 0.0
    %726 = vmatprep.subr.mxu0 0.0
    %727 = vmatpush1.msra.mxu0 0.0
    %728 = vmatprep.subr.mxu0 0.0
    %729 = vmatpush1.msra.mxu0 0.0
    %730 = vmatprep.subr.mxu0 0.0
    %731 = vmatpush1.msra.mxu0 0.0
    %732 = vmatprep.subr.mxu0 0.0
    %733 = vmatpush1.msra.mxu0 0.0
    %734 = vmatprep.subr.mxu0 0.0
    %735 = vmatpush1.msra.mxu0 0.0
    %736 = vmatprep.subr.mxu0 0.0
    %737 = vmatpush1.msra.mxu0 0.0
    %738 = vmatprep.subr.mxu0 0.0
    %739 = vmatpush1.msra.mxu0 0.0
    %740 = vmatprep.subr.mxu0 0.0
    %741 = vmatpush1.msra.mxu0 0.0
    %742 = vmatprep.mubr.f32.mxu0 0.0
    %743 = vmatmul.mubr.f32.gmra.mrb[0].mxu0 %v676
    %v744 = vpop.f32.mrb[0].mxu0
    %v745 = vadd.f32 %v674, %v744
    %v746 = vpop.f32.mrb[0].mxu0
    %747 = vdwg.mxu0
    %v748 = vxor.u32 %v745, 2147483648
    %v749 = vmul.f32 %v748, 1.442695
    %v750 = vpow.pop %v749
    %v751 = vadd.f32 %v750, 1.0
    %v752 = vrcp.pop %v751
    %v753 = vmul.f32 1.0, %v752
    %v754 = vmul.f32 %v753, 0.875
    %v755 = vadd.f32 %v754, 0.125
    %756 = vrot.lane.b32.xlu0 %v658, 16
    %v757 = vpop.permute.xlu0 %756
    %v759 = vmul.f32 %v753, %v757
    %761 = vrot.lane.b32.xlu0 %v759, 16
    %v762 = vpop.permute.xlu0 %761
    %v764 = vsel %vm54, %v457, %v762
    %s765 = scalar_lea.vmem %s8, 48
    %v766 = vld [vmem:[%s765] sm:$0xff]
    %v767 = vld [vmem:[%s765 + $0x8] sm:$0xff]
    %v768 = vld [vmem:[%s765 + $0x10] sm:$0xff]
    %v769 = vld [vmem:[%s765 + $0x18] sm:$0xff]
    %v770 = vld [vmem:[%s765 + $0x20] sm:$0xff]
    %v771 = vld [vmem:[%s765 + $0x28] sm:$0xff]
    %v772 = vlaneseq
    %v773 = vshrl.u32 %v772, 7
    %v774 = vsub.s32 0, %v773
    %v775 = vrot.slane %v43, %v774
    %v777 = vsel %vm66, %v764, 0
    %779 = vmatprep.subr.mxu0 0.0
    %780 = vmatpush1.msra.mxu0 %v766
    %781 = vmatprep.subr.mxu0 0.0
    %782 = vmatpush1.msra.mxu0 %v767
    %783 = vmatprep.subr.mxu0 0.0
    %784 = vmatpush1.msra.mxu0 %v768
    %785 = vmatprep.subr.mxu0 0.0
    %786 = vmatpush1.msra.mxu0 %v769
    %787 = vmatprep.subr.mxu0 0.0
    %788 = vmatpush1.msra.mxu0 %v770
    %789 = vmatprep.subr.mxu0 0.0
    %790 = vmatpush1.msra.mxu0 %v771
    %791 = vmatprep.subr.mxu0 0.0
    %792 = vmatpush1.msra.mxu0 0.0
    %793 = vmatprep.subr.mxu0 0.0
    %794 = vmatpush1.msra.mxu0 0.0
    %795 = vmatprep.subr.mxu0 0.0
    %796 = vmatpush1.msra.mxu0 0.0
    %797 = vmatprep.subr.mxu0 0.0
    %798 = vmatpush1.msra.mxu0 0.0
    %799 = vmatprep.subr.mxu0 0.0
    %800 = vmatpush1.msra.mxu0 0.0
    %801 = vmatprep.subr.mxu0 0.0
    %802 = vmatpush1.msra.mxu0 0.0
    %803 = vmatprep.subr.mxu0 0.0
    %804 = vmatpush1.msra.mxu0 0.0
    %805 = vmatprep.subr.mxu0 0.0
    %806 = vmatpush1.msra.mxu0 0.0
    %807 = vmatprep.subr.mxu0 0.0
    %808 = vmatpush1.msra.mxu0 0.0
    %809 = vmatprep.subr.mxu0 0.0
    %810 = vmatpush1.msra.mxu0 0.0
    %811 = vmatprep.subr.mxu0 0.0
    %812 = vmatpush1.msra.mxu0 0.0
    %813 = vmatprep.subr.mxu0 0.0
    %814 = vmatpush1.msra.mxu0 0.0
    %815 = vmatprep.subr.mxu0 0.0
    %816 = vmatpush1.msra.mxu0 0.0
    %817 = vmatprep.subr.mxu0 0.0
    %818 = vmatpush1.msra.mxu0 0.0
    %819 = vmatprep.subr.mxu0 0.0
    %820 = vmatpush1.msra.mxu0 0.0
    %821 = vmatprep.subr.mxu0 0.0
    %822 = vmatpush1.msra.mxu0 0.0
    %823 = vmatprep.subr.mxu0 0.0
    %824 = vmatpush1.msra.mxu0 0.0
    %825 = vmatprep.subr.mxu0 0.0
    %826 = vmatpush1.msra.mxu0 0.0
    %827 = vmatprep.subr.mxu0 0.0
    %828 = vmatpush1.msra.mxu0 0.0
    %829 = vmatprep.subr.mxu0 0.0
    %830 = vmatpush1.msra.mxu0 0.0
    %831 = vmatprep.subr.mxu0 0.0
    %832 = vmatpush1.msra.mxu0 0.0
    %833 = vmatprep.subr.mxu0 0.0
    %834 = vmatpush1.msra.mxu0 0.0
    %835 = vmatprep.subr.mxu0 0.0
    %836 = vmatpush1.msra.mxu0 0.0
    %837 = vmatprep.subr.mxu0 0.0
    %838 = vmatpush1.msra.mxu0 0.0
    %839 = vmatprep.subr.mxu0 0.0
    %840 = vmatpush1.msra.mxu0 0.0
    %841 = vmatprep.subr.mxu0 0.0
    %842 = vmatpush1.msra.mxu0 0.0
    %843 = vmatprep.mubr.f32.mxu0 0.0
    %844 = vmatmul.mubr.f32.gmra.mrb[0].mxu0 %v777
    %v845 = vpop.f32.mrb[0].mxu0
    %v846 = vadd.f32 %v775, %v845
    %v847 = vpop.f32.mrb[0].mxu0
    %848 = vdwg.mxu0
    %v849 = vtanh.pop %v846
    %851 = vrot.lane.b32.xlu0 %v458, 112
    %v852 = vpop.permute.xlu0 %851
    %v854 = vmul.f32 %v755, %v852
    %v855 = vfloor.f32 %v854
    %v856 = vcvt.f32.s32.to.zero.pseudo %v855
    %v857 = vsub.f32 1.0, %v755
    %v858 = vmul.f32 %v857, %v849
    %v859 = vmul.f32 %v858, 8388608.0
    %v860 = vfloor.f32 %v859
    %v861 = vcvt.f32.s32.to.zero.pseudo %v860
    %v862 = vadd.s32 %v856, %v861
    %863 = vrot.lane.b32.xlu0 %v862, 16
    %v864 = vpop.permute.xlu0 %863
    %v865 = vsel %vm453, %v656, %v864
    %s866 = scalar_lea.vmem [#allocation2], 8
    %867 = vst.msk [vmem:[%s866] sm:$0xff] %vm54, %v865
    %s868 = scalar_lea.vmem %s0, 8
    %v869 = vld [vmem:[%s868] sm:$0xff]
    %v870 = vcvt.s32.f32 %v450
    %v871 = vmul.f32 %v870, 1.1920929e-07
    %873 = vrot.lane.b32.xlu0 %v871, 32
    %v874 = vpop.permute.xlu0 %873
    %v876 = vsel %vm54, %v869, %v874
    %v877 = vld [vmem:[%s2] sm:$0xff]
    %v878 = vld [vmem:[%s2 + $0x8] sm:$0xff]
    %v879 = vld [vmem:[%s2 + $0x10] sm:$0xff]
    %v880 = vld [vmem:[%s2 + $0x18] sm:$0xff]
    %v881 = vld [vmem:[%s2 + $0x20] sm:$0xff]
    %v882 = vld [vmem:[%s2 + $0x28] sm:$0xff]
    %v884 = vsel %vm66, %v876, 0
    %886 = vmatprep.subr.mxu0 0.0
    %887 = vmatpush1.msra.mxu0 %v877
    %888 = vmatprep.subr.mxu0 0.0
    %889 = vmatpush1.msra.mxu0 %v878
    %890 = vmatprep.subr.mxu0 0.0
    %891 = vmatpush1.msra.mxu0 %v879
    %892 = vmatprep.subr.mxu0 0.0
    %893 = vmatpush1.msra.mxu0 %v880
    %894 = vmatprep.subr.mxu0 0.0
    %895 = vmatpush1.msra.mxu0 %v881
    %896 = vmatprep.subr.mxu0 0.0
    %897 = vmatpush1.msra.mxu0 %v882
    %898 = vmatprep.subr.mxu0 0.0
    %899 = vmatpush1.msra.mxu0 0.0
    %900 = vmatprep.subr.mxu0 0.0
    %901 = vmatpush1.msra.mxu0 0.0
    %902 = vmatprep.subr.mxu0 0.0
    %903 = vmatpush1.msra.mxu0 0.0
    %904 = vmatprep.subr.mxu0 0.0
    %905 = vmatpush1.msra.mxu0 0.0
    %906 = vmatprep.subr.mxu0 0.0
    %907 = vmatpush1.msra.mxu0 0.0
    %908 = vmatprep.subr.mxu0 0.0
    %909 = vmatpush1.msra.mxu0 0.0
    %910 = vmatprep.subr.mxu0 0.0
    %911 = vmatpush1.msra.mxu0 0.0
    %912 = vmatprep.subr.mxu0 0.0
    %913 = vmatpush1.msra.mxu0 0.0
    %914 = vmatprep.subr.mxu0 0.0
    %915 = vmatpush1.msra.mxu0 0.0
    %916 = vmatprep.subr.mxu0 0.0
    %917 = vmatpush1.msra.mxu0 0.0
    %918 = vmatprep.subr.mxu0 0.0
    %919 = vmatpush1.msra.mxu0 0.0
    %920 = vmatprep.subr.mxu0 0.0
    %921 = vmatpush1.msra.mxu0 0.0
    %922 = vmatprep.subr.mxu0 0.0
    %923 = vmatpush1.msra.mxu0 0.0
    %924 = vmatprep.subr.mxu0 0.0
    %925 = vmatpush1.msra.mxu0 0.0
    %926 = vmatprep.subr.mxu0 0.0
    %927 = vmatpush1.msra.mxu0 0.0
    %928 = vmatprep.subr.mxu0 0.0
    %929 = vmatpush1.msra.mxu0 0.0
    %930 = vmatprep.subr.mxu0 0.0
    %931 = vmatpush1.msra.mxu0 0.0
    %932 = vmatprep.subr.mxu0 0.0
    %933 = vmatpush1.msra.mxu0 0.0
    %934 = vmatprep.subr.mxu0 0.0
    %935 = vmatpush1.msra.mxu0 0.0
    %936 = vmatprep.subr.mxu0 0.0
    %937 = vmatpush1.msra.mxu0 0.0
    %938 = vmatprep.subr.mxu0 0.0
    %939 = vmatpush1.msra.mxu0 0.0
    %940 = vmatprep.subr.mxu0 0.0
    %941 = vmatpush1.msra.mxu0 0.0
    %942 = vmatprep.subr.mxu0 0.0
    %943 = vmatpush1.msra.mxu0 0.0
    %944 = vmatprep.subr.mxu0 0.0
    %945 = vmatpush1.msra.mxu0 0.0
    %946 = vmatprep.subr.mxu0 0.0
    %947 = vmatpush1.msra.mxu0 0.0
    %948 = vmatprep.subr.mxu0 0.0
    %949 = vmatpush1.msra.mxu0 0.0
    %950 = vmatprep.mubr.f32.mxu0 0.0
    %951 = vmatmul.mubr.f32.gmra.mrb[0].mxu0 %v884
    %v952 = vpop.f32.mrb[0].mxu0
    %v953 = vadd.f32 %v65, %v952
    %v954 = vpop.f32.mrb[0].mxu0
    %955 = vdwg.mxu0
    %v956 = vxor.u32 %v953, 2147483648
    %v957 = vmul.f32 %v956, 1.442695
    %v958 = vpow.pop %v957
    %v959 = vadd.f32 %v958, 1.0
    %v960 = vrcp.pop %v959
    %v961 = vmul.f32 1.0, %v960
    %v962 = vmul.f32 %v961, 0.875
    %v963 = vadd.f32 %v962, 0.125
    %964 = vrot.lane.b32.xlu0 %v871, 16
    %v965 = vpop.permute.xlu0 %964
    %v967 = vmul.f32 %v961, %v965
    %969 = vrot.lane.b32.xlu0 %v967, 16
    %v970 = vpop.permute.xlu0 %969
    %v972 = vsel %vm54, %v869, %v970
    %v973 = vld [vmem:[%s4] sm:$0xff]
    %v974 = vld [vmem:[%s4 + $0x8] sm:$0xff]
    %v975 = vld [vmem:[%s4 + $0x10] sm:$0xff]
    %v976 = vld [vmem:[%s4 + $0x18] sm:$0xff]
    %v977 = vld [vmem:[%s4 + $0x20] sm:$0xff]
    %v978 = vld [vmem:[%s4 + $0x28] sm:$0xff]
    %v980 = vsel %vm66, %v972, 0
    %982 = vmatprep.subr.mxu0 0.0
    %983 = vmatpush1.msra.mxu0 %v973
    %984 = vmatprep.subr.mxu0 0.0
    %985 = vmatpush1.msra.mxu0 %v974
    %986 = vmatprep.subr.mxu0 0.0
    %987 = vmatpush1.msra.mxu0 %v975
    %988 = vmatprep.subr.mxu0 0.0
    %989 = vmatpush1.msra.mxu0 %v976
    %990 = vmatprep.subr.mxu0 0.0
    %991 = vmatpush1.msra.mxu0 %v977
    %992 = vmatprep.subr.mxu0 0.0
    %993 = vmatpush1.msra.mxu0 %v978
    %994 = vmatprep.subr.mxu0 0.0
    %995 = vmatpush1.msra.mxu0 0.0
    %996 = vmatprep.subr.mxu0 0.0
    %997 = vmatpush1.msra.mxu0 0.0
    %998 = vmatprep.subr.mxu0 0.0
    %999 = vmatpush1.msra.mxu0 0.0
    %1000 = vmatprep.subr.mxu0 0.0
    %1001 = vmatpush1.msra.mxu0 0.0
    %1002 = vmatprep.subr.mxu0 0.0
    %1003 = vmatpush1.msra.mxu0 0.0
    %1004 = vmatprep.subr.mxu0 0.0
    %1005 = vmatpush1.msra.mxu0 0.0
    %1006 = vmatprep.subr.mxu0 0.0
    %1007 = vmatpush1.msra.mxu0 0.0
    %1008 = vmatprep.subr.mxu0 0.0
    %1009 = vmatpush1.msra.mxu0 0.0
    %1010 = vmatprep.subr.mxu0 0.0
    %1011 = vmatpush1.msra.mxu0 0.0
    %1012 = vmatprep.subr.mxu0 0.0
    %1013 = vmatpush1.msra.mxu0 0.0
    %1014 = vmatprep.subr.mxu0 0.0
    %1015 = vmatpush1.msra.mxu0 0.0
    %1016 = vmatprep.subr.mxu0 0.0
    %1017 = vmatpush1.msra.mxu0 0.0
    %1018 = vmatprep.subr.mxu0 0.0
    %1019 = vmatpush1.msra.mxu0 0.0
    %1020 = vmatprep.subr.mxu0 0.0
    %1021 = vmatpush1.msra.mxu0 0.0
    %1022 = vmatprep.subr.mxu0 0.0
    %1023 = vmatpush1.msra.mxu0 0.0
    %1024 = vmatprep.subr.mxu0 0.0
    %1025 = vmatpush1.msra.mxu0 0.0
    %1026 = vmatprep.subr.mxu0 0.0
    %1027 = vmatpush1.msra.mxu0 0.0
    %1028 = vmatprep.subr.mxu0 0.0
    %1029 = vmatpush1.msra.mxu0 0.0
    %1030 = vmatprep.subr.mxu0 0.0
    %1031 = vmatpush1.msra.mxu0 0.0
    %1032 = vmatprep.subr.mxu0 0.0
    %1033 = vmatpush1.msra.mxu0 0.0
    %1034 = vmatprep.subr.mxu0 0.0
    %1035 = vmatpush1.msra.mxu0 0.0
    %1036 = vmatprep.subr.mxu0 0.0
    %1037 = vmatpush1.msra.mxu0 0.0
    %1038 = vmatprep.subr.mxu0 0.0
    %1039 = vmatpush1.msra.mxu0 0.0
    %1040 = vmatprep.subr.mxu0 0.0
    %1041 = vmatpush1.msra.mxu0 0.0
    %1042 = vmatprep.subr.mxu0 0.0
    %1043 = vmatpush1.msra.mxu0 0.0
    %1044 = vmatprep.subr.mxu0 0.0
    %1045 = vmatpush1.msra.mxu0 0.0
    %1046 = vmatprep.mubr.f32.mxu0 0.0
    %1047 = vmatmul.mubr.f32.gmra.mrb[0].mxu0 %v980
    %v1048 = vpop.f32.mrb[0].mxu0
    %v1049 = vadd.f32 %v163, %v1048
    %v1050 = vpop.f32.mrb[0].mxu0
    %1051 = vdwg.mxu0
    %v1052 = vtanh.pop %v1049
    %v1053 = vmul.f32 %v963, %v247
    %v1054 = vfloor.f32 %v1053
    %v1055 = vcvt.f32.s32.to.zero.pseudo %v1054
    %v1056 = vsub.f32 1.0, %v963
    %v1057 = vmul.f32 %v1056, %v1052
    %v1058 = vmul.f32 %v1057, 8388608.0
    %v1059 = vfloor.f32 %v1058
    %v1060 = vcvt.f32.s32.to.zero.pseudo %v1059
    %v1061 = vadd.s32 %v1055, %v1060
    %v1062 = vcvt.s32.f32 %v1061
    %v1063 = vmul.f32 %v1062, 1.1920929e-07
    %1065 = vrot.lane.b32.xlu0 %v1063, 32
    %v1066 = vpop.permute.xlu0 %1065
    %v1068 = vsel %vm54, %v869, %v1066
    %v1069 = vld [vmem:[%s6] sm:$0xff]
    %v1070 = vld [vmem:[%s6 + $0x8] sm:$0xff]
    %v1071 = vld [vmem:[%s6 + $0x10] sm:$0xff]
    %v1072 = vld [vmem:[%s6 + $0x18] sm:$0xff]
    %v1073 = vld [vmem:[%s6 + $0x20] sm:$0xff]
    %v1074 = vld [vmem:[%s6 + $0x28] sm:$0xff]
    %v1076 = vsel %vm66, %v1068, 0
    %1078 = vmatprep.subr.mxu0 0.0
    %1079 = vmatpush1.msra.mxu0 %v1069
    %1080 = vmatprep.subr.mxu0 0.0
    %1081 = vmatpush1.msra.mxu0 %v1070
    %1082 = vmatprep.subr.mxu0 0.0
    %1083 = vmatpush1.msra.mxu0 %v1071
    %1084 = vmatprep.subr.mxu0 0.0
    %1085 = vmatpush1.msra.mxu0 %v1072
    %1086 = vmatprep.subr.mxu0 0.0
    %1087 = vmatpush1.msra.mxu0 %v1073
    %1088 = vmatprep.subr.mxu0 0.0
    %1089 = vmatpush1.msra.mxu0 %v1074
    %1090 = vmatprep.subr.mxu0 0.0
    %1091 = vmatpush1.msra.mxu0 0.0
    %1092 = vmatprep.subr.mxu0 0.0
    %1093 = vmatpush1.msra.mxu0 0.0
    %1094 = vmatprep.subr.mxu0 0.0
    %1095 = vmatpush1.msra.mxu0 0.0
    %1096 = vmatprep.subr.mxu0 0.0
    %1097 = vmatpush1.msra.mxu0 0.0
    %1098 = vmatprep.subr.mxu0 0.0
    %1099 = vmatpush1.msra.mxu0 0.0
    %1100 = vmatprep.subr.mxu0 0.0
    %1101 = vmatpush1.msra.mxu0 0.0
    %1102 = vmatprep.subr.mxu0 0.0
    %1103 = vmatpush1.msra.mxu0 0.0
    %1104 = vmatprep.subr.mxu0 0.0
    %1105 = vmatpush1.msra.mxu0 0.0
    %1106 = vmatprep.subr.mxu0 0.0
    %1107 = vmatpush1.msra.mxu0 0.0
    %1108 = vmatprep.subr.mxu0 0.0
    %1109 = vmatpush1.msra.mxu0 0.0
    %1110 = vmatprep.subr.mxu0 0.0
    %1111 = vmatpush1.msra.mxu0 0.0
    %1112 = vmatprep.subr.mxu0 0.0
    %1113 = vmatpush1.msra.mxu0 0.0
    %1114 = vmatprep.subr.mxu0 0.0
    %1115 = vmatpush1.msra.mxu0 0.0
    %1116 = vmatprep.subr.mxu0 0.0
    %1117 = vmatpush1.msra.mxu0 0.0
    %1118 = vmatprep.subr.mxu0 0.0
    %1119 = vmatpush1.msra.mxu0 0.0
    %1120 = vmatprep.subr.mxu0 0.0
    %1121 = vmatpush1.msra.mxu0 0.0
    %1122 = vmatprep.subr.mxu0 0.0
    %1123 = vmatpush1.msra.mxu0 0.0
    %1124 = vmatprep.subr.mxu0 0.0
    %1125 = vmatpush1.msra.mxu0 0.0
    %1126 = vmatprep.subr.mxu0 0.0
    %1127 = vmatpush1.msra.mxu0 0.0
    %1128 = vmatprep.subr.mxu0 0.0
    %1129 = vmatpush1.msra.mxu0 0.0
    %1130 = vmatprep.subr.mxu0 0.0
    %1131 = vmatpush1.msra.mxu0 0.0
    %1132 = vmatprep.subr.mxu0 0.0
    %1133 = vmatpush1.msra.mxu0 0.0
    %1134 = vmatprep.subr.mxu0 0.0
    %1135 = vmatpush1.msra.mxu0 0.0
    %1136 = vmatprep.subr.mxu0 0.0
    %1137 = vmatpush1.msra.mxu0 0.0
    %1138 = vmatprep.subr.mxu0 0.0
    %1139 = vmatpush1.msra.mxu0 0.0
    %1140 = vmatprep.subr.mxu0 0.0
    %1141 = vmatpush1.msra.mxu0 0.0
    %1142 = vmatprep.mubr.f32.mxu0 0.0
    %1143 = vmatmul.mubr.f32.gmra.mrb[0].mxu0 %v1076
    %v1144 = vpop.f32.mrb[0].mxu0
    %v1145 = vadd.f32 %v263, %v1144
    %v1146 = vpop.f32.mrb[0].mxu0
    %1147 = vdwg.mxu0
    %v1148 = vxor.u32 %v1145, 2147483648
    %v1149 = vmul.f32 %v1148, 1.442695
    %v1150 = vpow.pop %v1149
    %v1151 = vadd.f32 %v1150, 1.0
    %v1152 = vrcp.pop %v1151
    %v1153 = vmul.f32 1.0, %v1152
    %v1154 = vmul.f32 %v1153, 0.875
    %v1155 = vadd.f32 %v1154, 0.125
    %1156 = vrot.lane.b32.xlu0 %v1063, 16
    %v1157 = vpop.permute.xlu0 %1156
    %v1159 = vmul.f32 %v1153, %v1157
    %1161 = vrot.lane.b32.xlu0 %v1159, 16
    %v1162 = vpop.permute.xlu0 %1161
    %v1164 = vsel %vm54, %v869, %v1162
    %v1165 = vld [vmem:[%s8] sm:$0xff]
    %v1166 = vld [vmem:[%s8 + $0x8] sm:$0xff]
    %v1167 = vld [vmem:[%s8 + $0x10] sm:$0xff]
    %v1168 = vld [vmem:[%s8 + $0x18] sm:$0xff]
    %v1169 = vld [vmem:[%s8 + $0x20] sm:$0xff]
    %v1170 = vld [vmem:[%s8 + $0x28] sm:$0xff]
    %v1172 = vsel %vm66, %v1164, 0
    %1174 = vmatprep.subr.mxu0 0.0
    %1175 = vmatpush1.msra.mxu0 %v1165
    %1176 = vmatprep.subr.mxu0 0.0
    %1177 = vmatpush1.msra.mxu0 %v1166
    %1178 = vmatprep.subr.mxu0 0.0
    %1179 = vmatpush1.msra.mxu0 %v1167
    %1180 = vmatprep.subr.mxu0 0.0
    %1181 = vmatpush1.msra.mxu0 %v1168
    %1182 = vmatprep.subr.mxu0 0.0
    %1183 = vmatpush1.msra.mxu0 %v1169
    %1184 = vmatprep.subr.mxu0 0.0
    %1185 = vmatpush1.msra.mxu0 %v1170
    %1186 = vmatprep.subr.mxu0 0.0
    %1187 = vmatpush1.msra.mxu0 0.0
    %1188 = vmatprep.subr.mxu0 0.0
    %1189 = vmatpush1.msra.mxu0 0.0
    %1190 = vmatprep.subr.mxu0 0.0
    %1191 = vmatpush1.msra.mxu0 0.0
    %1192 = vmatprep.subr.mxu0 0.0
    %1193 = vmatpush1.msra.mxu0 0.0
    %1194 = vmatprep.subr.mxu0 0.0
    %1195 = vmatpush1.msra.mxu0 0.0
    %1196 = vmatprep.subr.mxu0 0.0
    %1197 = vmatpush1.msra.mxu0 0.0
    %1198 = vmatprep.subr.mxu0 0.0
    %1199 = vmatpush1.msra.mxu0 0.0
    %1200 = vmatprep.subr.mxu0 0.0
    %1201 = vmatpush1.msra.mxu0 0.0
    %1202 = vmatprep.subr.mxu0 0.0
    %1203 = vmatpush1.msra.mxu0 0.0
    %1204 = vmatprep.subr.mxu0 0.0
    %1205 = vmatpush1.msra.mxu0 0.0
    %1206 = vmatprep.subr.mxu0 0.0
    %1207 = vmatpush1.msra.mxu0 0.0
    %1208 = vmatprep.subr.mxu0 0.0
    %1209 = vmatpush1.msra.mxu0 0.0
    %1210 = vmatprep.subr.mxu0 0.0
    %1211 = vmatpush1.msra.mxu0 0.0
    %1212 = vmatprep.subr.mxu0 0.0
    %1213 = vmatpush1.msra.mxu0 0.0
    %1214 = vmatprep.subr.mxu0 0.0
    %1215 = vmatpush1.msra.mxu0 0.0
    %1216 = vmatprep.subr.mxu0 0.0
    %1217 = vmatpush1.msra.mxu0 0.0
    %1218 = vmatprep.subr.mxu0 0.0
    %1219 = vmatpush1.msra.mxu0 0.0
    %1220 = vmatprep.subr.mxu0 0.0
    %1221 = vmatpush1.msra.mxu0 0.0
    %1222 = vmatprep.subr.mxu0 0.0
    %1223 = vmatpush1.msra.mxu0 0.0
    %1224 = vmatprep.subr.mxu0 0.0
    %1225 = vmatpush1.msra.mxu0 0.0
    %1226 = vmatprep.subr.mxu0 0.0
    %1227 = vmatpush1.msra.mxu0 0.0
    %1228 = vmatprep.subr.mxu0 0.0
    %1229 = vmatpush1.msra.mxu0 0.0
    %1230 = vmatprep.subr.mxu0 0.0
    %1231 = vmatpush1.msra.mxu0 0.0
    %1232 = vmatprep.subr.mxu0 0.0
    %1233 = vmatpush1.msra.mxu0 0.0
    %1234 = vmatprep.subr.mxu0 0.0
    %1235 = vmatpush1.msra.mxu0 0.0
    %1236 = vmatprep.subr.mxu0 0.0
    %1237 = vmatpush1.msra.mxu0 0.0
    %1238 = vmatprep.mubr.f32.mxu0 0.0
    %1239 = vmatmul.mubr.f32.gmra.mrb[0].mxu0 %v1172
    %v1240 = vpop.f32.mrb[0].mxu0
    %v1241 = vadd.f32 %v363, %v1240
    %v1242 = vpop.f32.mrb[0].mxu0
    %1243 = vdwg.mxu0
    %v1244 = vtanh.pop %v1241
    %v1245 = vmul.f32 %v1155, %v870
    %v1246 = vfloor.f32 %v1245
    %v1247 = vcvt.f32.s32.to.zero.pseudo %v1246
    %v1248 = vsub.f32 1.0, %v1155
    %v1249 = vmul.f32 %v1248, %v1244
    %v1250 = vmul.f32 %v1249, 8388608.0
    %v1251 = vfloor.f32 %v1250
    %v1252 = vcvt.f32.s32.to.zero.pseudo %v1251
    %v1253 = vadd.s32 %v1247, %v1252
    %1254 = vrot.lane.b32.xlu0 %v1253, 16
    %v1255 = vpop.permute.xlu0 %1254
    %v1256 = vsel %vm453, %v1061, %v1255
    %s1257 = scalar_lea.vmem [#allocation2], 16
    %1258 = vst.msk [vmem:[%s1257] sm:$0xff] %vm54, %v1256
    %v1259 = vcvt.s32.f32 %v1256
    %v1260 = vmul.f32 %v1259, 1.1920929e-07
    %v1261 = vcvt.s32.f32 %v862
    %v1262 = vmul.f32 %v1261, 1.1920929e-07
    %1264 = vrot.lane.b32.xlu0 %v1262, 32
    %v1265 = vpop.permute.xlu0 %1264
    %v1267 = vsel %vm54, %v1260, %v1265
    %v1268 = vld [vmem:[%s465] sm:$0xff]
    %v1269 = vld [vmem:[%s465 + $0x8] sm:$0xff]
    %v1270 = vld [vmem:[%s465 + $0x10] sm:$0xff]
    %v1271 = vld [vmem:[%s465 + $0x18] sm:$0xff]
    %v1272 = vld [vmem:[%s465 + $0x20] sm:$0xff]
    %v1273 = vld [vmem:[%s465 + $0x28] sm:$0xff]
    %v1275 = vsel %vm66, %v1267, 0
    %1277 = vmatprep.subr.mxu0 0.0
    %1278 = vmatpush1.msra.mxu0 %v1268
    %1279 = vmatprep.subr.mxu0 0.0
    %1280 = vmatpush1.msra.mxu0 %v1269
    %1281 = vmatprep.subr.mxu0 0.0
    %1282 = vmatpush1.msra.mxu0 %v1270
    %1283 = vmatprep.subr.mxu0 0.0
    %1284 = vmatpush1.msra.mxu0 %v1271
    %1285 = vmatprep.subr.mxu0 0.0
    %1286 = vmatpush1.msra.mxu0 %v1272
    %1287 = vmatprep.subr.mxu0 0.0
    %1288 = vmatpush1.msra.mxu0 %v1273
    %1289 = vmatprep.subr.mxu0 0.0
    %1290 = vmatpush1.msra.mxu0 0.0
    %1291 = vmatprep.subr.mxu0 0.0
    %1292 = vmatpush1.msra.mxu0 0.0
    %1293 = vmatprep.subr.mxu0 0.0
    %1294 = vmatpush1.msra.mxu0 0.0
    %1295 = vmatprep.subr.mxu0 0.0
    %1296 = vmatpush1.msra.mxu0 0.0
    %1297 = vmatprep.subr.mxu0 0.0
    %1298 = vmatpush1.msra.mxu0 0.0
    %1299 = vmatprep.subr.mxu0 0.0
    %1300 = vmatpush1.msra.mxu0 0.0
    %1301 = vmatprep.subr.mxu0 0.0
    %1302 = vmatpush1.msra.mxu0 0.0
    %1303 = vmatprep.subr.mxu0 0.0
    %1304 = vmatpush1.msra.mxu0 0.0
    %1305 = vmatprep.subr.mxu0 0.0
    %1306 = vmatpush1.msra.mxu0 0.0
    %1307 = vmatprep.subr.mxu0 0.0
    %1308 = vmatpush1.msra.mxu0 0.0
    %1309 = vmatprep.subr.mxu0 0.0
    %1310 = vmatpush1.msra.mxu0 0.0
    %1311 = vmatprep.subr.mxu0 0.0
    %1312 = vmatpush1.msra.mxu0 0.0
    %1313 = vmatprep.subr.mxu0 0.0
    %1314 = vmatpush1.msra.mxu0 0.0
    %1315 = vmatprep.subr.mxu0 0.0
    %1316 = vmatpush1.msra.mxu0 0.0
    %1317 = vmatprep.subr.mxu0 0.0
    %1318 = vmatpush1.msra.mxu0 0.0
    %1319 = vmatprep.subr.mxu0 0.0
    %1320 = vmatpush1.msra.mxu0 0.0
    %1321 = vmatprep.subr.mxu0 0.0
    %1322 = vmatpush1.msra.mxu0 0.0
    %1323 = vmatprep.subr.mxu0 0.0
    %1324 = vmatpush1.msra.mxu0 0.0
    %1325 = vmatprep.subr.mxu0 0.0
    %1326 = vmatpush1.msra.mxu0 0.0
    %1327 = vmatprep.subr.mxu0 0.0
    %1328 = vmatpush1.msra.mxu0 0.0
    %1329 = vmatprep.subr.mxu0 0.0
    %1330 = vmatpush1.msra.mxu0 0.0
    %1331 = vmatprep.subr.mxu0 0.0
    %1332 = vmatpush1.msra.mxu0 0.0
    %1333 = vmatprep.subr.mxu0 0.0
    %1334 = vmatpush1.msra.mxu0 0.0
    %1335 = vmatprep.subr.mxu0 0.0
    %1336 = vmatpush1.msra.mxu0 0.0
    %1337 = vmatprep.subr.mxu0 0.0
    %1338 = vmatpush1.msra.mxu0 0.0
    %1339 = vmatprep.subr.mxu0 0.0
    %1340 = vmatpush1.msra.mxu0 0.0
    %1341 = vmatprep.mubr.f32.mxu0 0.0
    %1342 = vmatmul.mubr.f32.gmra.mrb[0].mxu0 %v1275
    %v1343 = vpop.f32.mrb[0].mxu0
    %v1344 = vadd.f32 %v475, %v1343
    %v1345 = vpop.f32.mrb[0].mxu0
    %1346 = vdwg.mxu0
    %v1347 = vxor.u32 %v1344, 2147483648
    %v1348 = vmul.f32 %v1347, 1.442695
    %v1349 = vpow.pop %v1348
    %v1350 = vadd.f32 %v1349, 1.0
    %v1351 = vrcp.pop %v1350
    %v1352 = vmul.f32 1.0, %v1351
    %v1353 = vmul.f32 %v1352, 0.875
    %v1354 = vadd.f32 %v1353, 0.125
    %1355 = vrot.lane.b32.xlu0 %v1262, 16
    %v1356 = vpop.permute.xlu0 %1355
    %v1358 = vmul.f32 %v1352, %v1356
    %1360 = vrot.lane.b32.xlu0 %v1358, 16
    %v1361 = vpop.permute.xlu0 %1360
    %v1363 = vsel %vm54, %v1260, %v1361
    %v1364 = vld [vmem:[%s563] sm:$0xff]
    %v1365 = vld [vmem:[%s563 + $0x8] sm:$0xff]
    %v1366 = vld [vmem:[%s563 + $0x10] sm:$0xff]
    %v1367 = vld [vmem:[%s563 + $0x18] sm:$0xff]
    %v1368 = vld [vmem:[%s563 + $0x20] sm:$0xff]
    %v1369 = vld [vmem:[%s563 + $0x28] sm:$0xff]
    %v1371 = vsel %vm66, %v1363, 0
    %1373 = vmatprep.subr.mxu0 0.0
    %1374 = vmatpush1.msra.mxu0 %v1364
    %1375 = vmatprep.subr.mxu0 0.0
    %1376 = vmatpush1.msra.mxu0 %v1365
    %1377 = vmatprep.subr.mxu0 0.0
    %1378 = vmatpush1.msra.mxu0 %v1366
    %1379 = vmatprep.subr.mxu0 0.0
    %1380 = vmatpush1.msra.mxu0 %v1367
    %1381 = vmatprep.subr.mxu0 0.0
    %1382 = vmatpush1.msra.mxu0 %v1368
    %1383 = vmatprep.subr.mxu0 0.0
    %1384 = vmatpush1.msra.mxu0 %v1369
    %1385 = vmatprep.subr.mxu0 0.0
    %1386 = vmatpush1.msra.mxu0 0.0
    %1387 = vmatprep.subr.mxu0 0.0
    %1388 = vmatpush1.msra.mxu0 0.0
    %1389 = vmatprep.subr.mxu0 0.0
    %1390 = vmatpush1.msra.mxu0 0.0
    %1391 = vmatprep.subr.mxu0 0.0
    %1392 = vmatpush1.msra.mxu0 0.0
    %1393 = vmatprep.subr.mxu0 0.0
    %1394 = vmatpush1.msra.mxu0 0.0
    %1395 = vmatprep.subr.mxu0 0.0
    %1396 = vmatpush1.msra.mxu0 0.0
    %1397 = vmatprep.subr.mxu0 0.0
    %1398 = vmatpush1.msra.mxu0 0.0
    %1399 = vmatprep.subr.mxu0 0.0
    %1400 = vmatpush1.msra.mxu0 0.0
    %1401 = vmatprep.subr.mxu0 0.0
    %1402 = vmatpush1.msra.mxu0 0.0
    %1403 = vmatprep.subr.mxu0 0.0
    %1404 = vmatpush1.msra.mxu0 0.0
    %1405 = vmatprep.subr.mxu0 0.0
    %1406 = vmatpush1.msra.mxu0 0.0
    %1407 = vmatprep.subr.mxu0 0.0
    %1408 = vmatpush1.msra.mxu0 0.0
    %1409 = vmatprep.subr.mxu0 0.0
    %1410 = vmatpush1.msra.mxu0 0.0
    %1411 = vmatprep.subr.mxu0 0.0
    %1412 = vmatpush1.msra.mxu0 0.0
    %1413 = vmatprep.subr.mxu0 0.0
    %1414 = vmatpush1.msra.mxu0 0.0
    %1415 = vmatprep.subr.mxu0 0.0
    %1416 = vmatpush1.msra.mxu0 0.0
    %1417 = vmatprep.subr.mxu0 0.0
    %1418 = vmatpush1.msra.mxu0 0.0
    %1419 = vmatprep.subr.mxu0 0.0
    %1420 = vmatpush1.msra.mxu0 0.0
    %1421 = vmatprep.subr.mxu0 0.0
    %1422 = vmatpush1.msra.mxu0 0.0
    %1423 = vmatprep.subr.mxu0 0.0
    %1424 = vmatpush1.msra.mxu0 0.0
    %1425 = vmatprep.subr.mxu0 0.0
    %1426 = vmatpush1.msra.mxu0 0.0
    %1427 = vmatprep.subr.mxu0 0.0
    %1428 = vmatpush1.msra.mxu0 0.0
    %1429 = vmatprep.subr.mxu0 0.0
    %1430 = vmatpush1.msra.mxu0 0.0
    %1431 = vmatprep.subr.mxu0 0.0
    %1432 = vmatpush1.msra.mxu0 0.0
    %1433 = vmatprep.subr.mxu0 0.0
    %1434 = vmatpush1.msra.mxu0 0.0
    %1435 = vmatprep.subr.mxu0 0.0
    %1436 = vmatpush1.msra.mxu0 0.0
    %1437 = vmatprep.mubr.f32.mxu0 0.0
    %1438 = vmatmul.mubr.f32.gmra.mrb[0].mxu0 %v1371
    %v1439 = vpop.f32.mrb[0].mxu0
    %v1440 = vadd.f32 %v573, %v1439
    %v1441 = vpop.f32.mrb[0].mxu0
    %1442 = vdwg.mxu0
    %v1443 = vtanh.pop %v1440
    %v1444 = vmul.f32 %v1354, %v657
    %v1445 = vfloor.f32 %v1444
    %v1446 = vcvt.f32.s32.to.zero.pseudo %v1445
    %v1447 = vsub.f32 1.0, %v1354
    %v1448 = vmul.f32 %v1447, %v1443
    %v1449 = vmul.f32 %v1448, 8388608.0
    %v1450 = vfloor.f32 %v1449
    %v1451 = vcvt.f32.s32.to.zero.pseudo %v1450
    %v1452 = vadd.s32 %v1446, %v1451
    %v1453 = vcvt.s32.f32 %v1452
    %v1454 = vmul.f32 %v1453, 1.1920929e-07
    %1456 = vrot.lane.b32.xlu0 %v1454, 32
    %v1457 = vpop.permute.xlu0 %1456
    %v1459 = vsel %vm54, %v1260, %v1457
    %v1460 = vld [vmem:[%s664] sm:$0xff]
    %v1461 = vld [vmem:[%s664 + $0x8] sm:$0xff]
    %v1462 = vld [vmem:[%s664 + $0x10] sm:$0xff]
    %v1463 = vld [vmem:[%s664 + $0x18] sm:$0xff]
    %v1464 = vld [vmem:[%s664 + $0x20] sm:$0xff]
    %v1465 = vld [vmem:[%s664 + $0x28] sm:$0xff]
    %v1467 = vsel %vm66, %v1459, 0
    %1469 = vmatprep.subr.mxu0 0.0
    %1470 = vmatpush1.msra.mxu0 %v1460
    %1471 = vmatprep.subr.mxu0 0.0
    %1472 = vmatpush1.msra.mxu0 %v1461
    %1473 = vmatprep.subr.mxu0 0.0
    %1474 = vmatpush1.msra.mxu0 %v1462
    %1475 = vmatprep.subr.mxu0 0.0
    %1476 = vmatpush1.msra.mxu0 %v1463
    %1477 = vmatprep.subr.mxu0 0.0
    %1478 = vmatpush1.msra.mxu0 %v1464
    %1479 = vmatprep.subr.mxu0 0.0
    %1480 = vmatpush1.msra.mxu0 %v1465
    %1481 = vmatprep.subr.mxu0 0.0
    %1482 = vmatpush1.msra.mxu0 0.0
    %1483 = vmatprep.subr.mxu0 0.0
    %1484 = vmatpush1.msra.mxu0 0.0
    %1485 = vmatprep.subr.mxu0 0.0
    %1486 = vmatpush1.msra.mxu0 0.0
    %1487 = vmatprep.subr.mxu0 0.0
    %1488 = vmatpush1.msra.mxu0 0.0
    %1489 = vmatprep.subr.mxu0 0.0
    %1490 = vmatpush1.msra.mxu0 0.0
    %1491 = vmatprep.subr.mxu0 0.0
    %1492 = vmatpush1.msra.mxu0 0.0
    %1493 = vmatprep.subr.mxu0 0.0
    %1494 = vmatpush1.msra.mxu0 0.0
    %1495 = vmatprep.subr.mxu0 0.0
    %1496 = vmatpush1.msra.mxu0 0.0
    %1497 = vmatprep.subr.mxu0 0.0
    %1498 = vmatpush1.msra.mxu0 0.0
    %1499 = vmatprep.subr.mxu0 0.0
    %1500 = vmatpush1.msra.mxu0 0.0
    %1501 = vmatprep.subr.mxu0 0.0
    %1502 = vmatpush1.msra.mxu0 0.0
    %1503 = vmatprep.subr.mxu0 0.0
    %1504 = vmatpush1.msra.mxu0 0.0
    %1505 = vmatprep.subr.mxu0 0.0
    %1506 = vmatpush1.msra.mxu0 0.0
    %1507 = vmatprep.subr.mxu0 0.0
    %1508 = vmatpush1.msra.mxu0 0.0
    %1509 = vmatprep.subr.mxu0 0.0
    %1510 = vmatpush1.msra.mxu0 0.0
    %1511 = vmatprep.subr.mxu0 0.0
    %1512 = vmatpush1.msra.mxu0 0.0
    %1513 = vmatprep.subr.mxu0 0.0
    %1514 = vmatpush1.msra.mxu0 0.0
    %1515 = vmatprep.subr.mxu0 0.0
    %1516 = vmatpush1.msra.mxu0 0.0
    %1517 = vmatprep.subr.mxu0 0.0
    %1518 = vmatpush1.msra.mxu0 0.0
    %1519 = vmatprep.subr.mxu0 0.0
    %1520 = vmatpush1.msra.mxu0 0.0
    %1521 = vmatprep.subr.mxu0 0.0
    %1522 = vmatpush1.msra.mxu0 0.0
    %1523 = vmatprep.subr.mxu0 0.0
    %1524 = vmatpush1.msra.mxu0 0.0
    %1525 = vmatprep.subr.mxu0 0.0
    %1526 = vmatpush1.msra.mxu0 0.0
    %1527 = vmatprep.subr.mxu0 0.0
    %1528 = vmatpush1.msra.mxu0 0.0
    %1529 = vmatprep.subr.mxu0 0.0
    %1530 = vmatpush1.msra.mxu0 0.0
    %1531 = vmatprep.subr.mxu0 0.0
    %1532 = vmatpush1.msra.mxu0 0.0
    %1533 = vmatprep.mubr.f32.mxu0 0.0
    %1534 = vmatmul.mubr.f32.gmra.mrb[0].mxu0 %v1467
    %v1535 = vpop.f32.mrb[0].mxu0
    %v1536 = vadd.f32 %v674, %v1535
    %v1537 = vpop.f32.mrb[0].mxu0
    %1538 = vdwg.mxu0
    %v1539 = vxor.u32 %v1536, 2147483648
    %v1540 = vmul.f32 %v1539, 1.442695
    %v1541 = vpow.pop %v1540
    %v1542 = vadd.f32 %v1541, 1.0
    %v1543 = vrcp.pop %v1542
    %v1544 = vmul.f32 1.0, %v1543
    %v1545 = vmul.f32 %v1544, 0.875
    %v1546 = vadd.f32 %v1545, 0.125
    %1547 = vrot.lane.b32.xlu0 %v1454, 16
    %v1548 = vpop.permute.xlu0 %1547
    %v1550 = vmul.f32 %v1544, %v1548
    %1552 = vrot.lane.b32.xlu0 %v1550, 16
    %v1553 = vpop.permute.xlu0 %1552
    %v1555 = vsel %vm54, %v1260, %v1553
    %v1556 = vld [vmem:[%s765] sm:$0xff]
    %v1557 = vld [vmem:[%s765 + $0x8] sm:$0xff]
    %v1558 = vld [vmem:[%s765 + $0x10] sm:$0xff]
    %v1559 = vld [vmem:[%s765 + $0x18] sm:$0xff]
    %v1560 = vld [vmem:[%s765 + $0x20] sm:$0xff]
    %v1561 = vld [vmem:[%s765 + $0x28] sm:$0xff]
    %v1563 = vsel %vm66, %v1555, 0
    %1565 = vmatprep.subr.mxu0 0.0
    %1566 = vmatpush1.msra.mxu0 %v1556
    %1567 = vmatprep.subr.mxu0 0.0
    %1568 = vmatpush1.msra.mxu0 %v1557
    %1569 = vmatprep.subr.mxu0 0.0
    %1570 = vmatpush1.msra.mxu0 %v1558
    %1571 = vmatprep.subr.mxu0 0.0
    %1572 = vmatpush1.msra.mxu0 %v1559
    %1573 = vmatprep.subr.mxu0 0.0
    %1574 = vmatpush1.msra.mxu0 %v1560
    %1575 = vmatprep.subr.mxu0 0.0
    %1576 = vmatpush1.msra.mxu0 %v1561
    %1577 = vmatprep.subr.mxu0 0.0
    %1578 = vmatpush1.msra.mxu0 0.0
    %1579 = vmatprep.subr.mxu0 0.0
    %1580 = vmatpush1.msra.mxu0 0.0
    %1581 = vmatprep.subr.mxu0 0.0
    %1582 = vmatpush1.msra.mxu0 0.0
    %1583 = vmatprep.subr.mxu0 0.0
    %1584 = vmatpush1.msra.mxu0 0.0
    %1585 = vmatprep.subr.mxu0 0.0
    %1586 = vmatpush1.msra.mxu0 0.0
    %1587 = vmatprep.subr.mxu0 0.0
    %1588 = vmatpush1.msra.mxu0 0.0
    %1589 = vmatprep.subr.mxu0 0.0
    %1590 = vmatpush1.msra.mxu0 0.0
    %1591 = vmatprep.subr.mxu0 0.0
    %1592 = vmatpush1.msra.mxu0 0.0
    %1593 = vmatprep.subr.mxu0 0.0
    %1594 = vmatpush1.msra.mxu0 0.0
    %1595 = vmatprep.subr.mxu0 0.0
    %1596 = vmatpush1.msra.mxu0 0.0
    %1597 = vmatprep.subr.mxu0 0.0
    %1598 = vmatpush1.msra.mxu0 0.0
    %1599 = vmatprep.subr.mxu0 0.0
    %1600 = vmatpush1.msra.mxu0 0.0
    %1601 = vmatprep.subr.mxu0 0.0
    %1602 = vmatpush1.msra.mxu0 0.0
    %1603 = vmatprep.subr.mxu0 0.0
    %1604 = vmatpush1.msra.mxu0 0.0
    %1605 = vmatprep.subr.mxu0 0.0
    %1606 = vmatpush1.msra.mxu0 0.0
    %1607 = vmatprep.subr.mxu0 0.0
    %1608 = vmatpush1.msra.mxu0 0.0
    %1609 = vmatprep.subr.mxu0 0.0
    %1610 = vmatpush1.msra.mxu0 0.0
    %1611 = vmatprep.subr.mxu0 0.0
    %1612 = vmatpush1.msra.mxu0 0.0
    %1613 = vmatprep.subr.mxu0 0.0
    %1614 = vmatpush1.msra.mxu0 0.0
    %1615 = vmatprep.subr.mxu0 0.0
    %1616 = vmatpush1.msra.mxu0 0.0
    %1617 = vmatprep.subr.mxu0 0.0
    %1618 = vmatpush1.msra.mxu0 0.0
    %1619 = vmatprep.subr.mxu0 0.0
    %1620 = vmatpush1.msra.mxu0 0.0
    %1621 = vmatprep.subr.mxu0 0.0
    %1622 = vmatpush1.msra.mxu0 0.0
    %1623 = vmatprep.subr.mxu0 0.0
    %1624 = vmatpush1.msra.mxu0 0.0
    %1625 = vmatprep.subr.mxu0 0.0
    %1626 = vmatpush1.msra.mxu0 0.0
    %1627 = vmatprep.subr.mxu0 0.0
    %1628 = vmatpush1.msra.mxu0 0.0
    %1629 = vmatprep.mubr.f32.mxu0 0.0
    %1630 = vmatmul.mubr.f32.gmra.mrb[0].mxu0 %v1563
    %v1631 = vpop.f32.mrb[0].mxu0
    %v1632 = vadd.f32 %v775, %v1631
    %v1633 = vpop.f32.mrb[0].mxu0
    %1634 = vdwg.mxu0
    %v1635 = vtanh.pop %v1632
    %v1636 = vmul.f32 %v1546, %v1261
    %v1637 = vfloor.f32 %v1636
    %v1638 = vcvt.f32.s32.to.zero.pseudo %v1637
    %v1639 = vsub.f32 1.0, %v1546
    %v1640 = vmul.f32 %v1639, %v1635
    %v1641 = vmul.f32 %v1640, 8388608.0
    %v1642 = vfloor.f32 %v1641
    %v1643 = vcvt.f32.s32.to.zero.pseudo %v1642
    %v1644 = vadd.s32 %v1638, %v1643
    %1645 = vrot.lane.b32.xlu0 %v1644, 16
    %v1646 = vpop.permute.xlu0 %1645
    %v1647 = vsel %vm453, %v1452, %v1646
    %s1648 = scalar_lea.vmem [#allocation2], 24
    %1649 = vst.msk [vmem:[%s1648] sm:$0xff] %vm54, %v1647
    %s1650 = scalar_lea.vmem %s0, 16
    %v1651 = vld [vmem:[%s1650] sm:$0xff]
    %v1652 = vcvt.s32.f32 %v1253
    %v1653 = vmul.f32 %v1652, 1.1920929e-07
    %1655 = vrot.lane.b32.xlu0 %v1653, 32
    %v1656 = vpop.permute.xlu0 %1655
    %v1658 = vsel %vm54, %v1651, %v1656
    %v1659 = vld [vmem:[%s2] sm:$0xff]
    %v1660 = vld [vmem:[%s2 + $0x8] sm:$0xff]
    %v1661 = vld [vmem:[%s2 + $0x10] sm:$0xff]
    %v1662 = vld [vmem:[%s2 + $0x18] sm:$0xff]
    %v1663 = vld [vmem:[%s2 + $0x20] sm:$0xff]
    %v1664 = vld [vmem:[%s2 + $0x28] sm:$0xff]
    %v1666 = vsel %vm66, %v1658, 0
    %1668 = vmatprep.subr.mxu0 0.0
    %1669 = vmatpush1.msra.mxu0 %v1659
    %1670 = vmatprep.subr.mxu0 0.0
    %1671 = vmatpush1.msra.mxu0 %v1660
    %1672 = vmatprep.subr.mxu0 0.0
    %1673 = vmatpush1.msra.mxu0 %v1661
    %1674 = vmatprep.subr.mxu0 0.0
    %1675 = vmatpush1.msra.mxu0 %v1662
    %1676 = vmatprep.subr.mxu0 0.0
    %1677 = vmatpush1.msra.mxu0 %v1663
    %1678 = vmatprep.subr.mxu0 0.0
    %1679 = vmatpush1.msra.mxu0 %v1664
    %1680 = vmatprep.subr.mxu0 0.0
    %1681 = vmatpush1.msra.mxu0 0.0
    %1682 = vmatprep.subr.mxu0 0.0
    %1683 = vmatpush1.msra.mxu0 0.0
    %1684 = vmatprep.subr.mxu0 0.0
    %1685 = vmatpush1.msra.mxu0 0.0
    %1686 = vmatprep.subr.mxu0 0.0
    %1687 = vmatpush1.msra.mxu0 0.0
    %1688 = vmatprep.subr.mxu0 0.0
    %1689 = vmatpush1.msra.mxu0 0.0
    %1690 = vmatprep.subr.mxu0 0.0
    %1691 = vmatpush1.msra.mxu0 0.0
    %1692 = vmatprep.subr.mxu0 0.0
    %1693 = vmatpush1.msra.mxu0 0.0
    %1694 = vmatprep.subr.mxu0 0.0
    %1695 = vmatpush1.msra.mxu0 0.0
    %1696 = vmatprep.subr.mxu0 0.0
    %1697 = vmatpush1.msra.mxu0 0.0
    %1698 = vmatprep.subr.mxu0 0.0
    %1699 = vmatpush1.msra.mxu0 0.0
    %1700 = vmatprep.subr.mxu0 0.0
    %1701 = vmatpush1.msra.mxu0 0.0
    %1702 = vmatprep.subr.mxu0 0.0
    %1703 = vmatpush1.msra.mxu0 0.0
    %1704 = vmatprep.subr.mxu0 0.0
    %1705 = vmatpush1.msra.mxu0 0.0
    %1706 = vmatprep.subr.mxu0 0.0
    %1707 = vmatpush1.msra.mxu0 0.0
    %1708 = vmatprep.subr.mxu0 0.0
    %1709 = vmatpush1.msra.mxu0 0.0
    %1710 = vmatprep.subr.mxu0 0.0
    %1711 = vmatpush1.msra.mxu0 0.0
    %1712 = vmatprep.subr.mxu0 0.0
    %1713 = vmatpush1.msra.mxu0 0.0
    %1714 = vmatprep.subr.mxu0 0.0
    %1715 = vmatpush1.msra.mxu0 0.0
    %1716 = vmatprep.subr.mxu0 0.0
    %1717 = vmatpush1.msra.mxu0 0.0
    %1718 = vmatprep.subr.mxu0 0.0
    %1719 = vmatpush1.msra.mxu0 0.0
    %1720 = vmatprep.subr.mxu0 0.0
    %1721 = vmatpush1.msra.mxu0 0.0
    %1722 = vmatprep.subr.mxu0 0.0
    %1723 = vmatpush1.msra.mxu0 0.0
    %1724 = vmatprep.subr.mxu0 0.0
    %1725 = vmatpush1.msra.mxu0 0.0
    %1726 = vmatprep.subr.mxu0 0.0
    %1727 = vmatpush1.msra.mxu0 0.0
    %1728 = vmatprep.subr.mxu0 0.0
    %1729 = vmatpush1.msra.mxu0 0.0
    %1730 = vmatprep.subr.mxu0 0.0
    %1731 = vmatpush1.msra.mxu0 0.0
    %1732 = vmatprep.mubr.f32.mxu0 0.0
    %1733 = vmatmul.mubr.f32.gmra.mrb[0].mxu0 %v1666
    %v1734 = vpop.f32.mrb[0].mxu0
    %v1735 = vadd.f32 %v65, %v1734
    %v1736 = vpop.f32.mrb[0].mxu0
    %1737 = vdwg.mxu0
    %v1738 = vxor.u32 %v1735, 2147483648
    %v1739 = vmul.f32 %v1738, 1.442695
    %v1740 = vpow.pop %v1739
    %v1741 = vadd.f32 %v1740, 1.0
    %v1742 = vrcp.pop %v1741
    %v1743 = vmul.f32 1.0, %v1742
    %v1744 = vmul.f32 %v1743, 0.875
    %v1745 = vadd.f32 %v1744, 0.125
    %1746 = vrot.lane.b32.xlu0 %v1653, 16
    %v1747 = vpop.permute.xlu0 %1746
    %v1749 = vmul.f32 %v1743, %v1747
    %1751 = vrot.lane.b32.xlu0 %v1749, 16
    %v1752 = vpop.permute.xlu0 %1751
    %v1754 = vsel %vm54, %v1651, %v1752
    %v1755 = vld [vmem:[%s4] sm:$0xff]
    %v1756 = vld [vmem:[%s4 + $0x8] sm:$0xff]
    %v1757 = vld [vmem:[%s4 + $0x10] sm:$0xff]
    %v1758 = vld [vmem:[%s4 + $0x18] sm:$0xff]
    %v1759 = vld [vmem:[%s4 + $0x20] sm:$0xff]
    %v1760 = vld [vmem:[%s4 + $0x28] sm:$0xff]
    %v1762 = vsel %vm66, %v1754, 0
    %1764 = vmatprep.subr.mxu0 0.0
    %1765 = vmatpush1.msra.mxu0 %v1755
    %1766 = vmatprep.subr.mxu0 0.0
    %1767 = vmatpush1.msra.mxu0 %v1756
    %1768 = vmatprep.subr.mxu0 0.0
    %1769 = vmatpush1.msra.mxu0 %v1757
    %1770 = vmatprep.subr.mxu0 0.0
    %1771 = vmatpush1.msra.mxu0 %v1758
    %1772 = vmatprep.subr.mxu0 0.0
    %1773 = vmatpush1.msra.mxu0 %v1759
    %1774 = vmatprep.subr.mxu0 0.0
    %1775 = vmatpush1.msra.mxu0 %v1760
    %1776 = vmatprep.subr.mxu0 0.0
    %1777 = vmatpush1.msra.mxu0 0.0
    %1778 = vmatprep.subr.mxu0 0.0
    %1779 = vmatpush1.msra.mxu0 0.0
    %1780 = vmatprep.subr.mxu0 0.0
    %1781 = vmatpush1.msra.mxu0 0.0
    %1782 = vmatprep.subr.mxu0 0.0
    %1783 = vmatpush1.msra.mxu0 0.0
    %1784 = vmatprep.subr.mxu0 0.0
    %1785 = vmatpush1.msra.mxu0 0.0
    %1786 = vmatprep.subr.mxu0 0.0
    %1787 = vmatpush1.msra.mxu0 0.0
    %1788 = vmatprep.subr.mxu0 0.0
    %1789 = vmatpush1.msra.mxu0 0.0
    %1790 = vmatprep.subr.mxu0 0.0
    %1791 = vmatpush1.msra.mxu0 0.0
    %1792 = vmatprep.subr.mxu0 0.0
    %1793 = vmatpush1.msra.mxu0 0.0
    %1794 = vmatprep.subr.mxu0 0.0
    %1795 = vmatpush1.msra.mxu0 0.0
    %1796 = vmatprep.subr.mxu0 0.0
    %1797 = vmatpush1.msra.mxu0 0.0
    %1798 = vmatprep.subr.mxu0 0.0
    %1799 = vmatpush1.msra.mxu0 0.0
    %1800 = vmatprep.subr.mxu0 0.0
    %1801 = vmatpush1.msra.mxu0 0.0
    %1802 = vmatprep.subr.mxu0 0.0
    %1803 = vmatpush1.msra.mxu0 0.0
    %1804 = vmatprep.subr.mxu0 0.0
    %1805 = vmatpush1.msra.mxu0 0.0
    %1806 = vmatprep.subr.mxu0 0.0
    %1807 = vmatpush1.msra.mxu0 0.0
    %1808 = vmatprep.subr.mxu0 0.0
    %1809 = vmatpush1.msra.mxu0 0.0
    %1810 = vmatprep.subr.mxu0 0.0
    %1811 = vmatpush1.msra.mxu0 0.0
    %1812 = vmatprep.subr.mxu0 0.0
    %1813 = vmatpush1.msra.mxu0 0.0
    %1814 = vmatprep.subr.mxu0 0.0
    %1815 = vmatpush1.msra.mxu0 0.0
    %1816 = vmatprep.subr.mxu0 0.0
    %1817 = vmatpush1.msra.mxu0 0.0
    %1818 = vmatprep.subr.mxu0 0.0
    %1819 = vmatpush1.msra.mxu0 0.0
    %1820 = vmatprep.subr.mxu0 0.0
    %1821 = vmatpush1.msra.mxu0 0.0
    %1822 = vmatprep.subr.mxu0 0.0
    %1823 = vmatpush1.msra.mxu0 0.0
    %1824 = vmatprep.subr.mxu0 0.0
    %1825 = vmatpush1.msra.mxu0 0.0
    %1826 = vmatprep.subr.mxu0 0.0
    %1827 = vmatpush1.msra.mxu0 0.0
    %1828 = vmatprep.mubr.f32.mxu0 0.0
    %1829 = vmatmul.mubr.f32.gmra.mrb[0].mxu0 %v1762
    %v1830 = vpop.f32.mrb[0].mxu0
    %v1831 = vadd.f32 %v163, %v1830
    %v1832 = vpop.f32.mrb[0].mxu0
    %1833 = vdwg.mxu0
    %v1834 = vtanh.pop %v1831
    %v1835 = vmul.f32 %v1745, %v1062
    %v1836 = vfloor.f32 %v1835
    %v1837 = vcvt.f32.s32.to.zero.pseudo %v1836
    %v1838 = vsub.f32 1.0, %v1745
    %v1839 = vmul.f32 %v1838, %v1834
    %v1840 = vmul.f32 %v1839, 8388608.0
    %v1841 = vfloor.f32 %v1840
    %v1842 = vcvt.f32.s32.to.zero.pseudo %v1841
    %v1843 = vadd.s32 %v1837, %v1842
    %v1844 = vcvt.s32.f32 %v1843
    %v1845 = vmul.f32 %v1844, 1.1920929e-07
    %1847 = vrot.lane.b32.xlu0 %v1845, 32
    %v1848 = vpop.permute.xlu0 %1847
    %v1850 = vsel %vm54, %v1651, %v1848
    %v1851 = vld [vmem:[%s6] sm:$0xff]
    %v1852 = vld [vmem:[%s6 + $0x8] sm:$0xff]
    %v1853 = vld [vmem:[%s6 + $0x10] sm:$0xff]
    %v1854 = vld [vmem:[%s6 + $0x18] sm:$0xff]
    %v1855 = vld [vmem:[%s6 + $0x20] sm:$0xff]
    %v1856 = vld [vmem:[%s6 + $0x28] sm:$0xff]
    %v1858 = vsel %vm66, %v1850, 0
    %1860 = vmatprep.subr.mxu0 0.0
    %1861 = vmatpush1.msra.mxu0 %v1851
    %1862 = vmatprep.subr.mxu0 0.0
    %1863 = vmatpush1.msra.mxu0 %v1852
    %1864 = vmatprep.subr.mxu0 0.0
    %1865 = vmatpush1.msra.mxu0 %v1853
    %1866 = vmatprep.subr.mxu0 0.0
    %1867 = vmatpush1.msra.mxu0 %v1854
    %1868 = vmatprep.subr.mxu0 0.0
    %1869 = vmatpush1.msra.mxu0 %v1855
    %1870 = vmatprep.subr.mxu0 0.0
    %1871 = vmatpush1.msra.mxu0 %v1856
    %1872 = vmatprep.subr.mxu0 0.0
    %1873 = vmatpush1.msra.mxu0 0.0
    %1874 = vmatprep.subr.mxu0 0.0
    %1875 = vmatpush1.msra.mxu0 0.0
    %1876 = vmatprep.subr.mxu0 0.0
    %1877 = vmatpush1.msra.mxu0 0.0
    %1878 = vmatprep.subr.mxu0 0.0
    %1879 = vmatpush1.msra.mxu0 0.0
    %1880 = vmatprep.subr.mxu0 0.0
    %1881 = vmatpush1.msra.mxu0 0.0
    %1882 = vmatprep.subr.mxu0 0.0
    %1883 = vmatpush1.msra.mxu0 0.0
    %1884 = vmatprep.subr.mxu0 0.0
    %1885 = vmatpush1.msra.mxu0 0.0
    %1886 = vmatprep.subr.mxu0 0.0
    %1887 = vmatpush1.msra.mxu0 0.0
    %1888 = vmatprep.subr.mxu0 0.0
    %1889 = vmatpush1.msra.mxu0 0.0
    %1890 = vmatprep.subr.mxu0 0.0
    %1891 = vmatpush1.msra.mxu0 0.0
    %1892 = vmatprep.subr.mxu0 0.0
    %1893 = vmatpush1.msra.mxu0 0.0
    %1894 = vmatprep.subr.mxu0 0.0
    %1895 = vmatpush1.msra.mxu0 0.0
    %1896 = vmatprep.subr.mxu0 0.0
    %1897 = vmatpush1.msra.mxu0 0.0
    %1898 = vmatprep.subr.mxu0 0.0
    %1899 = vmatpush1.msra.mxu0 0.0
    %1900 = vmatprep.subr.mxu0 0.0
    %1901 = vmatpush1.msra.mxu0 0.0
    %1902 = vmatprep.subr.mxu0 0.0
    %1903 = vmatpush1.msra.mxu0 0.0
    %1904 = vmatprep.subr.mxu0 0.0
    %1905 = vmatpush1.msra.mxu0 0.0
    %1906 = vmatprep.subr.mxu0 0.0
    %1907 = vmatpush1.msra.mxu0 0.0
    %1908 = vmatprep.subr.mxu0 0.0
    %1909 = vmatpush1.msra.mxu0 0.0
    %1910 = vmatprep.subr.mxu0 0.0
    %1911 = vmatpush1.msra.mxu0 0.0
    %1912 = vmatprep.subr.mxu0 0.0
    %1913 = vmatpush1.msra.mxu0 0.0
    %1914 = vmatprep.subr.mxu0 0.0
    %1915 = vmatpush1.msra.mxu0 0.0
    %1916 = vmatprep.subr.mxu0 0.0
    %1917 = vmatpush1.msra.mxu0 0.0
    %1918 = vmatprep.subr.mxu0 0.0
    %1919 = vmatpush1.msra.mxu0 0.0
    %1920 = vmatprep.subr.mxu0 0.0
    %1921 = vmatpush1.msra.mxu0 0.0
    %1922 = vmatprep.subr.mxu0 0.0
    %1923 = vmatpush1.msra.mxu0 0.0
    %1924 = vmatprep.mubr.f32.mxu0 0.0
    %1925 = vmatmul.mubr.f32.gmra.mrb[0].mxu0 %v1858
    %v1926 = vpop.f32.mrb[0].mxu0
    %v1927 = vadd.f32 %v263, %v1926
    %v1928 = vpop.f32.mrb[0].mxu0
    %1929 = vdwg.mxu0
    %v1930 = vxor.u32 %v1927, 2147483648
    %v1931 = vmul.f32 %v1930, 1.442695
    %v1932 = vpow.pop %v1931
    %v1933 = vadd.f32 %v1932, 1.0
    %v1934 = vrcp.pop %v1933
    %v1935 = vmul.f32 1.0, %v1934
    %v1936 = vmul.f32 %v1935, 0.875
    %v1937 = vadd.f32 %v1936, 0.125
    %1938 = vrot.lane.b32.xlu0 %v1845, 16
    %v1939 = vpop.permute.xlu0 %1938
    %v1941 = vmul.f32 %v1935, %v1939
    %1943 = vrot.lane.b32.xlu0 %v1941, 16
    %v1944 = vpop.permute.xlu0 %1943
    %v1946 = vsel %vm54, %v1651, %v1944
    %v1947 = vld [vmem:[%s8] sm:$0xff]
    %v1948 = vld [vmem:[%s8 + $0x8] sm:$0xff]
    %v1949 = vld [vmem:[%s8 + $0x10] sm:$0xff]
    %v1950 = vld [vmem:[%s8 + $0x18] sm:$0xff]
    %v1951 = vld [vmem:[%s8 + $0x20] sm:$0xff]
    %v1952 = vld [vmem:[%s8 + $0x28] sm:$0xff]
    %v1954 = vsel %vm66, %v1946, 0
    %1956 = vmatprep.subr.mxu0 0.0
    %1957 = vmatpush1.msra.mxu0 %v1947
    %1958 = vmatprep.subr.mxu0 0.0
    %1959 = vmatpush1.msra.mxu0 %v1948
    %1960 = vmatprep.subr.mxu0 0.0
    %1961 = vmatpush1.msra.mxu0 %v1949
    %1962 = vmatprep.subr.mxu0 0.0
    %1963 = vmatpush1.msra.mxu0 %v1950
    %1964 = vmatprep.subr.mxu0 0.0
    %1965 = vmatpush1.msra.mxu0 %v1951
    %1966 = vmatprep.subr.mxu0 0.0
    %1967 = vmatpush1.msra.mxu0 %v1952
    %1968 = vmatprep.subr.mxu0 0.0
    %1969 = vmatpush1.msra.mxu0 0.0
    %1970 = vmatprep.subr.mxu0 0.0
    %1971 = vmatpush1.msra.mxu0 0.0
    %1972 = vmatprep.subr.mxu0 0.0
    %1973 = vmatpush1.msra.mxu0 0.0
    %1974 = vmatprep.subr.mxu0 0.0
    %1975 = vmatpush1.msra.mxu0 0.0
    %1976 = vmatprep.subr.mxu0 0.0
    %1977 = vmatpush1.msra.mxu0 0.0
    %1978 = vmatprep.subr.mxu0 0.0
    %1979 = vmatpush1.msra.mxu0 0.0
    %1980 = vmatprep.subr.mxu0 0.0
    %1981 = vmatpush1.msra.mxu0 0.0
    %1982 = vmatprep.subr.mxu0 0.0
    %1983 = vmatpush1.msra.mxu0 0.0
    %1984 = vmatprep.subr.mxu0 0.0
    %1985 = vmatpush1.msra.mxu0 0.0
    %1986 = vmatprep.subr.mxu0 0.0
    %1987 = vmatpush1.msra.mxu0 0.0
    %1988 = vmatprep.subr.mxu0 0.0
    %1989 = vmatpush1.msra.mxu0 0.0
    %1990 = vmatprep.subr.mxu0 0.0
    %1991 = vmatpush1.msra.mxu0 0.0
    %1992 = vmatprep.subr.mxu0 0.0
    %1993 = vmatpush1.msra.mxu0 0.0
    %1994 = vmatprep.subr.mxu0 0.0
    %1995 = vmatpush1.msra.mxu0 0.0
    %1996 = vmatprep.subr.mxu0 0.0
    %1997 = vmatpush1.msra.mxu0 0.0
    %1998 = vmatprep.subr.mxu0 0.0
    %1999 = vmatpush1.msra.mxu0 0.0
    %2000 = vmatprep.subr.mxu0 0.0
    %2001 = vmatpush1.msra.mxu0 0.0
    %2002 = vmatprep.subr.mxu0 0.0
    %2003 = vmatpush1.msra.mxu0 0.0
    %2004 = vmatprep.subr.mxu0 0.0
    %2005 = vmatpush1.msra.mxu0 0.0
    %2006 = vmatprep.subr.mxu0 0.0
    %2007 = vmatpush1.msra.mxu0 0.0
    %2008 = vmatprep.subr.mxu0 0.0
    %2009 = vmatpush1.msra.mxu0 0.0
    %2010 = vmatprep.subr.mxu0 0.0
    %2011 = vmatpush1.msra.mxu0 0.0
    %2012 = vmatprep.subr.mxu0 0.0
    %2013 = vmatpush1.msra.mxu0 0.0
    %2014 = vmatprep.subr.mxu0 0.0
    %2015 = vmatpush1.msra.mxu0 0.0
    %2016 = vmatprep.subr.mxu0 0.0
    %2017 = vmatpush1.msra.mxu0 0.0
    %2018 = vmatprep.subr.mxu0 0.0
    %2019 = vmatpush1.msra.mxu0 0.0
    %2020 = vmatprep.mubr.f32.mxu0 0.0
    %2021 = vmatmul.mubr.f32.gmra.mrb[0].mxu0 %v1954
    %v2022 = vpop.f32.mrb[0].mxu0
    %v2023 = vadd.f32 %v363, %v2022
    %v2024 = vpop.f32.mrb[0].mxu0
    %2025 = vdwg.mxu0
    %v2026 = vtanh.pop %v2023
    %v2027 = vmul.f32 %v1937, %v1652
    %v2028 = vfloor.f32 %v2027
    %v2029 = vcvt.f32.s32.to.zero.pseudo %v2028
    %v2030 = vsub.f32 1.0, %v1937
    %v2031 = vmul.f32 %v2030, %v2026
    %v2032 = vmul.f32 %v2031, 8388608.0
    %v2033 = vfloor.f32 %v2032
    %v2034 = vcvt.f32.s32.to.zero.pseudo %v2033
    %v2035 = vadd.s32 %v2029, %v2034
    %2036 = vrot.lane.b32.xlu0 %v2035, 16
    %v2037 = vpop.permute.xlu0 %2036
    %v2038 = vsel %vm453, %v1843, %v2037
    %s2039 = scalar_lea.vmem [#allocation2], 32
    %2040 = vst.msk [vmem:[%s2039] sm:$0xff] %vm54, %v2038
    %v2041 = vcvt.s32.f32 %v2038
    %v2042 = vmul.f32 %v2041, 1.1920929e-07
    %v2043 = vcvt.s32.f32 %v1644
    %v2044 = vmul.f32 %v2043, 1.1920929e-07
    %2046 = vrot.lane.b32.xlu0 %v2044, 32
    %v2047 = vpop.permute.xlu0 %2046
    %v2049 = vsel %vm54, %v2042, %v2047
    %v2050 = vld [vmem:[%s465] sm:$0xff]
    %v2051 = vld [vmem:[%s465 + $0x8] sm:$0xff]
    %v2052 = vld [vmem:[%s465 + $0x10] sm:$0xff]
    %v2053 = vld [vmem:[%s465 + $0x18] sm:$0xff]
    %v2054 = vld [vmem:[%s465 + $0x20] sm:$0xff]
    %v2055 = vld [vmem:[%s465 + $0x28] sm:$0xff]
    %v2057 = vsel %vm66, %v2049, 0
    %2059 = vmatprep.subr.mxu0 0.0
    %2060 = vmatpush1.msra.mxu0 %v2050
    %2061 = vmatprep.subr.mxu0 0.0
    %2062 = vmatpush1.msra.mxu0 %v2051
    %2063 = vmatprep.subr.mxu0 0.0
    %2064 = vmatpush1.msra.mxu0 %v2052
    %2065 = vmatprep.subr.mxu0 0.0
    %2066 = vmatpush1.msra.mxu0 %v2053
    %2067 = vmatprep.subr.mxu0 0.0
    %2068 = vmatpush1.msra.mxu0 %v2054
    %2069 = vmatprep.subr.mxu0 0.0
    %2070 = vmatpush1.msra.mxu0 %v2055
    %2071 = vmatprep.subr.mxu0 0.0
    %2072 = vmatpush1.msra.mxu0 0.0
    %2073 = vmatprep.subr.mxu0 0.0
    %2074 = vmatpush1.msra.mxu0 0.0
    %2075 = vmatprep.subr.mxu0 0.0
    %2076 = vmatpush1.msra.mxu0 0.0
    %2077 = vmatprep.subr.mxu0 0.0
    %2078 = vmatpush1.msra.mxu0 0.0
    %2079 = vmatprep.subr.mxu0 0.0
    %2080 = vmatpush1.msra.mxu0 0.0
    %2081 = vmatprep.subr.mxu0 0.0
    %2082 = vmatpush1.msra.mxu0 0.0
    %2083 = vmatprep.subr.mxu0 0.0
    %2084 = vmatpush1.msra.mxu0 0.0
    %2085 = vmatprep.subr.mxu0 0.0
    %2086 = vmatpush1.msra.mxu0 0.0
    %2087 = vmatprep.subr.mxu0 0.0
    %2088 = vmatpush1.msra.mxu0 0.0
    %2089 = vmatprep.subr.mxu0 0.0
    %2090 = vmatpush1.msra.mxu0 0.0
    %2091 = vmatprep.subr.mxu0 0.0
    %2092 = vmatpush1.msra.mxu0 0.0
    %2093 = vmatprep.subr.mxu0 0.0
    %2094 = vmatpush1.msra.mxu0 0.0
    %2095 = vmatprep.subr.mxu0 0.0
    %2096 = vmatpush1.msra.mxu0 0.0
    %2097 = vmatprep.subr.mxu0 0.0
    %2098 = vmatpush1.msra.mxu0 0.0
    %2099 = vmatprep.subr.mxu0 0.0
    %2100 = vmatpush1.msra.mxu0 0.0
    %2101 = vmatprep.subr.mxu0 0.0
    %2102 = vmatpush1.msra.mxu0 0.0
    %2103 = vmatprep.subr.mxu0 0.0
    %2104 = vmatpush1.msra.mxu0 0.0
    %2105 = vmatprep.subr.mxu0 0.0
    %2106 = vmatpush1.msra.mxu0 0.0
    %2107 = vmatprep.subr.mxu0 0.0
    %2108 = vmatpush1.msra.mxu0 0.0
    %2109 = vmatprep.subr.mxu0 0.0
    %2110 = vmatpush1.msra.mxu0 0.0
    %2111 = vmatprep.subr.mxu0 0.0
    %2112 = vmatpush1.msra.mxu0 0.0
    %2113 = vmatprep.subr.mxu0 0.0
    %2114 = vmatpush1.msra.mxu0 0.0
    %2115 = vmatprep.subr.mxu0 0.0
    %2116 = vmatpush1.msra.mxu0 0.0
    %2117 = vmatprep.subr.mxu0 0.0
    %2118 = vmatpush1.msra.mxu0 0.0
    %2119 = vmatprep.subr.mxu0 0.0
    %2120 = vmatpush1.msra.mxu0 0.0
    %2121 = vmatprep.subr.mxu0 0.0
    %2122 = vmatpush1.msra.mxu0 0.0
    %2123 = vmatprep.mubr.f32.mxu0 0.0
    %2124 = vmatmul.mubr.f32.gmra.mrb[0].mxu0 %v2057
    %v2125 = vpop.f32.mrb[0].mxu0
    %v2126 = vadd.f32 %v475, %v2125
    %v2127 = vpop.f32.mrb[0].mxu0
    %2128 = vdwg.mxu0
    %v2129 = vxor.u32 %v2126, 2147483648
    %v2130 = vmul.f32 %v2129, 1.442695
    %v2131 = vpow.pop %v2130
    %v2132 = vadd.f32 %v2131, 1.0
    %v2133 = vrcp.pop %v2132
    %v2134 = vmul.f32 1.0, %v2133
    %v2135 = vmul.f32 %v2134, 0.875
    %v2136 = vadd.f32 %v2135, 0.125
    %2137 = vrot.lane.b32.xlu0 %v2044, 16
    %v2138 = vpop.permute.xlu0 %2137
    %v2140 = vmul.f32 %v2134, %v2138
    %2142 = vrot.lane.b32.xlu0 %v2140, 16
    %v2143 = vpop.permute.xlu0 %2142
    %v2145 = vsel %vm54, %v2042, %v2143
    %v2146 = vld [vmem:[%s563] sm:$0xff]
    %v2147 = vld [vmem:[%s563 + $0x8] sm:$0xff]
    %v2148 = vld [vmem:[%s563 + $0x10] sm:$0xff]
    %v2149 = vld [vmem:[%s563 + $0x18] sm:$0xff]
    %v2150 = vld [vmem:[%s563 + $0x20] sm:$0xff]
    %v2151 = vld [vmem:[%s563 + $0x28] sm:$0xff]
    %v2153 = vsel %vm66, %v2145, 0
    %2155 = vmatprep.subr.mxu0 0.0
    %2156 = vmatpush1.msra.mxu0 %v2146
    %2157 = vmatprep.subr.mxu0 0.0
    %2158 = vmatpush1.msra.mxu0 %v2147
    %2159 = vmatprep.subr.mxu0 0.0
    %2160 = vmatpush1.msra.mxu0 %v2148
    %2161 = vmatprep.subr.mxu0 0.0
    %2162 = vmatpush1.msra.mxu0 %v2149
    %2163 = vmatprep.subr.mxu0 0.0
    %2164 = vmatpush1.msra.mxu0 %v2150
    %2165 = vmatprep.subr.mxu0 0.0
    %2166 = vmatpush1.msra.mxu0 %v2151
    %2167 = vmatprep.subr.mxu0 0.0
    %2168 = vmatpush1.msra.mxu0 0.0
    %2169 = vmatprep.subr.mxu0 0.0
    %2170 = vmatpush1.msra.mxu0 0.0
    %2171 = vmatprep.subr.mxu0 0.0
    %2172 = vmatpush1.msra.mxu0 0.0
    %2173 = vmatprep.subr.mxu0 0.0
    %2174 = vmatpush1.msra.mxu0 0.0
    %2175 = vmatprep.subr.mxu0 0.0
    %2176 = vmatpush1.msra.mxu0 0.0
    %2177 = vmatprep.subr.mxu0 0.0
    %2178 = vmatpush1.msra.mxu0 0.0
    %2179 = vmatprep.subr.mxu0 0.0
    %2180 = vmatpush1.msra.mxu0 0.0
    %2181 = vmatprep.subr.mxu0 0.0
    %2182 = vmatpush1.msra.mxu0 0.0
    %2183 = vmatprep.subr.mxu0 0.0
    %2184 = vmatpush1.msra.mxu0 0.0
    %2185 = vmatprep.subr.mxu0 0.0
    %2186 = vmatpush1.msra.mxu0 0.0
    %2187 = vmatprep.subr.mxu0 0.0
    %2188 = vmatpush1.msra.mxu0 0.0
    %2189 = vmatprep.subr.mxu0 0.0
    %2190 = vmatpush1.msra.mxu0 0.0
    %2191 = vmatprep.subr.mxu0 0.0
    %2192 = vmatpush1.msra.mxu0 0.0
    %2193 = vmatprep.subr.mxu0 0.0
    %2194 = vmatpush1.msra.mxu0 0.0
    %2195 = vmatprep.subr.mxu0 0.0
    %2196 = vmatpush1.msra.mxu0 0.0
    %2197 = vmatprep.subr.mxu0 0.0
    %2198 = vmatpush1.msra.mxu0 0.0
    %2199 = vmatprep.subr.mxu0 0.0
    %2200 = vmatpush1.msra.mxu0 0.0
    %2201 = vmatprep.subr.mxu0 0.0
    %2202 = vmatpush1.msra.mxu0 0.0
    %2203 = vmatprep.subr.mxu0 0.0
    %2204 = vmatpush1.msra.mxu0 0.0
    %2205 = vmatprep.subr.mxu0 0.0
    %2206 = vmatpush1.msra.mxu0 0.0
    %2207 = vmatprep.subr.mxu0 0.0
    %2208 = vmatpush1.msra.mxu0 0.0
    %2209 = vmatprep.subr.mxu0 0.0
    %2210 = vmatpush1.msra.mxu0 0.0
    %2211 = vmatprep.subr.mxu0 0.0
    %2212 = vmatpush1.msra.mxu0 0.0
    %2213 = vmatprep.subr.mxu0 0.0
    %2214 = vmatpush1.msra.mxu0 0.0
    %2215 = vmatprep.subr.mxu0 0.0
    %2216 = vmatpush1.msra.mxu0 0.0
    %2217 = vmatprep.subr.mxu0 0.0
    %2218 = vmatpush1.msra.mxu0 0.0
    %2219 = vmatprep.mubr.f32.mxu0 0.0
    %2220 = vmatmul.mubr.f32.gmra.mrb[0].mxu0 %v2153
    %v2221 = vpop.f32.mrb[0].mxu0
    %v2222 = vadd.f32 %v573, %v2221
    %v2223 = vpop.f32.mrb[0].mxu0
    %2224 = vdwg.mxu0
    %v2225 = vtanh.pop %v2222
    %v2226 = vmul.f32 %v2136, %v1453
    %v2227 = vfloor.f32 %v2226
    %v2228 = vcvt.f32.s32.to.zero.pseudo %v2227
    %v2229 = vsub.f32 1.0, %v2136
    %v2230 = vmul.f32 %v2229, %v2225
    %v2231 = vmul.f32 %v2230, 8388608.0
    %v2232 = vfloor.f32 %v2231
    %v2233 = vcvt.f32.s32.to.zero.pseudo %v2232
    %v2234 = vadd.s32 %v2228, %v2233
    %v2235 = vcvt.s32.f32 %v2234
    %v2236 = vmul.f32 %v2235, 1.1920929e-07
    %2238 = vrot.lane.b32.xlu0 %v2236, 32
    %v2239 = vpop.permute.xlu0 %2238
    %v2241 = vsel %vm54, %v2042, %v2239
    %v2242 = vld [vmem:[%s664] sm:$0xff]
    %v2243 = vld [vmem:[%s664 + $0x8] sm:$0xff]
    %v2244 = vld [vmem:[%s664 + $0x10] sm:$0xff]
    %v2245 = vld [vmem:[%s664 + $0x18] sm:$0xff]
    %v2246 = vld [vmem:[%s664 + $0x20] sm:$0xff]
    %v2247 = vld [vmem:[%s664 + $0x28] sm:$0xff]
    %v2249 = vsel %vm66, %v2241, 0
    %2251 = vmatprep.subr.mxu0 0.0
    %2252 = vmatpush1.msra.mxu0 %v2242
    %2253 = vmatprep.subr.mxu0 0.0
    %2254 = vmatpush1.msra.mxu0 %v2243
    %2255 = vmatprep.subr.mxu0 0.0
    %2256 = vmatpush1.msra.mxu0 %v2244
    %2257 = vmatprep.subr.mxu0 0.0
    %2258 = vmatpush1.msra.mxu0 %v2245
    %2259 = vmatprep.subr.mxu0 0.0
    %2260 = vmatpush1.msra.mxu0 %v2246
    %2261 = vmatprep.subr.mxu0 0.0
    %2262 = vmatpush1.msra.mxu0 %v2247
    %2263 = vmatprep.subr.mxu0 0.0
    %2264 = vmatpush1.msra.mxu0 0.0
    %2265 = vmatprep.subr.mxu0 0.0
    %2266 = vmatpush1.msra.mxu0 0.0
    %2267 = vmatprep.subr.mxu0 0.0
    %2268 = vmatpush1.msra.mxu0 0.0
    %2269 = vmatprep.subr.mxu0 0.0
    %2270 = vmatpush1.msra.mxu0 0.0
    %2271 = vmatprep.subr.mxu0 0.0
    %2272 = vmatpush1.msra.mxu0 0.0
    %2273 = vmatprep.subr.mxu0 0.0
    %2274 = vmatpush1.msra.mxu0 0.0
    %2275 = vmatprep.subr.mxu0 0.0
    %2276 = vmatpush1.msra.mxu0 0.0
    %2277 = vmatprep.subr.mxu0 0.0
    %2278 = vmatpush1.msra.mxu0 0.0
    %2279 = vmatprep.subr.mxu0 0.0
    %2280 = vmatpush1.msra.mxu0 0.0
    %2281 = vmatprep.subr.mxu0 0.0
    %2282 = vmatpush1.msra.mxu0 0.0
    %2283 = vmatprep.subr.mxu0 0.0
    %2284 = vmatpush1.msra.mxu0 0.0
    %2285 = vmatprep.subr.mxu0 0.0
    %2286 = vmatpush1.msra.mxu0 0.0
    %2287 = vmatprep.subr.mxu0 0.0
    %2288 = vmatpush1.msra.mxu0 0.0
    %2289 = vmatprep.subr.mxu0 0.0
    %2290 = vmatpush1.msra.mxu0 0.0
    %2291 = vmatprep.subr.mxu0 0.0
    %2292 = vmatpush1.msra.mxu0 0.0
    %2293 = vmatprep.subr.mxu0 0.0
    %2294 = vmatpush1.msra.mxu0 0.0
    %2295 = vmatprep.subr.mxu0 0.0
    %2296 = vmatpush1.msra.mxu0 0.0
    %2297 = vmatprep.subr.mxu0 0.0
    %2298 = vmatpush1.msra.mxu0 0.0
    %2299 = vmatprep.subr.mxu0 0.0
    %2300 = vmatpush1.msra.mxu0 0.0
    %2301 = vmatprep.subr.mxu0 0.0
    %2302 = vmatpush1.msra.mxu0 0.0
    %2303 = vmatprep.subr.mxu0 0.0
    %2304 = vmatpush1.msra.mxu0 0.0
    %2305 = vmatprep.subr.mxu0 0.0
    %2306 = vmatpush1.msra.mxu0 0.0
    %2307 = vmatprep.subr.mxu0 0.0
    %2308 = vmatpush1.msra.mxu0 0.0
    %2309 = vmatprep.subr.mxu0 0.0
    %2310 = vmatpush1.msra.mxu0 0.0
    %2311 = vmatprep.subr.mxu0 0.0
    %2312 = vmatpush1.msra.mxu0 0.0
    %2313 = vmatprep.subr.mxu0 0.0
    %2314 = vmatpush1.msra.mxu0 0.0
    %2315 = vmatprep.mubr.f32.mxu0 0.0
    %2316 = vmatmul.mubr.f32.gmra.mrb[0].mxu0 %v2249
    %v2317 = vpop.f32.mrb[0].mxu0
    %v2318 = vadd.f32 %v674, %v2317
    %v2319 = vpop.f32.mrb[0].mxu0
    %2320 = vdwg.mxu0
    %v2321 = vxor.u32 %v2318, 2147483648
    %v2322 = vmul.f32 %v2321, 1.442695
    %v2323 = vpow.pop %v2322
    %v2324 = vadd.f32 %v2323, 1.0
    %v2325 = vrcp.pop %v2324
    %v2326 = vmul.f32 1.0, %v2325
    %v2327 = vmul.f32 %v2326, 0.875
    %v2328 = vadd.f32 %v2327, 0.125
    %2329 = vrot.lane.b32.xlu0 %v2236, 16
    %v2330 = vpop.permute.xlu0 %2329
    %v2332 = vmul.f32 %v2326, %v2330
    %2334 = vrot.lane.b32.xlu0 %v2332, 16
    %v2335 = vpop.permute.xlu0 %2334
    %v2337 = vsel %vm54, %v2042, %v2335
    %v2338 = vld [vmem:[%s765] sm:$0xff]
    %v2339 = vld [vmem:[%s765 + $0x8] sm:$0xff]
    %v2340 = vld [vmem:[%s765 + $0x10] sm:$0xff]
    %v2341 = vld [vmem:[%s765 + $0x18] sm:$0xff]
    %v2342 = vld [vmem:[%s765 + $0x20] sm:$0xff]
    %v2343 = vld [vmem:[%s765 + $0x28] sm:$0xff]
    %v2345 = vsel %vm66, %v2337, 0
    %2347 = vmatprep.subr.mxu0 0.0
    %2348 = vmatpush1.msra.mxu0 %v2338
    %2349 = vmatprep.subr.mxu0 0.0
    %2350 = vmatpush1.msra.mxu0 %v2339
    %2351 = vmatprep.subr.mxu0 0.0
    %2352 = vmatpush1.msra.mxu0 %v2340
    %2353 = vmatprep.subr.mxu0 0.0
    %2354 = vmatpush1.msra.mxu0 %v2341
    %2355 = vmatprep.subr.mxu0 0.0
    %2356 = vmatpush1.msra.mxu0 %v2342
    %2357 = vmatprep.subr.mxu0 0.0
    %2358 = vmatpush1.msra.mxu0 %v2343
    %2359 = vmatprep.subr.mxu0 0.0
    %2360 = vmatpush1.msra.mxu0 0.0
    %2361 = vmatprep.subr.mxu0 0.0
    %2362 = vmatpush1.msra.mxu0 0.0
    %2363 = vmatprep.subr.mxu0 0.0
    %2364 = vmatpush1.msra.mxu0 0.0
    %2365 = vmatprep.subr.mxu0 0.0
    %2366 = vmatpush1.msra.mxu0 0.0
    %2367 = vmatprep.subr.mxu0 0.0
    %2368 = vmatpush1.msra.mxu0 0.0
    %2369 = vmatprep.subr.mxu0 0.0
    %2370 = vmatpush1.msra.mxu0 0.0
    %2371 = vmatprep.subr.mxu0 0.0
    %2372 = vmatpush1.msra.mxu0 0.0
    %2373 = vmatprep.subr.mxu0 0.0
    %2374 = vmatpush1.msra.mxu0 0.0
    %2375 = vmatprep.subr.mxu0 0.0
    %2376 = vmatpush1.msra.mxu0 0.0
    %2377 = vmatprep.subr.mxu0 0.0
    %2378 = vmatpush1.msra.mxu0 0.0
    %2379 = vmatprep.subr.mxu0 0.0
    %2380 = vmatpush1.msra.mxu0 0.0
    %2381 = vmatprep.subr.mxu0 0.0
    %2382 = vmatpush1.msra.mxu0 0.0
    %2383 = vmatprep.subr.mxu0 0.0
    %2384 = vmatpush1.msra.mxu0 0.0
    %2385 = vmatprep.subr.mxu0 0.0
    %2386 = vmatpush1.msra.mxu0 0.0
    %2387 = vmatprep.subr.mxu0 0.0
    %2388 = vmatpush1.msra.mxu0 0.0
    %2389 = vmatprep.subr.mxu0 0.0
    %2390 = vmatpush1.msra.mxu0 0.0
    %2391 = vmatprep.subr.mxu0 0.0
    %2392 = vmatpush1.msra.mxu0 0.0
    %2393 = vmatprep.subr.mxu0 0.0
    %2394 = vmatpush1.msra.mxu0 0.0
    %2395 = vmatprep.subr.mxu0 0.0
    %2396 = vmatpush1.msra.mxu0 0.0
    %2397 = vmatprep.subr.mxu0 0.0
    %2398 = vmatpush1.msra.mxu0 0.0
    %2399 = vmatprep.subr.mxu0 0.0
    %2400 = vmatpush1.msra.mxu0 0.0
    %2401 = vmatprep.subr.mxu0 0.0
    %2402 = vmatpush1.msra.mxu0 0.0
    %2403 = vmatprep.subr.mxu0 0.0
    %2404 = vmatpush1.msra.mxu0 0.0
    %2405 = vmatprep.subr.mxu0 0.0
    %2406 = vmatpush1.msra.mxu0 0.0
    %2407 = vmatprep.subr.mxu0 0.0
    %2408 = vmatpush1.msra.mxu0 0.0
    %2409 = vmatprep.subr.mxu0 0.0
    %2410 = vmatpush1.msra.mxu0 0.0
    %2411 = vmatprep.mubr.f32.mxu0 0.0
    %2412 = vmatmul.mubr.f32.gmra.mrb[0].mxu0 %v2345
    %v2413 = vpop.f32.mrb[0].mxu0
    %v2414 = vadd.f32 %v775, %v2413
    %v2415 = vpop.f32.mrb[0].mxu0
    %2416 = vdwg.mxu0
    %v2417 = vtanh.pop %v2414
    %v2418 = vmul.f32 %v2328, %v2043
    %v2419 = vfloor.f32 %v2418
    %v2420 = vcvt.f32.s32.to.zero.pseudo %v2419
    %v2421 = vsub.f32 1.0, %v2328
    %v2422 = vmul.f32 %v2421, %v2417
    %v2423 = vmul.f32 %v2422, 8388608.0
    %v2424 = vfloor.f32 %v2423
    %v2425 = vcvt.f32.s32.to.zero.pseudo %v2424
    %v2426 = vadd.s32 %v2420, %v2425
    %2427 = vrot.lane.b32.xlu0 %v2426, 16
    %v2428 = vpop.permute.xlu0 %2427
    %v2429 = vsel %vm453, %v2234, %v2428
    %s2430 = scalar_lea.vmem [#allocation2], 40
    %2431 = vst.msk [vmem:[%s2430] sm:$0xff] %vm54, %v2429
    %s2432 = scalar_lea.vmem %s0, 24
    %v2433 = vld [vmem:[%s2432] sm:$0xff]
    %v2434 = vcvt.s32.f32 %v2035
    %v2435 = vmul.f32 %v2434, 1.1920929e-07
    %2437 = vrot.lane.b32.xlu0 %v2435, 32
    %v2438 = vpop.permute.xlu0 %2437
    %v2440 = vsel %vm54, %v2433, %v2438
    %v2441 = vld [vmem:[%s2] sm:$0xff]
    %v2442 = vld [vmem:[%s2 + $0x8] sm:$0xff]
    %v2443 = vld [vmem:[%s2 + $0x10] sm:$0xff]
    %v2444 = vld [vmem:[%s2 + $0x18] sm:$0xff]
    %v2445 = vld [vmem:[%s2 + $0x20] sm:$0xff]
    %v2446 = vld [vmem:[%s2 + $0x28] sm:$0xff]
    %v2448 = vsel %vm66, %v2440, 0
    %2450 = vmatprep.subr.mxu0 0.0
    %2451 = vmatpush1.msra.mxu0 %v2441
    %2452 = vmatprep.subr.mxu0 0.0
    %2453 = vmatpush1.msra.mxu0 %v2442
    %2454 = vmatprep.subr.mxu0 0.0
    %2455 = vmatpush1.msra.mxu0 %v2443
    %2456 = vmatprep.subr.mxu0 0.0
    %2457 = vmatpush1.msra.mxu0 %v2444
    %2458 = vmatprep.subr.mxu0 0.0
    %2459 = vmatpush1.msra.mxu0 %v2445
    %2460 = vmatprep.subr.mxu0 0.0
    %2461 = vmatpush1.msra.mxu0 %v2446
    %2462 = vmatprep.subr.mxu0 0.0
    %2463 = vmatpush1.msra.mxu0 0.0
    %2464 = vmatprep.subr.mxu0 0.0
    %2465 = vmatpush1.msra.mxu0 0.0
    %2466 = vmatprep.subr.mxu0 0.0
    %2467 = vmatpush1.msra.mxu0 0.0
    %2468 = vmatprep.subr.mxu0 0.0
    %2469 = vmatpush1.msra.mxu0 0.0
    %2470 = vmatprep.subr.mxu0 0.0
    %2471 = vmatpush1.msra.mxu0 0.0
    %2472 = vmatprep.subr.mxu0 0.0
    %2473 = vmatpush1.msra.mxu0 0.0
    %2474 = vmatprep.subr.mxu0 0.0
    %2475 = vmatpush1.msra.mxu0 0.0
    %2476 = vmatprep.subr.mxu0 0.0
    %2477 = vmatpush1.msra.mxu0 0.0
    %2478 = vmatprep.subr.mxu0 0.0
    %2479 = vmatpush1.msra.mxu0 0.0
    %2480 = vmatprep.subr.mxu0 0.0
    %2481 = vmatpush1.msra.mxu0 0.0
    %2482 = vmatprep.subr.mxu0 0.0
    %2483 = vmatpush1.msra.mxu0 0.0
    %2484 = vmatprep.subr.mxu0 0.0
    %2485 = vmatpush1.msra.mxu0 0.0
    %2486 = vmatprep.subr.mxu0 0.0
    %2487 = vmatpush1.msra.mxu0 0.0
    %2488 = vmatprep.subr.mxu0 0.0
    %2489 = vmatpush1.msra.mxu0 0.0
    %2490 = vmatprep.subr.mxu0 0.0
    %2491 = vmatpush1.msra.mxu0 0.0
    %2492 = vmatprep.subr.mxu0 0.0
    %2493 = vmatpush1.msra.mxu0 0.0
    %2494 = vmatprep.subr.mxu0 0.0
    %2495 = vmatpush1.msra.mxu0 0.0
    %2496 = vmatprep.subr.mxu0 0.0
    %2497 = vmatpush1.msra.mxu0 0.0
    %2498 = vmatprep.subr.mxu0 0.0
    %2499 = vmatpush1.msra.mxu0 0.0
    %2500 = vmatprep.subr.mxu0 0.0
    %2501 = vmatpush1.msra.mxu0 0.0
    %2502 = vmatprep.subr.mxu0 0.0
    %2503 = vmatpush1.msra.mxu0 0.0
    %2504 = vmatprep.subr.mxu0 0.0
    %2505 = vmatpush1.msra.mxu0 0.0
    %2506 = vmatprep.subr.mxu0 0.0
    %2507 = vmatpush1.msra.mxu0 0.0
    %2508 = vmatprep.subr.mxu0 0.0
    %2509 = vmatpush1.msra.mxu0 0.0
    %2510 = vmatprep.subr.mxu0 0.0
    %2511 = vmatpush1.msra.mxu0 0.0
    %2512 = vmatprep.subr.mxu0 0.0
    %2513 = vmatpush1.msra.mxu0 0.0
    %2514 = vmatprep.mubr.f32.mxu0 0.0
    %2515 = vmatmul.mubr.f32.gmra.mrb[0].mxu0 %v2448
    %v2516 = vpop.f32.mrb[0].mxu0
    %v2517 = vadd.f32 %v65, %v2516
    %v2518 = vpop.f32.mrb[0].mxu0
    %2519 = vdwg.mxu0
    %v2520 = vxor.u32 %v2517, 2147483648
    %v2521 = vmul.f32 %v2520, 1.442695
    %v2522 = vpow.pop %v2521
    %v2523 = vadd.f32 %v2522, 1.0
    %v2524 = vrcp.pop %v2523
    %v2525 = vmul.f32 1.0, %v2524
    %v2526 = vmul.f32 %v2525, 0.875
    %v2527 = vadd.f32 %v2526, 0.125
    %2528 = vrot.lane.b32.xlu0 %v2435, 16
    %v2529 = vpop.permute.xlu0 %2528
    %v2531 = vmul.f32 %v2525, %v2529
    %2533 = vrot.lane.b32.xlu0 %v2531, 16
    %v2534 = vpop.permute.xlu0 %2533
    %v2536 = vsel %vm54, %v2433, %v2534
    %v2537 = vld [vmem:[%s4] sm:$0xff]
    %v2538 = vld [vmem:[%s4 + $0x8] sm:$0xff]
    %v2539 = vld [vmem:[%s4 + $0x10] sm:$0xff]
    %v2540 = vld [vmem:[%s4 + $0x18] sm:$0xff]
    %v2541 = vld [vmem:[%s4 + $0x20] sm:$0xff]
    %v2542 = vld [vmem:[%s4 + $0x28] sm:$0xff]
    %v2544 = vsel %vm66, %v2536, 0
    %2546 = vmatprep.subr.mxu0 0.0
    %2547 = vmatpush1.msra.mxu0 %v2537
    %2548 = vmatprep.subr.mxu0 0.0
    %2549 = vmatpush1.msra.mxu0 %v2538
    %2550 = vmatprep.subr.mxu0 0.0
    %2551 = vmatpush1.msra.mxu0 %v2539
    %2552 = vmatprep.subr.mxu0 0.0
    %2553 = vmatpush1.msra.mxu0 %v2540
    %2554 = vmatprep.subr.mxu0 0.0
    %2555 = vmatpush1.msra.mxu0 %v2541
    %2556 = vmatprep.subr.mxu0 0.0
    %2557 = vmatpush1.msra.mxu0 %v2542
    %2558 = vmatprep.subr.mxu0 0.0
    %2559 = vmatpush1.msra.mxu0 0.0
    %2560 = vmatprep.subr.mxu0 0.0
    %2561 = vmatpush1.msra.mxu0 0.0
    %2562 = vmatprep.subr.mxu0 0.0
    %2563 = vmatpush1.msra.mxu0 0.0
    %2564 = vmatprep.subr.mxu0 0.0
    %2565 = vmatpush1.msra.mxu0 0.0
    %2566 = vmatprep.subr.mxu0 0.0
    %2567 = vmatpush1.msra.mxu0 0.0
    %2568 = vmatprep.subr.mxu0 0.0
    %2569 = vmatpush1.msra.mxu0 0.0
    %2570 = vmatprep.subr.mxu0 0.0
    %2571 = vmatpush1.msra.mxu0 0.0
    %2572 = vmatprep.subr.mxu0 0.0
    %2573 = vmatpush1.msra.mxu0 0.0
    %2574 = vmatprep.subr.mxu0 0.0
    %2575 = vmatpush1.msra.mxu0 0.0
    %2576 = vmatprep.subr.mxu0 0.0
    %2577 = vmatpush1.msra.mxu0 0.0
    %2578 = vmatprep.subr.mxu0 0.0
    %2579 = vmatpush1.msra.mxu0 0.0
    %2580 = vmatprep.subr.mxu0 0.0
    %2581 = vmatpush1.msra.mxu0 0.0
    %2582 = vmatprep.subr.mxu0 0.0
    %2583 = vmatpush1.msra.mxu0 0.0
    %2584 = vmatprep.subr.mxu0 0.0
    %2585 = vmatpush1.msra.mxu0 0.0
    %2586 = vmatprep.subr.mxu0 0.0
    %2587 = vmatpush1.msra.mxu0 0.0
    %2588 = vmatprep.subr.mxu0 0.0
    %2589 = vmatpush1.msra.mxu0 0.0
    %2590 = vmatprep.subr.mxu0 0.0
    %2591 = vmatpush1.msra.mxu0 0.0
    %2592 = vmatprep.subr.mxu0 0.0
    %2593 = vmatpush1.msra.mxu0 0.0
    %2594 = vmatprep.subr.mxu0 0.0
    %2595 = vmatpush1.msra.mxu0 0.0
    %2596 = vmatprep.subr.mxu0 0.0
    %2597 = vmatpush1.msra.mxu0 0.0
    %2598 = vmatprep.subr.mxu0 0.0
    %2599 = vmatpush1.msra.mxu0 0.0
    %2600 = vmatprep.subr.mxu0 0.0
    %2601 = vmatpush1.msra.mxu0 0.0
    %2602 = vmatprep.subr.mxu0 0.0
    %2603 = vmatpush1.msra.mxu0 0.0
    %2604 = vmatprep.subr.mxu0 0.0
    %2605 = vmatpush1.msra.mxu0 0.0
    %2606 = vmatprep.subr.mxu0 0.0
    %2607 = vmatpush1.msra.mxu0 0.0
    %2608 = vmatprep.subr.mxu0 0.0
    %2609 = vmatpush1.msra.mxu0 0.0
    %2610 = vmatprep.mubr.f32.mxu0 0.0
    %2611 = vmatmul.mubr.f32.gmra.mrb[0].mxu0 %v2544
    %v2612 = vpop.f32.mrb[0].mxu0
    %v2613 = vadd.f32 %v163, %v2612
    %v2614 = vpop.f32.mrb[0].mxu0
    %2615 = vdwg.mxu0
    %v2616 = vtanh.pop %v2613
    %v2617 = vmul.f32 %v2527, %v1844
    %v2618 = vfloor.f32 %v2617
    %v2619 = vcvt.f32.s32.to.zero.pseudo %v2618
    %v2620 = vsub.f32 1.0, %v2527
    %v2621 = vmul.f32 %v2620, %v2616
    %v2622 = vmul.f32 %v2621, 8388608.0
    %v2623 = vfloor.f32 %v2622
    %v2624 = vcvt.f32.s32.to.zero.pseudo %v2623
    %v2625 = vadd.s32 %v2619, %v2624
    %v2626 = vcvt.s32.f32 %v2625
    %v2627 = vmul.f32 %v2626, 1.1920929e-07
    %2629 = vrot.lane.b32.xlu0 %v2627, 32
    %v2630 = vpop.permute.xlu0 %2629
    %v2632 = vsel %vm54, %v2433, %v2630
    %v2633 = vld [vmem:[%s6] sm:$0xff]
    %v2634 = vld [vmem:[%s6 + $0x8] sm:$0xff]
    %v2635 = vld [vmem:[%s6 + $0x10] sm:$0xff]
    %v2636 = vld [vmem:[%s6 + $0x18] sm:$0xff]
    %v2637 = vld [vmem:[%s6 + $0x20] sm:$0xff]
    %v2638 = vld [vmem:[%s6 + $0x28] sm:$0xff]
    %v2640 = vsel %vm66, %v2632, 0
    %2642 = vmatprep.subr.mxu0 0.0
    %2643 = vmatpush1.msra.mxu0 %v2633
    %2644 = vmatprep.subr.mxu0 0.0
    %2645 = vmatpush1.msra.mxu0 %v2634
    %2646 = vmatprep.subr.mxu0 0.0
    %2647 = vmatpush1.msra.mxu0 %v2635
    %2648 = vmatprep.subr.mxu0 0.0
    %2649 = vmatpush1.msra.mxu0 %v2636
    %2650 = vmatprep.subr.mxu0 0.0
    %2651 = vmatpush1.msra.mxu0 %v2637
    %2652 = vmatprep.subr.mxu0 0.0
    %2653 = vmatpush1.msra.mxu0 %v2638
    %2654 = vmatprep.subr.mxu0 0.0
    %2655 = vmatpush1.msra.mxu0 0.0
    %2656 = vmatprep.subr.mxu0 0.0
    %2657 = vmatpush1.msra.mxu0 0.0
    %2658 = vmatprep.subr.mxu0 0.0
    %2659 = vmatpush1.msra.mxu0 0.0
    %2660 = vmatprep.subr.mxu0 0.0
    %2661 = vmatpush1.msra.mxu0 0.0
    %2662 = vmatprep.subr.mxu0 0.0
    %2663 = vmatpush1.msra.mxu0 0.0
    %2664 = vmatprep.subr.mxu0 0.0
    %2665 = vmatpush1.msra.mxu0 0.0
    %2666 = vmatprep.subr.mxu0 0.0
    %2667 = vmatpush1.msra.mxu0 0.0
    %2668 = vmatprep.subr.mxu0 0.0
    %2669 = vmatpush1.msra.mxu0 0.0
    %2670 = vmatprep.subr.mxu0 0.0
    %2671 = vmatpush1.msra.mxu0 0.0
    %2672 = vmatprep.subr.mxu0 0.0
    %2673 = vmatpush1.msra.mxu0 0.0
    %2674 = vmatprep.subr.mxu0 0.0
    %2675 = vmatpush1.msra.mxu0 0.0
    %2676 = vmatprep.subr.mxu0 0.0
    %2677 = vmatpush1.msra.mxu0 0.0
    %2678 = vmatprep.subr.mxu0 0.0
    %2679 = vmatpush1.msra.mxu0 0.0
    %2680 = vmatprep.subr.mxu0 0.0
    %2681 = vmatpush1.msra.mxu0 0.0
    %2682 = vmatprep.subr.mxu0 0.0
    %2683 = vmatpush1.msra.mxu0 0.0
    %2684 = vmatprep.subr.mxu0 0.0
    %2685 = vmatpush1.msra.mxu0 0.0
    %2686 = vmatprep.subr.mxu0 0.0
    %2687 = vmatpush1.msra.mxu0 0.0
    %2688 = vmatprep.subr.mxu0 0.0
    %2689 = vmatpush1.msra.mxu0 0.0
    %2690 = vmatprep.subr.mxu0 0.0
    %2691 = vmatpush1.msra.mxu0 0.0
    %2692 = vmatprep.subr.mxu0 0.0
    %2693 = vmatpush1.msra.mxu0 0.0
    %2694 = vmatprep.subr.mxu0 0.0
    %2695 = vmatpush1.msra.mxu0 0.0
    %2696 = vmatprep.subr.mxu0 0.0
    %2697 = vmatpush1.msra.mxu0 0.0
    %2698 = vmatprep.subr.mxu0 0.0
    %2699 = vmatpush1.msra.mxu0 0.0
    %2700 = vmatprep.subr.mxu0 0.0
    %2701 = vmatpush1.msra.mxu0 0.0
    %2702 = vmatprep.subr.mxu0 0.0
    %2703 = vmatpush1.msra.mxu0 0.0
    %2704 = vmatprep.subr.mxu0 0.0
    %2705 = vmatpush1.msra.mxu0 0.0
    %2706 = vmatprep.mubr.f32.mxu0 0.0
    %2707 = vmatmul.mubr.f32.gmra.mrb[0].mxu0 %v2640
    %v2708 = vpop.f32.mrb[0].mxu0
    %v2709 = vadd.f32 %v263, %v2708
    %v2710 = vpop.f32.mrb[0].mxu0
    %2711 = vdwg.mxu0
    %v2712 = vxor.u32 %v2709, 2147483648
    %v2713 = vmul.f32 %v2712, 1.442695
    %v2714 = vpow.pop %v2713
    %v2715 = vadd.f32 %v2714, 1.0
    %v2716 = vrcp.pop %v2715
    %v2717 = vmul.f32 1.0, %v2716
    %v2718 = vmul.f32 %v2717, 0.875
    %v2719 = vadd.f32 %v2718, 0.125
    %2720 = vrot.lane.b32.xlu0 %v2627, 16
    %v2721 = vpop.permute.xlu0 %2720
    %v2723 = vmul.f32 %v2717, %v2721
    %2725 = vrot.lane.b32.xlu0 %v2723, 16
    %v2726 = vpop.permute.xlu0 %2725
    %v2728 = vsel %vm54, %v2433, %v2726
    %v2729 = vld [vmem:[%s8] sm:$0xff]
    %v2730 = vld [vmem:[%s8 + $0x8] sm:$0xff]
    %v2731 = vld [vmem:[%s8 + $0x10] sm:$0xff]
    %v2732 = vld [vmem:[%s8 + $0x18] sm:$0xff]
    %v2733 = vld [vmem:[%s8 + $0x20] sm:$0xff]
    %v2734 = vld [vmem:[%s8 + $0x28] sm:$0xff]
    %v2736 = vsel %vm66, %v2728, 0
    %2738 = vmatprep.subr.mxu0 0.0
    %2739 = vmatpush1.msra.mxu0 %v2729
    %2740 = vmatprep.subr.mxu0 0.0
    %2741 = vmatpush1.msra.mxu0 %v2730
    %2742 = vmatprep.subr.mxu0 0.0
    %2743 = vmatpush1.msra.mxu0 %v2731
    %2744 = vmatprep.subr.mxu0 0.0
    %2745 = vmatpush1.msra.mxu0 %v2732
    %2746 = vmatprep.subr.mxu0 0.0
    %2747 = vmatpush1.msra.mxu0 %v2733
    %2748 = vmatprep.subr.mxu0 0.0
    %2749 = vmatpush1.msra.mxu0 %v2734
    %2750 = vmatprep.subr.mxu0 0.0
    %2751 = vmatpush1.msra.mxu0 0.0
    %2752 = vmatprep.subr.mxu0 0.0
    %2753 = vmatpush1.msra.mxu0 0.0
    %2754 = vmatprep.subr.mxu0 0.0
    %2755 = vmatpush1.msra.mxu0 0.0
    %2756 = vmatprep.subr.mxu0 0.0
    %2757 = vmatpush1.msra.mxu0 0.0
    %2758 = vmatprep.subr.mxu0 0.0
    %2759 = vmatpush1.msra.mxu0 0.0
    %2760 = vmatprep.subr.mxu0 0.0
    %2761 = vmatpush1.msra.mxu0 0.0
    %2762 = vmatprep.subr.mxu0 0.0
    %2763 = vmatpush1.msra.mxu0 0.0
    %2764 = vmatprep.subr.mxu0 0.0
    %2765 = vmatpush1.msra.mxu0 0.0
    %2766 = vmatprep.subr.mxu0 0.0
    %2767 = vmatpush1.msra.mxu0 0.0
    %2768 = vmatprep.subr.mxu0 0.0
    %2769 = vmatpush1.msra.mxu0 0.0
    %2770 = vmatprep.subr.mxu0 0.0
    %2771 = vmatpush1.msra.mxu0 0.0
    %2772 = vmatprep.subr.mxu0 0.0
    %2773 = vmatpush1.msra.mxu0 0.0
    %2774 = vmatprep.subr.mxu0 0.0
    %2775 = vmatpush1.msra.mxu0 0.0
    %2776 = vmatprep.subr.mxu0 0.0
    %2777 = vmatpush1.msra.mxu0 0.0
    %2778 = vmatprep.subr.mxu0 0.0
    %2779 = vmatpush1.msra.mxu0 0.0
    %2780 = vmatprep.subr.mxu0 0.0
    %2781 = vmatpush1.msra.mxu0 0.0
    %2782 = vmatprep.subr.mxu0 0.0
    %2783 = vmatpush1.msra.mxu0 0.0
    %2784 = vmatprep.subr.mxu0 0.0
    %2785 = vmatpush1.msra.mxu0 0.0
    %2786 = vmatprep.subr.mxu0 0.0
    %2787 = vmatpush1.msra.mxu0 0.0
    %2788 = vmatprep.subr.mxu0 0.0
    %2789 = vmatpush1.msra.mxu0 0.0
    %2790 = vmatprep.subr.mxu0 0.0
    %2791 = vmatpush1.msra.mxu0 0.0
    %2792 = vmatprep.subr.mxu0 0.0
    %2793 = vmatpush1.msra.mxu0 0.0
    %2794 = vmatprep.subr.mxu0 0.0
    %2795 = vmatpush1.msra.mxu0 0.0
    %2796 = vmatprep.subr.mxu0 0.0
    %2797 = vmatpush1.msra.mxu0 0.0
    %2798 = vmatprep.subr.mxu0 0.0
    %2799 = vmatpush1.msra.mxu0 0.0
    %2800 = vmatprep.subr.mxu0 0.0
    %2801 = vmatpush1.msra.mxu0 0.0
    %2802 = vmatprep.mubr.f32.mxu0 0.0
    %2803 = vmatmul.mubr.f32.gmra.mrb[0].mxu0 %v2736
    %v2804 = vpop.f32.mrb[0].mxu0
    %v2805 = vadd.f32 %v363, %v2804
    %v2806 = vpop.f32.mrb[0].mxu0
    %2807 = vdwg.mxu0
    %v2808 = vtanh.pop %v2805
    %v2809 = vmul.f32 %v2719, %v2434
    %v2810 = vfloor.f32 %v2809
    %v2811 = vcvt.f32.s32.to.zero.pseudo %v2810
    %v2812 = vsub.f32 1.0, %v2719
    %v2813 = vmul.f32 %v2812, %v2808
    %v2814 = vmul.f32 %v2813, 8388608.0
    %v2815 = vfloor.f32 %v2814
    %v2816 = vcvt.f32.s32.to.zero.pseudo %v2815
    %v2817 = vadd.s32 %v2811, %v2816
    %2818 = vrot.lane.b32.xlu0 %v2817, 16
    %v2819 = vpop.permute.xlu0 %2818
    %v2820 = vsel %vm453, %v2625, %v2819
    %s2821 = scalar_lea.vmem [#allocation2], 48
    %2822 = vst.msk [vmem:[%s2821] sm:$0xff] %vm54, %v2820
    %v2823 = vcvt.s32.f32 %v2820
    %v2824 = vmul.f32 %v2823, 1.1920929e-07
    %v2825 = vcvt.s32.f32 %v2426
    %v2826 = vmul.f32 %v2825, 1.1920929e-07
    %2828 = vrot.lane.b32.xlu0 %v2826, 32
    %v2829 = vpop.permute.xlu0 %2828
    %v2831 = vsel %vm54, %v2824, %v2829
    %v2832 = vld [vmem:[%s465] sm:$0xff]
    %v2833 = vld [vmem:[%s465 + $0x8] sm:$0xff]
    %v2834 = vld [vmem:[%s465 + $0x10] sm:$0xff]
    %v2835 = vld [vmem:[%s465 + $0x18] sm:$0xff]
    %v2836 = vld [vmem:[%s465 + $0x20] sm:$0xff]
    %v2837 = vld [vmem:[%s465 + $0x28] sm:$0xff]
    %v2839 = vsel %vm66, %v2831, 0
    %2841 = vmatprep.subr.mxu0 0.0
    %2842 = vmatpush1.msra.mxu0 %v2832
    %2843 = vmatprep.subr.mxu0 0.0
    %2844 = vmatpush1.msra.mxu0 %v2833
    %2845 = vmatprep.subr.mxu0 0.0
    %2846 = vmatpush1.msra.mxu0 %v2834
    %2847 = vmatprep.subr.mxu0 0.0
    %2848 = vmatpush1.msra.mxu0 %v2835
    %2849 = vmatprep.subr.mxu0 0.0
    %2850 = vmatpush1.msra.mxu0 %v2836
    %2851 = vmatprep.subr.mxu0 0.0
    %2852 = vmatpush1.msra.mxu0 %v2837
    %2853 = vmatprep.subr.mxu0 0.0
    %2854 = vmatpush1.msra.mxu0 0.0
    %2855 = vmatprep.subr.mxu0 0.0
    %2856 = vmatpush1.msra.mxu0 0.0
    %2857 = vmatprep.subr.mxu0 0.0
    %2858 = vmatpush1.msra.mxu0 0.0
    %2859 = vmatprep.subr.mxu0 0.0
    %2860 = vmatpush1.msra.mxu0 0.0
    %2861 = vmatprep.subr.mxu0 0.0
    %2862 = vmatpush1.msra.mxu0 0.0
    %2863 = vmatprep.subr.mxu0 0.0
    %2864 = vmatpush1.msra.mxu0 0.0
    %2865 = vmatprep.subr.mxu0 0.0
    %2866 = vmatpush1.msra.mxu0 0.0
    %2867 = vmatprep.subr.mxu0 0.0
    %2868 = vmatpush1.msra.mxu0 0.0
    %2869 = vmatprep.subr.mxu0 0.0
    %2870 = vmatpush1.msra.mxu0 0.0
    %2871 = vmatprep.subr.mxu0 0.0
    %2872 = vmatpush1.msra.mxu0 0.0
    %2873 = vmatprep.subr.mxu0 0.0
    %2874 = vmatpush1.msra.mxu0 0.0
    %2875 = vmatprep.subr.mxu0 0.0
    %2876 = vmatpush1.msra.mxu0 0.0
    %2877 = vmatprep.subr.mxu0 0.0
    %2878 = vmatpush1.msra.mxu0 0.0
    %2879 = vmatprep.subr.mxu0 0.0
    %2880 = vmatpush1.msra.mxu0 0.0
    %2881 = vmatprep.subr.mxu0 0.0
    %2882 = vmatpush1.msra.mxu0 0.0
    %2883 = vmatprep.subr.mxu0 0.0
    %2884 = vmatpush1.msra.mxu0 0.0
    %2885 = vmatprep.subr.mxu0 0.0
    %2886 = vmatpush1.msra.mxu0 0.0
    %2887 = vmatprep.subr.mxu0 0.0
    %2888 = vmatpush1.msra.mxu0 0.0
    %2889 = vmatprep.subr.mxu0 0.0
    %2890 = vmatpush1.msra.mxu0 0.0
    %2891 = vmatprep.subr.mxu0 0.0
    %2892 = vmatpush1.msra.mxu0 0.0
    %2893 = vmatprep.subr.mxu0 0.0
    %2894 = vmatpush1.msra.mxu0 0.0
    %2895 = vmatprep.subr.mxu0 0.0
    %2896 = vmatpush1.msra.mxu0 0.0
    %2897 = vmatprep.subr.mxu0 0.0
    %2898 = vmatpush1.msra.mxu0 0.0
    %2899 = vmatprep.subr.mxu0 0.0
    %2900 = vmatpush1.msra.mxu0 0.0
    %2901 = vmatprep.subr.mxu0 0.0
    %2902 = vmatpush1.msra.mxu0 0.0
    %2903 = vmatprep.subr.mxu0 0.0
    %2904 = vmatpush1.msra.mxu0 0.0
    %2905 = vmatprep.mubr.f32.mxu0 0.0
    %2906 = vmatmul.mubr.f32.gmra.mrb[0].mxu0 %v2839
    %v2907 = vpop.f32.mrb[0].mxu0
    %v2908 = vadd.f32 %v475, %v2907
    %v2909 = vpop.f32.mrb[0].mxu0
    %2910 = vdwg.mxu0
    %v2911 = vxor.u32 %v2908, 2147483648
    %v2912 = vmul.f32 %v2911, 1.442695
    %v2913 = vpow.pop %v2912
    %v2914 = vadd.f32 %v2913, 1.0
    %v2915 = vrcp.pop %v2914
    %v2916 = vmul.f32 1.0, %v2915
    %v2917 = vmul.f32 %v2916, 0.875
    %v2918 = vadd.f32 %v2917, 0.125
    %2919 = vrot.lane.b32.xlu0 %v2826, 16
    %v2920 = vpop.permute.xlu0 %2919
    %v2922 = vmul.f32 %v2916, %v2920
    %2924 = vrot.lane.b32.xlu0 %v2922, 16
    %v2925 = vpop.permute.xlu0 %2924
    %v2927 = vsel %vm54, %v2824, %v2925
    %v2928 = vld [vmem:[%s563] sm:$0xff]
    %v2929 = vld [vmem:[%s563 + $0x8] sm:$0xff]
    %v2930 = vld [vmem:[%s563 + $0x10] sm:$0xff]
    %v2931 = vld [vmem:[%s563 + $0x18] sm:$0xff]
    %v2932 = vld [vmem:[%s563 + $0x20] sm:$0xff]
    %v2933 = vld [vmem:[%s563 + $0x28] sm:$0xff]
    %v2935 = vsel %vm66, %v2927, 0
    %2937 = vmatprep.subr.mxu0 0.0
    %2938 = vmatpush1.msra.mxu0 %v2928
    %2939 = vmatprep.subr.mxu0 0.0
    %2940 = vmatpush1.msra.mxu0 %v2929
    %2941 = vmatprep.subr.mxu0 0.0
    %2942 = vmatpush1.msra.mxu0 %v2930
    %2943 = vmatprep.subr.mxu0 0.0
    %2944 = vmatpush1.msra.mxu0 %v2931
    %2945 = vmatprep.subr.mxu0 0.0
    %2946 = vmatpush1.msra.mxu0 %v2932
    %2947 = vmatprep.subr.mxu0 0.0
    %2948 = vmatpush1.msra.mxu0 %v2933
    %2949 = vmatprep.subr.mxu0 0.0
    %2950 = vmatpush1.msra.mxu0 0.0
    %2951 = vmatprep.subr.mxu0 0.0
    %2952 = vmatpush1.msra.mxu0 0.0
    %2953 = vmatprep.subr.mxu0 0.0
    %2954 = vmatpush1.msra.mxu0 0.0
    %2955 = vmatprep.subr.mxu0 0.0
    %2956 = vmatpush1.msra.mxu0 0.0
    %2957 = vmatprep.subr.mxu0 0.0
    %2958 = vmatpush1.msra.mxu0 0.0
    %2959 = vmatprep.subr.mxu0 0.0
    %2960 = vmatpush1.msra.mxu0 0.0
    %2961 = vmatprep.subr.mxu0 0.0
    %2962 = vmatpush1.msra.mxu0 0.0
    %2963 = vmatprep.subr.mxu0 0.0
    %2964 = vmatpush1.msra.mxu0 0.0
    %2965 = vmatprep.subr.mxu0 0.0
    %2966 = vmatpush1.msra.mxu0 0.0
    %2967 = vmatprep.subr.mxu0 0.0
    %2968 = vmatpush1.msra.mxu0 0.0
    %2969 = vmatprep.subr.mxu0 0.0
    %2970 = vmatpush1.msra.mxu0 0.0
    %2971 = vmatprep.subr.mxu0 0.0
    %2972 = vmatpush1.msra.mxu0 0.0
    %2973 = vmatprep.subr.mxu0 0.0
    %2974 = vmatpush1.msra.mxu0 0.0
    %2975 = vmatprep.subr.mxu0 0.0
    %2976 = vmatpush1.msra.mxu0 0.0
    %2977 = vmatprep.subr.mxu0 0.0
    %2978 = vmatpush1.msra.mxu0 0.0
    %2979 = vmatprep.subr.mxu0 0.0
    %2980 = vmatpush1.msra.mxu0 0.0
    %2981 = vmatprep.subr.mxu0 0.0
    %2982 = vmatpush1.msra.mxu0 0.0
    %2983 = vmatprep.subr.mxu0 0.0
    %2984 = vmatpush1.msra.mxu0 0.0
    %2985 = vmatprep.subr.mxu0 0.0
    %2986 = vmatpush1.msra.mxu0 0.0
    %2987 = vmatprep.subr.mxu0 0.0
    %2988 = vmatpush1.msra.mxu0 0.0
    %2989 = vmatprep.subr.mxu0 0.0
    %2990 = vmatpush1.msra.mxu0 0.0
    %2991 = vmatprep.subr.mxu0 0.0
    %2992 = vmatpush1.msra.mxu0 0.0
    %2993 = vmatprep.subr.mxu0 0.0
    %2994 = vmatpush1.msra.mxu0 0.0
    %2995 = vmatprep.subr.mxu0 0.0
    %2996 = vmatpush1.msra.mxu0 0.0
    %2997 = vmatprep.subr.mxu0 0.0
    %2998 = vmatpush1.msra.mxu0 0.0
    %2999 = vmatprep.subr.mxu0 0.0
    %3000 = vmatpush1.msra.mxu0 0.0
    %3001 = vmatprep.mubr.f32.mxu0 0.0
    %3002 = vmatmul.mubr.f32.gmra.mrb[0].mxu0 %v2935
    %v3003 = vpop.f32.mrb[0].mxu0
    %v3004 = vadd.f32 %v573, %v3003
    %v3005 = vpop.f32.mrb[0].mxu0
    %3006 = vdwg.mxu0
    %v3007 = vtanh.pop %v3004
    %v3008 = vmul.f32 %v2918, %v2235
    %v3009 = vfloor.f32 %v3008
    %v3010 = vcvt.f32.s32.to.zero.pseudo %v3009
    %v3011 = vsub.f32 1.0, %v2918
    %v3012 = vmul.f32 %v3011, %v3007
    %v3013 = vmul.f32 %v3012, 8388608.0
    %v3014 = vfloor.f32 %v3013
    %v3015 = vcvt.f32.s32.to.zero.pseudo %v3014
    %v3016 = vadd.s32 %v3010, %v3015
    %v3017 = vcvt.s32.f32 %v3016
    %v3018 = vmul.f32 %v3017, 1.1920929e-07
    %3020 = vrot.lane.b32.xlu0 %v3018, 32
    %v3021 = vpop.permute.xlu0 %3020
    %v3023 = vsel %vm54, %v2824, %v3021
    %v3024 = vld [vmem:[%s664] sm:$0xff]
    %v3025 = vld [vmem:[%s664 + $0x8] sm:$0xff]
    %v3026 = vld [vmem:[%s664 + $0x10] sm:$0xff]
    %v3027 = vld [vmem:[%s664 + $0x18] sm:$0xff]
    %v3028 = vld [vmem:[%s664 + $0x20] sm:$0xff]
    %v3029 = vld [vmem:[%s664 + $0x28] sm:$0xff]
    %v3031 = vsel %vm66, %v3023, 0
    %3033 = vmatprep.subr.mxu0 0.0
    %3034 = vmatpush1.msra.mxu0 %v3024
    %3035 = vmatprep.subr.mxu0 0.0
    %3036 = vmatpush1.msra.mxu0 %v3025
    %3037 = vmatprep.subr.mxu0 0.0
    %3038 = vmatpush1.msra.mxu0 %v3026
    %3039 = vmatprep.subr.mxu0 0.0
    %3040 = vmatpush1.msra.mxu0 %v3027
    %3041 = vmatprep.subr.mxu0 0.0
    %3042 = vmatpush1.msra.mxu0 %v3028
    %3043 = vmatprep.subr.mxu0 0.0
    %3044 = vmatpush1.msra.mxu0 %v3029
    %3045 = vmatprep.subr.mxu0 0.0
    %3046 = vmatpush1.msra.mxu0 0.0
    %3047 = vmatprep.subr.mxu0 0.0
    %3048 = vmatpush1.msra.mxu0 0.0
    %3049 = vmatprep.subr.mxu0 0.0
    %3050 = vmatpush1.msra.mxu0 0.0
    %3051 = vmatprep.subr.mxu0 0.0
    %3052 = vmatpush1.msra.mxu0 0.0
    %3053 = vmatprep.subr.mxu0 0.0
    %3054 = vmatpush1.msra.mxu0 0.0
    %3055 = vmatprep.subr.mxu0 0.0
    %3056 = vmatpush1.msra.mxu0 0.0
    %3057 = vmatprep.subr.mxu0 0.0
    %3058 = vmatpush1.msra.mxu0 0.0
    %3059 = vmatprep.subr.mxu0 0.0
    %3060 = vmatpush1.msra.mxu0 0.0
    %3061 = vmatprep.subr.mxu0 0.0
    %3062 = vmatpush1.msra.mxu0 0.0
    %3063 = vmatprep.subr.mxu0 0.0
    %3064 = vmatpush1.msra.mxu0 0.0
    %3065 = vmatprep.subr.mxu0 0.0
    %3066 = vmatpush1.msra.mxu0 0.0
    %3067 = vmatprep.subr.mxu0 0.0
    %3068 = vmatpush1.msra.mxu0 0.0
    %3069 = vmatprep.subr.mxu0 0.0
    %3070 = vmatpush1.msra.mxu0 0.0
    %3071 = vmatprep.subr.mxu0 0.0
    %3072 = vmatpush1.msra.mxu0 0.0
    %3073 = vmatprep.subr.mxu0 0.0
    %3074 = vmatpush1.msra.mxu0 0.0
    %3075 = vmatprep.subr.mxu0 0.0
    %3076 = vmatpush1.msra.mxu0 0.0
    %3077 = vmatprep.subr.mxu0 0.0
    %3078 = vmatpush1.msra.mxu0 0.0
    %3079 = vmatprep.subr.mxu0 0.0
    %3080 = vmatpush1.msra.mxu0 0.0
    %3081 = vmatprep.subr.mxu0 0.0
    %3082 = vmatpush1.msra.mxu0 0.0
    %3083 = vmatprep.subr.mxu0 0.0
    %3084 = vmatpush1.msra.mxu0 0.0
    %3085 = vmatprep.subr.mxu0 0.0
    %3086 = vmatpush1.msra.mxu0 0.0
    %3087 = vmatprep.subr.mxu0 0.0
    %3088 = vmatpush1.msra.mxu0 0.0
    %3089 = vmatprep.subr.mxu0 0.0
    %3090 = vmatpush1.msra.mxu0 0.0
    %3091 = vmatprep.subr.mxu0 0.0
    %3092 = vmatpush1.msra.mxu0 0.0
    %3093 = vmatprep.subr.mxu0 0.0
    %3094 = vmatpush1.msra.mxu0 0.0
    %3095 = vmatprep.subr.mxu0 0.0
    %3096 = vmatpush1.msra.mxu0 0.0
    %3097 = vmatprep.mubr.f32.mxu0 0.0
    %3098 = vmatmul.mubr.f32.gmra.mrb[0].mxu0 %v3031
    %v3099 = vpop.f32.mrb[0].mxu0
    %v3100 = vadd.f32 %v674, %v3099
    %v3101 = vpop.f32.mrb[0].mxu0
    %3102 = vdwg.mxu0
    %v3103 = vxor.u32 %v3100, 2147483648
    %v3104 = vmul.f32 %v3103, 1.442695
    %v3105 = vpow.pop %v3104
    %v3106 = vadd.f32 %v3105, 1.0
    %v3107 = vrcp.pop %v3106
    %v3108 = vmul.f32 1.0, %v3107
    %v3109 = vmul.f32 %v3108, 0.875
    %v3110 = vadd.f32 %v3109, 0.125
    %3111 = vrot.lane.b32.xlu0 %v3018, 16
    %v3112 = vpop.permute.xlu0 %3111
    %v3114 = vmul.f32 %v3108, %v3112
    %3116 = vrot.lane.b32.xlu0 %v3114, 16
    %v3117 = vpop.permute.xlu0 %3116
    %v3119 = vsel %vm54, %v2824, %v3117
    %v3120 = vld [vmem:[%s765] sm:$0xff]
    %v3121 = vld [vmem:[%s765 + $0x8] sm:$0xff]
    %v3122 = vld [vmem:[%s765 + $0x10] sm:$0xff]
    %v3123 = vld [vmem:[%s765 + $0x18] sm:$0xff]
    %v3124 = vld [vmem:[%s765 + $0x20] sm:$0xff]
    %v3125 = vld [vmem:[%s765 + $0x28] sm:$0xff]
    %v3127 = vsel %vm66, %v3119, 0
    %3129 = vmatprep.subr.mxu0 0.0
    %3130 = vmatpush1.msra.mxu0 %v3120
    %3131 = vmatprep.subr.mxu0 0.0
    %3132 = vmatpush1.msra.mxu0 %v3121
    %3133 = vmatprep.subr.mxu0 0.0
    %3134 = vmatpush1.msra.mxu0 %v3122
    %3135 = vmatprep.subr.mxu0 0.0
    %3136 = vmatpush1.msra.mxu0 %v3123
    %3137 = vmatprep.subr.mxu0 0.0
    %3138 = vmatpush1.msra.mxu0 %v3124
    %3139 = vmatprep.subr.mxu0 0.0
    %3140 = vmatpush1.msra.mxu0 %v3125
    %3141 = vmatprep.subr.mxu0 0.0
    %3142 = vmatpush1.msra.mxu0 0.0
    %3143 = vmatprep.subr.mxu0 0.0
    %3144 = vmatpush1.msra.mxu0 0.0
    %3145 = vmatprep.subr.mxu0 0.0
    %3146 = vmatpush1.msra.mxu0 0.0
    %3147 = vmatprep.subr.mxu0 0.0
    %3148 = vmatpush1.msra.mxu0 0.0
    %3149 = vmatprep.subr.mxu0 0.0
    %3150 = vmatpush1.msra.mxu0 0.0
    %3151 = vmatprep.subr.mxu0 0.0
    %3152 = vmatpush1.msra.mxu0 0.0
    %3153 = vmatprep.subr.mxu0 0.0
    %3154 = vmatpush1.msra.mxu0 0.0
    %3155 = vmatprep.subr.mxu0 0.0
    %3156 = vmatpush1.msra.mxu0 0.0
    %3157 = vmatprep.subr.mxu0 0.0
    %3158 = vmatpush1.msra.mxu0 0.0
    %3159 = vmatprep.subr.mxu0 0.0
    %3160 = vmatpush1.msra.mxu0 0.0
    %3161 = vmatprep.subr.mxu0 0.0
    %3162 = vmatpush1.msra.mxu0 0.0
    %3163 = vmatprep.subr.mxu0 0.0
    %3164 = vmatpush1.msra.mxu0 0.0
    %3165 = vmatprep.subr.mxu0 0.0
    %3166 = vmatpush1.msra.mxu0 0.0
    %3167 = vmatprep.subr.mxu0 0.0
    %3168 = vmatpush1.msra.mxu0 0.0
    %3169 = vmatprep.subr.mxu0 0.0
    %3170 = vmatpush1.msra.mxu0 0.0
    %3171 = vmatprep.subr.mxu0 0.0
    %3172 = vmatpush1.msra.mxu0 0.0
    %3173 = vmatprep.subr.mxu0 0.0
    %3174 = vmatpush1.msra.mxu0 0.0
    %3175 = vmatprep.subr.mxu0 0.0
    %3176 = vmatpush1.msra.mxu0 0.0
    %3177 = vmatprep.subr.mxu0 0.0
    %3178 = vmatpush1.msra.mxu0 0.0
    %3179 = vmatprep.subr.mxu0 0.0
    %3180 = vmatpush1.msra.mxu0 0.0
    %3181 = vmatprep.subr.mxu0 0.0
    %3182 = vmatpush1.msra.mxu0 0.0
    %3183 = vmatprep.subr.mxu0 0.0
    %3184 = vmatpush1.msra.mxu0 0.0
    %3185 = vmatprep.subr.mxu0 0.0
    %3186 = vmatpush1.msra.mxu0 0.0
    %3187 = vmatprep.subr.mxu0 0.0
    %3188 = vmatpush1.msra.mxu0 0.0
    %3189 = vmatprep.subr.mxu0 0.0
    %3190 = vmatpush1.msra.mxu0 0.0
    %3191 = vmatprep.subr.mxu0 0.0
    %3192 = vmatpush1.msra.mxu0 0.0
    %3193 = vmatprep.mubr.f32.mxu0 0.0
    %3194 = vmatmul.mubr.f32.gmra.mrb[0].mxu0 %v3127
    %v3195 = vpop.f32.mrb[0].mxu0
    %v3196 = vadd.f32 %v775, %v3195
    %v3197 = vpop.f32.mrb[0].mxu0
    %3198 = vdwg.mxu0
    %v3199 = vtanh.pop %v3196
    %v3200 = vmul.f32 %v3110, %v2825
    %v3201 = vfloor.f32 %v3200
    %v3202 = vcvt.f32.s32.to.zero.pseudo %v3201
    %v3203 = vsub.f32 1.0, %v3110
    %v3204 = vmul.f32 %v3203, %v3199
    %v3205 = vmul.f32 %v3204, 8388608.0
    %v3206 = vfloor.f32 %v3205
    %v3207 = vcvt.f32.s32.to.zero.pseudo %v3206
    %v3208 = vadd.s32 %v3202, %v3207
    %3209 = vrot.lane.b32.xlu0 %v3208, 16
    %v3210 = vpop.permute.xlu0 %3209
    %v3211 = vsel %vm453, %v3016, %v3210
    %s3212 = scalar_lea.vmem [#allocation2], 56
    %3213 = vst.msk [vmem:[%s3212] sm:$0xff] %vm54, %v3211
    %s3214 = scalar_lea.vmem %s0, 32
    %v3215 = vld [vmem:[%s3214] sm:$0xff]
    %v3216 = vcvt.s32.f32 %v2817
    %v3217 = vmul.f32 %v3216, 1.1920929e-07
    %3219 = vrot.lane.b32.xlu0 %v3217, 32
    %v3220 = vpop.permute.xlu0 %3219
    %v3222 = vsel %vm54, %v3215, %v3220
    %v3223 = vld [vmem:[%s2] sm:$0xff]
    %v3224 = vld [vmem:[%s2 + $0x8] sm:$0xff]
    %v3225 = vld [vmem:[%s2 + $0x10] sm:$0xff]
    %v3226 = vld [vmem:[%s2 + $0x18] sm:$0xff]
    %v3227 = vld [vmem:[%s2 + $0x20] sm:$0xff]
    %v3228 = vld [vmem:[%s2 + $0x28] sm:$0xff]
    %v3230 = vsel %vm66, %v3222, 0
    %3232 = vmatprep.subr.mxu0 0.0
    %3233 = vmatpush1.msra.mxu0 %v3223
    %3234 = vmatprep.subr.mxu0 0.0
    %3235 = vmatpush1.msra.mxu0 %v3224
    %3236 = vmatprep.subr.mxu0 0.0
    %3237 = vmatpush1.msra.mxu0 %v3225
    %3238 = vmatprep.subr.mxu0 0.0
    %3239 = vmatpush1.msra.mxu0 %v3226
    %3240 = vmatprep.subr.mxu0 0.0
    %3241 = vmatpush1.msra.mxu0 %v3227
    %3242 = vmatprep.subr.mxu0 0.0
    %3243 = vmatpush1.msra.mxu0 %v3228
    %3244 = vmatprep.subr.mxu0 0.0
    %3245 = vmatpush1.msra.mxu0 0.0
    %3246 = vmatprep.subr.mxu0 0.0
    %3247 = vmatpush1.msra.mxu0 0.0
    %3248 = vmatprep.subr.mxu0 0.0
    %3249 = vmatpush1.msra.mxu0 0.0
    %3250 = vmatprep.subr.mxu0 0.0
    %3251 = vmatpush1.msra.mxu0 0.0
    %3252 = vmatprep.subr.mxu0 0.0
    %3253 = vmatpush1.msra.mxu0 0.0
    %3254 = vmatprep.subr.mxu0 0.0
    %3255 = vmatpush1.msra.mxu0 0.0
    %3256 = vmatprep.subr.mxu0 0.0
    %3257 = vmatpush1.msra.mxu0 0.0
    %3258 = vmatprep.subr.mxu0 0.0
    %3259 = vmatpush1.msra.mxu0 0.0
    %3260 = vmatprep.subr.mxu0 0.0
    %3261 = vmatpush1.msra.mxu0 0.0
    %3262 = vmatprep.subr.mxu0 0.0
    %3263 = vmatpush1.msra.mxu0 0.0
    %3264 = vmatprep.subr.mxu0 0.0
    %3265 = vmatpush1.msra.mxu0 0.0
    %3266 = vmatprep.subr.mxu0 0.0
    %3267 = vmatpush1.msra.mxu0 0.0
    %3268 = vmatprep.subr.mxu0 0.0
    %3269 = vmatpush1.msra.mxu0 0.0
    %3270 = vmatprep.subr.mxu0 0.0
    %3271 = vmatpush1.msra.mxu0 0.0
    %3272 = vmatprep.subr.mxu0 0.0
    %3273 = vmatpush1.msra.mxu0 0.0
    %3274 = vmatprep.subr.mxu0 0.0
    %3275 = vmatpush1.msra.mxu0 0.0
    %3276 = vmatprep.subr.mxu0 0.0
    %3277 = vmatpush1.msra.mxu0 0.0
    %3278 = vmatprep.subr.mxu0 0.0
    %3279 = vmatpush1.msra.mxu0 0.0
    %3280 = vmatprep.subr.mxu0 0.0
    %3281 = vmatpush1.msra.mxu0 0.0
    %3282 = vmatprep.subr.mxu0 0.0
    %3283 = vmatpush1.msra.mxu0 0.0
    %3284 = vmatprep.subr.mxu0 0.0
    %3285 = vmatpush1.msra.mxu0 0.0
    %3286 = vmatprep.subr.mxu0 0.0
    %3287 = vmatpush1.msra.mxu0 0.0
    %3288 = vmatprep.subr.mxu0 0.0
    %3289 = vmatpush1.msra.mxu0 0.0
    %3290 = vmatprep.subr.mxu0 0.0
    %3291 = vmatpush1.msra.mxu0 0.0
    %3292 = vmatprep.subr.mxu0 0.0
    %3293 = vmatpush1.msra.mxu0 0.0
    %3294 = vmatprep.subr.mxu0 0.0
    %3295 = vmatpush1.msra.mxu0 0.0
    %3296 = vmatprep.mubr.f32.mxu0 0.0
    %3297 = vmatmul.mubr.f32.gmra.mrb[0].mxu0 %v3230
    %v3298 = vpop.f32.mrb[0].mxu0
    %v3299 = vadd.f32 %v65, %v3298
    %v3300 = vpop.f32.mrb[0].mxu0
    %3301 = vdwg.mxu0
    %v3302 = vxor.u32 %v3299, 2147483648
    %v3303 = vmul.f32 %v3302, 1.442695
    %v3304 = vpow.pop %v3303
    %v3305 = vadd.f32 %v3304, 1.0
    %v3306 = vrcp.pop %v3305
    %v3307 = vmul.f32 1.0, %v3306
    %v3308 = vmul.f32 %v3307, 0.875
    %v3309 = vadd.f32 %v3308, 0.125
    %3310 = vrot.lane.b32.xlu0 %v3217, 16
    %v3311 = vpop.permute.xlu0 %3310
    %v3313 = vmul.f32 %v3307, %v3311
    %3315 = vrot.lane.b32.xlu0 %v3313, 16
    %v3316 = vpop.permute.xlu0 %3315
    %v3318 = vsel %vm54, %v3215, %v3316
    %v3319 = vld [vmem:[%s4] sm:$0xff]
    %v3320 = vld [vmem:[%s4 + $0x8] sm:$0xff]
    %v3321 = vld [vmem:[%s4 + $0x10] sm:$0xff]
    %v3322 = vld [vmem:[%s4 + $0x18] sm:$0xff]
    %v3323 = vld [vmem:[%s4 + $0x20] sm:$0xff]
    %v3324 = vld [vmem:[%s4 + $0x28] sm:$0xff]
    %v3326 = vsel %vm66, %v3318, 0
    %3328 = vmatprep.subr.mxu0 0.0
    %3329 = vmatpush1.msra.mxu0 %v3319
    %3330 = vmatprep.subr.mxu0 0.0
    %3331 = vmatpush1.msra.mxu0 %v3320
    %3332 = vmatprep.subr.mxu0 0.0
    %3333 = vmatpush1.msra.mxu0 %v3321
    %3334 = vmatprep.subr.mxu0 0.0
    %3335 = vmatpush1.msra.mxu0 %v3322
    %3336 = vmatprep.subr.mxu0 0.0
    %3337 = vmatpush1.msra.mxu0 %v3323
    %3338 = vmatprep.subr.mxu0 0.0
    %3339 = vmatpush1.msra.mxu0 %v3324
    %3340 = vmatprep.subr.mxu0 0.0
    %3341 = vmatpush1.msra.mxu0 0.0
    %3342 = vmatprep.subr.mxu0 0.0
    %3343 = vmatpush1.msra.mxu0 0.0
    %3344 = vmatprep.subr.mxu0 0.0
    %3345 = vmatpush1.msra.mxu0 0.0
    %3346 = vmatprep.subr.mxu0 0.0
    %3347 = vmatpush1.msra.mxu0 0.0
    %3348 = vmatprep.subr.mxu0 0.0
    %3349 = vmatpush1.msra.mxu0 0.0
    %3350 = vmatprep.subr.mxu0 0.0
    %3351 = vmatpush1.msra.mxu0 0.0
    %3352 = vmatprep.subr.mxu0 0.0
    %3353 = vmatpush1.msra.mxu0 0.0
    %3354 = vmatprep.subr.mxu0 0.0
    %3355 = vmatpush1.msra.mxu0 0.0
    %3356 = vmatprep.subr.mxu0 0.0
    %3357 = vmatpush1.msra.mxu0 0.0
    %3358 = vmatprep.subr.mxu0 0.0
    %3359 = vmatpush1.msra.mxu0 0.0
    %3360 = vmatprep.subr.mxu0 0.0
    %3361 = vmatpush1.msra.mxu0 0.0
    %3362 = vmatprep.subr.mxu0 0.0
    %3363 = vmatpush1.msra.mxu0 0.0
    %3364 = vmatprep.subr.mxu0 0.0
    %3365 = vmatpush1.msra.mxu0 0.0
    %3366 = vmatprep.subr.mxu0 0.0
    %3367 = vmatpush1.msra.mxu0 0.0
    %3368 = vmatprep.subr.mxu0 0.0
    %3369 = vmatpush1.msra.mxu0 0.0
    %3370 = vmatprep.subr.mxu0 0.0
    %3371 = vmatpush1.msra.mxu0 0.0
    %3372 = vmatprep.subr.mxu0 0.0
    %3373 = vmatpush1.msra.mxu0 0.0
    %3374 = vmatprep.subr.mxu0 0.0
    %3375 = vmatpush1.msra.mxu0 0.0
    %3376 = vmatprep.subr.mxu0 0.0
    %3377 = vmatpush1.msra.mxu0 0.0
    %3378 = vmatprep.subr.mxu0 0.0
    %3379 = vmatpush1.msra.mxu0 0.0
    %3380 = vmatprep.subr.mxu0 0.0
    %3381 = vmatpush1.msra.mxu0 0.0
    %3382 = vmatprep.subr.mxu0 0.0
    %3383 = vmatpush1.msra.mxu0 0.0
    %3384 = vmatprep.subr.mxu0 0.0
    %3385 = vmatpush1.msra.mxu0 0.0
    %3386 = vmatprep.subr.mxu0 0.0
    %3387 = vmatpush1.msra.mxu0 0.0
    %3388 = vmatprep.subr.mxu0 0.0
    %3389 = vmatpush1.msra.mxu0 0.0
    %3390 = vmatprep.subr.mxu0 0.0
    %3391 = vmatpush1.msra.mxu0 0.0
    %3392 = vmatprep.mubr.f32.mxu0 0.0
    %3393 = vmatmul.mubr.f32.gmra.mrb[0].mxu0 %v3326
    %v3394 = vpop.f32.mrb[0].mxu0
    %v3395 = vadd.f32 %v163, %v3394
    %v3396 = vpop.f32.mrb[0].mxu0
    %3397 = vdwg.mxu0
    %v3398 = vtanh.pop %v3395
    %v3399 = vmul.f32 %v3309, %v2626
    %v3400 = vfloor.f32 %v3399
    %v3401 = vcvt.f32.s32.to.zero.pseudo %v3400
    %v3402 = vsub.f32 1.0, %v3309
    %v3403 = vmul.f32 %v3402, %v3398
    %v3404 = vmul.f32 %v3403, 8388608.0
    %v3405 = vfloor.f32 %v3404
    %v3406 = vcvt.f32.s32.to.zero.pseudo %v3405
    %v3407 = vadd.s32 %v3401, %v3406
    %v3408 = vcvt.s32.f32 %v3407
    %v3409 = vmul.f32 %v3408, 1.1920929e-07
    %3411 = vrot.lane.b32.xlu0 %v3409, 32
    %v3412 = vpop.permute.xlu0 %3411
    %v3414 = vsel %vm54, %v3215, %v3412
    %v3415 = vld [vmem:[%s6] sm:$0xff]
    %v3416 = vld [vmem:[%s6 + $0x8] sm:$0xff]
    %v3417 = vld [vmem:[%s6 + $0x10] sm:$0xff]
    %v3418 = vld [vmem:[%s6 + $0x18] sm:$0xff]
    %v3419 = vld [vmem:[%s6 + $0x20] sm:$0xff]
    %v3420 = vld [vmem:[%s6 + $0x28] sm:$0xff]
    %v3422 = vsel %vm66, %v3414, 0
    %3424 = vmatprep.subr.mxu0 0.0
    %3425 = vmatpush1.msra.mxu0 %v3415
    %3426 = vmatprep.subr.mxu0 0.0
    %3427 = vmatpush1.msra.mxu0 %v3416
    %3428 = vmatprep.subr.mxu0 0.0
    %3429 = vmatpush1.msra.mxu0 %v3417
    %3430 = vmatprep.subr.mxu0 0.0
    %3431 = vmatpush1.msra.mxu0 %v3418
    %3432 = vmatprep.subr.mxu0 0.0
    %3433 = vmatpush1.msra.mxu0 %v3419
    %3434 = vmatprep.subr.mxu0 0.0
    %3435 = vmatpush1.msra.mxu0 %v3420
    %3436 = vmatprep.subr.mxu0 0.0
    %3437 = vmatpush1.msra.mxu0 0.0
    %3438 = vmatprep.subr.mxu0 0.0
    %3439 = vmatpush1.msra.mxu0 0.0
    %3440 = vmatprep.subr.mxu0 0.0
    %3441 = vmatpush1.msra.mxu0 0.0
    %3442 = vmatprep.subr.mxu0 0.0
    %3443 = vmatpush1.msra.mxu0 0.0
    %3444 = vmatprep.subr.mxu0 0.0
    %3445 = vmatpush1.msra.mxu0 0.0
    %3446 = vmatprep.subr.mxu0 0.0
    %3447 = vmatpush1.msra.mxu0 0.0
    %3448 = vmatprep.subr.mxu0 0.0
    %3449 = vmatpush1.msra.mxu0 0.0
    %3450 = vmatprep.subr.mxu0 0.0
    %3451 = vmatpush1.msra.mxu0 0.0
    %3452 = vmatprep.subr.mxu0 0.0
    %3453 = vmatpush1.msra.mxu0 0.0
    %3454 = vmatprep.subr.mxu0 0.0
    %3455 = vmatpush1.msra.mxu0 0.0
    %3456 = vmatprep.subr.mxu0 0.0
    %3457 = vmatpush1.msra.mxu0 0.0
    %3458 = vmatprep.subr.mxu0 0.0
    %3459 = vmatpush1.msra.mxu0 0.0
    %3460 = vmatprep.subr.mxu0 0.0
    %3461 = vmatpush1.msra.mxu0 0.0
    %3462 = vmatprep.subr.mxu0 0.0
    %3463 = vmatpush1.msra.mxu0 0.0
    %3464 = vmatprep.subr.mxu0 0.0
    %3465 = vmatpush1.msra.mxu0 0.0
    %3466 = vmatprep.subr.mxu0 0.0
    %3467 = vmatpush1.msra.mxu0 0.0
    %3468 = vmatprep.subr.mxu0 0.0
    %3469 = vmatpush1.msra.mxu0 0.0
    %3470 = vmatprep.subr.mxu0 0.0
    %3471 = vmatpush1.msra.mxu0 0.0
    %3472 = vmatprep.subr.mxu0 0.0
    %3473 = vmatpush1.msra.mxu0 0.0
    %3474 = vmatprep.subr.mxu0 0.0
    %3475 = vmatpush1.msra.mxu0 0.0
    %3476 = vmatprep.subr.mxu0 0.0
    %3477 = vmatpush1.msra.mxu0 0.0
    %3478 = vmatprep.subr.mxu0 0.0
    %3479 = vmatpush1.msra.mxu0 0.0
    %3480 = vmatprep.subr.mxu0 0.0
    %3481 = vmatpush1.msra.mxu0 0.0
    %3482 = vmatprep.subr.mxu0 0.0
    %3483 = vmatpush1.msra.mxu0 0.0
    %3484 = vmatprep.subr.mxu0 0.0
    %3485 = vmatpush1.msra.mxu0 0.0
    %3486 = vmatprep.subr.mxu0 0.0
    %3487 = vmatpush1.msra.mxu0 0.0
    %3488 = vmatprep.mubr.f32.mxu0 0.0
    %3489 = vmatmul.mubr.f32.gmra.mrb[0].mxu0 %v3422
    %v3490 = vpop.f32.mrb[0].mxu0
    %v3491 = vadd.f32 %v263, %v3490
    %v3492 = vpop.f32.mrb[0].mxu0
    %3493 = vdwg.mxu0
    %v3494 = vxor.u32 %v3491, 2147483648
    %v3495 = vmul.f32 %v3494, 1.442695
    %v3496 = vpow.pop %v3495
    %v3497 = vadd.f32 %v3496, 1.0
    %v3498 = vrcp.pop %v3497
    %v3499 = vmul.f32 1.0, %v3498
    %v3500 = vmul.f32 %v3499, 0.875
    %v3501 = vadd.f32 %v3500, 0.125
    %3502 = vrot.lane.b32.xlu0 %v3409, 16
    %v3503 = vpop.permute.xlu0 %3502
    %v3505 = vmul.f32 %v3499, %v3503
    %3507 = vrot.lane.b32.xlu0 %v3505, 16
    %v3508 = vpop.permute.xlu0 %3507
    %v3510 = vsel %vm54, %v3215, %v3508
    %v3511 = vld [vmem:[%s8] sm:$0xff]
    %v3512 = vld [vmem:[%s8 + $0x8] sm:$0xff]
    %v3513 = vld [vmem:[%s8 + $0x10] sm:$0xff]
    %v3514 = vld [vmem:[%s8 + $0x18] sm:$0xff]
    %v3515 = vld [vmem:[%s8 + $0x20] sm:$0xff]
    %v3516 = vld [vmem:[%s8 + $0x28] sm:$0xff]
    %v3518 = vsel %vm66, %v3510, 0
    %3520 = vmatprep.subr.mxu0 0.0
    %3521 = vmatpush1.msra.mxu0 %v3511
    %3522 = vmatprep.subr.mxu0 0.0
    %3523 = vmatpush1.msra.mxu0 %v3512
    %3524 = vmatprep.subr.mxu0 0.0
    %3525 = vmatpush1.msra.mxu0 %v3513
    %3526 = vmatprep.subr.mxu0 0.0
    %3527 = vmatpush1.msra.mxu0 %v3514
    %3528 = vmatprep.subr.mxu0 0.0
    %3529 = vmatpush1.msra.mxu0 %v3515
    %3530 = vmatprep.subr.mxu0 0.0
    %3531 = vmatpush1.msra.mxu0 %v3516
    %3532 = vmatprep.subr.mxu0 0.0
    %3533 = vmatpush1.msra.mxu0 0.0
    %3534 = vmatprep.subr.mxu0 0.0
    %3535 = vmatpush1.msra.mxu0 0.0
    %3536 = vmatprep.subr.mxu0 0.0
    %3537 = vmatpush1.msra.mxu0 0.0
    %3538 = vmatprep.subr.mxu0 0.0
    %3539 = vmatpush1.msra.mxu0 0.0
    %3540 = vmatprep.subr.mxu0 0.0
    %3541 = vmatpush1.msra.mxu0 0.0
    %3542 = vmatprep.subr.mxu0 0.0
    %3543 = vmatpush1.msra.mxu0 0.0
    %3544 = vmatprep.subr.mxu0 0.0
    %3545 = vmatpush1.msra.mxu0 0.0
    %3546 = vmatprep.subr.mxu0 0.0
    %3547 = vmatpush1.msra.mxu0 0.0
    %3548 = vmatprep.subr.mxu0 0.0
    %3549 = vmatpush1.msra.mxu0 0.0
    %3550 = vmatprep.subr.mxu0 0.0
    %3551 = vmatpush1.msra.mxu0 0.0
    %3552 = vmatprep.subr.mxu0 0.0
    %3553 = vmatpush1.msra.mxu0 0.0
    %3554 = vmatprep.subr.mxu0 0.0
    %3555 = vmatpush1.msra.mxu0 0.0
    %3556 = vmatprep.subr.mxu0 0.0
    %3557 = vmatpush1.msra.mxu0 0.0
    %3558 = vmatprep.subr.mxu0 0.0
    %3559 = vmatpush1.msra.mxu0 0.0
    %3560 = vmatprep.subr.mxu0 0.0
    %3561 = vmatpush1.msra.mxu0 0.0
    %3562 = vmatprep.subr.mxu0 0.0
    %3563 = vmatpush1.msra.mxu0 0.0
    %3564 = vmatprep.subr.mxu0 0.0
    %3565 = vmatpush1.msra.mxu0 0.0
    %3566 = vmatprep.subr.mxu0 0.0
    %3567 = vmatpush1.msra.mxu0 0.0
    %3568 = vmatprep.subr.mxu0 0.0
    %3569 = vmatpush1.msra.mxu0 0.0
    %3570 = vmatprep.subr.mxu0 0.0
    %3571 = vmatpush1.msra.mxu0 0.0
    %3572 = vmatprep.subr.mxu0 0.0
    %3573 = vmatpush1.msra.mxu0 0.0
    %3574 = vmatprep.subr.mxu0 0.0
    %3575 = vmatpush1.msra.mxu0 0.0
    %3576 = vmatprep.subr.mxu0 0.0
    %3577 = vmatpush1.msra.mxu0 0.0
    %3578 = vmatprep.subr.mxu0 0.0
    %3579 = vmatpush1.msra.mxu0 0.0
    %3580 = vmatprep.subr.mxu0 0.0
    %3581 = vmatpush1.msra.mxu0 0.0
    %3582 = vmatprep.subr.mxu0 0.0
    %3583 = vmatpush1.msra.mxu0 0.0
    %3584 = vmatprep.mubr.f32.mxu0 0.0
    %3585 = vmatmul.mubr.f32.gmra.mrb[0].mxu0 %v3518
    %v3586 = vpop.f32.mrb[0].mxu0
    %v3587 = vadd.f32 %v363, %v3586
    %v3588 = vpop.f32.mrb[0].mxu0
    %3589 = vdwg.mxu0
    %v3590 = vtanh.pop %v3587
    %v3591 = vmul.f32 %v3501, %v3216
    %v3592 = vfloor.f32 %v3591
    %v3593 = vcvt.f32.s32.to.zero.pseudo %v3592
    %v3594 = vsub.f32 1.0, %v3501
    %v3595 = vmul.f32 %v3594, %v3590
    %v3596 = vmul.f32 %v3595, 8388608.0
    %v3597 = vfloor.f32 %v3596
    %v3598 = vcvt.f32.s32.to.zero.pseudo %v3597
    %v3599 = vadd.s32 %v3593, %v3598
    %3600 = vrot.lane.b32.xlu0 %v3599, 16
    %v3601 = vpop.permute.xlu0 %3600
    %v3602 = vsel %vm453, %v3407, %v3601
    %s3603 = scalar_lea.vmem [#allocation2], 64
    %3604 = vst.msk [vmem:[%s3603] sm:$0xff] %vm54, %v3602
    %v3605 = vcvt.s32.f32 %v3602
    %v3606 = vmul.f32 %v3605, 1.1920929e-07
    %v3607 = vcvt.s32.f32 %v3208
    %v3608 = vmul.f32 %v3607, 1.1920929e-07
    %3610 = vrot.lane.b32.xlu0 %v3608, 32
    %v3611 = vpop.permute.xlu0 %3610
    %v3613 = vsel %vm54, %v3606, %v3611
    %v3614 = vld [vmem:[%s465] sm:$0xff]
    %v3615 = vld [vmem:[%s465 + $0x8] sm:$0xff]
    %v3616 = vld [vmem:[%s465 + $0x10] sm:$0xff]
    %v3617 = vld [vmem:[%s465 + $0x18] sm:$0xff]
    %v3618 = vld [vmem:[%s465 + $0x20] sm:$0xff]
    %v3619 = vld [vmem:[%s465 + $0x28] sm:$0xff]
    %v3621 = vsel %vm66, %v3613, 0
    %3623 = vmatprep.subr.mxu0 0.0
    %3624 = vmatpush1.msra.mxu0 %v3614
    %3625 = vmatprep.subr.mxu0 0.0
    %3626 = vmatpush1.msra.mxu0 %v3615
    %3627 = vmatprep.subr.mxu0 0.0
    %3628 = vmatpush1.msra.mxu0 %v3616
    %3629 = vmatprep.subr.mxu0 0.0
    %3630 = vmatpush1.msra.mxu0 %v3617
    %3631 = vmatprep.subr.mxu0 0.0
    %3632 = vmatpush1.msra.mxu0 %v3618
    %3633 = vmatprep.subr.mxu0 0.0
    %3634 = vmatpush1.msra.mxu0 %v3619
    %3635 = vmatprep.subr.mxu0 0.0
    %3636 = vmatpush1.msra.mxu0 0.0
    %3637 = vmatprep.subr.mxu0 0.0
    %3638 = vmatpush1.msra.mxu0 0.0
    %3639 = vmatprep.subr.mxu0 0.0
    %3640 = vmatpush1.msra.mxu0 0.0
    %3641 = vmatprep.subr.mxu0 0.0
    %3642 = vmatpush1.msra.mxu0 0.0
    %3643 = vmatprep.subr.mxu0 0.0
    %3644 = vmatpush1.msra.mxu0 0.0
    %3645 = vmatprep.subr.mxu0 0.0
    %3646 = vmatpush1.msra.mxu0 0.0
    %3647 = vmatprep.subr.mxu0 0.0
    %3648 = vmatpush1.msra.mxu0 0.0
    %3649 = vmatprep.subr.mxu0 0.0
    %3650 = vmatpush1.msra.mxu0 0.0
    %3651 = vmatprep.subr.mxu0 0.0
    %3652 = vmatpush1.msra.mxu0 0.0
    %3653 = vmatprep.subr.mxu0 0.0
    %3654 = vmatpush1.msra.mxu0 0.0
    %3655 = vmatprep.subr.mxu0 0.0
    %3656 = vmatpush1.msra.mxu0 0.0
    %3657 = vmatprep.subr.mxu0 0.0
    %3658 = vmatpush1.msra.mxu0 0.0
    %3659 = vmatprep.subr.mxu0 0.0
    %3660 = vmatpush1.msra.mxu0 0.0
    %3661 = vmatprep.subr.mxu0 0.0
    %3662 = vmatpush1.msra.mxu0 0.0
    %3663 = vmatprep.subr.mxu0 0.0
    %3664 = vmatpush1.msra.mxu0 0.0
    %3665 = vmatprep.subr.mxu0 0.0
    %3666 = vmatpush1.msra.mxu0 0.0
    %3667 = vmatprep.subr.mxu0 0.0
    %3668 = vmatpush1.msra.mxu0 0.0
    %3669 = vmatprep.subr.mxu0 0.0
    %3670 = vmatpush1.msra.mxu0 0.0
    %3671 = vmatprep.subr.mxu0 0.0
    %3672 = vmatpush1.msra.mxu0 0.0
    %3673 = vmatprep.subr.mxu0 0.0
    %3674 = vmatpush1.msra.mxu0 0.0
    %3675 = vmatprep.subr.mxu0 0.0
    %3676 = vmatpush1.msra.mxu0 0.0
    %3677 = vmatprep.subr.mxu0 0.0
    %3678 = vmatpush1.msra.mxu0 0.0
    %3679 = vmatprep.subr.mxu0 0.0
    %3680 = vmatpush1.msra.mxu0 0.0
    %3681 = vmatprep.subr.mxu0 0.0
    %3682 = vmatpush1.msra.mxu0 0.0
    %3683 = vmatprep.subr.mxu0 0.0
    %3684 = vmatpush1.msra.mxu0 0.0
    %3685 = vmatprep.subr.mxu0 0.0
    %3686 = vmatpush1.msra.mxu0 0.0
    %3687 = vmatprep.mubr.f32.mxu0 0.0
    %3688 = vmatmul.mubr.f32.gmra.mrb[0].mxu0 %v3621
    %v3689 = vpop.f32.mrb[0].mxu0
    %v3690 = vadd.f32 %v475, %v3689
    %v3691 = vpop.f32.mrb[0].mxu0
    %3692 = vdwg.mxu0
    %v3693 = vxor.u32 %v3690, 2147483648
    %v3694 = vmul.f32 %v3693, 1.442695
    %v3695 = vpow.pop %v3694
    %v3696 = vadd.f32 %v3695, 1.0
    %v3697 = vrcp.pop %v3696
    %v3698 = vmul.f32 1.0, %v3697
    %v3699 = vmul.f32 %v3698, 0.875
    %v3700 = vadd.f32 %v3699, 0.125
    %3701 = vrot.lane.b32.xlu0 %v3608, 16
    %v3702 = vpop.permute.xlu0 %3701
    %v3704 = vmul.f32 %v3698, %v3702
    %3706 = vrot.lane.b32.xlu0 %v3704, 16
    %v3707 = vpop.permute.xlu0 %3706
    %v3709 = vsel %vm54, %v3606, %v3707
    %v3710 = vld [vmem:[%s563] sm:$0xff]
    %v3711 = vld [vmem:[%s563 + $0x8] sm:$0xff]
    %v3712 = vld [vmem:[%s563 + $0x10] sm:$0xff]
    %v3713 = vld [vmem:[%s563 + $0x18] sm:$0xff]
    %v3714 = vld [vmem:[%s563 + $0x20] sm:$0xff]
    %v3715 = vld [vmem:[%s563 + $0x28] sm:$0xff]
    %v3717 = vsel %vm66, %v3709, 0
    %3719 = vmatprep.subr.mxu0 0.0
    %3720 = vmatpush1.msra.mxu0 %v3710
    %3721 = vmatprep.subr.mxu0 0.0
    %3722 = vmatpush1.msra.mxu0 %v3711
    %3723 = vmatprep.subr.mxu0 0.0
    %3724 = vmatpush1.msra.mxu0 %v3712
    %3725 = vmatprep.subr.mxu0 0.0
    %3726 = vmatpush1.msra.mxu0 %v3713
    %3727 = vmatprep.subr.mxu0 0.0
    %3728 = vmatpush1.msra.mxu0 %v3714
    %3729 = vmatprep.subr.mxu0 0.0
    %3730 = vmatpush1.msra.mxu0 %v3715
    %3731 = vmatprep.subr.mxu0 0.0
    %3732 = vmatpush1.msra.mxu0 0.0
    %3733 = vmatprep.subr.mxu0 0.0
    %3734 = vmatpush1.msra.mxu0 0.0
    %3735 = vmatprep.subr.mxu0 0.0
    %3736 = vmatpush1.msra.mxu0 0.0
    %3737 = vmatprep.subr.mxu0 0.0
    %3738 = vmatpush1.msra.mxu0 0.0
    %3739 = vmatprep.subr.mxu0 0.0
    %3740 = vmatpush1.msra.mxu0 0.0
    %3741 = vmatprep.subr.mxu0 0.0
    %3742 = vmatpush1.msra.mxu0 0.0
    %3743 = vmatprep.subr.mxu0 0.0
    %3744 = vmatpush1.msra.mxu0 0.0
    %3745 = vmatprep.subr.mxu0 0.0
    %3746 = vmatpush1.msra.mxu0 0.0
    %3747 = vmatprep.subr.mxu0 0.0
    %3748 = vmatpush1.msra.mxu0 0.0
    %3749 = vmatprep.subr.mxu0 0.0
    %3750 = vmatpush1.msra.mxu0 0.0
    %3751 = vmatprep.subr.mxu0 0.0
    %3752 = vmatpush1.msra.mxu0 0.0
    %3753 = vmatprep.subr.mxu0 0.0
    %3754 = vmatpush1.msra.mxu0 0.0
    %3755 = vmatprep.subr.mxu0 0.0
    %3756 = vmatpush1.msra.mxu0 0.0
    %3757 = vmatprep.subr.mxu0 0.0
    %3758 = vmatpush1.msra.mxu0 0.0
    %3759 = vmatprep.subr.mxu0 0.0
    %3760 = vmatpush1.msra.mxu0 0.0
    %3761 = vmatprep.subr.mxu0 0.0
    %3762 = vmatpush1.msra.mxu0 0.0
    %3763 = vmatprep.subr.mxu0 0.0
    %3764 = vmatpush1.msra.mxu0 0.0
    %3765 = vmatprep.subr.mxu0 0.0
    %3766 = vmatpush1.msra.mxu0 0.0
    %3767 = vmatprep.subr.mxu0 0.0
    %3768 = vmatpush1.msra.mxu0 0.0
    %3769 = vmatprep.subr.mxu0 0.0
    %3770 = vmatpush1.msra.mxu0 0.0
    %3771 = vmatprep.subr.mxu0 0.0
    %3772 = vmatpush1.msra.mxu0 0.0
    %3773 = vmatprep.subr.mxu0 0.0
    %3774 = vmatpush1.msra.mxu0 0.0
    %3775 = vmatprep.subr.mxu0 0.0
    %3776 = vmatpush1.msra.mxu0 0.0
    %3777 = vmatprep.subr.mxu0 0.0
    %3778 = vmatpush1.msra.mxu0 0.0
    %3779 = vmatprep.subr.mxu0 0.0
    %3780 = vmatpush1.msra.mxu0 0.0
    %3781 = vmatprep.subr.mxu0 0.0
    %3782 = vmatpush1.msra.mxu0 0.0
    %3783 = vmatprep.mubr.f32.mxu0 0.0
    %3784 = vmatmul.mubr.f32.gmra.mrb[0].mxu0 %v3717
    %v3785 = vpop.f32.mrb[0].mxu0
    %v3786 = vadd.f32 %v573, %v3785
    %v3787 = vpop.f32.mrb[0].mxu0
    %3788 = vdwg.mxu0
    %v3789 = vtanh.pop %v3786
    %v3790 = vmul.f32 %v3700, %v3017
    %v3791 = vfloor.f32 %v3790
    %v3792 = vcvt.f32.s32.to.zero.pseudo %v3791
    %v3793 = vsub.f32 1.0, %v3700
    %v3794 = vmul.f32 %v3793, %v3789
    %v3795 = vmul.f32 %v3794, 8388608.0
    %v3796 = vfloor.f32 %v3795
    %v3797 = vcvt.f32.s32.to.zero.pseudo %v3796
    %v3798 = vadd.s32 %v3792, %v3797
    %v3799 = vcvt.s32.f32 %v3798
    %v3800 = vmul.f32 %v3799, 1.1920929e-07
    %3802 = vrot.lane.b32.xlu0 %v3800, 32
    %v3803 = vpop.permute.xlu0 %3802
    %v3805 = vsel %vm54, %v3606, %v3803
    %v3806 = vld [vmem:[%s664] sm:$0xff]
    %v3807 = vld [vmem:[%s664 + $0x8] sm:$0xff]
    %v3808 = vld [vmem:[%s664 + $0x10] sm:$0xff]
    %v3809 = vld [vmem:[%s664 + $0x18] sm:$0xff]
    %v3810 = vld [vmem:[%s664 + $0x20] sm:$0xff]
    %v3811 = vld [vmem:[%s664 + $0x28] sm:$0xff]
    %v3813 = vsel %vm66, %v3805, 0
    %3815 = vmatprep.subr.mxu0 0.0
    %3816 = vmatpush1.msra.mxu0 %v3806
    %3817 = vmatprep.subr.mxu0 0.0
    %3818 = vmatpush1.msra.mxu0 %v3807
    %3819 = vmatprep.subr.mxu0 0.0
    %3820 = vmatpush1.msra.mxu0 %v3808
    %3821 = vmatprep.subr.mxu0 0.0
    %3822 = vmatpush1.msra.mxu0 %v3809
    %3823 = vmatprep.subr.mxu0 0.0
    %3824 = vmatpush1.msra.mxu0 %v3810
    %3825 = vmatprep.subr.mxu0 0.0
    %3826 = vmatpush1.msra.mxu0 %v3811
    %3827 = vmatprep.subr.mxu0 0.0
    %3828 = vmatpush1.msra.mxu0 0.0
    %3829 = vmatprep.subr.mxu0 0.0
    %3830 = vmatpush1.msra.mxu0 0.0
    %3831 = vmatprep.subr.mxu0 0.0
    %3832 = vmatpush1.msra.mxu0 0.0
    %3833 = vmatprep.subr.mxu0 0.0
    %3834 = vmatpush1.msra.mxu0 0.0
    %3835 = vmatprep.subr.mxu0 0.0
    %3836 = vmatpush1.msra.mxu0 0.0
    %3837 = vmatprep.subr.mxu0 0.0
    %3838 = vmatpush1.msra.mxu0 0.0
    %3839 = vmatprep.subr.mxu0 0.0
    %3840 = vmatpush1.msra.mxu0 0.0
    %3841 = vmatprep.subr.mxu0 0.0
    %3842 = vmatpush1.msra.mxu0 0.0
    %3843 = vmatprep.subr.mxu0 0.0
    %3844 = vmatpush1.msra.mxu0 0.0
    %3845 = vmatprep.subr.mxu0 0.0
    %3846 = vmatpush1.msra.mxu0 0.0
    %3847 = vmatprep.subr.mxu0 0.0
    %3848 = vmatpush1.msra.mxu0 0.0
    %3849 = vmatprep.subr.mxu0 0.0
    %3850 = vmatpush1.msra.mxu0 0.0
    %3851 = vmatprep.subr.mxu0 0.0
    %3852 = vmatpush1.msra.mxu0 0.0
    %3853 = vmatprep.subr.mxu0 0.0
    %3854 = vmatpush1.msra.mxu0 0.0
    %3855 = vmatprep.subr.mxu0 0.0
    %3856 = vmatpush1.msra.mxu0 0.0
    %3857 = vmatprep.subr.mxu0 0.0
    %3858 = vmatpush1.msra.mxu0 0.0
    %3859 = vmatprep.subr.mxu0 0.0
    %3860 = vmatpush1.msra.mxu0 0.0
    %3861 = vmatprep.subr.mxu0 0.0
    %3862 = vmatpush1.msra.mxu0 0.0
    %3863 = vmatprep.subr.mxu0 0.0
    %3864 = vmatpush1.msra.mxu0 0.0
    %3865 = vmatprep.subr.mxu0 0.0
    %3866 = vmatpush1.msra.mxu0 0.0
    %3867 = vmatprep.subr.mxu0 0.0
    %3868 = vmatpush1.msra.mxu0 0.0
    %3869 = vmatprep.subr.mxu0 0.0
    %3870 = vmatpush1.msra.mxu0 0.0
    %3871 = vmatprep.subr.mxu0 0.0
    %3872 = vmatpush1.msra.mxu0 0.0
    %3873 = vmatprep.subr.mxu0 0.0
    %3874 = vmatpush1.msra.mxu0 0.0
    %3875 = vmatprep.subr.mxu0 0.0
    %3876 = vmatpush1.msra.mxu0 0.0
    %3877 = vmatprep.subr.mxu0 0.0
    %3878 = vmatpush1.msra.mxu0 0.0
    %3879 = vmatprep.mubr.f32.mxu0 0.0
    %3880 = vmatmul.mubr.f32.gmra.mrb[0].mxu0 %v3813
    %v3881 = vpop.f32.mrb[0].mxu0
    %v3882 = vadd.f32 %v674, %v3881
    %v3883 = vpop.f32.mrb[0].mxu0
    %3884 = vdwg.mxu0
    %v3885 = vxor.u32 %v3882, 2147483648
    %v3886 = vmul.f32 %v3885, 1.442695
    %v3887 = vpow.pop %v3886
    %v3888 = vadd.f32 %v3887, 1.0
    %v3889 = vrcp.pop %v3888
    %v3890 = vmul.f32 1.0, %v3889
    %v3891 = vmul.f32 %v3890, 0.875
    %v3892 = vadd.f32 %v3891, 0.125
    %3893 = vrot.lane.b32.xlu0 %v3800, 16
    %v3894 = vpop.permute.xlu0 %3893
    %v3896 = vmul.f32 %v3890, %v3894
    %3898 = vrot.lane.b32.xlu0 %v3896, 16
    %v3899 = vpop.permute.xlu0 %3898
    %v3901 = vsel %vm54, %v3606, %v3899
    %v3902 = vld [vmem:[%s765] sm:$0xff]
    %v3903 = vld [vmem:[%s765 + $0x8] sm:$0xff]
    %v3904 = vld [vmem:[%s765 + $0x10] sm:$0xff]
    %v3905 = vld [vmem:[%s765 + $0x18] sm:$0xff]
    %v3906 = vld [vmem:[%s765 + $0x20] sm:$0xff]
    %v3907 = vld [vmem:[%s765 + $0x28] sm:$0xff]
    %v3909 = vsel %vm66, %v3901, 0
    %3911 = vmatprep.subr.mxu0 0.0
    %3912 = vmatpush1.msra.mxu0 %v3902
    %3913 = vmatprep.subr.mxu0 0.0
    %3914 = vmatpush1.msra.mxu0 %v3903
    %3915 = vmatprep.subr.mxu0 0.0
    %3916 = vmatpush1.msra.mxu0 %v3904
    %3917 = vmatprep.subr.mxu0 0.0
    %3918 = vmatpush1.msra.mxu0 %v3905
    %3919 = vmatprep.subr.mxu0 0.0
    %3920 = vmatpush1.msra.mxu0 %v3906
    %3921 = vmatprep.subr.mxu0 0.0
    %3922 = vmatpush1.msra.mxu0 %v3907
    %3923 = vmatprep.subr.mxu0 0.0
    %3924 = vmatpush1.msra.mxu0 0.0
    %3925 = vmatprep.subr.mxu0 0.0
    %3926 = vmatpush1.msra.mxu0 0.0
    %3927 = vmatprep.subr.mxu0 0.0
    %3928 = vmatpush1.msra.mxu0 0.0
    %3929 = vmatprep.subr.mxu0 0.0
    %3930 = vmatpush1.msra.mxu0 0.0
    %3931 = vmatprep.subr.mxu0 0.0
    %3932 = vmatpush1.msra.mxu0 0.0
    %3933 = vmatprep.subr.mxu0 0.0
    %3934 = vmatpush1.msra.mxu0 0.0
    %3935 = vmatprep.subr.mxu0 0.0
    %3936 = vmatpush1.msra.mxu0 0.0
    %3937 = vmatprep.subr.mxu0 0.0
    %3938 = vmatpush1.msra.mxu0 0.0
    %3939 = vmatprep.subr.mxu0 0.0
    %3940 = vmatpush1.msra.mxu0 0.0
    %3941 = vmatprep.subr.mxu0 0.0
    %3942 = vmatpush1.msra.mxu0 0.0
    %3943 = vmatprep.subr.mxu0 0.0
    %3944 = vmatpush1.msra.mxu0 0.0
    %3945 = vmatprep.subr.mxu0 0.0
    %3946 = vmatpush1.msra.mxu0 0.0
    %3947 = vmatprep.subr.mxu0 0.0
    %3948 = vmatpush1.msra.mxu0 0.0
    %3949 = vmatprep.subr.mxu0 0.0
    %3950 = vmatpush1.msra.mxu0 0.0
    %3951 = vmatprep.subr.mxu0 0.0
    %3952 = vmatpush1.msra.mxu0 0.0
    %3953 = vmatprep.subr.mxu0 0.0
    %3954 = vmatpush1.msra.mxu0 0.0
    %3955 = vmatprep.subr.mxu0 0.0
    %3956 = vmatpush1.msra.mxu0 0.0
    %3957 = vmatprep.subr.mxu0 0.0
    %3958 = vmatpush1.msra.mxu0 0.0
    %3959 = vmatprep.subr.mxu0 0.0
    %3960 = vmatpush1.msra.mxu0 0.0
    %3961 = vmatprep.subr.mxu0 0.0
    %3962 = vmatpush1.msra.mxu0 0.0
    %3963 = vmatprep.subr.mxu0 0.0
    %3964 = vmatpush1.msra.mxu0 0.0
    %3965 = vmatprep.subr.mxu0 0.0
    %3966 = vmatpush1.msra.mxu0 0.0
    %3967 = vmatprep.subr.mxu0 0.0
    %3968 = vmatpush1.msra.mxu0 0.0
    %3969 = vmatprep.subr.mxu0 0.0
    %3970 = vmatpush1.msra.mxu0 0.0
    %3971 = vmatprep.subr.mxu0 0.0
    %3972 = vmatpush1.msra.mxu0 0.0
    %3973 = vmatprep.subr.mxu0 0.0
    %3974 = vmatpush1.msra.mxu0 0.0
    %3975 = vmatprep.mubr.f32.mxu0 0.0
    %3976 = vmatmul.mubr.f32.gmra.mrb[0].mxu0 %v3909
    %v3977 = vpop.f32.mrb[0].mxu0
    %v3978 = vadd.f32 %v775, %v3977
    %v3979 = vpop.f32.mrb[0].mxu0
    %3980 = vdwg.mxu0
    %v3981 = vtanh.pop %v3978
    %v3982 = vmul.f32 %v3892, %v3607
    %v3983 = vfloor.f32 %v3982
    %v3984 = vcvt.f32.s32.to.zero.pseudo %v3983
    %v3985 = vsub.f32 1.0, %v3892
    %v3986 = vmul.f32 %v3985, %v3981
    %v3987 = vmul.f32 %v3986, 8388608.0
    %v3988 = vfloor.f32 %v3987
    %v3989 = vcvt.f32.s32.to.zero.pseudo %v3988
    %v3990 = vadd.s32 %v3984, %v3989
    %3991 = vrot.lane.b32.xlu0 %v3990, 16
    %v3992 = vpop.permute.xlu0 %3991
    %v3993 = vsel %vm453, %v3798, %v3992
    %s3994 = scalar_lea.vmem [#allocation2], 72
    %3995 = vst.msk [vmem:[%s3994] sm:$0xff] %vm54, %v3993
    %s3996 = scalar_lea.vmem %s0, 40
    %v3997 = vld [vmem:[%s3996] sm:$0xff]
    %v3998 = vcvt.s32.f32 %v3599
    %v3999 = vmul.f32 %v3998, 1.1920929e-07
    %4001 = vrot.lane.b32.xlu0 %v3999, 32
    %v4002 = vpop.permute.xlu0 %4001
    %v4004 = vsel %vm54, %v3997, %v4002
    %v4005 = vld [vmem:[%s2] sm:$0xff]
    %v4006 = vld [vmem:[%s2 + $0x8] sm:$0xff]
    %v4007 = vld [vmem:[%s2 + $0x10] sm:$0xff]
    %v4008 = vld [vmem:[%s2 + $0x18] sm:$0xff]
    %v4009 = vld [vmem:[%s2 + $0x20] sm:$0xff]
    %v4010 = vld [vmem:[%s2 + $0x28] sm:$0xff]
    %v4012 = vsel %vm66, %v4004, 0
    %4014 = vmatprep.subr.mxu0 0.0
    %4015 = vmatpush1.msra.mxu0 %v4005
    %4016 = vmatprep.subr.mxu0 0.0
    %4017 = vmatpush1.msra.mxu0 %v4006
    %4018 = vmatprep.subr.mxu0 0.0
    %4019 = vmatpush1.msra.mxu0 %v4007
    %4020 = vmatprep.subr.mxu0 0.0
    %4021 = vmatpush1.msra.mxu0 %v4008
    %4022 = vmatprep.subr.mxu0 0.0
    %4023 = vmatpush1.msra.mxu0 %v4009
    %4024 = vmatprep.subr.mxu0 0.0
    %4025 = vmatpush1.msra.mxu0 %v4010
    %4026 = vmatprep.subr.mxu0 0.0
    %4027 = vmatpush1.msra.mxu0 0.0
    %4028 = vmatprep.subr.mxu0 0.0
    %4029 = vmatpush1.msra.mxu0 0.0
    %4030 = vmatprep.subr.mxu0 0.0
    %4031 = vmatpush1.msra.mxu0 0.0
    %4032 = vmatprep.subr.mxu0 0.0
    %4033 = vmatpush1.msra.mxu0 0.0
    %4034 = vmatprep.subr.mxu0 0.0
    %4035 = vmatpush1.msra.mxu0 0.0
    %4036 = vmatprep.subr.mxu0 0.0
    %4037 = vmatpush1.msra.mxu0 0.0
    %4038 = vmatprep.subr.mxu0 0.0
    %4039 = vmatpush1.msra.mxu0 0.0
    %4040 = vmatprep.subr.mxu0 0.0
    %4041 = vmatpush1.msra.mxu0 0.0
    %4042 = vmatprep.subr.mxu0 0.0
    %4043 = vmatpush1.msra.mxu0 0.0
    %4044 = vmatprep.subr.mxu0 0.0
    %4045 = vmatpush1.msra.mxu0 0.0
    %4046 = vmatprep.subr.mxu0 0.0
    %4047 = vmatpush1.msra.mxu0 0.0
    %4048 = vmatprep.subr.mxu0 0.0
    %4049 = vmatpush1.msra.mxu0 0.0
    %4050 = vmatprep.subr.mxu0 0.0
    %4051 = vmatpush1.msra.mxu0 0.0
    %4052 = vmatprep.subr.mxu0 0.0
    %4053 = vmatpush1.msra.mxu0 0.0
    %4054 = vmatprep.subr.mxu0 0.0
    %4055 = vmatpush1.msra.mxu0 0.0
    %4056 = vmatprep.subr.mxu0 0.0
    %4057 = vmatpush1.msra.mxu0 0.0
    %4058 = vmatprep.subr.mxu0 0.0
    %4059 = vmatpush1.msra.mxu0 0.0
    %4060 = vmatprep.subr.mxu0 0.0
    %4061 = vmatpush1.msra.mxu0 0.0
    %4062 = vmatprep.subr.mxu0 0.0
    %4063 = vmatpush1.msra.mxu0 0.0
    %4064 = vmatprep.subr.mxu0 0.0
    %4065 = vmatpush1.msra.mxu0 0.0
    %4066 = vmatprep.subr.mxu0 0.0
    %4067 = vmatpush1.msra.mxu0 0.0
    %4068 = vmatprep.subr.mxu0 0.0
    %4069 = vmatpush1.msra.mxu0 0.0
    %4070 = vmatprep.subr.mxu0 0.0
    %4071 = vmatpush1.msra.mxu0 0.0
    %4072 = vmatprep.subr.mxu0 0.0
    %4073 = vmatpush1.msra.mxu0 0.0
    %4074 = vmatprep.subr.mxu0 0.0
    %4075 = vmatpush1.msra.mxu0 0.0
    %4076 = vmatprep.subr.mxu0 0.0
    %4077 = vmatpush1.msra.mxu0 0.0
    %4078 = vmatprep.mubr.f32.mxu0 0.0
    %4079 = vmatmul.mubr.f32.gmra.mrb[0].mxu0 %v4012
    %v4080 = vpop.f32.mrb[0].mxu0
    %v4081 = vadd.f32 %v65, %v4080
    %v4082 = vpop.f32.mrb[0].mxu0
    %4083 = vdwg.mxu0
    %v4084 = vxor.u32 %v4081, 2147483648
    %v4085 = vmul.f32 %v4084, 1.442695
    %v4086 = vpow.pop %v4085
    %v4087 = vadd.f32 %v4086, 1.0
    %v4088 = vrcp.pop %v4087
    %v4089 = vmul.f32 1.0, %v4088
    %v4090 = vmul.f32 %v4089, 0.875
    %v4091 = vadd.f32 %v4090, 0.125
    %4092 = vrot.lane.b32.xlu0 %v3999, 16
    %v4093 = vpop.permute.xlu0 %4092
    %v4095 = vmul.f32 %v4089, %v4093
    %4097 = vrot.lane.b32.xlu0 %v4095, 16
    %v4098 = vpop.permute.xlu0 %4097
    %v4100 = vsel %vm54, %v3997, %v4098
    %v4101 = vld [vmem:[%s4] sm:$0xff]
    %v4102 = vld [vmem:[%s4 + $0x8] sm:$0xff]
    %v4103 = vld [vmem:[%s4 + $0x10] sm:$0xff]
    %v4104 = vld [vmem:[%s4 + $0x18] sm:$0xff]
    %v4105 = vld [vmem:[%s4 + $0x20] sm:$0xff]
    %v4106 = vld [vmem:[%s4 + $0x28] sm:$0xff]
    %v4108 = vsel %vm66, %v4100, 0
    %4110 = vmatprep.subr.mxu0 0.0
    %4111 = vmatpush1.msra.mxu0 %v4101
    %4112 = vmatprep.subr.mxu0 0.0
    %4113 = vmatpush1.msra.mxu0 %v4102
    %4114 = vmatprep.subr.mxu0 0.0
    %4115 = vmatpush1.msra.mxu0 %v4103
    %4116 = vmatprep.subr.mxu0 0.0
    %4117 = vmatpush1.msra.mxu0 %v4104
    %4118 = vmatprep.subr.mxu0 0.0
    %4119 = vmatpush1.msra.mxu0 %v4105
    %4120 = vmatprep.subr.mxu0 0.0
    %4121 = vmatpush1.msra.mxu0 %v4106
    %4122 = vmatprep.subr.mxu0 0.0
    %4123 = vmatpush1.msra.mxu0 0.0
    %4124 = vmatprep.subr.mxu0 0.0
    %4125 = vmatpush1.msra.mxu0 0.0
    %4126 = vmatprep.subr.mxu0 0.0
    %4127 = vmatpush1.msra.mxu0 0.0
    %4128 = vmatprep.subr.mxu0 0.0
    %4129 = vmatpush1.msra.mxu0 0.0
    %4130 = vmatprep.subr.mxu0 0.0
    %4131 = vmatpush1.msra.mxu0 0.0
    %4132 = vmatprep.subr.mxu0 0.0
    %4133 = vmatpush1.msra.mxu0 0.0
    %4134 = vmatprep.subr.mxu0 0.0
    %4135 = vmatpush1.msra.mxu0 0.0
    %4136 = vmatprep.subr.mxu0 0.0
    %4137 = vmatpush1.msra.mxu0 0.0
    %4138 = vmatprep.subr.mxu0 0.0
    %4139 = vmatpush1.msra.mxu0 0.0
    %4140 = vmatprep.subr.mxu0 0.0
    %4141 = vmatpush1.msra.mxu0 0.0
    %4142 = vmatprep.subr.mxu0 0.0
    %4143 = vmatpush1.msra.mxu0 0.0
    %4144 = vmatprep.subr.mxu0 0.0
    %4145 = vmatpush1.msra.mxu0 0.0
    %4146 = vmatprep.subr.mxu0 0.0
    %4147 = vmatpush1.msra.mxu0 0.0
    %4148 = vmatprep.subr.mxu0 0.0
    %4149 = vmatpush1.msra.mxu0 0.0
    %4150 = vmatprep.subr.mxu0 0.0
    %4151 = vmatpush1.msra.mxu0 0.0
    %4152 = vmatprep.subr.mxu0 0.0
    %4153 = vmatpush1.msra.mxu0 0.0
    %4154 = vmatprep.subr.mxu0 0.0
    %4155 = vmatpush1.msra.mxu0 0.0
    %4156 = vmatprep.subr.mxu0 0.0
    %4157 = vmatpush1.msra.mxu0 0.0
    %4158 = vmatprep.subr.mxu0 0.0
    %4159 = vmatpush1.msra.mxu0 0.0
    %4160 = vmatprep.subr.mxu0 0.0
    %4161 = vmatpush1.msra.mxu0 0.0
    %4162 = vmatprep.subr.mxu0 0.0
    %4163 = vmatpush1.msra.mxu0 0.0
    %4164 = vmatprep.subr.mxu0 0.0
    %4165 = vmatpush1.msra.mxu0 0.0
    %4166 = vmatprep.subr.mxu0 0.0
    %4167 = vmatpush1.msra.mxu0 0.0
    %4168 = vmatprep.subr.mxu0 0.0
    %4169 = vmatpush1.msra.mxu0 0.0
    %4170 = vmatprep.subr.mxu0 0.0
    %4171 = vmatpush1.msra.mxu0 0.0
    %4172 = vmatprep.subr.mxu0 0.0
    %4173 = vmatpush1.msra.mxu0 0.0
    %4174 = vmatprep.mubr.f32.mxu0 0.0
    %4175 = vmatmul.mubr.f32.gmra.mrb[0].mxu0 %v4108
    %v4176 = vpop.f32.mrb[0].mxu0
    %v4177 = vadd.f32 %v163, %v4176
    %v4178 = vpop.f32.mrb[0].mxu0
    %4179 = vdwg.mxu0
    %v4180 = vtanh.pop %v4177
    %v4181 = vmul.f32 %v4091, %v3408
    %v4182 = vfloor.f32 %v4181
    %v4183 = vcvt.f32.s32.to.zero.pseudo %v4182
    %v4184 = vsub.f32 1.0, %v4091
    %v4185 = vmul.f32 %v4184, %v4180
    %v4186 = vmul.f32 %v4185, 8388608.0
    %v4187 = vfloor.f32 %v4186
    %v4188 = vcvt.f32.s32.to.zero.pseudo %v4187
    %v4189 = vadd.s32 %v4183, %v4188
    %v4190 = vcvt.s32.f32 %v4189
    %v4191 = vmul.f32 %v4190, 1.1920929e-07
    %4193 = vrot.lane.b32.xlu0 %v4191, 32
    %v4194 = vpop.permute.xlu0 %4193
    %v4196 = vsel %vm54, %v3997, %v4194
    %v4197 = vld [vmem:[%s6] sm:$0xff]
    %v4198 = vld [vmem:[%s6 + $0x8] sm:$0xff]
    %v4199 = vld [vmem:[%s6 + $0x10] sm:$0xff]
    %v4200 = vld [vmem:[%s6 + $0x18] sm:$0xff]
    %v4201 = vld [vmem:[%s6 + $0x20] sm:$0xff]
    %v4202 = vld [vmem:[%s6 + $0x28] sm:$0xff]
    %v4204 = vsel %vm66, %v4196, 0
    %4206 = vmatprep.subr.mxu0 0.0
    %4207 = vmatpush1.msra.mxu0 %v4197
    %4208 = vmatprep.subr.mxu0 0.0
    %4209 = vmatpush1.msra.mxu0 %v4198
    %4210 = vmatprep.subr.mxu0 0.0
    %4211 = vmatpush1.msra.mxu0 %v4199
    %4212 = vmatprep.subr.mxu0 0.0
    %4213 = vmatpush1.msra.mxu0 %v4200
    %4214 = vmatprep.subr.mxu0 0.0
    %4215 = vmatpush1.msra.mxu0 %v4201
    %4216 = vmatprep.subr.mxu0 0.0
    %4217 = vmatpush1.msra.mxu0 %v4202
    %4218 = vmatprep.subr.mxu0 0.0
    %4219 = vmatpush1.msra.mxu0 0.0
    %4220 = vmatprep.subr.mxu0 0.0
    %4221 = vmatpush1.msra.mxu0 0.0
    %4222 = vmatprep.subr.mxu0 0.0
    %4223 = vmatpush1.msra.mxu0 0.0
    %4224 = vmatprep.subr.mxu0 0.0
    %4225 = vmatpush1.msra.mxu0 0.0
    %4226 = vmatprep.subr.mxu0 0.0
    %4227 = vmatpush1.msra.mxu0 0.0
    %4228 = vmatprep.subr.mxu0 0.0
    %4229 = vmatpush1.msra.mxu0 0.0
    %4230 = vmatprep.subr.mxu0 0.0
    %4231 = vmatpush1.msra.mxu0 0.0
    %4232 = vmatprep.subr.mxu0 0.0
    %4233 = vmatpush1.msra.mxu0 0.0
    %4234 = vmatprep.subr.mxu0 0.0
    %4235 = vmatpush1.msra.mxu0 0.0
    %4236 = vmatprep.subr.mxu0 0.0
    %4237 = vmatpush1.msra.mxu0 0.0
    %4238 = vmatprep.subr.mxu0 0.0
    %4239 = vmatpush1.msra.mxu0 0.0
    %4240 = vmatprep.subr.mxu0 0.0
    %4241 = vmatpush1.msra.mxu0 0.0
    %4242 = vmatprep.subr.mxu0 0.0
    %4243 = vmatpush1.msra.mxu0 0.0
    %4244 = vmatprep.subr.mxu0 0.0
    %4245 = vmatpush1.msra.mxu0 0.0
    %4246 = vmatprep.subr.mxu0 0.0
    %4247 = vmatpush1.msra.mxu0 0.0
    %4248 = vmatprep.subr.mxu0 0.0
    %4249 = vmatpush1.msra.mxu0 0.0
    %4250 = vmatprep.subr.mxu0 0.0
    %4251 = vmatpush1.msra.mxu0 0.0
    %4252 = vmatprep.subr.mxu0 0.0
    %4253 = vmatpush1.msra.mxu0 0.0
    %4254 = vmatprep.subr.mxu0 0.0
    %4255 = vmatpush1.msra.mxu0 0.0
    %4256 = vmatprep.subr.mxu0 0.0
    %4257 = vmatpush1.msra.mxu0 0.0
    %4258 = vmatprep.subr.mxu0 0.0
    %4259 = vmatpush1.msra.mxu0 0.0
    %4260 = vmatprep.subr.mxu0 0.0
    %4261 = vmatpush1.msra.mxu0 0.0
    %4262 = vmatprep.subr.mxu0 0.0
    %4263 = vmatpush1.msra.mxu0 0.0
    %4264 = vmatprep.subr.mxu0 0.0
    %4265 = vmatpush1.msra.mxu0 0.0
    %4266 = vmatprep.subr.mxu0 0.0
    %4267 = vmatpush1.msra.mxu0 0.0
    %4268 = vmatprep.subr.mxu0 0.0
    %4269 = vmatpush1.msra.mxu0 0.0
    %4270 = vmatprep.mubr.f32.mxu0 0.0
    %4271 = vmatmul.mubr.f32.gmra.mrb[0].mxu0 %v4204
    %v4272 = vpop.f32.mrb[0].mxu0
    %v4273 = vadd.f32 %v263, %v4272
    %v4274 = vpop.f32.mrb[0].mxu0
    %4275 = vdwg.mxu0
    %v4276 = vxor.u32 %v4273, 2147483648
    %v4277 = vmul.f32 %v4276, 1.442695
    %v4278 = vpow.pop %v4277
    %v4279 = vadd.f32 %v4278, 1.0
    %v4280 = vrcp.pop %v4279
    %v4281 = vmul.f32 1.0, %v4280
    %v4282 = vmul.f32 %v4281, 0.875
    %v4283 = vadd.f32 %v4282, 0.125
    %4284 = vrot.lane.b32.xlu0 %v4191, 16
    %v4285 = vpop.permute.xlu0 %4284
    %v4287 = vmul.f32 %v4281, %v4285
    %4289 = vrot.lane.b32.xlu0 %v4287, 16
    %v4290 = vpop.permute.xlu0 %4289
    %v4292 = vsel %vm54, %v3997, %v4290
    %v4293 = vld [vmem:[%s8] sm:$0xff]
    %v4294 = vld [vmem:[%s8 + $0x8] sm:$0xff]
    %v4295 = vld [vmem:[%s8 + $0x10] sm:$0xff]
    %v4296 = vld [vmem:[%s8 + $0x18] sm:$0xff]
    %v4297 = vld [vmem:[%s8 + $0x20] sm:$0xff]
    %v4298 = vld [vmem:[%s8 + $0x28] sm:$0xff]
    %v4300 = vsel %vm66, %v4292, 0
    %4302 = vmatprep.subr.mxu0 0.0
    %4303 = vmatpush1.msra.mxu0 %v4293
    %4304 = vmatprep.subr.mxu0 0.0
    %4305 = vmatpush1.msra.mxu0 %v4294
    %4306 = vmatprep.subr.mxu0 0.0
    %4307 = vmatpush1.msra.mxu0 %v4295
    %4308 = vmatprep.subr.mxu0 0.0
    %4309 = vmatpush1.msra.mxu0 %v4296
    %4310 = vmatprep.subr.mxu0 0.0
    %4311 = vmatpush1.msra.mxu0 %v4297
    %4312 = vmatprep.subr.mxu0 0.0
    %4313 = vmatpush1.msra.mxu0 %v4298
    %4314 = vmatprep.subr.mxu0 0.0
    %4315 = vmatpush1.msra.mxu0 0.0
    %4316 = vmatprep.subr.mxu0 0.0
    %4317 = vmatpush1.msra.mxu0 0.0
    %4318 = vmatprep.subr.mxu0 0.0
    %4319 = vmatpush1.msra.mxu0 0.0
    %4320 = vmatprep.subr.mxu0 0.0
    %4321 = vmatpush1.msra.mxu0 0.0
    %4322 = vmatprep.subr.mxu0 0.0
    %4323 = vmatpush1.msra.mxu0 0.0
    %4324 = vmatprep.subr.mxu0 0.0
    %4325 = vmatpush1.msra.mxu0 0.0
    %4326 = vmatprep.subr.mxu0 0.0
    %4327 = vmatpush1.msra.mxu0 0.0
    %4328 = vmatprep.subr.mxu0 0.0
    %4329 = vmatpush1.msra.mxu0 0.0
    %4330 = vmatprep.subr.mxu0 0.0
    %4331 = vmatpush1.msra.mxu0 0.0
    %4332 = vmatprep.subr.mxu0 0.0
    %4333 = vmatpush1.msra.mxu0 0.0
    %4334 = vmatprep.subr.mxu0 0.0
    %4335 = vmatpush1.msra.mxu0 0.0
    %4336 = vmatprep.subr.mxu0 0.0
    %4337 = vmatpush1.msra.mxu0 0.0
    %4338 = vmatprep.subr.mxu0 0.0
    %4339 = vmatpush1.msra.mxu0 0.0
    %4340 = vmatprep.subr.mxu0 0.0
    %4341 = vmatpush1.msra.mxu0 0.0
    %4342 = vmatprep.subr.mxu0 0.0
    %4343 = vmatpush1.msra.mxu0 0.0
    %4344 = vmatprep.subr.mxu0 0.0
    %4345 = vmatpush1.msra.mxu0 0.0
    %4346 = vmatprep.subr.mxu0 0.0
    %4347 = vmatpush1.msra.mxu0 0.0
    %4348 = vmatprep.subr.mxu0 0.0
    %4349 = vmatpush1.msra.mxu0 0.0
    %4350 = vmatprep.subr.mxu0 0.0
    %4351 = vmatpush1.msra.mxu0 0.0
    %4352 = vmatprep.subr.mxu0 0.0
    %4353 = vmatpush1.msra.mxu0 0.0
    %4354 = vmatprep.subr.mxu0 0.0
    %4355 = vmatpush1.msra.mxu0 0.0
    %4356 = vmatprep.subr.mxu0 0.0
    %4357 = vmatpush1.msra.mxu0 0.0
    %4358 = vmatprep.subr.mxu0 0.0
    %4359 = vmatpush1.msra.mxu0 0.0
    %4360 = vmatprep.subr.mxu0 0.0
    %4361 = vmatpush1.msra.mxu0 0.0
    %4362 = vmatprep.subr.mxu0 0.0
    %4363 = vmatpush1.msra.mxu0 0.0
    %4364 = vmatprep.subr.mxu0 0.0
    %4365 = vmatpush1.msra.mxu0 0.0
    %4366 = vmatprep.mubr.f32.mxu0 0.0
    %4367 = vmatmul.mubr.f32.gmra.mrb[0].mxu0 %v4300
    %v4368 = vpop.f32.mrb[0].mxu0
    %v4369 = vadd.f32 %v363, %v4368
    %v4370 = vpop.f32.mrb[0].mxu0
    %4371 = vdwg.mxu0
    %v4372 = vtanh.pop %v4369
    %v4373 = vmul.f32 %v4283, %v3998
    %v4374 = vfloor.f32 %v4373
    %v4375 = vcvt.f32.s32.to.zero.pseudo %v4374
    %v4376 = vsub.f32 1.0, %v4283
    %v4377 = vmul.f32 %v4376, %v4372
    %v4378 = vmul.f32 %v4377, 8388608.0
    %v4379 = vfloor.f32 %v4378
    %v4380 = vcvt.f32.s32.to.zero.pseudo %v4379
    %v4381 = vadd.s32 %v4375, %v4380
    %4382 = vrot.lane.b32.xlu0 %v4381, 16
    %v4383 = vpop.permute.xlu0 %4382
    %v4384 = vsel %vm453, %v4189, %v4383
    %s4385 = scalar_lea.vmem [#allocation2], 80
    %4386 = vst.msk [vmem:[%s4385] sm:$0xff] %vm54, %v4384
    %v4387 = vcvt.s32.f32 %v4384
    %v4388 = vmul.f32 %v4387, 1.1920929e-07
    %v4389 = vcvt.s32.f32 %v3990
    %v4390 = vmul.f32 %v4389, 1.1920929e-07
    %4392 = vrot.lane.b32.xlu0 %v4390, 32
    %v4393 = vpop.permute.xlu0 %4392
    %v4395 = vsel %vm54, %v4388, %v4393
    %v4396 = vld [vmem:[%s465] sm:$0xff]
    %v4397 = vld [vmem:[%s465 + $0x8] sm:$0xff]
    %v4398 = vld [vmem:[%s465 + $0x10] sm:$0xff]
    %v4399 = vld [vmem:[%s465 + $0x18] sm:$0xff]
    %v4400 = vld [vmem:[%s465 + $0x20] sm:$0xff]
    %v4401 = vld [vmem:[%s465 + $0x28] sm:$0xff]
    %v4403 = vsel %vm66, %v4395, 0
    %4405 = vmatprep.subr.mxu0 0.0
    %4406 = vmatpush1.msra.mxu0 %v4396
    %4407 = vmatprep.subr.mxu0 0.0
    %4408 = vmatpush1.msra.mxu0 %v4397
    %4409 = vmatprep.subr.mxu0 0.0
    %4410 = vmatpush1.msra.mxu0 %v4398
    %4411 = vmatprep.subr.mxu0 0.0
    %4412 = vmatpush1.msra.mxu0 %v4399
    %4413 = vmatprep.subr.mxu0 0.0
    %4414 = vmatpush1.msra.mxu0 %v4400
    %4415 = vmatprep.subr.mxu0 0.0
    %4416 = vmatpush1.msra.mxu0 %v4401
    %4417 = vmatprep.subr.mxu0 0.0
    %4418 = vmatpush1.msra.mxu0 0.0
    %4419 = vmatprep.subr.mxu0 0.0
    %4420 = vmatpush1.msra.mxu0 0.0
    %4421 = vmatprep.subr.mxu0 0.0
    %4422 = vmatpush1.msra.mxu0 0.0
    %4423 = vmatprep.subr.mxu0 0.0
    %4424 = vmatpush1.msra.mxu0 0.0
    %4425 = vmatprep.subr.mxu0 0.0
    %4426 = vmatpush1.msra.mxu0 0.0
    %4427 = vmatprep.subr.mxu0 0.0
    %4428 = vmatpush1.msra.mxu0 0.0
    %4429 = vmatprep.subr.mxu0 0.0
    %4430 = vmatpush1.msra.mxu0 0.0
    %4431 = vmatprep.subr.mxu0 0.0
    %4432 = vmatpush1.msra.mxu0 0.0
    %4433 = vmatprep.subr.mxu0 0.0
    %4434 = vmatpush1.msra.mxu0 0.0
    %4435 = vmatprep.subr.mxu0 0.0
    %4436 = vmatpush1.msra.mxu0 0.0
    %4437 = vmatprep.subr.mxu0 0.0
    %4438 = vmatpush1.msra.mxu0 0.0
    %4439 = vmatprep.subr.mxu0 0.0
    %4440 = vmatpush1.msra.mxu0 0.0
    %4441 = vmatprep.subr.mxu0 0.0
    %4442 = vmatpush1.msra.mxu0 0.0
    %4443 = vmatprep.subr.mxu0 0.0
    %4444 = vmatpush1.msra.mxu0 0.0
    %4445 = vmatprep.subr.mxu0 0.0
    %4446 = vmatpush1.msra.mxu0 0.0
    %4447 = vmatprep.subr.mxu0 0.0
    %4448 = vmatpush1.msra.mxu0 0.0
    %4449 = vmatprep.subr.mxu0 0.0
    %4450 = vmatpush1.msra.mxu0 0.0
    %4451 = vmatprep.subr.mxu0 0.0
    %4452 = vmatpush1.msra.mxu0 0.0
    %4453 = vmatprep.subr.mxu0 0.0
    %4454 = vmatpush1.msra.mxu0 0.0
    %4455 = vmatprep.subr.mxu0 0.0
    %4456 = vmatpush1.msra.mxu0 0.0
    %4457 = vmatprep.subr.mxu0 0.0
    %4458 = vmatpush1.msra.mxu0 0.0
    %4459 = vmatprep.subr.mxu0 0.0
    %4460 = vmatpush1.msra.mxu0 0.0
    %4461 = vmatprep.subr.mxu0 0.0
    %4462 = vmatpush1.msra.mxu0 0.0
    %4463 = vmatprep.subr.mxu0 0.0
    %4464 = vmatpush1.msra.mxu0 0.0
    %4465 = vmatprep.subr.mxu0 0.0
    %4466 = vmatpush1.msra.mxu0 0.0
    %4467 = vmatprep.subr.mxu0 0.0
    %4468 = vmatpush1.msra.mxu0 0.0
    %4469 = vmatprep.mubr.f32.mxu0 0.0
    %4470 = vmatmul.mubr.f32.gmra.mrb[0].mxu0 %v4403
    %v4471 = vpop.f32.mrb[0].mxu0
    %v4472 = vadd.f32 %v475, %v4471
    %v4473 = vpop.f32.mrb[0].mxu0
    %4474 = vdwg.mxu0
    %v4475 = vxor.u32 %v4472, 2147483648
    %v4476 = vmul.f32 %v4475, 1.442695
    %v4477 = vpow.pop %v4476
    %v4478 = vadd.f32 %v4477, 1.0
    %v4479 = vrcp.pop %v4478
    %v4480 = vmul.f32 1.0, %v4479
    %v4481 = vmul.f32 %v4480, 0.875
    %v4482 = vadd.f32 %v4481, 0.125
    %4483 = vrot.lane.b32.xlu0 %v4390, 16
    %v4484 = vpop.permute.xlu0 %4483
    %v4486 = vmul.f32 %v4480, %v4484
    %4488 = vrot.lane.b32.xlu0 %v4486, 16
    %v4489 = vpop.permute.xlu0 %4488
    %v4491 = vsel %vm54, %v4388, %v4489
    %v4492 = vld [vmem:[%s563] sm:$0xff]
    %v4493 = vld [vmem:[%s563 + $0x8] sm:$0xff]
    %v4494 = vld [vmem:[%s563 + $0x10] sm:$0xff]
    %v4495 = vld [vmem:[%s563 + $0x18] sm:$0xff]
    %v4496 = vld [vmem:[%s563 + $0x20] sm:$0xff]
    %v4497 = vld [vmem:[%s563 + $0x28] sm:$0xff]
    %v4499 = vsel %vm66, %v4491, 0
    %4501 = vmatprep.subr.mxu0 0.0
    %4502 = vmatpush1.msra.mxu0 %v4492
    %4503 = vmatprep.subr.mxu0 0.0
    %4504 = vmatpush1.msra.mxu0 %v4493
    %4505 = vmatprep.subr.mxu0 0.0
    %4506 = vmatpush1.msra.mxu0 %v4494
    %4507 = vmatprep.subr.mxu0 0.0
    %4508 = vmatpush1.msra.mxu0 %v4495
    %4509 = vmatprep.subr.mxu0 0.0
    %4510 = vmatpush1.msra.mxu0 %v4496
    %4511 = vmatprep.subr.mxu0 0.0
    %4512 = vmatpush1.msra.mxu0 %v4497
    %4513 = vmatprep.subr.mxu0 0.0
    %4514 = vmatpush1.msra.mxu0 0.0
    %4515 = vmatprep.subr.mxu0 0.0
    %4516 = vmatpush1.msra.mxu0 0.0
    %4517 = vmatprep.subr.mxu0 0.0
    %4518 = vmatpush1.msra.mxu0 0.0
    %4519 = vmatprep.subr.mxu0 0.0
    %4520 = vmatpush1.msra.mxu0 0.0
    %4521 = vmatprep.subr.mxu0 0.0
    %4522 = vmatpush1.msra.mxu0 0.0
    %4523 = vmatprep.subr.mxu0 0.0
    %4524 = vmatpush1.msra.mxu0 0.0
    %4525 = vmatprep.subr.mxu0 0.0
    %4526 = vmatpush1.msra.mxu0 0.0
    %4527 = vmatprep.subr.mxu0 0.0
    %4528 = vmatpush1.msra.mxu0 0.0
    %4529 = vmatprep.subr.mxu0 0.0
    %4530 = vmatpush1.msra.mxu0 0.0
    %4531 = vmatprep.subr.mxu0 0.0
    %4532 = vmatpush1.msra.mxu0 0.0
    %4533 = vmatprep.subr.mxu0 0.0
    %4534 = vmatpush1.msra.mxu0 0.0
    %4535 = vmatprep.subr.mxu0 0.0
    %4536 = vmatpush1.msra.mxu0 0.0
    %4537 = vmatprep.subr.mxu0 0.0
    %4538 = vmatpush1.msra.mxu0 0.0
    %4539 = vmatprep.subr.mxu0 0.0
    %4540 = vmatpush1.msra.mxu0 0.0
    %4541 = vmatprep.subr.mxu0 0.0
    %4542 = vmatpush1.msra.mxu0 0.0
    %4543 = vmatprep.subr.mxu0 0.0
    %4544 = vmatpush1.msra.mxu0 0.0
    %4545 = vmatprep.subr.mxu0 0.0
    %4546 = vmatpush1.msra.mxu0 0.0
    %4547 = vmatprep.subr.mxu0 0.0
    %4548 = vmatpush1.msra.mxu0 0.0
    %4549 = vmatprep.subr.mxu0 0.0
    %4550 = vmatpush1.msra.mxu0 0.0
    %4551 = vmatprep.subr.mxu0 0.0
    %4552 = vmatpush1.msra.mxu0 0.0
    %4553 = vmatprep.subr.mxu0 0.0
    %4554 = vmatpush1.msra.mxu0 0.0
    %4555 = vmatprep.subr.mxu0 0.0
    %4556 = vmatpush1.msra.mxu0 0.0
    %4557 = vmatprep.subr.mxu0 0.0
    %4558 = vmatpush1.msra.mxu0 0.0
    %4559 = vmatprep.subr.mxu0 0.0
    %4560 = vmatpush1.msra.mxu0 0.0
    %4561 = vmatprep.subr.mxu0 0.0
    %4562 = vmatpush1.msra.mxu0 0.0
    %4563 = vmatprep.subr.mxu0 0.0
    %4564 = vmatpush1.msra.mxu0 0.0
    %4565 = vmatprep.mubr.f32.mxu0 0.0
    %4566 = vmatmul.mubr.f32.gmra.mrb[0].mxu0 %v4499
    %v4567 = vpop.f32.mrb[0].mxu0
    %v4568 = vadd.f32 %v573, %v4567
    %v4569 = vpop.f32.mrb[0].mxu0
    %4570 = vdwg.mxu0
    %v4571 = vtanh.pop %v4568
    %v4572 = vmul.f32 %v4482, %v3799
    %v4573 = vfloor.f32 %v4572
    %v4574 = vcvt.f32.s32.to.zero.pseudo %v4573
    %v4575 = vsub.f32 1.0, %v4482
    %v4576 = vmul.f32 %v4575, %v4571
    %v4577 = vmul.f32 %v4576, 8388608.0
    %v4578 = vfloor.f32 %v4577
    %v4579 = vcvt.f32.s32.to.zero.pseudo %v4578
    %v4580 = vadd.s32 %v4574, %v4579
    %v4581 = vcvt.s32.f32 %v4580
    %v4582 = vmul.f32 %v4581, 1.1920929e-07
    %4584 = vrot.lane.b32.xlu0 %v4582, 32
    %v4585 = vpop.permute.xlu0 %4584
    %v4587 = vsel %vm54, %v4388, %v4585
    %v4588 = vld [vmem:[%s664] sm:$0xff]
    %v4589 = vld [vmem:[%s664 + $0x8] sm:$0xff]
    %v4590 = vld [vmem:[%s664 + $0x10] sm:$0xff]
    %v4591 = vld [vmem:[%s664 + $0x18] sm:$0xff]
    %v4592 = vld [vmem:[%s664 + $0x20] sm:$0xff]
    %v4593 = vld [vmem:[%s664 + $0x28] sm:$0xff]
    %v4595 = vsel %vm66, %v4587, 0
    %4597 = vmatprep.subr.mxu0 0.0
    %4598 = vmatpush1.msra.mxu0 %v4588
    %4599 = vmatprep.subr.mxu0 0.0
    %4600 = vmatpush1.msra.mxu0 %v4589
    %4601 = vmatprep.subr.mxu0 0.0
    %4602 = vmatpush1.msra.mxu0 %v4590
    %4603 = vmatprep.subr.mxu0 0.0
    %4604 = vmatpush1.msra.mxu0 %v4591
    %4605 = vmatprep.subr.mxu0 0.0
    %4606 = vmatpush1.msra.mxu0 %v4592
    %4607 = vmatprep.subr.mxu0 0.0
    %4608 = vmatpush1.msra.mxu0 %v4593
    %4609 = vmatprep.subr.mxu0 0.0
    %4610 = vmatpush1.msra.mxu0 0.0
    %4611 = vmatprep.subr.mxu0 0.0
    %4612 = vmatpush1.msra.mxu0 0.0
    %4613 = vmatprep.subr.mxu0 0.0
    %4614 = vmatpush1.msra.mxu0 0.0
    %4615 = vmatprep.subr.mxu0 0.0
    %4616 = vmatpush1.msra.mxu0 0.0
    %4617 = vmatprep.subr.mxu0 0.0
    %4618 = vmatpush1.msra.mxu0 0.0
    %4619 = vmatprep.subr.mxu0 0.0
    %4620 = vmatpush1.msra.mxu0 0.0
    %4621 = vmatprep.subr.mxu0 0.0
    %4622 = vmatpush1.msra.mxu0 0.0
    %4623 = vmatprep.subr.mxu0 0.0
    %4624 = vmatpush1.msra.mxu0 0.0
    %4625 = vmatprep.subr.mxu0 0.0
    %4626 = vmatpush1.msra.mxu0 0.0
    %4627 = vmatprep.subr.mxu0 0.0
    %4628 = vmatpush1.msra.mxu0 0.0
    %4629 = vmatprep.subr.mxu0 0.0
    %4630 = vmatpush1.msra.mxu0 0.0
    %4631 = vmatprep.subr.mxu0 0.0
    %4632 = vmatpush1.msra.mxu0 0.0
    %4633 = vmatprep.subr.mxu0 0.0
    %4634 = vmatpush1.msra.mxu0 0.0
    %4635 = vmatprep.subr.mxu0 0.0
    %4636 = vmatpush1.msra.mxu0 0.0
    %4637 = vmatprep.subr.mxu0 0.0
    %4638 = vmatpush1.msra.mxu0 0.0
    %4639 = vmatprep.subr.mxu0 0.0
    %4640 = vmatpush1.msra.mxu0 0.0
    %4641 = vmatprep.subr.mxu0 0.0
    %4642 = vmatpush1.msra.mxu0 0.0
    %4643 = vmatprep.subr.mxu0 0.0
    %4644 = vmatpush1.msra.mxu0 0.0
    %4645 = vmatprep.subr.mxu0 0.0
    %4646 = vmatpush1.msra.mxu0 0.0
    %4647 = vmatprep.subr.mxu0 0.0
    %4648 = vmatpush1.msra.mxu0 0.0
    %4649 = vmatprep.subr.mxu0 0.0
    %4650 = vmatpush1.msra.mxu0 0.0
    %4651 = vmatprep.subr.mxu0 0.0
    %4652 = vmatpush1.msra.mxu0 0.0
    %4653 = vmatprep.subr.mxu0 0.0
    %4654 = vmatpush1.msra.mxu0 0.0
    %4655 = vmatprep.subr.mxu0 0.0
    %4656 = vmatpush1.msra.mxu0 0.0
    %4657 = vmatprep.subr.mxu0 0.0
    %4658 = vmatpush1.msra.mxu0 0.0
    %4659 = vmatprep.subr.mxu0 0.0
    %4660 = vmatpush1.msra.mxu0 0.0
    %4661 = vmatprep.mubr.f32.mxu0 0.0
    %4662 = vmatmul.mubr.f32.gmra.mrb[0].mxu0 %v4595
    %v4663 = vpop.f32.mrb[0].mxu0
    %v4664 = vadd.f32 %v674, %v4663
    %v4665 = vpop.f32.mrb[0].mxu0
    %4666 = vdwg.mxu0
    %v4667 = vxor.u32 %v4664, 2147483648
    %v4668 = vmul.f32 %v4667, 1.442695
    %v4669 = vpow.pop %v4668
    %v4670 = vadd.f32 %v4669, 1.0
    %v4671 = vrcp.pop %v4670
    %v4672 = vmul.f32 1.0, %v4671
    %v4673 = vmul.f32 %v4672, 0.875
    %v4674 = vadd.f32 %v4673, 0.125
    %4675 = vrot.lane.b32.xlu0 %v4582, 16
    %v4676 = vpop.permute.xlu0 %4675
    %v4678 = vmul.f32 %v4672, %v4676
    %4680 = vrot.lane.b32.xlu0 %v4678, 16
    %v4681 = vpop.permute.xlu0 %4680
    %v4683 = vsel %vm54, %v4388, %v4681
    %v4684 = vld [vmem:[%s765] sm:$0xff]
    %v4685 = vld [vmem:[%s765 + $0x8] sm:$0xff]
    %v4686 = vld [vmem:[%s765 + $0x10] sm:$0xff]
    %v4687 = vld [vmem:[%s765 + $0x18] sm:$0xff]
    %v4688 = vld [vmem:[%s765 + $0x20] sm:$0xff]
    %v4689 = vld [vmem:[%s765 + $0x28] sm:$0xff]
    %v4691 = vsel %vm66, %v4683, 0
    %4693 = vmatprep.subr.mxu0 0.0
    %4694 = vmatpush1.msra.mxu0 %v4684
    %4695 = vmatprep.subr.mxu0 0.0
    %4696 = vmatpush1.msra.mxu0 %v4685
    %4697 = vmatprep.subr.mxu0 0.0
    %4698 = vmatpush1.msra.mxu0 %v4686
    %4699 = vmatprep.subr.mxu0 0.0
    %4700 = vmatpush1.msra.mxu0 %v4687
    %4701 = vmatprep.subr.mxu0 0.0
    %4702 = vmatpush1.msra.mxu0 %v4688
    %4703 = vmatprep.subr.mxu0 0.0
    %4704 = vmatpush1.msra.mxu0 %v4689
    %4705 = vmatprep.subr.mxu0 0.0
    %4706 = vmatpush1.msra.mxu0 0.0
    %4707 = vmatprep.subr.mxu0 0.0
    %4708 = vmatpush1.msra.mxu0 0.0
    %4709 = vmatprep.subr.mxu0 0.0
    %4710 = vmatpush1.msra.mxu0 0.0
    %4711 = vmatprep.subr.mxu0 0.0
    %4712 = vmatpush1.msra.mxu0 0.0
    %4713 = vmatprep.subr.mxu0 0.0
    %4714 = vmatpush1.msra.mxu0 0.0
    %4715 = vmatprep.subr.mxu0 0.0
    %4716 = vmatpush1.msra.mxu0 0.0
    %4717 = vmatprep.subr.mxu0 0.0
    %4718 = vmatpush1.msra.mxu0 0.0
    %4719 = vmatprep.subr.mxu0 0.0
    %4720 = vmatpush1.msra.mxu0 0.0
    %4721 = vmatprep.subr.mxu0 0.0
    %4722 = vmatpush1.msra.mxu0 0.0
    %4723 = vmatprep.subr.mxu0 0.0
    %4724 = vmatpush1.msra.mxu0 0.0
    %4725 = vmatprep.subr.mxu0 0.0
    %4726 = vmatpush1.msra.mxu0 0.0
    %4727 = vmatprep.subr.mxu0 0.0
    %4728 = vmatpush1.msra.mxu0 0.0
    %4729 = vmatprep.subr.mxu0 0.0
    %4730 = vmatpush1.msra.mxu0 0.0
    %4731 = vmatprep.subr.mxu0 0.0
    %4732 = vmatpush1.msra.mxu0 0.0
    %4733 = vmatprep.subr.mxu0 0.0
    %4734 = vmatpush1.msra.mxu0 0.0
    %4735 = vmatprep.subr.mxu0 0.0
    %4736 = vmatpush1.msra.mxu0 0.0
    %4737 = vmatprep.subr.mxu0 0.0
    %4738 = vmatpush1.msra.mxu0 0.0
    %4739 = vmatprep.subr.mxu0 0.0
    %4740 = vmatpush1.msra.mxu0 0.0
    %4741 = vmatprep.subr.mxu0 0.0
    %4742 = vmatpush1.msra.mxu0 0.0
    %4743 = vmatprep.subr.mxu0 0.0
    %4744 = vmatpush1.msra.mxu0 0.0
    %4745 = vmatprep.subr.mxu0 0.0
    %4746 = vmatpush1.msra.mxu0 0.0
    %4747 = vmatprep.subr.mxu0 0.0
    %4748 = vmatpush1.msra.mxu0 0.0
    %4749 = vmatprep.subr.mxu0 0.0
    %4750 = vmatpush1.msra.mxu0 0.0
    %4751 = vmatprep.subr.mxu0 0.0
    %4752 = vmatpush1.msra.mxu0 0.0
    %4753 = vmatprep.subr.mxu0 0.0
    %4754 = vmatpush1.msra.mxu0 0.0
    %4755 = vmatprep.subr.mxu0 0.0
    %4756 = vmatpush1.msra.mxu0 0.0
    %4757 = vmatprep.mubr.f32.mxu0 0.0
    %4758 = vmatmul.mubr.f32.gmra.mrb[0].mxu0 %v4691
    %v4759 = vpop.f32.mrb[0].mxu0
    %v4760 = vadd.f32 %v775, %v4759
    %v4761 = vpop.f32.mrb[0].mxu0
    %4762 = vdwg.mxu0
    %v4763 = vtanh.pop %v4760
    %v4764 = vmul.f32 %v4674, %v4389
    %v4765 = vfloor.f32 %v4764
    %v4766 = vcvt.f32.s32.to.zero.pseudo %v4765
    %v4767 = vsub.f32 1.0, %v4674
    %v4768 = vmul.f32 %v4767, %v4763
    %v4769 = vmul.f32 %v4768, 8388608.0
    %v4770 = vfloor.f32 %v4769
    %v4771 = vcvt.f32.s32.to.zero.pseudo %v4770
    %v4772 = vadd.s32 %v4766, %v4771
    %4773 = vrot.lane.b32.xlu0 %v4772, 16
    %v4774 = vpop.permute.xlu0 %4773
    %v4775 = vsel %vm453, %v4580, %v4774
    %s4776 = scalar_lea.vmem [#allocation2], 88
    %4777 = vst.msk [vmem:[%s4776] sm:$0xff] %vm54, %v4775
    %s4778 = scalar_lea.vmem %s0, 48
    %v4779 = vld [vmem:[%s4778] sm:$0xff]
    %v4780 = vcvt.s32.f32 %v4381
    %v4781 = vmul.f32 %v4780, 1.1920929e-07
    %4783 = vrot.lane.b32.xlu0 %v4781, 32
    %v4784 = vpop.permute.xlu0 %4783
    %v4786 = vsel %vm54, %v4779, %v4784
    %v4787 = vld [vmem:[%s2] sm:$0xff]
    %v4788 = vld [vmem:[%s2 + $0x8] sm:$0xff]
    %v4789 = vld [vmem:[%s2 + $0x10] sm:$0xff]
    %v4790 = vld [vmem:[%s2 + $0x18] sm:$0xff]
    %v4791 = vld [vmem:[%s2 + $0x20] sm:$0xff]
    %v4792 = vld [vmem:[%s2 + $0x28] sm:$0xff]
    %v4794 = vsel %vm66, %v4786, 0
    %4796 = vmatprep.subr.mxu0 0.0
    %4797 = vmatpush1.msra.mxu0 %v4787
    %4798 = vmatprep.subr.mxu0 0.0
    %4799 = vmatpush1.msra.mxu0 %v4788
    %4800 = vmatprep.subr.mxu0 0.0
    %4801 = vmatpush1.msra.mxu0 %v4789
    %4802 = vmatprep.subr.mxu0 0.0
    %4803 = vmatpush1.msra.mxu0 %v4790
    %4804 = vmatprep.subr.mxu0 0.0
    %4805 = vmatpush1.msra.mxu0 %v4791
    %4806 = vmatprep.subr.mxu0 0.0
    %4807 = vmatpush1.msra.mxu0 %v4792
    %4808 = vmatprep.subr.mxu0 0.0
    %4809 = vmatpush1.msra.mxu0 0.0
    %4810 = vmatprep.subr.mxu0 0.0
    %4811 = vmatpush1.msra.mxu0 0.0
    %4812 = vmatprep.subr.mxu0 0.0
    %4813 = vmatpush1.msra.mxu0 0.0
    %4814 = vmatprep.subr.mxu0 0.0
    %4815 = vmatpush1.msra.mxu0 0.0
    %4816 = vmatprep.subr.mxu0 0.0
    %4817 = vmatpush1.msra.mxu0 0.0
    %4818 = vmatprep.subr.mxu0 0.0
    %4819 = vmatpush1.msra.mxu0 0.0
    %4820 = vmatprep.subr.mxu0 0.0
    %4821 = vmatpush1.msra.mxu0 0.0
    %4822 = vmatprep.subr.mxu0 0.0
    %4823 = vmatpush1.msra.mxu0 0.0
    %4824 = vmatprep.subr.mxu0 0.0
    %4825 = vmatpush1.msra.mxu0 0.0
    %4826 = vmatprep.subr.mxu0 0.0
    %4827 = vmatpush1.msra.mxu0 0.0
    %4828 = vmatprep.subr.mxu0 0.0
    %4829 = vmatpush1.msra.mxu0 0.0
    %4830 = vmatprep.subr.mxu0 0.0
    %4831 = vmatpush1.msra.mxu0 0.0
    %4832 = vmatprep.subr.mxu0 0.0
    %4833 = vmatpush1.msra.mxu0 0.0
    %4834 = vmatprep.subr.mxu0 0.0
    %4835 = vmatpush1.msra.mxu0 0.0
    %4836 = vmatprep.subr.mxu0 0.0
    %4837 = vmatpush1.msra.mxu0 0.0
    %4838 = vmatprep.subr.mxu0 0.0
    %4839 = vmatpush1.msra.mxu0 0.0
    %4840 = vmatprep.subr.mxu0 0.0
    %4841 = vmatpush1.msra.mxu0 0.0
    %4842 = vmatprep.subr.mxu0 0.0
    %4843 = vmatpush1.msra.mxu0 0.0
    %4844 = vmatprep.subr.mxu0 0.0
    %4845 = vmatpush1.msra.mxu0 0.0
    %4846 = vmatprep.subr.mxu0 0.0
    %4847 = vmatpush1.msra.mxu0 0.0
    %4848 = vmatprep.subr.mxu0 0.0
    %4849 = vmatpush1.msra.mxu0 0.0
    %4850 = vmatprep.subr.mxu0 0.0
    %4851 = vmatpush1.msra.mxu0 0.0
    %4852 = vmatprep.subr.mxu0 0.0
    %4853 = vmatpush1.msra.mxu0 0.0
    %4854 = vmatprep.subr.mxu0 0.0
    %4855 = vmatpush1.msra.mxu0 0.0
    %4856 = vmatprep.subr.mxu0 0.0
    %4857 = vmatpush1.msra.mxu0 0.0
    %4858 = vmatprep.subr.mxu0 0.0
    %4859 = vmatpush1.msra.mxu0 0.0
    %4860 = vmatprep.mubr.f32.mxu0 0.0
    %4861 = vmatmul.mubr.f32.gmra.mrb[0].mxu0 %v4794
    %v4862 = vpop.f32.mrb[0].mxu0
    %v4863 = vadd.f32 %v65, %v4862
    %v4864 = vpop.f32.mrb[0].mxu0
    %4865 = vdwg.mxu0
    %v4866 = vxor.u32 %v4863, 2147483648
    %v4867 = vmul.f32 %v4866, 1.442695
    %v4868 = vpow.pop %v4867
    %v4869 = vadd.f32 %v4868, 1.0
    %v4870 = vrcp.pop %v4869
    %v4871 = vmul.f32 1.0, %v4870
    %v4872 = vmul.f32 %v4871, 0.875
    %v4873 = vadd.f32 %v4872, 0.125
    %4874 = vrot.lane.b32.xlu0 %v4781, 16
    %v4875 = vpop.permute.xlu0 %4874
    %v4877 = vmul.f32 %v4871, %v4875
    %4879 = vrot.lane.b32.xlu0 %v4877, 16
    %v4880 = vpop.permute.xlu0 %4879
    %v4882 = vsel %vm54, %v4779, %v4880
    %v4883 = vld [vmem:[%s4] sm:$0xff]
    %v4884 = vld [vmem:[%s4 + $0x8] sm:$0xff]
    %v4885 = vld [vmem:[%s4 + $0x10] sm:$0xff]
    %v4886 = vld [vmem:[%s4 + $0x18] sm:$0xff]
    %v4887 = vld [vmem:[%s4 + $0x20] sm:$0xff]
    %v4888 = vld [vmem:[%s4 + $0x28] sm:$0xff]
    %v4890 = vsel %vm66, %v4882, 0
    %4892 = vmatprep.subr.mxu0 0.0
    %4893 = vmatpush1.msra.mxu0 %v4883
    %4894 = vmatprep.subr.mxu0 0.0
    %4895 = vmatpush1.msra.mxu0 %v4884
    %4896 = vmatprep.subr.mxu0 0.0
    %4897 = vmatpush1.msra.mxu0 %v4885
    %4898 = vmatprep.subr.mxu0 0.0
    %4899 = vmatpush1.msra.mxu0 %v4886
    %4900 = vmatprep.subr.mxu0 0.0
    %4901 = vmatpush1.msra.mxu0 %v4887
    %4902 = vmatprep.subr.mxu0 0.0
    %4903 = vmatpush1.msra.mxu0 %v4888
    %4904 = vmatprep.subr.mxu0 0.0
    %4905 = vmatpush1.msra.mxu0 0.0
    %4906 = vmatprep.subr.mxu0 0.0
    %4907 = vmatpush1.msra.mxu0 0.0
    %4908 = vmatprep.subr.mxu0 0.0
    %4909 = vmatpush1.msra.mxu0 0.0
    %4910 = vmatprep.subr.mxu0 0.0
    %4911 = vmatpush1.msra.mxu0 0.0
    %4912 = vmatprep.subr.mxu0 0.0
    %4913 = vmatpush1.msra.mxu0 0.0
    %4914 = vmatprep.subr.mxu0 0.0
    %4915 = vmatpush1.msra.mxu0 0.0
    %4916 = vmatprep.subr.mxu0 0.0
    %4917 = vmatpush1.msra.mxu0 0.0
    %4918 = vmatprep.subr.mxu0 0.0
    %4919 = vmatpush1.msra.mxu0 0.0
    %4920 = vmatprep.subr.mxu0 0.0
    %4921 = vmatpush1.msra.mxu0 0.0
    %4922 = vmatprep.subr.mxu0 0.0
    %4923 = vmatpush1.msra.mxu0 0.0
    %4924 = vmatprep.subr.mxu0 0.0
    %4925 = vmatpush1.msra.mxu0 0.0
    %4926 = vmatprep.subr.mxu0 0.0
    %4927 = vmatpush1.msra.mxu0 0.0
    %4928 = vmatprep.subr.mxu0 0.0
    %4929 = vmatpush1.msra.mxu0 0.0
    %4930 = vmatprep.subr.mxu0 0.0
    %4931 = vmatpush1.msra.mxu0 0.0
    %4932 = vmatprep.subr.mxu0 0.0
    %4933 = vmatpush1.msra.mxu0 0.0
    %4934 = vmatprep.subr.mxu0 0.0
    %4935 = vmatpush1.msra.mxu0 0.0
    %4936 = vmatprep.subr.mxu0 0.0
    %4937 = vmatpush1.msra.mxu0 0.0
    %4938 = vmatprep.subr.mxu0 0.0
    %4939 = vmatpush1.msra.mxu0 0.0
    %4940 = vmatprep.subr.mxu0 0.0
    %4941 = vmatpush1.msra.mxu0 0.0
    %4942 = vmatprep.subr.mxu0 0.0
    %4943 = vmatpush1.msra.mxu0 0.0
    %4944 = vmatprep.subr.mxu0 0.0
    %4945 = vmatpush1.msra.mxu0 0.0
    %4946 = vmatprep.subr.mxu0 0.0
    %4947 = vmatpush1.msra.mxu0 0.0
    %4948 = vmatprep.subr.mxu0 0.0
    %4949 = vmatpush1.msra.mxu0 0.0
    %4950 = vmatprep.subr.mxu0 0.0
    %4951 = vmatpush1.msra.mxu0 0.0
    %4952 = vmatprep.subr.mxu0 0.0
    %4953 = vmatpush1.msra.mxu0 0.0
    %4954 = vmatprep.subr.mxu0 0.0
    %4955 = vmatpush1.msra.mxu0 0.0
    %4956 = vmatprep.mubr.f32.mxu0 0.0
    %4957 = vmatmul.mubr.f32.gmra.mrb[0].mxu0 %v4890
    %v4958 = vpop.f32.mrb[0].mxu0
    %v4959 = vadd.f32 %v163, %v4958
    %v4960 = vpop.f32.mrb[0].mxu0
    %4961 = vdwg.mxu0
    %v4962 = vtanh.pop %v4959
    %v4963 = vmul.f32 %v4873, %v4190
    %v4964 = vfloor.f32 %v4963
    %v4965 = vcvt.f32.s32.to.zero.pseudo %v4964
    %v4966 = vsub.f32 1.0, %v4873
    %v4967 = vmul.f32 %v4966, %v4962
    %v4968 = vmul.f32 %v4967, 8388608.0
    %v4969 = vfloor.f32 %v4968
    %v4970 = vcvt.f32.s32.to.zero.pseudo %v4969
    %v4971 = vadd.s32 %v4965, %v4970
    %v4972 = vcvt.s32.f32 %v4971
    %v4973 = vmul.f32 %v4972, 1.1920929e-07
    %4975 = vrot.lane.b32.xlu0 %v4973, 32
    %v4976 = vpop.permute.xlu0 %4975
    %v4978 = vsel %vm54, %v4779, %v4976
    %v4979 = vld [vmem:[%s6] sm:$0xff]
    %v4980 = vld [vmem:[%s6 + $0x8] sm:$0xff]
    %v4981 = vld [vmem:[%s6 + $0x10] sm:$0xff]
    %v4982 = vld [vmem:[%s6 + $0x18] sm:$0xff]
    %v4983 = vld [vmem:[%s6 + $0x20] sm:$0xff]
    %v4984 = vld [vmem:[%s6 + $0x28] sm:$0xff]
    %v4986 = vsel %vm66, %v4978, 0
    %4988 = vmatprep.subr.mxu0 0.0
    %4989 = vmatpush1.msra.mxu0 %v4979
    %4990 = vmatprep.subr.mxu0 0.0
    %4991 = vmatpush1.msra.mxu0 %v4980
    %4992 = vmatprep.subr.mxu0 0.0
    %4993 = vmatpush1.msra.mxu0 %v4981
    %4994 = vmatprep.subr.mxu0 0.0
    %4995 = vmatpush1.msra.mxu0 %v4982
    %4996 = vmatprep.subr.mxu0 0.0
    %4997 = vmatpush1.msra.mxu0 %v4983
    %4998 = vmatprep.subr.mxu0 0.0
    %4999 = vmatpush1.msra.mxu0 %v4984
    %5000 = vmatprep.subr.mxu0 0.0
    %5001 = vmatpush1.msra.mxu0 0.0
    %5002 = vmatprep.subr.mxu0 0.0
    %5003 = vmatpush1.msra.mxu0 0.0
    %5004 = vmatprep.subr.mxu0 0.0
    %5005 = vmatpush1.msra.mxu0 0.0
    %5006 = vmatprep.subr.mxu0 0.0
    %5007 = vmatpush1.msra.mxu0 0.0
    %5008 = vmatprep.subr.mxu0 0.0
    %5009 = vmatpush1.msra.mxu0 0.0
    %5010 = vmatprep.subr.mxu0 0.0
    %5011 = vmatpush1.msra.mxu0 0.0
    %5012 = vmatprep.subr.mxu0 0.0
    %5013 = vmatpush1.msra.mxu0 0.0
    %5014 = vmatprep.subr.mxu0 0.0
    %5015 = vmatpush1.msra.mxu0 0.0
    %5016 = vmatprep.subr.mxu0 0.0
    %5017 = vmatpush1.msra.mxu0 0.0
    %5018 = vmatprep.subr.mxu0 0.0
    %5019 = vmatpush1.msra.mxu0 0.0
    %5020 = vmatprep.subr.mxu0 0.0
    %5021 = vmatpush1.msra.mxu0 0.0
    %5022 = vmatprep.subr.mxu0 0.0
    %5023 = vmatpush1.msra.mxu0 0.0
    %5024 = vmatprep.subr.mxu0 0.0
    %5025 = vmatpush1.msra.mxu0 0.0
    %5026 = vmatprep.subr.mxu0 0.0
    %5027 = vmatpush1.msra.mxu0 0.0
    %5028 = vmatprep.subr.mxu0 0.0
    %5029 = vmatpush1.msra.mxu0 0.0
    %5030 = vmatprep.subr.mxu0 0.0
    %5031 = vmatpush1.msra.mxu0 0.0
    %5032 = vmatprep.subr.mxu0 0.0
    %5033 = vmatpush1.msra.mxu0 0.0
    %5034 = vmatprep.subr.mxu0 0.0
    %5035 = vmatpush1.msra.mxu0 0.0
    %5036 = vmatprep.subr.mxu0 0.0
    %5037 = vmatpush1.msra.mxu0 0.0
    %5038 = vmatprep.subr.mxu0 0.0
    %5039 = vmatpush1.msra.mxu0 0.0
    %5040 = vmatprep.subr.mxu0 0.0
    %5041 = vmatpush1.msra.mxu0 0.0
    %5042 = vmatprep.subr.mxu0 0.0
    %5043 = vmatpush1.msra.mxu0 0.0
    %5044 = vmatprep.subr.mxu0 0.0
    %5045 = vmatpush1.msra.mxu0 0.0
    %5046 = vmatprep.subr.mxu0 0.0
    %5047 = vmatpush1.msra.mxu0 0.0
    %5048 = vmatprep.subr.mxu0 0.0
    %5049 = vmatpush1.msra.mxu0 0.0
    %5050 = vmatprep.subr.mxu0 0.0
    %5051 = vmatpush1.msra.mxu0 0.0
    %5052 = vmatprep.mubr.f32.mxu0 0.0
    %5053 = vmatmul.mubr.f32.gmra.mrb[0].mxu0 %v4986
    %v5054 = vpop.f32.mrb[0].mxu0
    %v5055 = vadd.f32 %v263, %v5054
    %v5056 = vpop.f32.mrb[0].mxu0
    %5057 = vdwg.mxu0
    %v5058 = vxor.u32 %v5055, 2147483648
    %v5059 = vmul.f32 %v5058, 1.442695
    %v5060 = vpow.pop %v5059
    %v5061 = vadd.f32 %v5060, 1.0
    %v5062 = vrcp.pop %v5061
    %v5063 = vmul.f32 1.0, %v5062
    %v5064 = vmul.f32 %v5063, 0.875
    %v5065 = vadd.f32 %v5064, 0.125
    %5066 = vrot.lane.b32.xlu0 %v4973, 16
    %v5067 = vpop.permute.xlu0 %5066
    %v5069 = vmul.f32 %v5063, %v5067
    %5071 = vrot.lane.b32.xlu0 %v5069, 16
    %v5072 = vpop.permute.xlu0 %5071
    %v5074 = vsel %vm54, %v4779, %v5072
    %v5075 = vld [vmem:[%s8] sm:$0xff]
    %v5076 = vld [vmem:[%s8 + $0x8] sm:$0xff]
    %v5077 = vld [vmem:[%s8 + $0x10] sm:$0xff]
    %v5078 = vld [vmem:[%s8 + $0x18] sm:$0xff]
    %v5079 = vld [vmem:[%s8 + $0x20] sm:$0xff]
    %v5080 = vld [vmem:[%s8 + $0x28] sm:$0xff]
    %v5082 = vsel %vm66, %v5074, 0
    %5084 = vmatprep.subr.mxu0 0.0
    %5085 = vmatpush1.msra.mxu0 %v5075
    %5086 = vmatprep.subr.mxu0 0.0
    %5087 = vmatpush1.msra.mxu0 %v5076
    %5088 = vmatprep.subr.mxu0 0.0
    %5089 = vmatpush1.msra.mxu0 %v5077
    %5090 = vmatprep.subr.mxu0 0.0
    %5091 = vmatpush1.msra.mxu0 %v5078
    %5092 = vmatprep.subr.mxu0 0.0
    %5093 = vmatpush1.msra.mxu0 %v5079
    %5094 = vmatprep.subr.mxu0 0.0
    %5095 = vmatpush1.msra.mxu0 %v5080
    %5096 = vmatprep.subr.mxu0 0.0
    %5097 = vmatpush1.msra.mxu0 0.0
    %5098 = vmatprep.subr.mxu0 0.0
    %5099 = vmatpush1.msra.mxu0 0.0
    %5100 = vmatprep.subr.mxu0 0.0
    %5101 = vmatpush1.msra.mxu0 0.0
    %5102 = vmatprep.subr.mxu0 0.0
    %5103 = vmatpush1.msra.mxu0 0.0
    %5104 = vmatprep.subr.mxu0 0.0
    %5105 = vmatpush1.msra.mxu0 0.0
    %5106 = vmatprep.subr.mxu0 0.0
    %5107 = vmatpush1.msra.mxu0 0.0
    %5108 = vmatprep.subr.mxu0 0.0
    %5109 = vmatpush1.msra.mxu0 0.0
    %5110 = vmatprep.subr.mxu0 0.0
    %5111 = vmatpush1.msra.mxu0 0.0
    %5112 = vmatprep.subr.mxu0 0.0
    %5113 = vmatpush1.msra.mxu0 0.0
    %5114 = vmatprep.subr.mxu0 0.0
    %5115 = vmatpush1.msra.mxu0 0.0
    %5116 = vmatprep.subr.mxu0 0.0
    %5117 = vmatpush1.msra.mxu0 0.0
    %5118 = vmatprep.subr.mxu0 0.0
    %5119 = vmatpush1.msra.mxu0 0.0
    %5120 = vmatprep.subr.mxu0 0.0
    %5121 = vmatpush1.msra.mxu0 0.0
    %5122 = vmatprep.subr.mxu0 0.0
    %5123 = vmatpush1.msra.mxu0 0.0
    %5124 = vmatprep.subr.mxu0 0.0
    %5125 = vmatpush1.msra.mxu0 0.0
    %5126 = vmatprep.subr.mxu0 0.0
    %5127 = vmatpush1.msra.mxu0 0.0
    %5128 = vmatprep.subr.mxu0 0.0
    %5129 = vmatpush1.msra.mxu0 0.0
    %5130 = vmatprep.subr.mxu0 0.0
    %5131 = vmatpush1.msra.mxu0 0.0
    %5132 = vmatprep.subr.mxu0 0.0
    %5133 = vmatpush1.msra.mxu0 0.0
    %5134 = vmatprep.subr.mxu0 0.0
    %5135 = vmatpush1.msra.mxu0 0.0
    %5136 = vmatprep.subr.mxu0 0.0
    %5137 = vmatpush1.msra.mxu0 0.0
    %5138 = vmatprep.subr.mxu0 0.0
    %5139 = vmatpush1.msra.mxu0 0.0
    %5140 = vmatprep.subr.mxu0 0.0
    %5141 = vmatpush1.msra.mxu0 0.0
    %5142 = vmatprep.subr.mxu0 0.0
    %5143 = vmatpush1.msra.mxu0 0.0
    %5144 = vmatprep.subr.mxu0 0.0
    %5145 = vmatpush1.msra.mxu0 0.0
    %5146 = vmatprep.subr.mxu0 0.0
    %5147 = vmatpush1.msra.mxu0 0.0
    %5148 = vmatprep.mubr.f32.mxu0 0.0
    %5149 = vmatmul.mubr.f32.gmra.mrb[0].mxu0 %v5082
    %v5150 = vpop.f32.mrb[0].mxu0
    %v5151 = vadd.f32 %v363, %v5150
    %v5152 = vpop.f32.mrb[0].mxu0
    %5153 = vdwg.mxu0
    %v5154 = vtanh.pop %v5151
    %v5155 = vmul.f32 %v5065, %v4780
    %v5156 = vfloor.f32 %v5155
    %v5157 = vcvt.f32.s32.to.zero.pseudo %v5156
    %v5158 = vsub.f32 1.0, %v5065
    %v5159 = vmul.f32 %v5158, %v5154
    %v5160 = vmul.f32 %v5159, 8388608.0
    %v5161 = vfloor.f32 %v5160
    %v5162 = vcvt.f32.s32.to.zero.pseudo %v5161
    %v5163 = vadd.s32 %v5157, %v5162
    %5164 = vrot.lane.b32.xlu0 %v5163, 16
    %v5165 = vpop.permute.xlu0 %5164
    %v5166 = vsel %vm453, %v4971, %v5165
    %s5167 = scalar_lea.vmem [#allocation2], 96
    %5168 = vst.msk [vmem:[%s5167] sm:$0xff] %vm54, %v5166
    %v5169 = vcvt.s32.f32 %v5166
    %v5170 = vmul.f32 %v5169, 1.1920929e-07
    %v5171 = vcvt.s32.f32 %v4772
    %v5172 = vmul.f32 %v5171, 1.1920929e-07
    %5174 = vrot.lane.b32.xlu0 %v5172, 32
    %v5175 = vpop.permute.xlu0 %5174
    %v5177 = vsel %vm54, %v5170, %v5175
    %v5178 = vld [vmem:[%s465] sm:$0xff]
    %v5179 = vld [vmem:[%s465 + $0x8] sm:$0xff]
    %v5180 = vld [vmem:[%s465 + $0x10] sm:$0xff]
    %v5181 = vld [vmem:[%s465 + $0x18] sm:$0xff]
    %v5182 = vld [vmem:[%s465 + $0x20] sm:$0xff]
    %v5183 = vld [vmem:[%s465 + $0x28] sm:$0xff]
    %v5185 = vsel %vm66, %v5177, 0
    %5187 = vmatprep.subr.mxu0 0.0
    %5188 = vmatpush1.msra.mxu0 %v5178
    %5189 = vmatprep.subr.mxu0 0.0
    %5190 = vmatpush1.msra.mxu0 %v5179
    %5191 = vmatprep.subr.mxu0 0.0
    %5192 = vmatpush1.msra.mxu0 %v5180
    %5193 = vmatprep.subr.mxu0 0.0
    %5194 = vmatpush1.msra.mxu0 %v5181
    %5195 = vmatprep.subr.mxu0 0.0
    %5196 = vmatpush1.msra.mxu0 %v5182
    %5197 = vmatprep.subr.mxu0 0.0
    %5198 = vmatpush1.msra.mxu0 %v5183
    %5199 = vmatprep.subr.mxu0 0.0
    %5200 = vmatpush1.msra.mxu0 0.0
    %5201 = vmatprep.subr.mxu0 0.0
    %5202 = vmatpush1.msra.mxu0 0.0
    %5203 = vmatprep.subr.mxu0 0.0
    %5204 = vmatpush1.msra.mxu0 0.0
    %5205 = vmatprep.subr.mxu0 0.0
    %5206 = vmatpush1.msra.mxu0 0.0
    %5207 = vmatprep.subr.mxu0 0.0
    %5208 = vmatpush1.msra.mxu0 0.0
    %5209 = vmatprep.subr.mxu0 0.0
    %5210 = vmatpush1.msra.mxu0 0.0
    %5211 = vmatprep.subr.mxu0 0.0
    %5212 = vmatpush1.msra.mxu0 0.0
    %5213 = vmatprep.subr.mxu0 0.0
    %5214 = vmatpush1.msra.mxu0 0.0
    %5215 = vmatprep.subr.mxu0 0.0
    %5216 = vmatpush1.msra.mxu0 0.0
    %5217 = vmatprep.subr.mxu0 0.0
    %5218 = vmatpush1.msra.mxu0 0.0
    %5219 = vmatprep.subr.mxu0 0.0
    %5220 = vmatpush1.msra.mxu0 0.0
    %5221 = vmatprep.subr.mxu0 0.0
    %5222 = vmatpush1.msra.mxu0 0.0
    %5223 = vmatprep.subr.mxu0 0.0
    %5224 = vmatpush1.msra.mxu0 0.0
    %5225 = vmatprep.subr.mxu0 0.0
    %5226 = vmatpush1.msra.mxu0 0.0
    %5227 = vmatprep.subr.mxu0 0.0
    %5228 = vmatpush1.msra.mxu0 0.0
    %5229 = vmatprep.subr.mxu0 0.0
    %5230 = vmatpush1.msra.mxu0 0.0
    %5231 = vmatprep.subr.mxu0 0.0
    %5232 = vmatpush1.msra.mxu0 0.0
    %5233 = vmatprep.subr.mxu0 0.0
    %5234 = vmatpush1.msra.mxu0 0.0
    %5235 = vmatprep.subr.mxu0 0.0
    %5236 = vmatpush1.msra.mxu0 0.0
    %5237 = vmatprep.subr.mxu0 0.0
    %5238 = vmatpush1.msra.mxu0 0.0
    %5239 = vmatprep.subr.mxu0 0.0
    %5240 = vmatpush1.msra.mxu0 0.0
    %5241 = vmatprep.subr.mxu0 0.0
    %5242 = vmatpush1.msra.mxu0 0.0
    %5243 = vmatprep.subr.mxu0 0.0
    %5244 = vmatpush1.msra.mxu0 0.0
    %5245 = vmatprep.subr.mxu0 0.0
    %5246 = vmatpush1.msra.mxu0 0.0
    %5247 = vmatprep.subr.mxu0 0.0
    %5248 = vmatpush1.msra.mxu0 0.0
    %5249 = vmatprep.subr.mxu0 0.0
    %5250 = vmatpush1.msra.mxu0 0.0
    %5251 = vmatprep.mubr.f32.mxu0 0.0
    %5252 = vmatmul.mubr.f32.gmra.mrb[0].mxu0 %v5185
    %v5253 = vpop.f32.mrb[0].mxu0
    %v5254 = vadd.f32 %v475, %v5253
    %v5255 = vpop.f32.mrb[0].mxu0
    %5256 = vdwg.mxu0
    %v5257 = vxor.u32 %v5254, 2147483648
    %v5258 = vmul.f32 %v5257, 1.442695
    %v5259 = vpow.pop %v5258
    %v5260 = vadd.f32 %v5259, 1.0
    %v5261 = vrcp.pop %v5260
    %v5262 = vmul.f32 1.0, %v5261
    %v5263 = vmul.f32 %v5262, 0.875
    %v5264 = vadd.f32 %v5263, 0.125
    %5265 = vrot.lane.b32.xlu0 %v5172, 16
    %v5266 = vpop.permute.xlu0 %5265
    %v5268 = vmul.f32 %v5262, %v5266
    %5270 = vrot.lane.b32.xlu0 %v5268, 16
    %v5271 = vpop.permute.xlu0 %5270
    %v5273 = vsel %vm54, %v5170, %v5271
    %v5274 = vld [vmem:[%s563] sm:$0xff]
    %v5275 = vld [vmem:[%s563 + $0x8] sm:$0xff]
    %v5276 = vld [vmem:[%s563 + $0x10] sm:$0xff]
    %v5277 = vld [vmem:[%s563 + $0x18] sm:$0xff]
    %v5278 = vld [vmem:[%s563 + $0x20] sm:$0xff]
    %v5279 = vld [vmem:[%s563 + $0x28] sm:$0xff]
    %v5281 = vsel %vm66, %v5273, 0
    %5283 = vmatprep.subr.mxu0 0.0
    %5284 = vmatpush1.msra.mxu0 %v5274
    %5285 = vmatprep.subr.mxu0 0.0
    %5286 = vmatpush1.msra.mxu0 %v5275
    %5287 = vmatprep.subr.mxu0 0.0
    %5288 = vmatpush1.msra.mxu0 %v5276
    %5289 = vmatprep.subr.mxu0 0.0
    %5290 = vmatpush1.msra.mxu0 %v5277
    %5291 = vmatprep.subr.mxu0 0.0
    %5292 = vmatpush1.msra.mxu0 %v5278
    %5293 = vmatprep.subr.mxu0 0.0
    %5294 = vmatpush1.msra.mxu0 %v5279
    %5295 = vmatprep.subr.mxu0 0.0
    %5296 = vmatpush1.msra.mxu0 0.0
    %5297 = vmatprep.subr.mxu0 0.0
    %5298 = vmatpush1.msra.mxu0 0.0
    %5299 = vmatprep.subr.mxu0 0.0
    %5300 = vmatpush1.msra.mxu0 0.0
    %5301 = vmatprep.subr.mxu0 0.0
    %5302 = vmatpush1.msra.mxu0 0.0
    %5303 = vmatprep.subr.mxu0 0.0
    %5304 = vmatpush1.msra.mxu0 0.0
    %5305 = vmatprep.subr.mxu0 0.0
    %5306 = vmatpush1.msra.mxu0 0.0
    %5307 = vmatprep.subr.mxu0 0.0
    %5308 = vmatpush1.msra.mxu0 0.0
    %5309 = vmatprep.subr.mxu0 0.0
    %5310 = vmatpush1.msra.mxu0 0.0
    %5311 = vmatprep.subr.mxu0 0.0
    %5312 = vmatpush1.msra.mxu0 0.0
    %5313 = vmatprep.subr.mxu0 0.0
    %5314 = vmatpush1.msra.mxu0 0.0
    %5315 = vmatprep.subr.mxu0 0.0
    %5316 = vmatpush1.msra.mxu0 0.0
    %5317 = vmatprep.subr.mxu0 0.0
    %5318 = vmatpush1.msra.mxu0 0.0
    %5319 = vmatprep.subr.mxu0 0.0
    %5320 = vmatpush1.msra.mxu0 0.0
    %5321 = vmatprep.subr.mxu0 0.0
    %5322 = vmatpush1.msra.mxu0 0.0
    %5323 = vmatprep.subr.mxu0 0.0
    %5324 = vmatpush1.msra.mxu0 0.0
    %5325 = vmatprep.subr.mxu0 0.0
    %5326 = vmatpush1.msra.mxu0 0.0
    %5327 = vmatprep.subr.mxu0 0.0
    %5328 = vmatpush1.msra.mxu0 0.0
    %5329 = vmatprep.subr.mxu0 0.0
    %5330 = vmatpush1.msra.mxu0 0.0
    %5331 = vmatprep.subr.mxu0 0.0
    %5332 = vmatpush1.msra.mxu0 0.0
    %5333 = vmatprep.subr.mxu0 0.0
    %5334 = vmatpush1.msra.mxu0 0.0
    %5335 = vmatprep.subr.mxu0 0.0
    %5336 = vmatpush1.msra.mxu0 0.0
    %5337 = vmatprep.subr.mxu0 0.0
    %5338 = vmatpush1.msra.mxu0 0.0
    %5339 = vmatprep.subr.mxu0 0.0
    %5340 = vmatpush1.msra.mxu0 0.0
    %5341 = vmatprep.subr.mxu0 0.0
    %5342 = vmatpush1.msra.mxu0 0.0
    %5343 = vmatprep.subr.mxu0 0.0
    %5344 = vmatpush1.msra.mxu0 0.0
    %5345 = vmatprep.subr.mxu0 0.0
    %5346 = vmatpush1.msra.mxu0 0.0
    %5347 = vmatprep.mubr.f32.mxu0 0.0
    %5348 = vmatmul.mubr.f32.gmra.mrb[0].mxu0 %v5281
    %v5349 = vpop.f32.mrb[0].mxu0
    %v5350 = vadd.f32 %v573, %v5349
    %v5351 = vpop.f32.mrb[0].mxu0
    %5352 = vdwg.mxu0
    %v5353 = vtanh.pop %v5350
    %v5354 = vmul.f32 %v5264, %v4581
    %v5355 = vfloor.f32 %v5354
    %v5356 = vcvt.f32.s32.to.zero.pseudo %v5355
    %v5357 = vsub.f32 1.0, %v5264
    %v5358 = vmul.f32 %v5357, %v5353
    %v5359 = vmul.f32 %v5358, 8388608.0
    %v5360 = vfloor.f32 %v5359
    %v5361 = vcvt.f32.s32.to.zero.pseudo %v5360
    %v5362 = vadd.s32 %v5356, %v5361
    %v5363 = vcvt.s32.f32 %v5362
    %v5364 = vmul.f32 %v5363, 1.1920929e-07
    %5366 = vrot.lane.b32.xlu0 %v5364, 32
    %v5367 = vpop.permute.xlu0 %5366
    %v5369 = vsel %vm54, %v5170, %v5367
    %v5370 = vld [vmem:[%s664] sm:$0xff]
    %v5371 = vld [vmem:[%s664 + $0x8] sm:$0xff]
    %v5372 = vld [vmem:[%s664 + $0x10] sm:$0xff]
    %v5373 = vld [vmem:[%s664 + $0x18] sm:$0xff]
    %v5374 = vld [vmem:[%s664 + $0x20] sm:$0xff]
    %v5375 = vld [vmem:[%s664 + $0x28] sm:$0xff]
    %v5377 = vsel %vm66, %v5369, 0
    %5379 = vmatprep.subr.mxu0 0.0
    %5380 = vmatpush1.msra.mxu0 %v5370
    %5381 = vmatprep.subr.mxu0 0.0
    %5382 = vmatpush1.msra.mxu0 %v5371
    %5383 = vmatprep.subr.mxu0 0.0
    %5384 = vmatpush1.msra.mxu0 %v5372
    %5385 = vmatprep.subr.mxu0 0.0
    %5386 = vmatpush1.msra.mxu0 %v5373
    %5387 = vmatprep.subr.mxu0 0.0
    %5388 = vmatpush1.msra.mxu0 %v5374
    %5389 = vmatprep.subr.mxu0 0.0
    %5390 = vmatpush1.msra.mxu0 %v5375
    %5391 = vmatprep.subr.mxu0 0.0
    %5392 = vmatpush1.msra.mxu0 0.0
    %5393 = vmatprep.subr.mxu0 0.0
    %5394 = vmatpush1.msra.mxu0 0.0
    %5395 = vmatprep.subr.mxu0 0.0
    %5396 = vmatpush1.msra.mxu0 0.0
    %5397 = vmatprep.subr.mxu0 0.0
    %5398 = vmatpush1.msra.mxu0 0.0
    %5399 = vmatprep.subr.mxu0 0.0
    %5400 = vmatpush1.msra.mxu0 0.0
    %5401 = vmatprep.subr.mxu0 0.0
    %5402 = vmatpush1.msra.mxu0 0.0
    %5403 = vmatprep.subr.mxu0 0.0
    %5404 = vmatpush1.msra.mxu0 0.0
    %5405 = vmatprep.subr.mxu0 0.0
    %5406 = vmatpush1.msra.mxu0 0.0
    %5407 = vmatprep.subr.mxu0 0.0
    %5408 = vmatpush1.msra.mxu0 0.0
    %5409 = vmatprep.subr.mxu0 0.0
    %5410 = vmatpush1.msra.mxu0 0.0
    %5411 = vmatprep.subr.mxu0 0.0
    %5412 = vmatpush1.msra.mxu0 0.0
    %5413 = vmatprep.subr.mxu0 0.0
    %5414 = vmatpush1.msra.mxu0 0.0
    %5415 = vmatprep.subr.mxu0 0.0
    %5416 = vmatpush1.msra.mxu0 0.0
    %5417 = vmatprep.subr.mxu0 0.0
    %5418 = vmatpush1.msra.mxu0 0.0
    %5419 = vmatprep.subr.mxu0 0.0
    %5420 = vmatpush1.msra.mxu0 0.0
    %5421 = vmatprep.subr.mxu0 0.0
    %5422 = vmatpush1.msra.mxu0 0.0
    %5423 = vmatprep.subr.mxu0 0.0
    %5424 = vmatpush1.msra.mxu0 0.0
    %5425 = vmatprep.subr.mxu0 0.0
    %5426 = vmatpush1.msra.mxu0 0.0
    %5427 = vmatprep.subr.mxu0 0.0
    %5428 = vmatpush1.msra.mxu0 0.0
    %5429 = vmatprep.subr.mxu0 0.0
    %5430 = vmatpush1.msra.mxu0 0.0
    %5431 = vmatprep.subr.mxu0 0.0
    %5432 = vmatpush1.msra.mxu0 0.0
    %5433 = vmatprep.subr.mxu0 0.0
    %5434 = vmatpush1.msra.mxu0 0.0
    %5435 = vmatprep.subr.mxu0 0.0
    %5436 = vmatpush1.msra.mxu0 0.0
    %5437 = vmatprep.subr.mxu0 0.0
    %5438 = vmatpush1.msra.mxu0 0.0
    %5439 = vmatprep.subr.mxu0 0.0
    %5440 = vmatpush1.msra.mxu0 0.0
    %5441 = vmatprep.subr.mxu0 0.0
    %5442 = vmatpush1.msra.mxu0 0.0
    %5443 = vmatprep.mubr.f32.mxu0 0.0
    %5444 = vmatmul.mubr.f32.gmra.mrb[0].mxu0 %v5377
    %v5445 = vpop.f32.mrb[0].mxu0
    %v5446 = vadd.f32 %v674, %v5445
    %v5447 = vpop.f32.mrb[0].mxu0
    %5448 = vdwg.mxu0
    %v5449 = vxor.u32 %v5446, 2147483648
    %v5450 = vmul.f32 %v5449, 1.442695
    %v5451 = vpow.pop %v5450
    %v5452 = vadd.f32 %v5451, 1.0
    %v5453 = vrcp.pop %v5452
    %v5454 = vmul.f32 1.0, %v5453
    %v5455 = vmul.f32 %v5454, 0.875
    %v5456 = vadd.f32 %v5455, 0.125
    %5457 = vrot.lane.b32.xlu0 %v5364, 16
    %v5458 = vpop.permute.xlu0 %5457
    %v5460 = vmul.f32 %v5454, %v5458
    %5462 = vrot.lane.b32.xlu0 %v5460, 16
    %v5463 = vpop.permute.xlu0 %5462
    %v5465 = vsel %vm54, %v5170, %v5463
    %v5466 = vld [vmem:[%s765] sm:$0xff]
    %v5467 = vld [vmem:[%s765 + $0x8] sm:$0xff]
    %v5468 = vld [vmem:[%s765 + $0x10] sm:$0xff]
    %v5469 = vld [vmem:[%s765 + $0x18] sm:$0xff]
    %v5470 = vld [vmem:[%s765 + $0x20] sm:$0xff]
    %v5471 = vld [vmem:[%s765 + $0x28] sm:$0xff]
    %v5473 = vsel %vm66, %v5465, 0
    %5475 = vmatprep.subr.mxu0 0.0
    %5476 = vmatpush1.msra.mxu0 %v5466
    %5477 = vmatprep.subr.mxu0 0.0
    %5478 = vmatpush1.msra.mxu0 %v5467
    %5479 = vmatprep.subr.mxu0 0.0
    %5480 = vmatpush1.msra.mxu0 %v5468
    %5481 = vmatprep.subr.mxu0 0.0
    %5482 = vmatpush1.msra.mxu0 %v5469
    %5483 = vmatprep.subr.mxu0 0.0
    %5484 = vmatpush1.msra.mxu0 %v5470
    %5485 = vmatprep.subr.mxu0 0.0
    %5486 = vmatpush1.msra.mxu0 %v5471
    %5487 = vmatprep.subr.mxu0 0.0
    %5488 = vmatpush1.msra.mxu0 0.0
    %5489 = vmatprep.subr.mxu0 0.0
    %5490 = vmatpush1.msra.mxu0 0.0
    %5491 = vmatprep.subr.mxu0 0.0
    %5492 = vmatpush1.msra.mxu0 0.0
    %5493 = vmatprep.subr.mxu0 0.0
    %5494 = vmatpush1.msra.mxu0 0.0
    %5495 = vmatprep.subr.mxu0 0.0
    %5496 = vmatpush1.msra.mxu0 0.0
    %5497 = vmatprep.subr.mxu0 0.0
    %5498 = vmatpush1.msra.mxu0 0.0
    %5499 = vmatprep.subr.mxu0 0.0
    %5500 = vmatpush1.msra.mxu0 0.0
    %5501 = vmatprep.subr.mxu0 0.0
    %5502 = vmatpush1.msra.mxu0 0.0
    %5503 = vmatprep.subr.mxu0 0.0
    %5504 = vmatpush1.msra.mxu0 0.0
    %5505 = vmatprep.subr.mxu0 0.0
    %5506 = vmatpush1.msra.mxu0 0.0
    %5507 = vmatprep.subr.mxu0 0.0
    %5508 = vmatpush1.msra.mxu0 0.0
    %5509 = vmatprep.subr.mxu0 0.0
    %5510 = vmatpush1.msra.mxu0 0.0
    %5511 = vmatprep.subr.mxu0 0.0
    %5512 = vmatpush1.msra.mxu0 0.0
    %5513 = vmatprep.subr.mxu0 0.0
    %5514 = vmatpush1.msra.mxu0 0.0
    %5515 = vmatprep.subr.mxu0 0.0
    %5516 = vmatpush1.msra.mxu0 0.0
    %5517 = vmatprep.subr.mxu0 0.0
    %5518 = vmatpush1.msra.mxu0 0.0
    %5519 = vmatprep.subr.mxu0 0.0
    %5520 = vmatpush1.msra.mxu0 0.0
    %5521 = vmatprep.subr.mxu0 0.0
    %5522 = vmatpush1.msra.mxu0 0.0
    %5523 = vmatprep.subr.mxu0 0.0
    %5524 = vmatpush1.msra.mxu0 0.0
    %5525 = vmatprep.subr.mxu0 0.0
    %5526 = vmatpush1.msra.mxu0 0.0
    %5527 = vmatprep.subr.mxu0 0.0
    %5528 = vmatpush1.msra.mxu0 0.0
    %5529 = vmatprep.subr.mxu0 0.0
    %5530 = vmatpush1.msra.mxu0 0.0
    %5531 = vmatprep.subr.mxu0 0.0
    %5532 = vmatpush1.msra.mxu0 0.0
    %5533 = vmatprep.subr.mxu0 0.0
    %5534 = vmatpush1.msra.mxu0 0.0
    %5535 = vmatprep.subr.mxu0 0.0
    %5536 = vmatpush1.msra.mxu0 0.0
    %5537 = vmatprep.subr.mxu0 0.0
    %5538 = vmatpush1.msra.mxu0 0.0
    %5539 = vmatprep.mubr.f32.mxu0 0.0
    %5540 = vmatmul.mubr.f32.gmra.mrb[0].mxu0 %v5473
    %v5541 = vpop.f32.mrb[0].mxu0
    %v5542 = vadd.f32 %v775, %v5541
    %v5543 = vpop.f32.mrb[0].mxu0
    %5544 = vdwg.mxu0
    %v5545 = vtanh.pop %v5542
    %v5546 = vmul.f32 %v5456, %v5171
    %v5547 = vfloor.f32 %v5546
    %v5548 = vcvt.f32.s32.to.zero.pseudo %v5547
    %v5549 = vsub.f32 1.0, %v5456
    %v5550 = vmul.f32 %v5549, %v5545
    %v5551 = vmul.f32 %v5550, 8388608.0
    %v5552 = vfloor.f32 %v5551
    %v5553 = vcvt.f32.s32.to.zero.pseudo %v5552
    %v5554 = vadd.s32 %v5548, %v5553
    %5555 = vrot.lane.b32.xlu0 %v5554, 16
    %v5556 = vpop.permute.xlu0 %5555
    %v5557 = vsel %vm453, %v5362, %v5556
    %s5558 = scalar_lea.vmem [#allocation2], 104
    %5559 = vst.msk [vmem:[%s5558] sm:$0xff] %vm54, %v5557
    %s5560 = scalar_lea.vmem %s0, 56
    %v5561 = vld [vmem:[%s5560] sm:$0xff]
    %v5562 = vcvt.s32.f32 %v5163
    %v5563 = vmul.f32 %v5562, 1.1920929e-07
    %5565 = vrot.lane.b32.xlu0 %v5563, 32
    %v5566 = vpop.permute.xlu0 %5565
    %v5568 = vsel %vm54, %v5561, %v5566
    %v5569 = vld [vmem:[%s2] sm:$0xff]
    %v5570 = vld [vmem:[%s2 + $0x8] sm:$0xff]
    %v5571 = vld [vmem:[%s2 + $0x10] sm:$0xff]
    %v5572 = vld [vmem:[%s2 + $0x18] sm:$0xff]
    %v5573 = vld [vmem:[%s2 + $0x20] sm:$0xff]
    %v5574 = vld [vmem:[%s2 + $0x28] sm:$0xff]
    %v5576 = vsel %vm66, %v5568, 0
    %5578 = vmatprep.subr.mxu0 0.0
    %5579 = vmatpush1.msra.mxu0 %v5569
    %5580 = vmatprep.subr.mxu0 0.0
    %5581 = vmatpush1.msra.mxu0 %v5570
    %5582 = vmatprep.subr.mxu0 0.0
    %5583 = vmatpush1.msra.mxu0 %v5571
    %5584 = vmatprep.subr.mxu0 0.0
    %5585 = vmatpush1.msra.mxu0 %v5572
    %5586 = vmatprep.subr.mxu0 0.0
    %5587 = vmatpush1.msra.mxu0 %v5573
    %5588 = vmatprep.subr.mxu0 0.0
    %5589 = vmatpush1.msra.mxu0 %v5574
    %5590 = vmatprep.subr.mxu0 0.0
    %5591 = vmatpush1.msra.mxu0 0.0
    %5592 = vmatprep.subr.mxu0 0.0
    %5593 = vmatpush1.msra.mxu0 0.0
    %5594 = vmatprep.subr.mxu0 0.0
    %5595 = vmatpush1.msra.mxu0 0.0
    %5596 = vmatprep.subr.mxu0 0.0
    %5597 = vmatpush1.msra.mxu0 0.0
    %5598 = vmatprep.subr.mxu0 0.0
    %5599 = vmatpush1.msra.mxu0 0.0
    %5600 = vmatprep.subr.mxu0 0.0
    %5601 = vmatpush1.msra.mxu0 0.0
    %5602 = vmatprep.subr.mxu0 0.0
    %5603 = vmatpush1.msra.mxu0 0.0
    %5604 = vmatprep.subr.mxu0 0.0
    %5605 = vmatpush1.msra.mxu0 0.0
    %5606 = vmatprep.subr.mxu0 0.0
    %5607 = vmatpush1.msra.mxu0 0.0
    %5608 = vmatprep.subr.mxu0 0.0
    %5609 = vmatpush1.msra.mxu0 0.0
    %5610 = vmatprep.subr.mxu0 0.0
    %5611 = vmatpush1.msra.mxu0 0.0
    %5612 = vmatprep.subr.mxu0 0.0
    %5613 = vmatpush1.msra.mxu0 0.0
    %5614 = vmatprep.subr.mxu0 0.0
    %5615 = vmatpush1.msra.mxu0 0.0
    %5616 = vmatprep.subr.mxu0 0.0
    %5617 = vmatpush1.msra.mxu0 0.0
    %5618 = vmatprep.subr.mxu0 0.0
    %5619 = vmatpush1.msra.mxu0 0.0
    %5620 = vmatprep.subr.mxu0 0.0
    %5621 = vmatpush1.msra.mxu0 0.0
    %5622 = vmatprep.subr.mxu0 0.0
    %5623 = vmatpush1.msra.mxu0 0.0
    %5624 = vmatprep.subr.mxu0 0.0
    %5625 = vmatpush1.msra.mxu0 0.0
    %5626 = vmatprep.subr.mxu0 0.0
    %5627 = vmatpush1.msra.mxu0 0.0
    %5628 = vmatprep.subr.mxu0 0.0
    %5629 = vmatpush1.msra.mxu0 0.0
    %5630 = vmatprep.subr.mxu0 0.0
    %5631 = vmatpush1.msra.mxu0 0.0
    %5632 = vmatprep.subr.mxu0 0.0
    %5633 = vmatpush1.msra.mxu0 0.0
    %5634 = vmatprep.subr.mxu0 0.0
    %5635 = vmatpush1.msra.mxu0 0.0
    %5636 = vmatprep.subr.mxu0 0.0
    %5637 = vmatpush1.msra.mxu0 0.0
    %5638 = vmatprep.subr.mxu0 0.0
    %5639 = vmatpush1.msra.mxu0 0.0
    %5640 = vmatprep.subr.mxu0 0.0
    %5641 = vmatpush1.msra.mxu0 0.0
    %5642 = vmatprep.mubr.f32.mxu0 0.0
    %5643 = vmatmul.mubr.f32.gmra.mrb[0].mxu0 %v5576
    %v5644 = vpop.f32.mrb[0].mxu0
    %v5645 = vadd.f32 %v65, %v5644
    %v5646 = vpop.f32.mrb[0].mxu0
    %5647 = vdwg.mxu0
    %v5648 = vxor.u32 %v5645, 2147483648
    %v5649 = vmul.f32 %v5648, 1.442695
    %v5650 = vpow.pop %v5649
    %v5651 = vadd.f32 %v5650, 1.0
    %v5652 = vrcp.pop %v5651
    %v5653 = vmul.f32 1.0, %v5652
    %v5654 = vmul.f32 %v5653, 0.875
    %v5655 = vadd.f32 %v5654, 0.125
    %5656 = vrot.lane.b32.xlu0 %v5563, 16
    %v5657 = vpop.permute.xlu0 %5656
    %v5659 = vmul.f32 %v5653, %v5657
    %5661 = vrot.lane.b32.xlu0 %v5659, 16
    %v5662 = vpop.permute.xlu0 %5661
    %v5664 = vsel %vm54, %v5561, %v5662
    %v5665 = vld [vmem:[%s4] sm:$0xff]
    %v5666 = vld [vmem:[%s4 + $0x8] sm:$0xff]
    %v5667 = vld [vmem:[%s4 + $0x10] sm:$0xff]
    %v5668 = vld [vmem:[%s4 + $0x18] sm:$0xff]
    %v5669 = vld [vmem:[%s4 + $0x20] sm:$0xff]
    %v5670 = vld [vmem:[%s4 + $0x28] sm:$0xff]
    %v5672 = vsel %vm66, %v5664, 0
    %5674 = vmatprep.subr.mxu0 0.0
    %5675 = vmatpush1.msra.mxu0 %v5665
    %5676 = vmatprep.subr.mxu0 0.0
    %5677 = vmatpush1.msra.mxu0 %v5666
    %5678 = vmatprep.subr.mxu0 0.0
    %5679 = vmatpush1.msra.mxu0 %v5667
    %5680 = vmatprep.subr.mxu0 0.0
    %5681 = vmatpush1.msra.mxu0 %v5668
    %5682 = vmatprep.subr.mxu0 0.0
    %5683 = vmatpush1.msra.mxu0 %v5669
    %5684 = vmatprep.subr.mxu0 0.0
    %5685 = vmatpush1.msra.mxu0 %v5670
    %5686 = vmatprep.subr.mxu0 0.0
    %5687 = vmatpush1.msra.mxu0 0.0
    %5688 = vmatprep.subr.mxu0 0.0
    %5689 = vmatpush1.msra.mxu0 0.0
    %5690 = vmatprep.subr.mxu0 0.0
    %5691 = vmatpush1.msra.mxu0 0.0
    %5692 = vmatprep.subr.mxu0 0.0
    %5693 = vmatpush1.msra.mxu0 0.0
    %5694 = vmatprep.subr.mxu0 0.0
    %5695 = vmatpush1.msra.mxu0 0.0
    %5696 = vmatprep.subr.mxu0 0.0
    %5697 = vmatpush1.msra.mxu0 0.0
    %5698 = vmatprep.subr.mxu0 0.0
    %5699 = vmatpush1.msra.mxu0 0.0
    %5700 = vmatprep.subr.mxu0 0.0
    %5701 = vmatpush1.msra.mxu0 0.0
    %5702 = vmatprep.subr.mxu0 0.0
    %5703 = vmatpush1.msra.mxu0 0.0
    %5704 = vmatprep.subr.mxu0 0.0
    %5705 = vmatpush1.msra.mxu0 0.0
    %5706 = vmatprep.subr.mxu0 0.0
    %5707 = vmatpush1.msra.mxu0 0.0
    %5708 = vmatprep.subr.mxu0 0.0
    %5709 = vmatpush1.msra.mxu0 0.0
    %5710 = vmatprep.subr.mxu0 0.0
    %5711 = vmatpush1.msra.mxu0 0.0
    %5712 = vmatprep.subr.mxu0 0.0
    %5713 = vmatpush1.msra.mxu0 0.0
    %5714 = vmatprep.subr.mxu0 0.0
    %5715 = vmatpush1.msra.mxu0 0.0
    %5716 = vmatprep.subr.mxu0 0.0
    %5717 = vmatpush1.msra.mxu0 0.0
    %5718 = vmatprep.subr.mxu0 0.0
    %5719 = vmatpush1.msra.mxu0 0.0
    %5720 = vmatprep.subr.mxu0 0.0
    %5721 = vmatpush1.msra.mxu0 0.0
    %5722 = vmatprep.subr.mxu0 0.0
    %5723 = vmatpush1.msra.mxu0 0.0
    %5724 = vmatprep.subr.mxu0 0.0
    %5725 = vmatpush1.msra.mxu0 0.0
    %5726 = vmatprep.subr.mxu0 0.0
    %5727 = vmatpush1.msra.mxu0 0.0
    %5728 = vmatprep.subr.mxu0 0.0
    %5729 = vmatpush1.msra.mxu0 0.0
    %5730 = vmatprep.subr.mxu0 0.0
    %5731 = vmatpush1.msra.mxu0 0.0
    %5732 = vmatprep.subr.mxu0 0.0
    %5733 = vmatpush1.msra.mxu0 0.0
    %5734 = vmatprep.subr.mxu0 0.0
    %5735 = vmatpush1.msra.mxu0 0.0
    %5736 = vmatprep.subr.mxu0 0.0
    %5737 = vmatpush1.msra.mxu0 0.0
    %5738 = vmatprep.mubr.f32.mxu0 0.0
    %5739 = vmatmul.mubr.f32.gmra.mrb[0].mxu0 %v5672
    %v5740 = vpop.f32.mrb[0].mxu0
    %v5741 = vadd.f32 %v163, %v5740
    %v5742 = vpop.f32.mrb[0].mxu0
    %5743 = vdwg.mxu0
    %v5744 = vtanh.pop %v5741
    %v5745 = vmul.f32 %v5655, %v4972
    %v5746 = vfloor.f32 %v5745
    %v5747 = vcvt.f32.s32.to.zero.pseudo %v5746
    %v5748 = vsub.f32 1.0, %v5655
    %v5749 = vmul.f32 %v5748, %v5744
    %v5750 = vmul.f32 %v5749, 8388608.0
    %v5751 = vfloor.f32 %v5750
    %v5752 = vcvt.f32.s32.to.zero.pseudo %v5751
    %v5753 = vadd.s32 %v5747, %v5752
    %v5754 = vcvt.s32.f32 %v5753
    %v5755 = vmul.f32 %v5754, 1.1920929e-07
    %5757 = vrot.lane.b32.xlu0 %v5755, 32
    %v5758 = vpop.permute.xlu0 %5757
    %v5760 = vsel %vm54, %v5561, %v5758
    %v5761 = vld [vmem:[%s6] sm:$0xff]
    %v5762 = vld [vmem:[%s6 + $0x8] sm:$0xff]
    %v5763 = vld [vmem:[%s6 + $0x10] sm:$0xff]
    %v5764 = vld [vmem:[%s6 + $0x18] sm:$0xff]
    %v5765 = vld [vmem:[%s6 + $0x20] sm:$0xff]
    %v5766 = vld [vmem:[%s6 + $0x28] sm:$0xff]
    %v5768 = vsel %vm66, %v5760, 0
    %5770 = vmatprep.subr.mxu0 0.0
    %5771 = vmatpush1.msra.mxu0 %v5761
    %5772 = vmatprep.subr.mxu0 0.0
    %5773 = vmatpush1.msra.mxu0 %v5762
    %5774 = vmatprep.subr.mxu0 0.0
    %5775 = vmatpush1.msra.mxu0 %v5763
    %5776 = vmatprep.subr.mxu0 0.0
    %5777 = vmatpush1.msra.mxu0 %v5764
    %5778 = vmatprep.subr.mxu0 0.0
    %5779 = vmatpush1.msra.mxu0 %v5765
    %5780 = vmatprep.subr.mxu0 0.0
    %5781 = vmatpush1.msra.mxu0 %v5766
    %5782 = vmatprep.subr.mxu0 0.0
    %5783 = vmatpush1.msra.mxu0 0.0
    %5784 = vmatprep.subr.mxu0 0.0
    %5785 = vmatpush1.msra.mxu0 0.0
    %5786 = vmatprep.subr.mxu0 0.0
    %5787 = vmatpush1.msra.mxu0 0.0
    %5788 = vmatprep.subr.mxu0 0.0
    %5789 = vmatpush1.msra.mxu0 0.0
    %5790 = vmatprep.subr.mxu0 0.0
    %5791 = vmatpush1.msra.mxu0 0.0
    %5792 = vmatprep.subr.mxu0 0.0
    %5793 = vmatpush1.msra.mxu0 0.0
    %5794 = vmatprep.subr.mxu0 0.0
    %5795 = vmatpush1.msra.mxu0 0.0
    %5796 = vmatprep.subr.mxu0 0.0
    %5797 = vmatpush1.msra.mxu0 0.0
    %5798 = vmatprep.subr.mxu0 0.0
    %5799 = vmatpush1.msra.mxu0 0.0
    %5800 = vmatprep.subr.mxu0 0.0
    %5801 = vmatpush1.msra.mxu0 0.0
    %5802 = vmatprep.subr.mxu0 0.0
    %5803 = vmatpush1.msra.mxu0 0.0
    %5804 = vmatprep.subr.mxu0 0.0
    %5805 = vmatpush1.msra.mxu0 0.0
    %5806 = vmatprep.subr.mxu0 0.0
    %5807 = vmatpush1.msra.mxu0 0.0
    %5808 = vmatprep.subr.mxu0 0.0
    %5809 = vmatpush1.msra.mxu0 0.0
    %5810 = vmatprep.subr.mxu0 0.0
    %5811 = vmatpush1.msra.mxu0 0.0
    %5812 = vmatprep.subr.mxu0 0.0
    %5813 = vmatpush1.msra.mxu0 0.0
    %5814 = vmatprep.subr.mxu0 0.0
    %5815 = vmatpush1.msra.mxu0 0.0
    %5816 = vmatprep.subr.mxu0 0.0
    %5817 = vmatpush1.msra.mxu0 0.0
    %5818 = vmatprep.subr.mxu0 0.0
    %5819 = vmatpush1.msra.mxu0 0.0
    %5820 = vmatprep.subr.mxu0 0.0
    %5821 = vmatpush1.msra.mxu0 0.0
    %5822 = vmatprep.subr.mxu0 0.0
    %5823 = vmatpush1.msra.mxu0 0.0
    %5824 = vmatprep.subr.mxu0 0.0
    %5825 = vmatpush1.msra.mxu0 0.0
    %5826 = vmatprep.subr.mxu0 0.0
    %5827 = vmatpush1.msra.mxu0 0.0
    %5828 = vmatprep.subr.mxu0 0.0
    %5829 = vmatpush1.msra.mxu0 0.0
    %5830 = vmatprep.subr.mxu0 0.0
    %5831 = vmatpush1.msra.mxu0 0.0
    %5832 = vmatprep.subr.mxu0 0.0
    %5833 = vmatpush1.msra.mxu0 0.0
    %5834 = vmatprep.mubr.f32.mxu0 0.0
    %5835 = vmatmul.mubr.f32.gmra.mrb[0].mxu0 %v5768
    %v5836 = vpop.f32.mrb[0].mxu0
    %v5837 = vadd.f32 %v263, %v5836
    %v5838 = vpop.f32.mrb[0].mxu0
    %5839 = vdwg.mxu0
    %v5840 = vxor.u32 %v5837, 2147483648
    %v5841 = vmul.f32 %v5840, 1.442695
    %v5842 = vpow.pop %v5841
    %v5843 = vadd.f32 %v5842, 1.0
    %v5844 = vrcp.pop %v5843
    %v5845 = vmul.f32 1.0, %v5844
    %v5846 = vmul.f32 %v5845, 0.875
    %v5847 = vadd.f32 %v5846, 0.125
    %5848 = vrot.lane.b32.xlu0 %v5755, 16
    %v5849 = vpop.permute.xlu0 %5848
    %v5851 = vmul.f32 %v5845, %v5849
    %5853 = vrot.lane.b32.xlu0 %v5851, 16
    %v5854 = vpop.permute.xlu0 %5853
    %v5856 = vsel %vm54, %v5561, %v5854
    %v5857 = vld [vmem:[%s8] sm:$0xff]
    %v5858 = vld [vmem:[%s8 + $0x8] sm:$0xff]
    %v5859 = vld [vmem:[%s8 + $0x10] sm:$0xff]
    %v5860 = vld [vmem:[%s8 + $0x18] sm:$0xff]
    %v5861 = vld [vmem:[%s8 + $0x20] sm:$0xff]
    %v5862 = vld [vmem:[%s8 + $0x28] sm:$0xff]
    %v5864 = vsel %vm66, %v5856, 0
    %5866 = vmatprep.subr.mxu0 0.0
    %5867 = vmatpush1.msra.mxu0 %v5857
    %5868 = vmatprep.subr.mxu0 0.0
    %5869 = vmatpush1.msra.mxu0 %v5858
    %5870 = vmatprep.subr.mxu0 0.0
    %5871 = vmatpush1.msra.mxu0 %v5859
    %5872 = vmatprep.subr.mxu0 0.0
    %5873 = vmatpush1.msra.mxu0 %v5860
    %5874 = vmatprep.subr.mxu0 0.0
    %5875 = vmatpush1.msra.mxu0 %v5861
    %5876 = vmatprep.subr.mxu0 0.0
    %5877 = vmatpush1.msra.mxu0 %v5862
    %5878 = vmatprep.subr.mxu0 0.0
    %5879 = vmatpush1.msra.mxu0 0.0
    %5880 = vmatprep.subr.mxu0 0.0
    %5881 = vmatpush1.msra.mxu0 0.0
    %5882 = vmatprep.subr.mxu0 0.0
    %5883 = vmatpush1.msra.mxu0 0.0
    %5884 = vmatprep.subr.mxu0 0.0
    %5885 = vmatpush1.msra.mxu0 0.0
    %5886 = vmatprep.subr.mxu0 0.0
    %5887 = vmatpush1.msra.mxu0 0.0
    %5888 = vmatprep.subr.mxu0 0.0
    %5889 = vmatpush1.msra.mxu0 0.0
    %5890 = vmatprep.subr.mxu0 0.0
    %5891 = vmatpush1.msra.mxu0 0.0
    %5892 = vmatprep.subr.mxu0 0.0
    %5893 = vmatpush1.msra.mxu0 0.0
    %5894 = vmatprep.subr.mxu0 0.0
    %5895 = vmatpush1.msra.mxu0 0.0
    %5896 = vmatprep.subr.mxu0 0.0
    %5897 = vmatpush1.msra.mxu0 0.0
    %5898 = vmatprep.subr.mxu0 0.0
    %5899 = vmatpush1.msra.mxu0 0.0
    %5900 = vmatprep.subr.mxu0 0.0
    %5901 = vmatpush1.msra.mxu0 0.0
    %5902 = vmatprep.subr.mxu0 0.0
    %5903 = vmatpush1.msra.mxu0 0.0
    %5904 = vmatprep.subr.mxu0 0.0
    %5905 = vmatpush1.msra.mxu0 0.0
    %5906 = vmatprep.subr.mxu0 0.0
    %5907 = vmatpush1.msra.mxu0 0.0
    %5908 = vmatprep.subr.mxu0 0.0
    %5909 = vmatpush1.msra.mxu0 0.0
    %5910 = vmatprep.subr.mxu0 0.0
    %5911 = vmatpush1.msra.mxu0 0.0
    %5912 = vmatprep.subr.mxu0 0.0
    %5913 = vmatpush1.msra.mxu0 0.0
    %5914 = vmatprep.subr.mxu0 0.0
    %5915 = vmatpush1.msra.mxu0 0.0
    %5916 = vmatprep.subr.mxu0 0.0
    %5917 = vmatpush1.msra.mxu0 0.0
    %5918 = vmatprep.subr.mxu0 0.0
    %5919 = vmatpush1.msra.mxu0 0.0
    %5920 = vmatprep.subr.mxu0 0.0
    %5921 = vmatpush1.msra.mxu0 0.0
    %5922 = vmatprep.subr.mxu0 0.0
    %5923 = vmatpush1.msra.mxu0 0.0
    %5924 = vmatprep.subr.mxu0 0.0
    %5925 = vmatpush1.msra.mxu0 0.0
    %5926 = vmatprep.subr.mxu0 0.0
    %5927 = vmatpush1.msra.mxu0 0.0
    %5928 = vmatprep.subr.mxu0 0.0
    %5929 = vmatpush1.msra.mxu0 0.0
    %5930 = vmatprep.mubr.f32.mxu0 0.0
    %5931 = vmatmul.mubr.f32.gmra.mrb[0].mxu0 %v5864
    %v5932 = vpop.f32.mrb[0].mxu0
    %v5933 = vadd.f32 %v363, %v5932
    %v5934 = vpop.f32.mrb[0].mxu0
    %5935 = vdwg.mxu0
    %v5936 = vtanh.pop %v5933
    %v5937 = vmul.f32 %v5847, %v5562
    %v5938 = vfloor.f32 %v5937
    %v5939 = vcvt.f32.s32.to.zero.pseudo %v5938
    %v5940 = vsub.f32 1.0, %v5847
    %v5941 = vmul.f32 %v5940, %v5936
    %v5942 = vmul.f32 %v5941, 8388608.0
    %v5943 = vfloor.f32 %v5942
    %v5944 = vcvt.f32.s32.to.zero.pseudo %v5943
    %v5945 = vadd.s32 %v5939, %v5944
    %5946 = vrot.lane.b32.xlu0 %v5945, 16
    %v5947 = vpop.permute.xlu0 %5946
    %v5948 = vsel %vm453, %v5753, %v5947
    %s5949 = scalar_lea.vmem [#allocation2], 112
    %5950 = vst.msk [vmem:[%s5949] sm:$0xff] %vm54, %v5948
    %v5951 = vcvt.s32.f32 %v5948
    %v5952 = vmul.f32 %v5951, 1.1920929e-07
    %v5953 = vcvt.s32.f32 %v5554
    %v5954 = vmul.f32 %v5953, 1.1920929e-07
    %5956 = vrot.lane.b32.xlu0 %v5954, 32
    %v5957 = vpop.permute.xlu0 %5956
    %v5959 = vsel %vm54, %v5952, %v5957
    %v5960 = vld [vmem:[%s465] sm:$0xff]
    %v5961 = vld [vmem:[%s465 + $0x8] sm:$0xff]
    %v5962 = vld [vmem:[%s465 + $0x10] sm:$0xff]
    %v5963 = vld [vmem:[%s465 + $0x18] sm:$0xff]
    %v5964 = vld [vmem:[%s465 + $0x20] sm:$0xff]
    %v5965 = vld [vmem:[%s465 + $0x28] sm:$0xff]
    %v5967 = vsel %vm66, %v5959, 0
    %5969 = vmatprep.subr.mxu0 0.0
    %5970 = vmatpush1.msra.mxu0 %v5960
    %5971 = vmatprep.subr.mxu0 0.0
    %5972 = vmatpush1.msra.mxu0 %v5961
    %5973 = vmatprep.subr.mxu0 0.0
    %5974 = vmatpush1.msra.mxu0 %v5962
    %5975 = vmatprep.subr.mxu0 0.0
    %5976 = vmatpush1.msra.mxu0 %v5963
    %5977 = vmatprep.subr.mxu0 0.0
    %5978 = vmatpush1.msra.mxu0 %v5964
    %5979 = vmatprep.subr.mxu0 0.0
    %5980 = vmatpush1.msra.mxu0 %v5965
    %5981 = vmatprep.subr.mxu0 0.0
    %5982 = vmatpush1.msra.mxu0 0.0
    %5983 = vmatprep.subr.mxu0 0.0
    %5984 = vmatpush1.msra.mxu0 0.0
    %5985 = vmatprep.subr.mxu0 0.0
    %5986 = vmatpush1.msra.mxu0 0.0
    %5987 = vmatprep.subr.mxu0 0.0
    %5988 = vmatpush1.msra.mxu0 0.0
    %5989 = vmatprep.subr.mxu0 0.0
    %5990 = vmatpush1.msra.mxu0 0.0
    %5991 = vmatprep.subr.mxu0 0.0
    %5992 = vmatpush1.msra.mxu0 0.0
    %5993 = vmatprep.subr.mxu0 0.0
    %5994 = vmatpush1.msra.mxu0 0.0
    %5995 = vmatprep.subr.mxu0 0.0
    %5996 = vmatpush1.msra.mxu0 0.0
    %5997 = vmatprep.subr.mxu0 0.0
    %5998 = vmatpush1.msra.mxu0 0.0
    %5999 = vmatprep.subr.mxu0 0.0
    %6000 = vmatpush1.msra.mxu0 0.0
    %6001 = vmatprep.subr.mxu0 0.0
    %6002 = vmatpush1.msra.mxu0 0.0
    %6003 = vmatprep.subr.mxu0 0.0
    %6004 = vmatpush1.msra.mxu0 0.0
    %6005 = vmatprep.subr.mxu0 0.0
    %6006 = vmatpush1.msra.mxu0 0.0
    %6007 = vmatprep.subr.mxu0 0.0
    %6008 = vmatpush1.msra.mxu0 0.0
    %6009 = vmatprep.subr.mxu0 0.0
    %6010 = vmatpush1.msra.mxu0 0.0
    %6011 = vmatprep.subr.mxu0 0.0
    %6012 = vmatpush1.msra.mxu0 0.0
    %6013 = vmatprep.subr.mxu0 0.0
    %6014 = vmatpush1.msra.mxu0 0.0
    %6015 = vmatprep.subr.mxu0 0.0
    %6016 = vmatpush1.msra.mxu0 0.0
    %6017 = vmatprep.subr.mxu0 0.0
    %6018 = vmatpush1.msra.mxu0 0.0
    %6019 = vmatprep.subr.mxu0 0.0
    %6020 = vmatpush1.msra.mxu0 0.0
    %6021 = vmatprep.subr.mxu0 0.0
    %6022 = vmatpush1.msra.mxu0 0.0
    %6023 = vmatprep.subr.mxu0 0.0
    %6024 = vmatpush1.msra.mxu0 0.0
    %6025 = vmatprep.subr.mxu0 0.0
    %6026 = vmatpush1.msra.mxu0 0.0
    %6027 = vmatprep.subr.mxu0 0.0
    %6028 = vmatpush1.msra.mxu0 0.0
    %6029 = vmatprep.subr.mxu0 0.0
    %6030 = vmatpush1.msra.mxu0 0.0
    %6031 = vmatprep.subr.mxu0 0.0
    %6032 = vmatpush1.msra.mxu0 0.0
    %6033 = vmatprep.mubr.f32.mxu0 0.0
    %6034 = vmatmul.mubr.f32.gmra.mrb[0].mxu0 %v5967
    %v6035 = vpop.f32.mrb[0].mxu0
    %v6036 = vadd.f32 %v475, %v6035
    %v6037 = vpop.f32.mrb[0].mxu0
    %6038 = vdwg.mxu0
    %v6039 = vxor.u32 %v6036, 2147483648
    %v6040 = vmul.f32 %v6039, 1.442695
    %v6041 = vpow.pop %v6040
    %v6042 = vadd.f32 %v6041, 1.0
    %v6043 = vrcp.pop %v6042
    %v6044 = vmul.f32 1.0, %v6043
    %v6045 = vmul.f32 %v6044, 0.875
    %v6046 = vadd.f32 %v6045, 0.125
    %6047 = vrot.lane.b32.xlu0 %v5954, 16
    %v6048 = vpop.permute.xlu0 %6047
    %v6050 = vmul.f32 %v6044, %v6048
    %6052 = vrot.lane.b32.xlu0 %v6050, 16
    %v6053 = vpop.permute.xlu0 %6052
    %v6055 = vsel %vm54, %v5952, %v6053
    %v6056 = vld [vmem:[%s563] sm:$0xff]
    %v6057 = vld [vmem:[%s563 + $0x8] sm:$0xff]
    %v6058 = vld [vmem:[%s563 + $0x10] sm:$0xff]
    %v6059 = vld [vmem:[%s563 + $0x18] sm:$0xff]
    %v6060 = vld [vmem:[%s563 + $0x20] sm:$0xff]
    %v6061 = vld [vmem:[%s563 + $0x28] sm:$0xff]
    %v6063 = vsel %vm66, %v6055, 0
    %6065 = vmatprep.subr.mxu0 0.0
    %6066 = vmatpush1.msra.mxu0 %v6056
    %6067 = vmatprep.subr.mxu0 0.0
    %6068 = vmatpush1.msra.mxu0 %v6057
    %6069 = vmatprep.subr.mxu0 0.0
    %6070 = vmatpush1.msra.mxu0 %v6058
    %6071 = vmatprep.subr.mxu0 0.0
    %6072 = vmatpush1.msra.mxu0 %v6059
    %6073 = vmatprep.subr.mxu0 0.0
    %6074 = vmatpush1.msra.mxu0 %v6060
    %6075 = vmatprep.subr.mxu0 0.0
    %6076 = vmatpush1.msra.mxu0 %v6061
    %6077 = vmatprep.subr.mxu0 0.0
    %6078 = vmatpush1.msra.mxu0 0.0
    %6079 = vmatprep.subr.mxu0 0.0
    %6080 = vmatpush1.msra.mxu0 0.0
    %6081 = vmatprep.subr.mxu0 0.0
    %6082 = vmatpush1.msra.mxu0 0.0
    %6083 = vmatprep.subr.mxu0 0.0
    %6084 = vmatpush1.msra.mxu0 0.0
    %6085 = vmatprep.subr.mxu0 0.0
    %6086 = vmatpush1.msra.mxu0 0.0
    %6087 = vmatprep.subr.mxu0 0.0
    %6088 = vmatpush1.msra.mxu0 0.0
    %6089 = vmatprep.subr.mxu0 0.0
    %6090 = vmatpush1.msra.mxu0 0.0
    %6091 = vmatprep.subr.mxu0 0.0
    %6092 = vmatpush1.msra.mxu0 0.0
    %6093 = vmatprep.subr.mxu0 0.0
    %6094 = vmatpush1.msra.mxu0 0.0
    %6095 = vmatprep.subr.mxu0 0.0
    %6096 = vmatpush1.msra.mxu0 0.0
    %6097 = vmatprep.subr.mxu0 0.0
    %6098 = vmatpush1.msra.mxu0 0.0
    %6099 = vmatprep.subr.mxu0 0.0
    %6100 = vmatpush1.msra.mxu0 0.0
    %6101 = vmatprep.subr.mxu0 0.0
    %6102 = vmatpush1.msra.mxu0 0.0
    %6103 = vmatprep.subr.mxu0 0.0
    %6104 = vmatpush1.msra.mxu0 0.0
    %6105 = vmatprep.subr.mxu0 0.0
    %6106 = vmatpush1.msra.mxu0 0.0
    %6107 = vmatprep.subr.mxu0 0.0
    %6108 = vmatpush1.msra.mxu0 0.0
    %6109 = vmatprep.subr.mxu0 0.0
    %6110 = vmatpush1.msra.mxu0 0.0
    %6111 = vmatprep.subr.mxu0 0.0
    %6112 = vmatpush1.msra.mxu0 0.0
    %6113 = vmatprep.subr.mxu0 0.0
    %6114 = vmatpush1.msra.mxu0 0.0
    %6115 = vmatprep.subr.mxu0 0.0
    %6116 = vmatpush1.msra.mxu0 0.0
    %6117 = vmatprep.subr.mxu0 0.0
    %6118 = vmatpush1.msra.mxu0 0.0
    %6119 = vmatprep.subr.mxu0 0.0
    %6120 = vmatpush1.msra.mxu0 0.0
    %6121 = vmatprep.subr.mxu0 0.0
    %6122 = vmatpush1.msra.mxu0 0.0
    %6123 = vmatprep.subr.mxu0 0.0
    %6124 = vmatpush1.msra.mxu0 0.0
    %6125 = vmatprep.subr.mxu0 0.0
    %6126 = vmatpush1.msra.mxu0 0.0
    %6127 = vmatprep.subr.mxu0 0.0
    %6128 = vmatpush1.msra.mxu0 0.0
    %6129 = vmatprep.mubr.f32.mxu0 0.0
    %6130 = vmatmul.mubr.f32.gmra.mrb[0].mxu0 %v6063
    %v6131 = vpop.f32.mrb[0].mxu0
    %v6132 = vadd.f32 %v573, %v6131
    %v6133 = vpop.f32.mrb[0].mxu0
    %6134 = vdwg.mxu0
    %v6135 = vtanh.pop %v6132
    %v6136 = vmul.f32 %v6046, %v5363
    %v6137 = vfloor.f32 %v6136
    %v6138 = vcvt.f32.s32.to.zero.pseudo %v6137
    %v6139 = vsub.f32 1.0, %v6046
    %v6140 = vmul.f32 %v6139, %v6135
    %v6141 = vmul.f32 %v6140, 8388608.0
    %v6142 = vfloor.f32 %v6141
    %v6143 = vcvt.f32.s32.to.zero.pseudo %v6142
    %v6144 = vadd.s32 %v6138, %v6143
    %v6145 = vcvt.s32.f32 %v6144
    %v6146 = vmul.f32 %v6145, 1.1920929e-07
    %6148 = vrot.lane.b32.xlu0 %v6146, 32
    %v6149 = vpop.permute.xlu0 %6148
    %v6151 = vsel %vm54, %v5952, %v6149
    %v6152 = vld [vmem:[%s664] sm:$0xff]
    %v6153 = vld [vmem:[%s664 + $0x8] sm:$0xff]
    %v6154 = vld [vmem:[%s664 + $0x10] sm:$0xff]
    %v6155 = vld [vmem:[%s664 + $0x18] sm:$0xff]
    %v6156 = vld [vmem:[%s664 + $0x20] sm:$0xff]
    %v6157 = vld [vmem:[%s664 + $0x28] sm:$0xff]
    %v6159 = vsel %vm66, %v6151, 0
    %6161 = vmatprep.subr.mxu0 0.0
    %6162 = vmatpush1.msra.mxu0 %v6152
    %6163 = vmatprep.subr.mxu0 0.0
    %6164 = vmatpush1.msra.mxu0 %v6153
    %6165 = vmatprep.subr.mxu0 0.0
    %6166 = vmatpush1.msra.mxu0 %v6154
    %6167 = vmatprep.subr.mxu0 0.0
    %6168 = vmatpush1.msra.mxu0 %v6155
    %6169 = vmatprep.subr.mxu0 0.0
    %6170 = vmatpush1.msra.mxu0 %v6156
    %6171 = vmatprep.subr.mxu0 0.0
    %6172 = vmatpush1.msra.mxu0 %v6157
    %6173 = vmatprep.subr.mxu0 0.0
    %6174 = vmatpush1.msra.mxu0 0.0
    %6175 = vmatprep.subr.mxu0 0.0
    %6176 = vmatpush1.msra.mxu0 0.0
    %6177 = vmatprep.subr.mxu0 0.0
    %6178 = vmatpush1.msra.mxu0 0.0
    %6179 = vmatprep.subr.mxu0 0.0
    %6180 = vmatpush1.msra.mxu0 0.0
    %6181 = vmatprep.subr.mxu0 0.0
    %6182 = vmatpush1.msra.mxu0 0.0
    %6183 = vmatprep.subr.mxu0 0.0
    %6184 = vmatpush1.msra.mxu0 0.0
    %6185 = vmatprep.subr.mxu0 0.0
    %6186 = vmatpush1.msra.mxu0 0.0
    %6187 = vmatprep.subr.mxu0 0.0
    %6188 = vmatpush1.msra.mxu0 0.0
    %6189 = vmatprep.subr.mxu0 0.0
    %6190 = vmatpush1.msra.mxu0 0.0
    %6191 = vmatprep.subr.mxu0 0.0
    %6192 = vmatpush1.msra.mxu0 0.0
    %6193 = vmatprep.subr.mxu0 0.0
    %6194 = vmatpush1.msra.mxu0 0.0
    %6195 = vmatprep.subr.mxu0 0.0
    %6196 = vmatpush1.msra.mxu0 0.0
    %6197 = vmatprep.subr.mxu0 0.0
    %6198 = vmatpush1.msra.mxu0 0.0
    %6199 = vmatprep.subr.mxu0 0.0
    %6200 = vmatpush1.msra.mxu0 0.0
    %6201 = vmatprep.subr.mxu0 0.0
    %6202 = vmatpush1.msra.mxu0 0.0
    %6203 = vmatprep.subr.mxu0 0.0
    %6204 = vmatpush1.msra.mxu0 0.0
    %6205 = vmatprep.subr.mxu0 0.0
    %6206 = vmatpush1.msra.mxu0 0.0
    %6207 = vmatprep.subr.mxu0 0.0
    %6208 = vmatpush1.msra.mxu0 0.0
    %6209 = vmatprep.subr.mxu0 0.0
    %6210 = vmatpush1.msra.mxu0 0.0
    %6211 = vmatprep.subr.mxu0 0.0
    %6212 = vmatpush1.msra.mxu0 0.0
    %6213 = vmatprep.subr.mxu0 0.0
    %6214 = vmatpush1.msra.mxu0 0.0
    %6215 = vmatprep.subr.mxu0 0.0
    %6216 = vmatpush1.msra.mxu0 0.0
    %6217 = vmatprep.subr.mxu0 0.0
    %6218 = vmatpush1.msra.mxu0 0.0
    %6219 = vmatprep.subr.mxu0 0.0
    %6220 = vmatpush1.msra.mxu0 0.0
    %6221 = vmatprep.subr.mxu0 0.0
    %6222 = vmatpush1.msra.mxu0 0.0
    %6223 = vmatprep.subr.mxu0 0.0
    %6224 = vmatpush1.msra.mxu0 0.0
    %6225 = vmatprep.mubr.f32.mxu0 0.0
    %6226 = vmatmul.mubr.f32.gmra.mrb[0].mxu0 %v6159
    %v6227 = vpop.f32.mrb[0].mxu0
    %v6228 = vadd.f32 %v674, %v6227
    %v6229 = vpop.f32.mrb[0].mxu0
    %6230 = vdwg.mxu0
    %v6231 = vxor.u32 %v6228, 2147483648
    %v6232 = vmul.f32 %v6231, 1.442695
    %v6233 = vpow.pop %v6232
    %v6234 = vadd.f32 %v6233, 1.0
    %v6235 = vrcp.pop %v6234
    %v6236 = vmul.f32 1.0, %v6235
    %v6237 = vmul.f32 %v6236, 0.875
    %v6238 = vadd.f32 %v6237, 0.125
    %6239 = vrot.lane.b32.xlu0 %v6146, 16
    %v6240 = vpop.permute.xlu0 %6239
    %v6242 = vmul.f32 %v6236, %v6240
    %6244 = vrot.lane.b32.xlu0 %v6242, 16
    %v6245 = vpop.permute.xlu0 %6244
    %v6247 = vsel %vm54, %v5952, %v6245
    %v6248 = vld [vmem:[%s765] sm:$0xff]
    %v6249 = vld [vmem:[%s765 + $0x8] sm:$0xff]
    %v6250 = vld [vmem:[%s765 + $0x10] sm:$0xff]
    %v6251 = vld [vmem:[%s765 + $0x18] sm:$0xff]
    %v6252 = vld [vmem:[%s765 + $0x20] sm:$0xff]
    %v6253 = vld [vmem:[%s765 + $0x28] sm:$0xff]
    %v6255 = vsel %vm66, %v6247, 0
    %6257 = vmatprep.subr.mxu0 0.0
    %6258 = vmatpush1.msra.mxu0 %v6248
    %6259 = vmatprep.subr.mxu0 0.0
    %6260 = vmatpush1.msra.mxu0 %v6249
    %6261 = vmatprep.subr.mxu0 0.0
    %6262 = vmatpush1.msra.mxu0 %v6250
    %6263 = vmatprep.subr.mxu0 0.0
    %6264 = vmatpush1.msra.mxu0 %v6251
    %6265 = vmatprep.subr.mxu0 0.0
    %6266 = vmatpush1.msra.mxu0 %v6252
    %6267 = vmatprep.subr.mxu0 0.0
    %6268 = vmatpush1.msra.mxu0 %v6253
    %6269 = vmatprep.subr.mxu0 0.0
    %6270 = vmatpush1.msra.mxu0 0.0
    %6271 = vmatprep.subr.mxu0 0.0
    %6272 = vmatpush1.msra.mxu0 0.0
    %6273 = vmatprep.subr.mxu0 0.0
    %6274 = vmatpush1.msra.mxu0 0.0
    %6275 = vmatprep.subr.mxu0 0.0
    %6276 = vmatpush1.msra.mxu0 0.0
    %6277 = vmatprep.subr.mxu0 0.0
    %6278 = vmatpush1.msra.mxu0 0.0
    %6279 = vmatprep.subr.mxu0 0.0
    %6280 = vmatpush1.msra.mxu0 0.0
    %6281 = vmatprep.subr.mxu0 0.0
    %6282 = vmatpush1.msra.mxu0 0.0
    %6283 = vmatprep.subr.mxu0 0.0
    %6284 = vmatpush1.msra.mxu0 0.0
    %6285 = vmatprep.subr.mxu0 0.0
    %6286 = vmatpush1.msra.mxu0 0.0
    %6287 = vmatprep.subr.mxu0 0.0
    %6288 = vmatpush1.msra.mxu0 0.0
    %6289 = vmatprep.subr.mxu0 0.0
    %6290 = vmatpush1.msra.mxu0 0.0
    %6291 = vmatprep.subr.mxu0 0.0
    %6292 = vmatpush1.msra.mxu0 0.0
    %6293 = vmatprep.subr.mxu0 0.0
    %6294 = vmatpush1.msra.mxu0 0.0
    %6295 = vmatprep.subr.mxu0 0.0
    %6296 = vmatpush1.msra.mxu0 0.0
    %6297 = vmatprep.subr.mxu0 0.0
    %6298 = vmatpush1.msra.mxu0 0.0
    %6299 = vmatprep.subr.mxu0 0.0
    %6300 = vmatpush1.msra.mxu0 0.0
    %6301 = vmatprep.subr.mxu0 0.0
    %6302 = vmatpush1.msra.mxu0 0.0
    %6303 = vmatprep.subr.mxu0 0.0
    %6304 = vmatpush1.msra.mxu0 0.0
    %6305 = vmatprep.subr.mxu0 0.0
    %6306 = vmatpush1.msra.mxu0 0.0
    %6307 = vmatprep.subr.mxu0 0.0
    %6308 = vmatpush1.msra.mxu0 0.0
    %6309 = vmatprep.subr.mxu0 0.0
    %6310 = vmatpush1.msra.mxu0 0.0
    %6311 = vmatprep.subr.mxu0 0.0
    %6312 = vmatpush1.msra.mxu0 0.0
    %6313 = vmatprep.subr.mxu0 0.0
    %6314 = vmatpush1.msra.mxu0 0.0
    %6315 = vmatprep.subr.mxu0 0.0
    %6316 = vmatpush1.msra.mxu0 0.0
    %6317 = vmatprep.subr.mxu0 0.0
    %6318 = vmatpush1.msra.mxu0 0.0
    %6319 = vmatprep.subr.mxu0 0.0
    %6320 = vmatpush1.msra.mxu0 0.0
    %6321 = vmatprep.mubr.f32.mxu0 0.0
    %6322 = vmatmul.mubr.f32.gmra.mrb[0].mxu0 %v6255
    %v6323 = vpop.f32.mrb[0].mxu0
    %v6324 = vadd.f32 %v775, %v6323
    %v6325 = vpop.f32.mrb[0].mxu0
    %6326 = vdwg.mxu0
    %v6327 = vtanh.pop %v6324
    %v6328 = vmul.f32 %v6238, %v5953
    %v6329 = vfloor.f32 %v6328
    %v6330 = vcvt.f32.s32.to.zero.pseudo %v6329
    %v6331 = vsub.f32 1.0, %v6238
    %v6332 = vmul.f32 %v6331, %v6327
    %v6333 = vmul.f32 %v6332, 8388608.0
    %v6334 = vfloor.f32 %v6333
    %v6335 = vcvt.f32.s32.to.zero.pseudo %v6334
    %v6336 = vadd.s32 %v6330, %v6335
    %6337 = vrot.lane.b32.xlu0 %v6336, 16
    %v6338 = vpop.permute.xlu0 %6337
    %v6339 = vsel %vm453, %v6144, %v6338
    %s6340 = scalar_lea.vmem [#allocation2], 120
    %6341 = vst.msk [vmem:[%s6340] sm:$0xff] %vm54, %v6339
    // Predicated region
    $region42: #{tpu_custom_call.1} parent=1 // pred_check
      _
    $region43: #{tpu_custom_call.1} parent=1 // pred_check_branch
      %6343 = sbr.rel (0) target = $region45
    $region44: #{tpu_custom_call.1} parent=1 // pred_region
      %s6345 = ssub.s32 2048, 2048
      %6346 = vsyncadd [#allocation3], %s6345
      %s6347 = sshll.u32 [#allocation2], 4
      %s6348 = int_to_ptr.vmem [resolvable:$true] %s6347
      %6353 = dma.vmem_to_hbm [thread:$0]  %s6348, 2048, %s10, [#allocation3], 128, 128, 8
    $region45: #{tpu_custom_call.1} parent=1 // pred_fallthru
      _
    // Predicated region
    $region46: #{tpu_custom_call.1} parent=1 // pred_check
      _
    $region47: #{tpu_custom_call.1} parent=1 // pred_check_branch
      %6355 = sbr.rel (0) target = $region49
    $region48: #{tpu_custom_call.1} parent=1 // pred_region
      %6356 = dma.done [#allocation3], 2048
    $region49: #{tpu_custom_call.1} parent=1 // pred_fallthru
      _
    %6357 = vsyncpa [#allocation3], 1

</llo_original>
